<compile_context>
chip_gen: v7x
topology: tpu7x:2x2x1
jax: 0.10.0
libtpu: 0.0.40
codegen_flags: <defaults>
</compile_context>

<pallas_src>
import functools

import jax
import jax.numpy as jnp
from jax.experimental import pallas as pl
from jax.experimental.pallas import tpu as pltpu


def _round_up(x, m):
    return ((x + m - 1) // m) * m


# ----------------------------------------------------------------------------
# Pallas kernels
# ----------------------------------------------------------------------------
def _atrous_tap_kernel(x_ref, w_ref, b_ref, o_ref, acc_ref, *, d, w_out):
    """One grid step = one ky row of the 3x3 dilated kernel.

    x_ref : (TR, W + 2d, Cin)  bf16   halo rows for this row-tile / ky slab
    w_ref : (3, Cin, TN)       bf16   the 3 kx taps of row ky
    b_ref : (1, TN)            f32
    o_ref : (TR * W, TN)       out dtype (resident across the ky axis)
    acc_ref: (TR * W, TN)      f32 scratch accumulator
    """
    ky = pl.program_id(2)

    @pl.when(ky == 0)
    def _():
        acc_ref[...] = jnp.zeros_like(acc_ref)

    tr = x_ref.shape[0]
    cin = x_ref.shape[2]
    for kx in range(3):  # kx taps resolved from the same VMEM block (no extra HBM traffic)
        xs = x_ref[:, kx * d: kx * d + w_out, :].reshape(tr * w_out, cin)
        acc_ref[...] += jnp.dot(xs, w_ref[kx],
                                preferred_element_type=jnp.float32)

    @pl.when(ky == pl.num_programs(2) - 1)
    def _():
        o_ref[...] = (acc_ref[...] + b_ref[...]).astype(o_ref.dtype)


def _pointwise_kernel(x_ref, w_ref, b_ref, o_ref):
    """1x1 conv tile: (TM, Cin) @ (Cin, TN) + bias, f32 accumulation on the MXU."""
    acc = jnp.dot(x_ref[...], w_ref[...], preferred_element_type=jnp.float32)
    o_ref[...] = (acc + b_ref[...]).astype(o_ref.dtype)


# ----------------------------------------------------------------------------
# Layer wrappers (padding / slab construction / reshapes stay in plain JAX glue)
# ----------------------------------------------------------------------------
def atrous_conv3x3(x, w, b, rate, out_dtype=jnp.bfloat16):
    """Dilated 3x3 'same' conv + bias.  x: (N,H,W,Cin), w: (3,3,Cin,Cout), b: (Cout,)."""
    n, h, wdim, cin = x.shape
    cout = w.shape[-1]
    d = int(rate)
    TN = 128

    cout_p = _round_up(cout, TN)
    mr = n * h                                   # number of output rows
    # Row tile: aim for ~512 output pixels per MXU tile, multiple of 8 rows.
    TR = _round_up(max(1, 512 // max(wdim, 1)), 8)
    mr_p = _round_up(mr, TR)
    wp = wdim + 2 * d
    tmw = TR * wdim                              # output rows per block (multiple of 8)

    # TODO(synk): replace the 3 per-ky row slabs with halo-tile DMA from a single padded
    # input (memory_space=pl.ANY + make_async_copy) to remove the remaining ~3x read amp.
    xp = jnp.pad(x, ((0, 0), (d, d), (d, d), (0, 0))).astype(jnp.bfloat16)
    slabs = jnp.stack(
        [xp[:, ky * d: ky * d + h, :, :].reshape(mr, wp, cin) for ky in range(3)],
        axis=0,
    )                                            # (3, Mr, W+2d, Cin)
    if mr_p != mr:
        slabs = jnp.pad(slabs, ((0, 0), (0, mr_p - mr), (0, 0), (0, 0)))

    wk = w.astype(jnp.bfloat16)
    if cout_p != cout:
        wk = jnp.pad(wk, ((0, 0), (0, 0), (0, 0), (0, cout_p - cout)))
    bias = b.astype(jnp.float32).reshape(1, cout)
    if cout_p != cout:
        bias = jnp.pad(bias, ((0, 0), (0, cout_p - cout)))

    kernel = functools.partial(_atrous_tap_kernel, d=d, w_out=wdim)

    out = pl.pallas_call(
        kernel,
        out_shape=jax.ShapeDtypeStruct((mr_p * wdim, cout_p), out_dtype),
        grid_spec=pltpu.PrefetchScalarGridSpec(
            num_scalar_prefetch=0,
            grid=(mr_p // TR, cout_p // TN, 3),   # reduction (ky) axis last
            in_specs=[
                pl.BlockSpec((None, TR, wp, cin), lambda r, c, ky: (ky, r, 0, 0)),
                pl.BlockSpec((None, 3, cin, TN), lambda r, c, ky: (ky, 0, 0, c)),
                pl.BlockSpec((1, TN), lambda r, c, ky: (0, c)),
            ],
            out_specs=pl.BlockSpec((tmw, TN), lambda r, c, ky: (r, c)),
            scratch_shapes=[pltpu.VMEM((tmw, TN), jnp.float32)],
        ),
        compiler_params=pltpu.CompilerParams(
            dimension_semantics=("parallel", "parallel", "arbitrary"),
            vmem_limit_bytes=48 * 1024 * 1024,    # fits v7x's 64 MiB physical VMEM
        ),
    )(slabs, wk, bias)

    out = out[: mr * wdim, :cout]
    return out.reshape(n, h, wdim, cout)


def conv1x1(x, w, b, out_dtype=jnp.bfloat16):
    """1x1 conv + bias.  x: (N,H,W,Cin), w: (Cin,Cout), b: (Cout,)."""
    n, h, wdim, cin = x.shape
    cout = w.shape[-1]
    TN = 128
    m = n * h * wdim
    TM = min(512, _round_up(m, 8))
    m_p = _round_up(m, TM)
    cin_p = _round_up(cin, 128)
    cout_p = _round_up(cout, TN)

    xf = x.reshape(m, cin).astype(jnp.bfloat16)
    if (m_p, cin_p) != (m, cin):
        xf = jnp.pad(xf, ((0, m_p - m), (0, cin_p - cin)))
    wf = w.astype(jnp.bfloat16)
    if (cin_p, cout_p) != (cin, cout):
        wf = jnp.pad(wf, ((0, cin_p - cin), (0, cout_p - cout)))
    bf = b.astype(jnp.float32).reshape(1, cout)
    if cout_p != cout:
        bf = jnp.pad(bf, ((0, 0), (0, cout_p - cout)))

    out = pl.pallas_call(
        _pointwise_kernel,
        out_shape=jax.ShapeDtypeStruct((m_p, cout_p), out_dtype),
        grid_spec=pltpu.PrefetchScalarGridSpec(
            num_scalar_prefetch=0,
            grid=(m_p // TM, cout_p // TN),
            in_specs=[
                pl.BlockSpec((TM, cin_p), lambda i, j: (i, 0)),
                pl.BlockSpec((cin_p, TN), lambda i, j: (0, j)),
                pl.BlockSpec((1, TN), lambda i, j: (0, j)),
            ],
            out_specs=pl.BlockSpec((TM, TN), lambda i, j: (i, j)),
        ),
        compiler_params=pltpu.CompilerParams(
            dimension_semantics=("parallel", "parallel"),
            vmem_limit_bytes=48 * 1024 * 1024,
        ),
    )(xf, wf, bf)

    return out[:m, :cout].reshape(n, h, wdim, cout)


# ----------------------------------------------------------------------------
# Astrous module: params + forward
# ----------------------------------------------------------------------------
def init_params(key, planes, n_classes, cin=512):
    k = jax.random.split(key, 6)
    w_at = jax.random.normal(k[0], (3, 3, cin, planes), jnp.float32) * (2.0 / (9.0 * cin)) ** 0.5
    b_at = 0.01 * jax.random.normal(k[1], (planes,), jnp.float32)
    w_fc1 = jax.random.normal(k[2], (planes, planes), jnp.float32) * (1.0 / planes) ** 0.5
    b_fc1 = 0.01 * jax.random.normal(k[3], (planes,), jnp.float32)
    w_fc2 = jax.random.normal(k[4], (planes, n_classes), jnp.float32) * (1.0 / planes) ** 0.5
    b_fc2 = 0.01 * jax.random.normal(k[5], (n_classes,), jnp.float32)
    return dict(w_at=w_at, b_at=b_at, w_fc1=w_fc1, b_fc1=b_fc1, w_fc2=w_fc2, b_fc2=b_fc2)


@functools.partial(jax.jit, static_argnames=("rate",))
def astrous_forward(x_nchw, params, rate):
    """x_nchw: (N, 512, H, W) f32 -> (N, n_classes, H, W) f32."""
    x = jnp.transpose(x_nchw, (0, 2, 3, 1))                         # NCHW -> NHWC
    x = atrous_conv3x3(x, params["w_at"], params["b_at"], rate,
                       out_dtype=jnp.bfloat16)
    x = conv1x1(x, params["w_fc1"], params["b_fc1"], out_dtype=jnp.bfloat16)
    x = conv1x1(x, params["w_fc2"], params["b_fc2"], out_dtype=jnp.float32)
    return jnp.transpose(x, (0, 3, 1, 2))                           # NHWC -> NCHW


def _reference_forward(x_nchw, params, rate):
    """Pure-JAX reference (f32) of the same forward pass."""
    dn = ("NCHW", "HWIO", "NCHW")
    y = jax.lax.conv_general_dilated(
        x_nchw, params["w_at"], window_strides=(1, 1),
        padding=((rate, rate), (rate, rate)),
        rhs_dilation=(rate, rate), dimension_numbers=dn)
    y = y + params["b_at"][None, :, None, None]
    y = jnp.einsum("nchw,cd->ndhw", y, params["w_fc1"]) + params["b_fc1"][None, :, None, None]
    y = jnp.einsum("nchw,cd->ndhw", y, params["w_fc2"]) + params["b_fc2"][None, :, None, None]
    return y


# ----------------------------------------------------------------------------
# Demo
# ----------------------------------------------------------------------------
if __name__ == "__main__":
    key = jax.random.PRNGKey(0)
    k_x, k_p = jax.random.split(key)

    # Small shapes consistent with the module: Conv2d(512, planes, ...) forces Cin=512.
    N, CIN, H, W = 2, 512, 16, 16
    PLANES, NCLASS, RATE = 256, 21, 6

    x = jax.random.normal(k_x, (N, CIN, H, W), jnp.float32)
    params = init_params(k_p, PLANES, NCLASS, CIN)

    out = astrous_forward(x, params, rate=RATE)
    out = jax.block_until_ready(out)

    assert out.shape == (N, NCLASS, H, W), out.shape
    assert bool(jnp.all(jnp.isfinite(out))), "non-finite output"

    # Loose-tolerance numerical check vs a pure-JAX reference (bf16 MXU path vs f32).
    ref = _reference_forward(x, params, RATE)
    err = float(jnp.max(jnp.abs(out - ref)))
    scale = float(jnp.max(jnp.abs(ref))) + 1e-6
    assert err <= 0.05 * scale + 0.05, (err, scale)

    print("KERNEL_OK")
</pallas_src>

<mosaic_0001>
module attributes {stable_mosaic.version = 11 : i64} {
  func.func @_atrous_tap_kernel(%arg0: i32, %arg1: i32, %arg2: i32, %arg3: memref<1x32x28x512xbf16, #tpu.memory_space<vmem>>, %arg4: memref<1x3x512x128xbf16, #tpu.memory_space<vmem>>, %arg5: memref<1x128xf32, #tpu.memory_space<vmem>>, %arg6: memref<512x128xbf16, #tpu.memory_space<vmem>>, %arg7: memref<512x128xf32, #tpu.memory_space<vmem>>) attributes {dimension_semantics = [#tpu.dimension_semantics<parallel>, #tpu.dimension_semantics<parallel>, #tpu.dimension_semantics<arbitrary>], iteration_bounds = array<i64: 1, 2, 3>, scalar_prefetch = 0 : i64, scratch_operands = 1 : i64, tpu.core_type = #tpu.core_type<tc>, window_params = [{transform_indices = @transform_0, window_bounds = array<i64: 1, 32, 28, 512>}, {transform_indices = @transform_1, window_bounds = array<i64: 1, 3, 512, 128>}, {transform_indices = @transform_2, window_bounds = array<i64: 1, 128>}, {transform_indices = @transform_3, window_bounds = array<i64: 512, 128>}]} {
    %c0_i32 = arith.constant 0 : i32
    %0 = arith.cmpi eq, %arg2, %c0_i32 : i32
    %1 = arith.extui %0 : i1 to i32
    %c0_i32_0 = arith.constant 0 : i32
    %2 = arith.cmpi ne, %1, %c0_i32_0 : i32
    scf.if %2 {
      %cst_35 = arith.constant 0.000000e+00 : f32
      %33 = vector.broadcast %cst_35 : f32 to vector<512x128xf32>
      %c0_36 = arith.constant 0 : index
      %c0_37 = arith.constant 0 : index
      %34 = vector.load %arg7[%c0_36, %c0_37] : memref<512x128xf32, #tpu.memory_space<vmem>>, vector<512x128xf32>
      tpu.vector_store %arg7[%c0_36, %c0_37], %33 {strides = array<i32>} : memref<512x128xf32, #tpu.memory_space<vmem>>, vector<512x128xf32>,
    } else {
    }
    %c0 = arith.constant 0 : index
    %c0_1 = arith.constant 0 : index
    %c0_2 = arith.constant 0 : index
    %c0_3 = arith.constant 0 : index
    %3 = vector.load %arg3[%c0, %c0_1, %c0_2, %c0_3] : memref<1x32x28x512xbf16, #tpu.memory_space<vmem>>, vector<1x32x16x512xbf16>
    %4 = vector.shape_cast %3 : vector<1x32x16x512xbf16> to vector<32x16x512xbf16>
    %5 = vector.shape_cast %4 : vector<32x16x512xbf16> to vector<512x512xbf16>
    %c0_4 = arith.constant 0 : index
    %c0_5 = arith.constant 0 : index
    %6 = vector.load %arg7[%c0_4, %c0_5] : memref<512x128xf32, #tpu.memory_space<vmem>>, vector<512x128xf32>
    %c0_6 = arith.constant 0 : index
    %c0_7 = arith.constant 0 : index
    %c0_8 = arith.constant 0 : index
    %c0_9 = arith.constant 0 : index
    %7 = vector.load %arg4[%c0_6, %c0_7, %c0_8, %c0_9] : memref<1x3x512x128xbf16, #tpu.memory_space<vmem>>, vector<1x1x512x128xbf16>
    %8 = vector.shape_cast %7 : vector<1x1x512x128xbf16> to vector<512x128xbf16>
    %cst = arith.constant dense<0.000000e+00> : vector<512x128xf32>
    %9 = tpu.matmul %5, %8, %cst {dimension_numbers = #tpu.dot_dimension_numbers<[1], [0], [0], [1], [0, 0, 1, 1], [], []>} : vector<512x512xbf16>, vector<512x128xbf16>, vector<512x128xf32> -> vector<512x128xf32>
    %10 = arith.addf %6, %9 : vector<512x128xf32>
    %c0_10 = arith.constant 0 : index
    %c0_11 = arith.constant 0 : index
    %11 = vector.load %arg7[%c0_10, %c0_11] : memref<512x128xf32, #tpu.memory_space<vmem>>, vector<512x128xf32>
    tpu.vector_store %arg7[%c0_10, %c0_11], %10 {strides = array<i32>} : memref<512x128xf32, #tpu.memory_space<vmem>>, vector<512x128xf32>,
    %c0_12 = arith.constant 0 : index
    %c0_13 = arith.constant 0 : index
    %c6 = arith.constant 6 : index
    %c0_14 = arith.constant 0 : index
    %12 = vector.load %arg3[%c0_12, %c0_13, %c6, %c0_14] : memref<1x32x28x512xbf16, #tpu.memory_space<vmem>>, vector<1x32x16x512xbf16>
    %13 = vector.shape_cast %12 : vector<1x32x16x512xbf16> to vector<32x16x512xbf16>
    %14 = vector.shape_cast %13 : vector<32x16x512xbf16> to vector<512x512xbf16>
    %c0_15 = arith.constant 0 : index
    %c0_16 = arith.constant 0 : index
    %15 = vector.load %arg7[%c0_15, %c0_16] : memref<512x128xf32, #tpu.memory_space<vmem>>, vector<512x128xf32>
    %c0_17 = arith.constant 0 : index
    %c1 = arith.constant 1 : index
    %c0_18 = arith.constant 0 : index
    %c0_19 = arith.constant 0 : index
    %16 = vector.load %arg4[%c0_17, %c1, %c0_18, %c0_19] : memref<1x3x512x128xbf16, #tpu.memory_space<vmem>>, vector<1x1x512x128xbf16>
    %17 = vector.shape_cast %16 : vector<1x1x512x128xbf16> to vector<512x128xbf16>
    %cst_20 = arith.constant dense<0.000000e+00> : vector<512x128xf32>
    %18 = tpu.matmul %14, %17, %cst_20 {dimension_numbers = #tpu.dot_dimension_numbers<[1], [0], [0], [1], [0, 0, 1, 1], [], []>} : vector<512x512xbf16>, vector<512x128xbf16>, vector<512x128xf32> -> vector<512x128xf32>
    %19 = arith.addf %15, %18 : vector<512x128xf32>
    %c0_21 = arith.constant 0 : index
    %c0_22 = arith.constant 0 : index
    %20 = vector.load %arg7[%c0_21, %c0_22] : memref<512x128xf32, #tpu.memory_space<vmem>>, vector<512x128xf32>
    tpu.vector_store %arg7[%c0_21, %c0_22], %19 {strides = array<i32>} : memref<512x128xf32, #tpu.memory_space<vmem>>, vector<512x128xf32>,
    %c0_23 = arith.constant 0 : index
    %c0_24 = arith.constant 0 : index
    %c12 = arith.constant 12 : index
    %c0_25 = arith.constant 0 : index
    %21 = vector.load %arg3[%c0_23, %c0_24, %c12, %c0_25] : memref<1x32x28x512xbf16, #tpu.memory_space<vmem>>, vector<1x32x16x512xbf16>
    %22 = vector.shape_cast %21 : vector<1x32x16x512xbf16> to vector<32x16x512xbf16>
    %23 = vector.shape_cast %22 : vector<32x16x512xbf16> to vector<512x512xbf16>
    %c0_26 = arith.constant 0 : index
    %c0_27 = arith.constant 0 : index
    %24 = vector.load %arg7[%c0_26, %c0_27] : memref<512x128xf32, #tpu.memory_space<vmem>>, vector<512x128xf32>
    %c0_28 = arith.constant 0 : index
    %c2 = arith.constant 2 : index
    %c0_29 = arith.constant 0 : index
    %c0_30 = arith.constant 0 : index
    %25 = vector.load %arg4[%c0_28, %c2, %c0_29, %c0_30] : memref<1x3x512x128xbf16, #tpu.memory_space<vmem>>, vector<1x1x512x128xbf16>
    %26 = vector.shape_cast %25 : vector<1x1x512x128xbf16> to vector<512x128xbf16>
    %cst_31 = arith.constant dense<0.000000e+00> : vector<512x128xf32>
    %27 = tpu.matmul %23, %26, %cst_31 {dimension_numbers = #tpu.dot_dimension_numbers<[1], [0], [0], [1], [0, 0, 1, 1], [], []>} : vector<512x512xbf16>, vector<512x128xbf16>, vector<512x128xf32> -> vector<512x128xf32>
    %28 = arith.addf %24, %27 : vector<512x128xf32>
    %c0_32 = arith.constant 0 : index
    %c0_33 = arith.constant 0 : index
    %29 = vector.load %arg7[%c0_32, %c0_33] : memref<512x128xf32, #tpu.memory_space<vmem>>, vector<512x128xf32>
    tpu.vector_store %arg7[%c0_32, %c0_33], %28 {strides = array<i32>} : memref<512x128xf32, #tpu.memory_space<vmem>>, vector<512x128xf32>,
    %c2_i32 = arith.constant 2 : i32
    %30 = arith.cmpi eq, %arg2, %c2_i32 : i32
    %31 = arith.extui %30 : i1 to i32
    %c0_i32_34 = arith.constant 0 : i32
    %32 = arith.cmpi ne, %31, %c0_i32_34 : i32
    scf.if %32 {
      %c0_35 = arith.constant 0 : index
      %c0_36 = arith.constant 0 : index
      %33 = vector.load %arg7[%c0_35, %c0_36] : memref<512x128xf32, #tpu.memory_space<vmem>>, vector<512x128xf32>
      %c0_37 = arith.constant 0 : index
      %c0_38 = arith.constant 0 : index
      %34 = vector.load %arg5[%c0_37, %c0_38] : memref<1x128xf32, #tpu.memory_space<vmem>>, vector<1x128xf32>
      %35 = vector.broadcast %34 : vector<1x128xf32> to vector<512x128xf32>
      %36 = arith.addf %33, %35 : vector<512x128xf32>
      %37 = arith.truncf %36 : vector<512x128xf32> to vector<512x128xbf16>
      %c0_39 = arith.constant 0 : index
      %c0_40 = arith.constant 0 : index
      %38 = vector.load %arg6[%c0_39, %c0_40] : memref<512x128xbf16, #tpu.memory_space<vmem>>, vector<512x128xbf16>
      tpu.vector_store %arg6[%c0_39, %c0_40], %37 {strides = array<i32>} : memref<512x128xbf16, #tpu.memory_space<vmem>>, vector<512x128xbf16>,
    } else {
    }
    return
  }
  func.func @transform_0(%arg0: i32, %arg1: i32, %arg2: i32) -> (i32, i32, i32, i32) {
    %c0_i32 = arith.constant 0 : i32
    %c0_i32_0 = arith.constant 0 : i32
    %c0_i32_1 = arith.constant 0 : i32
    return %arg2, %arg0, %c0_i32, %c0_i32_0 : i32, i32, i32, i32
  }
  func.func @transform_1(%arg0: i32, %arg1: i32, %arg2: i32) -> (i32, i32, i32, i32) {
    %c0_i32 = arith.constant 0 : i32
    %c0_i32_0 = arith.constant 0 : i32
    %c0_i32_1 = arith.constant 0 : i32
    return %arg2, %c0_i32, %c0_i32_0, %arg1 : i32, i32, i32, i32
  }
  func.func @transform_2(%arg0: i32, %arg1: i32, %arg2: i32) -> (i32, i32) {
    %c0_i32 = arith.constant 0 : i32
    %c0_i32_0 = arith.constant 0 : i32
    return %c0_i32, %arg1 : i32, i32
  }
  func.func @transform_3(%arg0: i32, %arg1: i32, %arg2: i32) -> (i32, i32) {
    %c0_i32 = arith.constant 0 : i32
    return %arg0, %arg1 : i32, i32
  }
}

module attributes {stable_mosaic.version = 11 : i64} {
  func.func @_pointwise_kernel(%arg0: i32, %arg1: i32, %arg2: memref<512x256xbf16, #tpu.memory_space<vmem>>, %arg3: memref<256x128xbf16, #tpu.memory_space<vmem>>, %arg4: memref<1x128xf32, #tpu.memory_space<vmem>>, %arg5: memref<512x128xbf16, #tpu.memory_space<vmem>>) attributes {dimension_semantics = [#tpu.dimension_semantics<parallel>, #tpu.dimension_semantics<parallel>], iteration_bounds = array<i64: 1, 2>, scalar_prefetch = 0 : i64, scratch_operands = 0 : i64, tpu.core_type = #tpu.core_type<tc>, window_params = [{transform_indices = @transform_0, window_bounds = array<i64: 512, 256>}, {transform_indices = @transform_1, window_bounds = array<i64: 256, 128>}, {transform_indices = @transform_2, window_bounds = array<i64: 1, 128>}, {transform_indices = @transform_3, window_bounds = array<i64: 512, 128>}]} {
    %c0 = arith.constant 0 : index
    %c0_0 = arith.constant 0 : index
    %0 = vector.load %arg2[%c0, %c0_0] : memref<512x256xbf16, #tpu.memory_space<vmem>>, vector<512x256xbf16>
    %c0_1 = arith.constant 0 : index
    %c0_2 = arith.constant 0 : index
    %1 = vector.load %arg3[%c0_1, %c0_2] : memref<256x128xbf16, #tpu.memory_space<vmem>>, vector<256x128xbf16>
    %cst = arith.constant dense<0.000000e+00> : vector<512x128xf32>
    %2 = tpu.matmul %0, %1, %cst {dimension_numbers = #tpu.dot_dimension_numbers<[1], [0], [0], [1], [0, 0, 1, 1], [], []>} : vector<512x256xbf16>, vector<256x128xbf16>, vector<512x128xf32> -> vector<512x128xf32>
    %c0_3 = arith.constant 0 : index
    %c0_4 = arith.constant 0 : index
    %3 = vector.load %arg4[%c0_3, %c0_4] : memref<1x128xf32, #tpu.memory_space<vmem>>, vector<1x128xf32>
    %4 = vector.broadcast %3 : vector<1x128xf32> to vector<512x128xf32>
    %5 = arith.addf %2, %4 : vector<512x128xf32>
    %6 = arith.truncf %5 : vector<512x128xf32> to vector<512x128xbf16>
    %c0_5 = arith.constant 0 : index
    %c0_6 = arith.constant 0 : index
    %7 = vector.load %arg5[%c0_5, %c0_6] : memref<512x128xbf16, #tpu.memory_space<vmem>>, vector<512x128xbf16>
    tpu.vector_store %arg5[%c0_5, %c0_6], %6 {strides = array<i32>} : memref<512x128xbf16, #tpu.memory_space<vmem>>, vector<512x128xbf16>,
    return
  }
  func.func @transform_0(%arg0: i32, %arg1: i32) -> (i32, i32) {
    %c0_i32 = arith.constant 0 : i32
    %c0_i32_0 = arith.constant 0 : i32
    return %arg0, %c0_i32 : i32, i32
  }
  func.func @transform_1(%arg0: i32, %arg1: i32) -> (i32, i32) {
    %c0_i32 = arith.constant 0 : i32
    %c0_i32_0 = arith.constant 0 : i32
    return %c0_i32, %arg1 : i32, i32
  }
  func.func @transform_2(%arg0: i32, %arg1: i32) -> (i32, i32) {
    %c0_i32 = arith.constant 0 : i32
    %c0_i32_0 = arith.constant 0 : i32
    return %c0_i32, %arg1 : i32, i32
  }
  func.func @transform_3(%arg0: i32, %arg1: i32) -> (i32, i32) {
    %c0_i32 = arith.constant 0 : i32
    return %arg0, %arg1 : i32, i32
  }
}

module attributes {stable_mosaic.version = 11 : i64} {
  func.func @_pointwise_kernel(%arg0: i32, %arg1: i32, %arg2: memref<512x256xbf16, #tpu.memory_space<vmem>>, %arg3: memref<256x128xbf16, #tpu.memory_space<vmem>>, %arg4: memref<1x128xf32, #tpu.memory_space<vmem>>, %arg5: memref<512x128xf32, #tpu.memory_space<vmem>>) attributes {dimension_semantics = [#tpu.dimension_semantics<parallel>, #tpu.dimension_semantics<parallel>], iteration_bounds = array<i64: 1, 1>, scalar_prefetch = 0 : i64, scratch_operands = 0 : i64, tpu.core_type = #tpu.core_type<tc>, window_params = [{transform_indices = @transform_0, window_bounds = array<i64: 512, 256>}, {transform_indices = @transform_1, window_bounds = array<i64: 256, 128>}, {transform_indices = @transform_2, window_bounds = array<i64: 1, 128>}, {transform_indices = @transform_3, window_bounds = array<i64: 512, 128>}]} {
    %c0 = arith.constant 0 : index
    %c0_0 = arith.constant 0 : index
    %0 = vector.load %arg2[%c0, %c0_0] : memref<512x256xbf16, #tpu.memory_space<vmem>>, vector<512x256xbf16>
    %c0_1 = arith.constant 0 : index
    %c0_2 = arith.constant 0 : index
    %1 = vector.load %arg3[%c0_1, %c0_2] : memref<256x128xbf16, #tpu.memory_space<vmem>>, vector<256x128xbf16>
    %cst = arith.constant dense<0.000000e+00> : vector<512x128xf32>
    %2 = tpu.matmul %0, %1, %cst {dimension_numbers = #tpu.dot_dimension_numbers<[1], [0], [0], [1], [0, 0, 1, 1], [], []>} : vector<512x256xbf16>, vector<256x128xbf16>, vector<512x128xf32> -> vector<512x128xf32>
    %c0_3 = arith.constant 0 : index
    %c0_4 = arith.constant 0 : index
    %3 = vector.load %arg4[%c0_3, %c0_4] : memref<1x128xf32, #tpu.memory_space<vmem>>, vector<1x128xf32>
    %4 = vector.broadcast %3 : vector<1x128xf32> to vector<512x128xf32>
    %5 = arith.addf %2, %4 : vector<512x128xf32>
    %c0_5 = arith.constant 0 : index
    %c0_6 = arith.constant 0 : index
    %6 = vector.load %arg5[%c0_5, %c0_6] : memref<512x128xf32, #tpu.memory_space<vmem>>, vector<512x128xf32>
    tpu.vector_store %arg5[%c0_5, %c0_6], %5 {strides = array<i32>} : memref<512x128xf32, #tpu.memory_space<vmem>>, vector<512x128xf32>,
    return
  }
  func.func @transform_0(%arg0: i32, %arg1: i32) -> (i32, i32) {
    %c0_i32 = arith.constant 0 : i32
    %c0_i32_0 = arith.constant 0 : i32
    return %arg0, %c0_i32 : i32, i32
  }
  func.func @transform_1(%arg0: i32, %arg1: i32) -> (i32, i32) {
    %c0_i32 = arith.constant 0 : i32
    %c0_i32_0 = arith.constant 0 : i32
    return %c0_i32, %arg1 : i32, i32
  }
  func.func @transform_2(%arg0: i32, %arg1: i32) -> (i32, i32) {
    %c0_i32 = arith.constant 0 : i32
    %c0_i32_0 = arith.constant 0 : i32
    return %c0_i32, %arg1 : i32, i32
  }
  func.func @transform_3(%arg0: i32, %arg1: i32) -> (i32, i32) {
    %c0_i32 = arith.constant 0 : i32
    return %arg0, %arg1 : i32, i32
  }
}

</mosaic_0001>

<llo_original>
// kernel: astrous_forward.4
$region0: #{astrous_forward.4}
  #allocation0 [shape = 'u32[]', space=smem, size = 0x4, offset = 0x4, fixed_abs, tag = 'smem constant byte address 0x4 - core index']
  #allocation1 [shape = 'u32[144,128]{1,0:T(1,128)}', space=vmem, size = 0x12000, scoped, tag = 'internal scratch']
  %s0 = inlined_call_operand.vmem [shape: bf16[512,256], index: 0, kind: input, shape index: {}]
  %s1 = inlined_call_operand.vmem [shape: bf16[256,256], index: 1, kind: input, shape index: {}]
  %s2 = inlined_call_operand.vmem [shape: f32[1,256], index: 2, kind: input, shape index: {}]
  %s3 = inlined_call_operand.vmem [shape: bf16[512,256], index: 3, kind: output, shape index: {}]
  %s4 = sld [smem:[#allocation0]]
  $region123: #{astrous_forward.4} parent=0
    _
  %s6 = ssub.s32 1, %s4
  %s7 = scalar_select 0, %s6, %s4
  $region1: #{astrous_forward.4} parent=0
    #allocation2 [shape = 'u8[131072]{0}', space=vmem, size = 0x20000, scoped, tag = 'input window, operand 1']
    #allocation3 [shape = 'u8[262144]{0}', space=vmem, size = 0x40000, scoped, tag = 'output window, operand 0']
    loop: start=0, step=1, limit=4
    $region2: #{astrous_forward.4} parent=1 // loop_pre_header
      _
    $region3: #{astrous_forward.4} parent=1 // loop_header
      %s9 = sphi 0, %s13
      %p10 = scmp.ge.s32.totalorder %s9, 4
      %s16 = sphi 0, %s28
      %s17 = sphi 0, %s24
      %s18 = sphi 0, %s16
      %s19 = sphi 0, %s17
      %s20 = sphi 0, %s18
      %s21 = sphi 0, %s19
      %s31 = sphi 0, %s33
      %s34 = sphi 0, %s31
      %s35 = sphi 0, %s34
      %s51 = sphi 0, %s35
      %s57 = sphi 0, %s59
      %s60 = sphi 0, %s57
      %s61 = sphi 0, %s60
      %s77 = sphi 0, %s61
      %s83 = sphi 0, %s85
      %s86 = sphi 0, %s83
      %s87 = sphi 0, %s86
      %s103 = sphi 0, %s87
      %s111 = sphi 0, %s113
      %s114 = sphi 0, %s111
      %s115 = sphi 0, %s114
      %s131 = sphi 0, %s115
    $region4: #{astrous_forward.4} parent=1 // loop_header_branch
      %12 = sbr.rel (%p10) target = $region8
    $region5: #{astrous_forward.4} parent=1 // loop_body
      %s14 = ssub.s32 %s9, 1
      %s15 = ssub.s32 %s9, 2
      %s22 = sadd.s32 1, %s17
      %p23 = scmp.ge.s32.totalorder %s22, 2
      %s24 = scalar_select %p23, 0, %s22
      %s25 = sadd.s32 1, %s16
      %s26 = scalar_select %p23, %s25, %s16
      %p27 = scmp.ge.s32.totalorder %s26, 1
      %s28 = scalar_select %p27, 0, %s26
      %s29 = ssub.s32 %s16, %s28
      %p30 = scmp.eq.s32.totalorder %s29, 0
      %s32 = sadd.s32 %s31, 1
      %s33 = scalar_select %p30, %s31, %s32
      %p36 = pneg %p30
      %p37 = scmp.eq.s32.totalorder %s9, 1
      %p38 = por %p36, %p37
      %p39 = scmp.ne.s32.totalorder %s31, %s34
      %p40 = scmp.eq.s32.totalorder %s9, 0
      %p41 = por %p39, %p40
      %p42 = scmp.ne.s32.totalorder %s31, %s34
      %p43 = scmp.eq.s32.totalorder %s14, 1
      %p44 = por %p42, %p43
      %p45 = scmp.ne.s32.totalorder %s34, %s35
      %p46 = scmp.eq.s32.totalorder %s14, 0
      %p47 = por %p45, %p46
      %p48 = scmp.ne.s32.totalorder %s34, %s35
      %p49 = scmp.eq.s32.totalorder %s15, 1
      %p50 = por %p48, %p49
      %p52 = scmp.ne.s32.totalorder %s35, %s51
      %p53 = scmp.eq.s32.totalorder %s15, 0
      %p54 = por %p52, %p53
      %s55 = ssub.s32 %s17, %s24
      %p56 = scmp.eq.s32.totalorder %s55, 0
      %s58 = sadd.s32 %s57, 1
      %s59 = scalar_select %p56, %s57, %s58
      %p62 = pneg %p56
      %p63 = scmp.eq.s32.totalorder %s9, 1
      %p64 = por %p62, %p63
      %p65 = scmp.ne.s32.totalorder %s57, %s60
      %p66 = scmp.eq.s32.totalorder %s9, 0
      %p67 = por %p65, %p66
      %p68 = scmp.ne.s32.totalorder %s57, %s60
      %p69 = scmp.eq.s32.totalorder %s14, 1
      %p70 = por %p68, %p69
      %p71 = scmp.ne.s32.totalorder %s60, %s61
      %p72 = scmp.eq.s32.totalorder %s14, 0
      %p73 = por %p71, %p72
      %p74 = scmp.ne.s32.totalorder %s60, %s61
      %p75 = scmp.eq.s32.totalorder %s15, 1
      %p76 = por %p74, %p75
      %p78 = scmp.ne.s32.totalorder %s61, %s77
      %p79 = scmp.eq.s32.totalorder %s15, 0
      %p80 = por %p78, %p79
      %s81 = ssub.s32 %s17, %s24
      %p82 = scmp.eq.s32.totalorder %s81, 0
      %s84 = sadd.s32 %s83, 1
      %s85 = scalar_select %p82, %s83, %s84
      %p88 = pneg %p82
      %p89 = scmp.eq.s32.totalorder %s9, 1
      %p90 = por %p88, %p89
      %p91 = scmp.ne.s32.totalorder %s83, %s86
      %p92 = scmp.eq.s32.totalorder %s9, 0
      %p93 = por %p91, %p92
      %p94 = scmp.ne.s32.totalorder %s83, %s86
      %p95 = scmp.eq.s32.totalorder %s14, 1
      %p96 = por %p94, %p95
      %p97 = scmp.ne.s32.totalorder %s86, %s87
      %p98 = scmp.eq.s32.totalorder %s14, 0
      %p99 = por %p97, %p98
      %p100 = scmp.ne.s32.totalorder %s86, %s87
      %p101 = scmp.eq.s32.totalorder %s15, 1
      %p102 = por %p100, %p101
      %p104 = scmp.ne.s32.totalorder %s87, %s103
      %p105 = scmp.eq.s32.totalorder %s15, 0
      %p106 = por %p104, %p105
      %s107 = ssub.s32 %s16, %s28
      %s108 = ssub.s32 %s17, %s24
      %s109 = sor.u32 %s107, %s108
      %p110 = scmp.eq.s32.totalorder %s109, 0
      %s112 = sadd.s32 %s111, 1
      %s113 = scalar_select %p110, %s111, %s112
      %p116 = pneg %p110
      %p117 = scmp.eq.s32.totalorder %s9, 1
      %p118 = por %p116, %p117
      %p119 = scmp.ne.s32.totalorder %s111, %s114
      %p120 = scmp.eq.s32.totalorder %s9, 0
      %p121 = por %p119, %p120
      %p122 = scmp.ne.s32.totalorder %s111, %s114
      %p123 = scmp.eq.s32.totalorder %s14, 1
      %p124 = por %p122, %p123
      %p125 = scmp.ne.s32.totalorder %s114, %s115
      %p126 = scmp.eq.s32.totalorder %s14, 0
      %p127 = por %p125, %p126
      %p128 = scmp.ne.s32.totalorder %s114, %s115
      %p129 = scmp.eq.s32.totalorder %s15, 1
      %p130 = por %p128, %p129
      %p132 = scmp.ne.s32.totalorder %s115, %s131
      %p133 = scmp.eq.s32.totalorder %s15, 0
      %p134 = por %p132, %p133
      %p135 = scmp.le.s32.totalorder 1, %s9
      %p136 = scmp.lt.s32.totalorder %s9, 3
      %p137 = pnand %p135, %p136
      %p138 = pneg %p137
      // Predicated region
      $region9: #{astrous_forward.4} parent=5 // pred_check
        _
      $region10: #{astrous_forward.4} parent=5 // pred_check_branch
        %140 = sbr.rel (%p137) target = $region12
      $region11: #{astrous_forward.4} parent=5 // pred_region
        %s141 = ssub.s32 %s9, 1
        // Predicated region
        $region13: #{astrous_forward.4} parent=11 // pred_check
          %p142 = pneg %p47
        $region14: #{astrous_forward.4} parent=11 // pred_check_branch
          %144 = sbr.rel (%p142) target = $region16
        $region15: #{astrous_forward.4} parent=11 // pred_region
          %s145 = smul.u32 64, %s18
          %p146 = scmp.lt.s32.totalorder %s145, 63
          %s147 = scalar_select %p146, %s145, 63
          %s148 = smul.addr %s147, 2
          %s149 = smul.addr %s148, 4
          %s150 = scalar_lea.vmem %s0, %s149
          %s151 = smul.u32 64, %s18
        $region16: #{astrous_forward.4} parent=11 // pred_fallthru
          _
      $region12: #{astrous_forward.4} parent=5 // pred_fallthru
        _
      %p152 = scmp.lt.s32.totalorder %s9, 2
      // Predicated region
      $region17: #{astrous_forward.4} parent=5 // pred_check
        %p153 = pneg %p152
      $region18: #{astrous_forward.4} parent=5 // pred_check_branch
        %155 = sbr.rel (%p153) target = $region20
      $region19: #{astrous_forward.4} parent=5 // pred_region
        // Predicated region
        $region21: #{astrous_forward.4} parent=19 // pred_check
          %p156 = pneg %p67
        $region22: #{astrous_forward.4} parent=19 // pred_check_branch
          %158 = sbr.rel (%p156) target = $region24
        $region23: #{astrous_forward.4} parent=19 // pred_region
          %s159 = sand.u32 %s57, 1
          %s160 = sand.u32 %s57, 1
          %s161 = smul.addr %s160, 128
          %s162 = scalar_lea.vmem [#allocation2], %s161
          %s163 = smul.addr %s17, 4
          %s164 = scalar_lea.vmem %s1, %s163
          // Predicated region
          $region25: #{astrous_forward.4} parent=23 // pred_check
            _
          $region26: #{astrous_forward.4} parent=23 // pred_check_branch
            %166 = sbr.rel (0) target = $region28
          $region27: #{astrous_forward.4} parent=23 // pred_region
            // Predicated region
            $region29: #{astrous_forward.4} parent=27 // pred_check
              _
            $region30: #{astrous_forward.4} parent=27 // pred_check_branch
              %168 = sbr.rel target = $region32
            $region31: #{astrous_forward.4} parent=27 // pred_region
              // Predicated region
              $region44: #{astrous_forward.4} parent=31 // pred_check
                _
              $region45: #{astrous_forward.4} parent=31 // pred_check_branch
                %245 = sbr.rel (0) target = $region47
              $region46: #{astrous_forward.4} parent=31 // pred_region
                loop: start=0, step=1, limit=1
                $region48: #{astrous_forward.4} parent=46 // loop_pre_header
                  _
                $region49: #{astrous_forward.4} parent=46 // loop_header
                  %s247 = sphi 0, %s251
                  %p248 = scmp.ge.s32.totalorder %s247, 1
                  %s252 = sphi %s164, %s164
                  %s253 = sphi %s162, %s162
                $region50: #{astrous_forward.4} parent=46 // loop_header_branch
                  %250 = sbr.rel (%p248) target = $region54
                $region51: #{astrous_forward.4} parent=46 // loop_body
                  _
                $region52: #{astrous_forward.4} parent=46 // loop_footer
                  %s251 = sadd.s32 1, %s247
                $region53: #{astrous_forward.4} parent=46 // loop_footer_branch
                  %246 = sbr.rel target = $region49
                $region54: #{astrous_forward.4} parent=46 // loop_exit
                  _
                loop: start=0, step=1, limit=1
                $region55: #{astrous_forward.4} parent=46 // loop_pre_header
                  _
                $region56: #{astrous_forward.4} parent=46 // loop_header
                  %s256 = sphi 0, %s260
                  %p257 = scmp.ge.s32.totalorder %s256, 1
                  %s261 = sphi %s164, %s164
                  %s262 = sphi %s162, %s162
                $region57: #{astrous_forward.4} parent=46 // loop_header_branch
                  %259 = sbr.rel (%p257) target = $region61
                $region58: #{astrous_forward.4} parent=46 // loop_body
                  %v263 = vld [vmem:[%s261] sm:$0xf]
                  %264 = vst [vmem:[%s262] sm:$0xf] %v263
                  %v265 = vld [vmem:[%s261 + $0x8] sm:$0xf]
                  %266 = vst [vmem:[%s262 + $0x4] sm:$0xf] %v265
                  %v267 = vld [vmem:[%s261 + $0x10] sm:$0xf]
                  %268 = vst [vmem:[%s262 + $0x8] sm:$0xf] %v267
                  %v269 = vld [vmem:[%s261 + $0x18] sm:$0xf]
                  %270 = vst [vmem:[%s262 + $0xc] sm:$0xf] %v269
                  %v271 = vld [vmem:[%s261 + $0x20] sm:$0xf]
                  %272 = vst [vmem:[%s262 + $0x10] sm:$0xf] %v271
                  %v273 = vld [vmem:[%s261 + $0x28] sm:$0xf]
                  %274 = vst [vmem:[%s262 + $0x14] sm:$0xf] %v273
                  %v275 = vld [vmem:[%s261 + $0x30] sm:$0xf]
                  %276 = vst [vmem:[%s262 + $0x18] sm:$0xf] %v275
                  %v277 = vld [vmem:[%s261 + $0x38] sm:$0xf]
                  %278 = vst [vmem:[%s262 + $0x1c] sm:$0xf] %v277
                  %v279 = vld [vmem:[%s261 + $0x40] sm:$0xf]
                  %280 = vst [vmem:[%s262 + $0x20] sm:$0xf] %v279
                  %v281 = vld [vmem:[%s261 + $0x48] sm:$0xf]
                  %282 = vst [vmem:[%s262 + $0x24] sm:$0xf] %v281
                  %v283 = vld [vmem:[%s261 + $0x50] sm:$0xf]
                  %284 = vst [vmem:[%s262 + $0x28] sm:$0xf] %v283
                  %v285 = vld [vmem:[%s261 + $0x58] sm:$0xf]
                  %286 = vst [vmem:[%s262 + $0x2c] sm:$0xf] %v285
                  %v287 = vld [vmem:[%s261 + $0x60] sm:$0xf]
                  %288 = vst [vmem:[%s262 + $0x30] sm:$0xf] %v287
                  %v289 = vld [vmem:[%s261 + $0x68] sm:$0xf]
                  %290 = vst [vmem:[%s262 + $0x34] sm:$0xf] %v289
                  %v291 = vld [vmem:[%s261 + $0x70] sm:$0xf]
                  %292 = vst [vmem:[%s262 + $0x38] sm:$0xf] %v291
                  %v293 = vld [vmem:[%s261 + $0x78] sm:$0xf]
                  %294 = vst [vmem:[%s262 + $0x3c] sm:$0xf] %v293
                  %v295 = vld [vmem:[%s261 + $0x80] sm:$0xf]
                  %296 = vst [vmem:[%s262 + $0x40] sm:$0xf] %v295
                  %v297 = vld [vmem:[%s261 + $0x88] sm:$0xf]
                  %298 = vst [vmem:[%s262 + $0x44] sm:$0xf] %v297
                  %v299 = vld [vmem:[%s261 + $0x90] sm:$0xf]
                  %300 = vst [vmem:[%s262 + $0x48] sm:$0xf] %v299
                  %v301 = vld [vmem:[%s261 + $0x98] sm:$0xf]
                  %302 = vst [vmem:[%s262 + $0x4c] sm:$0xf] %v301
                  %v303 = vld [vmem:[%s261 + $0xa0] sm:$0xf]
                  %304 = vst [vmem:[%s262 + $0x50] sm:$0xf] %v303
                  %v305 = vld [vmem:[%s261 + $0xa8] sm:$0xf]
                  %306 = vst [vmem:[%s262 + $0x54] sm:$0xf] %v305
                  %v307 = vld [vmem:[%s261 + $0xb0] sm:$0xf]
                  %308 = vst [vmem:[%s262 + $0x58] sm:$0xf] %v307
                  %v309 = vld [vmem:[%s261 + $0xb8] sm:$0xf]
                  %310 = vst [vmem:[%s262 + $0x5c] sm:$0xf] %v309
                  %v311 = vld [vmem:[%s261 + $0xc0] sm:$0xf]
                  %312 = vst [vmem:[%s262 + $0x60] sm:$0xf] %v311
                  %v313 = vld [vmem:[%s261 + $0xc8] sm:$0xf]
                  %314 = vst [vmem:[%s262 + $0x64] sm:$0xf] %v313
                  %v315 = vld [vmem:[%s261 + $0xd0] sm:$0xf]
                  %316 = vst [vmem:[%s262 + $0x68] sm:$0xf] %v315
                  %v317 = vld [vmem:[%s261 + $0xd8] sm:$0xf]
                  %318 = vst [vmem:[%s262 + $0x6c] sm:$0xf] %v317
                  %v319 = vld [vmem:[%s261 + $0xe0] sm:$0xf]
                  %320 = vst [vmem:[%s262 + $0x70] sm:$0xf] %v319
                  %v321 = vld [vmem:[%s261 + $0xe8] sm:$0xf]
                  %322 = vst [vmem:[%s262 + $0x74] sm:$0xf] %v321
                  %v323 = vld [vmem:[%s261 + $0xf0] sm:$0xf]
                  %324 = vst [vmem:[%s262 + $0x78] sm:$0xf] %v323
                  %v325 = vld [vmem:[%s261 + $0xf8] sm:$0xf]
                  %326 = vst [vmem:[%s262 + $0x7c] sm:$0xf] %v325
                $region59: #{astrous_forward.4} parent=46 // loop_footer
                  %s260 = sadd.s32 1, %s256
                $region60: #{astrous_forward.4} parent=46 // loop_footer_branch
                  %255 = sbr.rel target = $region56
                $region61: #{astrous_forward.4} parent=46 // loop_exit
                  _
              $region47: #{astrous_forward.4} parent=31 // pred_fallthru
                _
            $region32: #{astrous_forward.4} parent=27 // pred_fallthru
              _
            // Predicated region
            $region33: #{astrous_forward.4} parent=27 // pred_check
              _
            $region34: #{astrous_forward.4} parent=27 // pred_check_branch
              %170 = sbr.rel (0) target = $region36
            $region35: #{astrous_forward.4} parent=27 // pred_region
              loop: start=0, step=1, limit=1
              $region37: #{astrous_forward.4} parent=35 // loop_pre_header
                _
              $region38: #{astrous_forward.4} parent=35 // loop_header
                %s173 = sphi 0, %s177
                %p174 = scmp.ge.s32.totalorder %s173, 1
                %s178 = sphi %s164, %s164
                %s179 = sphi %s162, %s162
              $region39: #{astrous_forward.4} parent=35 // loop_header_branch
                %176 = sbr.rel (%p174) target = $region43
              $region40: #{astrous_forward.4} parent=35 // loop_body
                %v180 = vld [vmem:[%s178] sm:$0xf]
                %181 = vst [vmem:[%s179] sm:$0xf] %v180
                %v182 = vld [vmem:[%s178 + $0x8] sm:$0xf]
                %183 = vst [vmem:[%s179 + $0x4] sm:$0xf] %v182
                %v184 = vld [vmem:[%s178 + $0x10] sm:$0xf]
                %185 = vst [vmem:[%s179 + $0x8] sm:$0xf] %v184
                %v186 = vld [vmem:[%s178 + $0x18] sm:$0xf]
                %187 = vst [vmem:[%s179 + $0xc] sm:$0xf] %v186
                %v188 = vld [vmem:[%s178 + $0x20] sm:$0xf]
                %189 = vst [vmem:[%s179 + $0x10] sm:$0xf] %v188
                %v190 = vld [vmem:[%s178 + $0x28] sm:$0xf]
                %191 = vst [vmem:[%s179 + $0x14] sm:$0xf] %v190
                %v192 = vld [vmem:[%s178 + $0x30] sm:$0xf]
                %193 = vst [vmem:[%s179 + $0x18] sm:$0xf] %v192
                %v194 = vld [vmem:[%s178 + $0x38] sm:$0xf]
                %195 = vst [vmem:[%s179 + $0x1c] sm:$0xf] %v194
                %v196 = vld [vmem:[%s178 + $0x40] sm:$0xf]
                %197 = vst [vmem:[%s179 + $0x20] sm:$0xf] %v196
                %v198 = vld [vmem:[%s178 + $0x48] sm:$0xf]
                %199 = vst [vmem:[%s179 + $0x24] sm:$0xf] %v198
                %v200 = vld [vmem:[%s178 + $0x50] sm:$0xf]
                %201 = vst [vmem:[%s179 + $0x28] sm:$0xf] %v200
                %v202 = vld [vmem:[%s178 + $0x58] sm:$0xf]
                %203 = vst [vmem:[%s179 + $0x2c] sm:$0xf] %v202
                %v204 = vld [vmem:[%s178 + $0x60] sm:$0xf]
                %205 = vst [vmem:[%s179 + $0x30] sm:$0xf] %v204
                %v206 = vld [vmem:[%s178 + $0x68] sm:$0xf]
                %207 = vst [vmem:[%s179 + $0x34] sm:$0xf] %v206
                %v208 = vld [vmem:[%s178 + $0x70] sm:$0xf]
                %209 = vst [vmem:[%s179 + $0x38] sm:$0xf] %v208
                %v210 = vld [vmem:[%s178 + $0x78] sm:$0xf]
                %211 = vst [vmem:[%s179 + $0x3c] sm:$0xf] %v210
                %v212 = vld [vmem:[%s178 + $0x80] sm:$0xf]
                %213 = vst [vmem:[%s179 + $0x40] sm:$0xf] %v212
                %v214 = vld [vmem:[%s178 + $0x88] sm:$0xf]
                %215 = vst [vmem:[%s179 + $0x44] sm:$0xf] %v214
                %v216 = vld [vmem:[%s178 + $0x90] sm:$0xf]
                %217 = vst [vmem:[%s179 + $0x48] sm:$0xf] %v216
                %v218 = vld [vmem:[%s178 + $0x98] sm:$0xf]
                %219 = vst [vmem:[%s179 + $0x4c] sm:$0xf] %v218
                %v220 = vld [vmem:[%s178 + $0xa0] sm:$0xf]
                %221 = vst [vmem:[%s179 + $0x50] sm:$0xf] %v220
                %v222 = vld [vmem:[%s178 + $0xa8] sm:$0xf]
                %223 = vst [vmem:[%s179 + $0x54] sm:$0xf] %v222
                %v224 = vld [vmem:[%s178 + $0xb0] sm:$0xf]
                %225 = vst [vmem:[%s179 + $0x58] sm:$0xf] %v224
                %v226 = vld [vmem:[%s178 + $0xb8] sm:$0xf]
                %227 = vst [vmem:[%s179 + $0x5c] sm:$0xf] %v226
                %v228 = vld [vmem:[%s178 + $0xc0] sm:$0xf]
                %229 = vst [vmem:[%s179 + $0x60] sm:$0xf] %v228
                %v230 = vld [vmem:[%s178 + $0xc8] sm:$0xf]
                %231 = vst [vmem:[%s179 + $0x64] sm:$0xf] %v230
                %v232 = vld [vmem:[%s178 + $0xd0] sm:$0xf]
                %233 = vst [vmem:[%s179 + $0x68] sm:$0xf] %v232
                %v234 = vld [vmem:[%s178 + $0xd8] sm:$0xf]
                %235 = vst [vmem:[%s179 + $0x6c] sm:$0xf] %v234
                %v236 = vld [vmem:[%s178 + $0xe0] sm:$0xf]
                %237 = vst [vmem:[%s179 + $0x70] sm:$0xf] %v236
                %v238 = vld [vmem:[%s178 + $0xe8] sm:$0xf]
                %239 = vst [vmem:[%s179 + $0x74] sm:$0xf] %v238
                %v240 = vld [vmem:[%s178 + $0xf0] sm:$0xf]
                %241 = vst [vmem:[%s179 + $0x78] sm:$0xf] %v240
                %v242 = vld [vmem:[%s178 + $0xf8] sm:$0xf]
                %243 = vst [vmem:[%s179 + $0x7c] sm:$0xf] %v242
              $region41: #{astrous_forward.4} parent=35 // loop_footer
                %s177 = sadd.s32 1, %s173
              $region42: #{astrous_forward.4} parent=35 // loop_footer_branch
                %172 = sbr.rel target = $region38
              $region43: #{astrous_forward.4} parent=35 // loop_exit
                _
            $region36: #{astrous_forward.4} parent=27 // pred_fallthru
              _
          $region28: #{astrous_forward.4} parent=23 // pred_fallthru
            _
          %327 = vnop
        $region24: #{astrous_forward.4} parent=19 // pred_fallthru
          _
        // Predicated region
        $region62: #{astrous_forward.4} parent=19 // pred_check
          %p328 = pneg %p93
        $region63: #{astrous_forward.4} parent=19 // pred_check_branch
          %330 = sbr.rel (%p328) target = $region65
        $region64: #{astrous_forward.4} parent=19 // pred_region
          %p331 = scmp.lt.s32.totalorder %s17, 1
          %s332 = scalar_select %p331, %s17, 1
          %s333 = scalar_lea.vmem %s2, %s332
        $region65: #{astrous_forward.4} parent=19 // pred_fallthru
          _
      $region20: #{astrous_forward.4} parent=5 // pred_fallthru
        _
      %p334 = scmp.le.s32.totalorder 1, %s9
      %p335 = scmp.lt.s32.totalorder %s9, 3
      %p336 = pnand %p334, %p335
      %p337 = pneg %p336
      // Predicated region
      $region66: #{astrous_forward.4} parent=5 // pred_check
        _
      $region67: #{astrous_forward.4} parent=5 // pred_check_branch
        %339 = sbr.rel (%p336) target = $region69
      $region68: #{astrous_forward.4} parent=5 // pred_region
        %s340 = ssub.s32 %s9, 1
        %s341 = sand.u32 %s60, 1
        %s342 = sand.u32 %s60, 1
        %s343 = smul.addr %s342, 128
        %s344 = scalar_lea.vmem [#allocation2], %s343
        // Predicated region
        $region70: #{astrous_forward.4} parent=68 // pred_check
          %p345 = pneg %p73
        $region71: #{astrous_forward.4} parent=68 // pred_check_branch
          %347 = sbr.rel (%p345) target = $region73
        $region72: #{astrous_forward.4} parent=68 // pred_region
          _
        $region73: #{astrous_forward.4} parent=68 // pred_fallthru
          _
        %s348 = smul.u32 64, %s18
        %p349 = scmp.lt.s32.totalorder %s348, 63
        %s350 = scalar_select %p349, %s348, 63
        %s351 = smul.addr %s350, 2
        %s352 = smul.addr %s351, 4
        %s353 = scalar_lea.vmem %s0, %s352
        %p354 = pneg %p47
        %p355 = pneg %p44
        %s356 = sand.u32 %s60, 1
        %s357 = sand.u32 %s60, 1
        %s358 = smul.addr %s357, 128
        %s359 = scalar_lea.vmem [#allocation2], %s358
        %p360 = pneg %p73
        %p361 = pneg %p70
        %p362 = scmp.lt.s32.totalorder %s19, 1
        %s363 = scalar_select %p362, %s19, 1
        %s364 = scalar_lea.vmem %s2, %s363
        %p365 = pneg %p99
        %p366 = pneg %p96
        %p367 = pneg %p127
        %p368 = pneg %p124
        %s369 = sand.u32 %s114, 1
        %s370 = sand.u32 %s114, 1
        %s371 = smul.addr %s370, 256
        %s372 = scalar_lea.vmem [#allocation3], %s371
        %s373 = smul.u32 64, %s18
        %p374 = scmp.lt.s32.totalorder %s373, 63
        %s375 = scalar_select %p374, %s373, 63
        %s376 = smul.addr %s375, 2
        %s377 = smul.addr %s376, 4
        %s378 = scalar_lea.vmem %s0, %s377
        %s379 = smul.u32 64, %s18
        %p380 = scmp.lt.s32.totalorder %s19, 1
        %s381 = scalar_select %p380, %s19, 1
        %s382 = scalar_lea.vmem %s2, %s381
        %s383 = smul.u32 64, %s18
        %v385 = vld [vmem:[%s378] sm:$0xff]
        %v386 = vld [vmem:[%s378 + $0x8] sm:$0xff]
        %v387 = vld [vmem:[%s378 + $0x10] sm:$0xff]
        %v388 = vld [vmem:[%s378 + $0x18] sm:$0xff]
        %v389 = vld [vmem:[%s378 + $0x20] sm:$0xff]
        %v390 = vld [vmem:[%s378 + $0x28] sm:$0xff]
        %v391 = vld [vmem:[%s378 + $0x30] sm:$0xff]
        %v392 = vld [vmem:[%s378 + $0x38] sm:$0xff]
        %v393 = vld [vmem:[%s378 + $0x40] sm:$0xff]
        %v394 = vld [vmem:[%s378 + $0x48] sm:$0xff]
        %v395 = vld [vmem:[%s378 + $0x50] sm:$0xff]
        %v396 = vld [vmem:[%s378 + $0x58] sm:$0xff]
        %v397 = vld [vmem:[%s378 + $0x60] sm:$0xff]
        %v398 = vld [vmem:[%s378 + $0x68] sm:$0xff]
        %v399 = vld [vmem:[%s378 + $0x70] sm:$0xff]
        %v400 = vld [vmem:[%s378 + $0x78] sm:$0xff]
        %v401 = vld [vmem:[%s378 + $0x80] sm:$0xff]
        %v402 = vld [vmem:[%s378 + $0x88] sm:$0xff]
        %v403 = vld [vmem:[%s378 + $0x90] sm:$0xff]
        %v404 = vld [vmem:[%s378 + $0x98] sm:$0xff]
        %v405 = vld [vmem:[%s378 + $0xa0] sm:$0xff]
        %v406 = vld [vmem:[%s378 + $0xa8] sm:$0xff]
        %v407 = vld [vmem:[%s378 + $0xb0] sm:$0xff]
        %v408 = vld [vmem:[%s378 + $0xb8] sm:$0xff]
        %v409 = vld [vmem:[%s378 + $0xc0] sm:$0xff]
        %v410 = vld [vmem:[%s378 + $0xc8] sm:$0xff]
        %v411 = vld [vmem:[%s378 + $0xd0] sm:$0xff]
        %v412 = vld [vmem:[%s378 + $0xd8] sm:$0xff]
        %v413 = vld [vmem:[%s378 + $0xe0] sm:$0xff]
        %v414 = vld [vmem:[%s378 + $0xe8] sm:$0xff]
        %v415 = vld [vmem:[%s378 + $0xf0] sm:$0xff]
        %v416 = vld [vmem:[%s378 + $0xf8] sm:$0xff]
        %v417 = vld [vmem:[%s378 + $0x100] sm:$0xff]
        %v418 = vld [vmem:[%s378 + $0x108] sm:$0xff]
        %v419 = vld [vmem:[%s378 + $0x110] sm:$0xff]
        %v420 = vld [vmem:[%s378 + $0x118] sm:$0xff]
        %v421 = vld [vmem:[%s378 + $0x120] sm:$0xff]
        %v422 = vld [vmem:[%s378 + $0x128] sm:$0xff]
        %v423 = vld [vmem:[%s378 + $0x130] sm:$0xff]
        %v424 = vld [vmem:[%s378 + $0x138] sm:$0xff]
        %v425 = vld [vmem:[%s378 + $0x140] sm:$0xff]
        %v426 = vld [vmem:[%s378 + $0x148] sm:$0xff]
        %v427 = vld [vmem:[%s378 + $0x150] sm:$0xff]
        %v428 = vld [vmem:[%s378 + $0x158] sm:$0xff]
        %v429 = vld [vmem:[%s378 + $0x160] sm:$0xff]
        %v430 = vld [vmem:[%s378 + $0x168] sm:$0xff]
        %v431 = vld [vmem:[%s378 + $0x170] sm:$0xff]
        %v432 = vld [vmem:[%s378 + $0x178] sm:$0xff]
        %v433 = vld [vmem:[%s378 + $0x180] sm:$0xff]
        %v434 = vld [vmem:[%s378 + $0x188] sm:$0xff]
        %v435 = vld [vmem:[%s378 + $0x190] sm:$0xff]
        %v436 = vld [vmem:[%s378 + $0x198] sm:$0xff]
        %v437 = vld [vmem:[%s378 + $0x1a0] sm:$0xff]
        %v438 = vld [vmem:[%s378 + $0x1a8] sm:$0xff]
        %v439 = vld [vmem:[%s378 + $0x1b0] sm:$0xff]
        %v440 = vld [vmem:[%s378 + $0x1b8] sm:$0xff]
        %v441 = vld [vmem:[%s378 + $0x1c0] sm:$0xff]
        %v442 = vld [vmem:[%s378 + $0x1c8] sm:$0xff]
        %v443 = vld [vmem:[%s378 + $0x1d0] sm:$0xff]
        %v444 = vld [vmem:[%s378 + $0x1d8] sm:$0xff]
        %v445 = vld [vmem:[%s378 + $0x1e0] sm:$0xff]
        %v446 = vld [vmem:[%s378 + $0x1e8] sm:$0xff]
        %v447 = vld [vmem:[%s378 + $0x1f0] sm:$0xff]
        %v448 = vld [vmem:[%s378 + $0x1f8] sm:$0xff]
        %v449 = vld [vmem:[%s344] sm:$0xf]
        %v450 = vld [vmem:[%s344 + $0x4] sm:$0xf]
        %v451 = vld [vmem:[%s344 + $0x8] sm:$0xf]
        %v452 = vld [vmem:[%s344 + $0xc] sm:$0xf]
        %v453 = vld [vmem:[%s344 + $0x10] sm:$0xf]
        %v454 = vld [vmem:[%s344 + $0x14] sm:$0xf]
        %v455 = vld [vmem:[%s344 + $0x18] sm:$0xf]
        %v456 = vld [vmem:[%s344 + $0x1c] sm:$0xf]
        %v457 = vld [vmem:[%s344 + $0x20] sm:$0xf]
        %v458 = vld [vmem:[%s344 + $0x24] sm:$0xf]
        %v459 = vld [vmem:[%s344 + $0x28] sm:$0xf]
        %v460 = vld [vmem:[%s344 + $0x2c] sm:$0xf]
        %v461 = vld [vmem:[%s344 + $0x30] sm:$0xf]
        %v462 = vld [vmem:[%s344 + $0x34] sm:$0xf]
        %v463 = vld [vmem:[%s344 + $0x38] sm:$0xf]
        %v464 = vld [vmem:[%s344 + $0x3c] sm:$0xf]
        %v465 = vld [vmem:[%s344 + $0x40] sm:$0xf]
        %v466 = vld [vmem:[%s344 + $0x44] sm:$0xf]
        %v467 = vld [vmem:[%s344 + $0x48] sm:$0xf]
        %v468 = vld [vmem:[%s344 + $0x4c] sm:$0xf]
        %v469 = vld [vmem:[%s344 + $0x50] sm:$0xf]
        %v470 = vld [vmem:[%s344 + $0x54] sm:$0xf]
        %v471 = vld [vmem:[%s344 + $0x58] sm:$0xf]
        %v472 = vld [vmem:[%s344 + $0x5c] sm:$0xf]
        %v473 = vld [vmem:[%s344 + $0x60] sm:$0xf]
        %v474 = vld [vmem:[%s344 + $0x64] sm:$0xf]
        %v475 = vld [vmem:[%s344 + $0x68] sm:$0xf]
        %v476 = vld [vmem:[%s344 + $0x6c] sm:$0xf]
        %v477 = vld [vmem:[%s344 + $0x70] sm:$0xf]
        %v478 = vld [vmem:[%s344 + $0x74] sm:$0xf]
        %v479 = vld [vmem:[%s344 + $0x78] sm:$0xf]
        %v480 = vld [vmem:[%s344 + $0x7c] sm:$0xf]
        %v481 = vld [vmem:[%s382] sm:$0x1]
        %v483 = vlaneseq
        %v484 = vshrl.u32 %v483, 7
        %v485 = vsub.s32 0, %v484
        %v486 = vrot.slane %v481, %v485
        %v552 = vunpack.c.l.b16 %v385
        %v553 = vunpack.c.h.b16 %v385
        %v554 = vunpack.c.l.b16 %v386
        %v555 = vunpack.c.h.b16 %v386
        %v556 = vunpack.c.l.b16 %v387
        %v557 = vunpack.c.h.b16 %v387
        %v558 = vunpack.c.l.b16 %v388
        %v559 = vunpack.c.h.b16 %v388
        %v560 = vunpack.c.l.b16 %v389
        %v561 = vunpack.c.h.b16 %v389
        %v562 = vunpack.c.l.b16 %v390
        %v563 = vunpack.c.h.b16 %v390
        %v564 = vunpack.c.l.b16 %v391
        %v565 = vunpack.c.h.b16 %v391
        %v566 = vunpack.c.l.b16 %v392
        %v567 = vunpack.c.h.b16 %v392
        %v568 = vunpack.c.l.b16 %v393
        %v569 = vunpack.c.h.b16 %v393
        %v570 = vunpack.c.l.b16 %v394
        %v571 = vunpack.c.h.b16 %v394
        %v572 = vunpack.c.l.b16 %v395
        %v573 = vunpack.c.h.b16 %v395
        %v574 = vunpack.c.l.b16 %v396
        %v575 = vunpack.c.h.b16 %v396
        %v576 = vunpack.c.l.b16 %v397
        %v577 = vunpack.c.h.b16 %v397
        %v578 = vunpack.c.l.b16 %v398
        %v579 = vunpack.c.h.b16 %v398
        %v580 = vunpack.c.l.b16 %v399
        %v581 = vunpack.c.h.b16 %v399
        %v582 = vunpack.c.l.b16 %v400
        %v583 = vunpack.c.h.b16 %v400
        %v584 = vunpack.c.l.b16 %v401
        %v585 = vunpack.c.h.b16 %v401
        %v586 = vunpack.c.l.b16 %v402
        %v587 = vunpack.c.h.b16 %v402
        %v588 = vunpack.c.l.b16 %v403
        %v589 = vunpack.c.h.b16 %v403
        %v590 = vunpack.c.l.b16 %v404
        %v591 = vunpack.c.h.b16 %v404
        %v592 = vunpack.c.l.b16 %v405
        %v593 = vunpack.c.h.b16 %v405
        %v594 = vunpack.c.l.b16 %v406
        %v595 = vunpack.c.h.b16 %v406
        %v596 = vunpack.c.l.b16 %v407
        %v597 = vunpack.c.h.b16 %v407
        %v598 = vunpack.c.l.b16 %v408
        %v599 = vunpack.c.h.b16 %v408
        %v600 = vunpack.c.l.b16 %v409
        %v601 = vunpack.c.h.b16 %v409
        %v602 = vunpack.c.l.b16 %v410
        %v603 = vunpack.c.h.b16 %v410
        %v604 = vunpack.c.l.b16 %v411
        %v605 = vunpack.c.h.b16 %v411
        %v606 = vunpack.c.l.b16 %v412
        %v607 = vunpack.c.h.b16 %v412
        %v608 = vunpack.c.l.b16 %v413
        %v609 = vunpack.c.h.b16 %v413
        %v610 = vunpack.c.l.b16 %v414
        %v611 = vunpack.c.h.b16 %v414
        %v612 = vunpack.c.l.b16 %v415
        %v613 = vunpack.c.h.b16 %v415
        %v614 = vunpack.c.l.b16 %v416
        %v615 = vunpack.c.h.b16 %v416
        %v616 = vunpack.c.l.b16 %v417
        %v617 = vunpack.c.h.b16 %v417
        %v618 = vunpack.c.l.b16 %v418
        %v619 = vunpack.c.h.b16 %v418
        %v620 = vunpack.c.l.b16 %v419
        %v621 = vunpack.c.h.b16 %v419
        %v622 = vunpack.c.l.b16 %v420
        %v623 = vunpack.c.h.b16 %v420
        %v624 = vunpack.c.l.b16 %v421
        %v625 = vunpack.c.h.b16 %v421
        %v626 = vunpack.c.l.b16 %v422
        %v627 = vunpack.c.h.b16 %v422
        %v628 = vunpack.c.l.b16 %v423
        %v629 = vunpack.c.h.b16 %v423
        %v630 = vunpack.c.l.b16 %v424
        %v631 = vunpack.c.h.b16 %v424
        %v632 = vunpack.c.l.b16 %v425
        %v633 = vunpack.c.h.b16 %v425
        %v634 = vunpack.c.l.b16 %v426
        %v635 = vunpack.c.h.b16 %v426
        %v636 = vunpack.c.l.b16 %v427
        %v637 = vunpack.c.h.b16 %v427
        %v638 = vunpack.c.l.b16 %v428
        %v639 = vunpack.c.h.b16 %v428
        %v640 = vunpack.c.l.b16 %v429
        %v641 = vunpack.c.h.b16 %v429
        %v642 = vunpack.c.l.b16 %v430
        %v643 = vunpack.c.h.b16 %v430
        %v644 = vunpack.c.l.b16 %v431
        %v645 = vunpack.c.h.b16 %v431
        %v646 = vunpack.c.l.b16 %v432
        %v647 = vunpack.c.h.b16 %v432
        %v648 = vunpack.c.l.b16 %v433
        %v649 = vunpack.c.h.b16 %v433
        %v650 = vunpack.c.l.b16 %v434
        %v651 = vunpack.c.h.b16 %v434
        %v652 = vunpack.c.l.b16 %v435
        %v653 = vunpack.c.h.b16 %v435
        %v654 = vunpack.c.l.b16 %v436
        %v655 = vunpack.c.h.b16 %v436
        %v656 = vunpack.c.l.b16 %v437
        %v657 = vunpack.c.h.b16 %v437
        %v658 = vunpack.c.l.b16 %v438
        %v659 = vunpack.c.h.b16 %v438
        %v660 = vunpack.c.l.b16 %v439
        %v661 = vunpack.c.h.b16 %v439
        %v662 = vunpack.c.l.b16 %v440
        %v663 = vunpack.c.h.b16 %v440
        %v664 = vunpack.c.l.b16 %v441
        %v665 = vunpack.c.h.b16 %v441
        %v666 = vunpack.c.l.b16 %v442
        %v667 = vunpack.c.h.b16 %v442
        %v668 = vunpack.c.l.b16 %v443
        %v669 = vunpack.c.h.b16 %v443
        %v670 = vunpack.c.l.b16 %v444
        %v671 = vunpack.c.h.b16 %v444
        %v672 = vunpack.c.l.b16 %v445
        %v673 = vunpack.c.h.b16 %v445
        %v674 = vunpack.c.l.b16 %v446
        %v675 = vunpack.c.h.b16 %v446
        %v676 = vunpack.c.l.b16 %v447
        %v677 = vunpack.c.h.b16 %v447
        %v678 = vunpack.c.l.b16 %v448
        %v679 = vunpack.c.h.b16 %v448
        %v680 = vpack.c.b16 %v554, %v552
        %v681 = vpack.c.b16 %v555, %v553
        %v682 = vpack.c.b16 %v558, %v556
        %v683 = vpack.c.b16 %v559, %v557
        %v684 = vpack.c.b16 %v562, %v560
        %v685 = vpack.c.b16 %v563, %v561
        %v686 = vpack.c.b16 %v566, %v564
        %v687 = vpack.c.b16 %v567, %v565
        %v688 = vpack.c.b16 %v570, %v568
        %v689 = vpack.c.b16 %v571, %v569
        %v690 = vpack.c.b16 %v574, %v572
        %v691 = vpack.c.b16 %v575, %v573
        %v692 = vpack.c.b16 %v578, %v576
        %v693 = vpack.c.b16 %v579, %v577
        %v694 = vpack.c.b16 %v582, %v580
        %v695 = vpack.c.b16 %v583, %v581
        %v696 = vpack.c.b16 %v586, %v584
        %v697 = vpack.c.b16 %v587, %v585
        %v698 = vpack.c.b16 %v590, %v588
        %v699 = vpack.c.b16 %v591, %v589
        %v700 = vpack.c.b16 %v594, %v592
        %v701 = vpack.c.b16 %v595, %v593
        %v702 = vpack.c.b16 %v598, %v596
        %v703 = vpack.c.b16 %v599, %v597
        %v704 = vpack.c.b16 %v602, %v600
        %v705 = vpack.c.b16 %v603, %v601
        %v706 = vpack.c.b16 %v606, %v604
        %v707 = vpack.c.b16 %v607, %v605
        %v708 = vpack.c.b16 %v610, %v608
        %v709 = vpack.c.b16 %v611, %v609
        %v710 = vpack.c.b16 %v614, %v612
        %v711 = vpack.c.b16 %v615, %v613
        %v712 = vpack.c.b16 %v618, %v616
        %v713 = vpack.c.b16 %v619, %v617
        %v714 = vpack.c.b16 %v622, %v620
        %v715 = vpack.c.b16 %v623, %v621
        %v716 = vpack.c.b16 %v626, %v624
        %v717 = vpack.c.b16 %v627, %v625
        %v718 = vpack.c.b16 %v630, %v628
        %v719 = vpack.c.b16 %v631, %v629
        %v720 = vpack.c.b16 %v634, %v632
        %v721 = vpack.c.b16 %v635, %v633
        %v722 = vpack.c.b16 %v638, %v636
        %v723 = vpack.c.b16 %v639, %v637
        %v724 = vpack.c.b16 %v642, %v640
        %v725 = vpack.c.b16 %v643, %v641
        %v726 = vpack.c.b16 %v646, %v644
        %v727 = vpack.c.b16 %v647, %v645
        %v728 = vpack.c.b16 %v650, %v648
        %v729 = vpack.c.b16 %v651, %v649
        %v730 = vpack.c.b16 %v654, %v652
        %v731 = vpack.c.b16 %v655, %v653
        %v732 = vpack.c.b16 %v658, %v656
        %v733 = vpack.c.b16 %v659, %v657
        %v734 = vpack.c.b16 %v662, %v660
        %v735 = vpack.c.b16 %v663, %v661
        %v736 = vpack.c.b16 %v666, %v664
        %v737 = vpack.c.b16 %v667, %v665
        %v738 = vpack.c.b16 %v670, %v668
        %v739 = vpack.c.b16 %v671, %v669
        %v740 = vpack.c.b16 %v674, %v672
        %v741 = vpack.c.b16 %v675, %v673
        %v742 = vpack.c.b16 %v678, %v676
        %v743 = vpack.c.b16 %v679, %v677
        %v840 = vunpack.c.l.b16 %v449
        %v841 = vunpack.c.l.b16 %v450
        %v842 = vunpack.c.l.b16 %v451
        %v843 = vunpack.c.l.b16 %v452
        %v844 = vunpack.c.l.b16 %v453
        %v845 = vunpack.c.l.b16 %v454
        %v846 = vunpack.c.l.b16 %v455
        %v847 = vunpack.c.l.b16 %v456
        %v848 = vunpack.c.l.b16 %v457
        %v849 = vunpack.c.l.b16 %v458
        %v850 = vunpack.c.l.b16 %v459
        %v851 = vunpack.c.l.b16 %v460
        %v852 = vunpack.c.l.b16 %v461
        %v853 = vunpack.c.l.b16 %v462
        %v854 = vunpack.c.l.b16 %v463
        %v855 = vunpack.c.l.b16 %v464
        %v856 = vunpack.c.l.b16 %v465
        %v857 = vunpack.c.l.b16 %v466
        %v858 = vunpack.c.l.b16 %v467
        %v859 = vunpack.c.l.b16 %v468
        %v860 = vunpack.c.l.b16 %v469
        %v861 = vunpack.c.l.b16 %v470
        %v862 = vunpack.c.l.b16 %v471
        %v863 = vunpack.c.l.b16 %v472
        %v864 = vunpack.c.l.b16 %v473
        %v865 = vunpack.c.l.b16 %v474
        %v866 = vunpack.c.l.b16 %v475
        %v867 = vunpack.c.l.b16 %v476
        %v868 = vunpack.c.l.b16 %v477
        %v869 = vunpack.c.l.b16 %v478
        %v870 = vunpack.c.l.b16 %v479
        %v871 = vunpack.c.l.b16 %v480
        %v872 = vpack.c.b16 %v841, %v840
        %v873 = vpack.c.b16 %v843, %v842
        %v874 = vpack.c.b16 %v845, %v844
        %v875 = vpack.c.b16 %v847, %v846
        %v876 = vpack.c.b16 %v849, %v848
        %v877 = vpack.c.b16 %v851, %v850
        %v878 = vpack.c.b16 %v853, %v852
        %v879 = vpack.c.b16 %v855, %v854
        %v880 = vpack.c.b16 %v857, %v856
        %v881 = vpack.c.b16 %v859, %v858
        %v882 = vpack.c.b16 %v861, %v860
        %v883 = vpack.c.b16 %v863, %v862
        %v884 = vpack.c.b16 %v865, %v864
        %v885 = vpack.c.b16 %v867, %v866
        %v886 = vpack.c.b16 %v869, %v868
        %v887 = vpack.c.b16 %v871, %v870
        %904 = vmatprep.subr.bf16.mxu0 0
        %905 = vmatpush1.bf16.msra.mxu0 %v872
        %906 = vmatprep.subr.bf16.mxu0 0
        %907 = vmatpush1.bf16.msra.mxu0 %v873
        %908 = vmatprep.subr.bf16.mxu0 0
        %909 = vmatpush1.bf16.msra.mxu0 %v874
        %910 = vmatprep.subr.bf16.mxu0 0
        %911 = vmatpush1.bf16.msra.mxu0 %v875
        %912 = vmatprep.subr.bf16.mxu0 0
        %913 = vmatpush1.bf16.msra.mxu0 %v876
        %914 = vmatprep.subr.bf16.mxu0 0
        %915 = vmatpush1.bf16.msra.mxu0 %v877
        %916 = vmatprep.subr.bf16.mxu0 0
        %917 = vmatpush1.bf16.msra.mxu0 %v878
        %918 = vmatprep.subr.bf16.mxu0 0
        %919 = vmatpush1.bf16.msra.mxu0 %v879
        %920 = vmatprep.subr.bf16.mxu0 0
        %921 = vmatpush1.bf16.msra.mxu0 %v880
        %922 = vmatprep.subr.bf16.mxu0 0
        %923 = vmatpush1.bf16.msra.mxu0 %v881
        %924 = vmatprep.subr.bf16.mxu0 0
        %925 = vmatpush1.bf16.msra.mxu0 %v882
        %926 = vmatprep.subr.bf16.mxu0 0
        %927 = vmatpush1.bf16.msra.mxu0 %v883
        %928 = vmatprep.subr.bf16.mxu0 0
        %929 = vmatpush1.bf16.msra.mxu0 %v884
        %930 = vmatprep.subr.bf16.mxu0 0
        %931 = vmatpush1.bf16.msra.mxu0 %v885
        %932 = vmatprep.subr.bf16.mxu0 0
        %933 = vmatpush1.bf16.msra.mxu0 %v886
        %934 = vmatprep.subr.bf16.mxu0 0
        %935 = vmatpush1.bf16.msra.mxu0 %v887
        %936 = vmatprep.mubr.bf16.mxu0 %v681
        %937 = vmatmul.mubr.bf16.gmra.mrb[0].mxu0 %v680
        %v938 = vpop.f32.mrb[0].mxu0
        %v939 = vadd.f32 %v486, %v938
        %v940 = vpop.f32.mrb[0].mxu0
        %v941 = vpop.f32.mrb[0].mxu0
        %v942 = vadd.f32 %v486, %v941
        %v943 = vpop.f32.mrb[0].mxu0
        %944 = vmatprep.mubr.bf16.mxu0 %v683
        %945 = vmatmul.mubr.bf16.gmra.mrb[0].mxu0 %v682
        %v946 = vpop.f32.mrb[0].mxu0
        %v947 = vadd.f32 %v486, %v946
        %v948 = vpop.f32.mrb[0].mxu0
        %v949 = vpop.f32.mrb[0].mxu0
        %v950 = vadd.f32 %v486, %v949
        %v951 = vpop.f32.mrb[0].mxu0
        %952 = vmatprep.mubr.bf16.mxu0 %v685
        %953 = vmatmul.mubr.bf16.gmra.mrb[0].mxu0 %v684
        %v954 = vpop.f32.mrb[0].mxu0
        %v955 = vadd.f32 %v486, %v954
        %v956 = vpop.f32.mrb[0].mxu0
        %v957 = vpop.f32.mrb[0].mxu0
        %v958 = vadd.f32 %v486, %v957
        %v959 = vpop.f32.mrb[0].mxu0
        %960 = vmatprep.mubr.bf16.mxu0 %v687
        %961 = vmatmul.mubr.bf16.gmra.mrb[0].mxu0 %v686
        %v962 = vpop.f32.mrb[0].mxu0
        %v963 = vadd.f32 %v486, %v962
        %v964 = vpop.f32.mrb[0].mxu0
        %v965 = vpop.f32.mrb[0].mxu0
        %v966 = vadd.f32 %v486, %v965
        %v967 = vpop.f32.mrb[0].mxu0
        %968 = vmatprep.mubr.bf16.mxu0 %v689
        %969 = vmatmul.mubr.bf16.gmra.mrb[0].mxu0 %v688
        %v970 = vpop.f32.mrb[0].mxu0
        %v971 = vadd.f32 %v486, %v970
        %v972 = vpop.f32.mrb[0].mxu0
        %v973 = vpop.f32.mrb[0].mxu0
        %v974 = vadd.f32 %v486, %v973
        %v975 = vpop.f32.mrb[0].mxu0
        %976 = vmatprep.mubr.bf16.mxu0 %v691
        %977 = vmatmul.mubr.bf16.gmra.mrb[0].mxu0 %v690
        %v978 = vpop.f32.mrb[0].mxu0
        %v979 = vadd.f32 %v486, %v978
        %v980 = vpop.f32.mrb[0].mxu0
        %v981 = vpop.f32.mrb[0].mxu0
        %v982 = vadd.f32 %v486, %v981
        %v983 = vpop.f32.mrb[0].mxu0
        %984 = vmatprep.mubr.bf16.mxu0 %v693
        %985 = vmatmul.mubr.bf16.gmra.mrb[0].mxu0 %v692
        %v986 = vpop.f32.mrb[0].mxu0
        %v987 = vadd.f32 %v486, %v986
        %v988 = vpop.f32.mrb[0].mxu0
        %v989 = vpop.f32.mrb[0].mxu0
        %v990 = vadd.f32 %v486, %v989
        %v991 = vpop.f32.mrb[0].mxu0
        %992 = vmatprep.mubr.bf16.mxu0 %v695
        %993 = vmatmul.mubr.bf16.gmra.mrb[0].mxu0 %v694
        %v994 = vpop.f32.mrb[0].mxu0
        %v995 = vadd.f32 %v486, %v994
        %v996 = vpop.f32.mrb[0].mxu0
        %v997 = vpop.f32.mrb[0].mxu0
        %v998 = vadd.f32 %v486, %v997
        %v999 = vpop.f32.mrb[0].mxu0
        %1000 = vmatprep.mubr.bf16.mxu0 %v697
        %1001 = vmatmul.mubr.bf16.gmra.mrb[0].mxu0 %v696
        %v1002 = vpop.f32.mrb[0].mxu0
        %v1003 = vadd.f32 %v486, %v1002
        %v1004 = vpop.f32.mrb[0].mxu0
        %v1005 = vpop.f32.mrb[0].mxu0
        %v1006 = vadd.f32 %v486, %v1005
        %v1007 = vpop.f32.mrb[0].mxu0
        %1008 = vmatprep.mubr.bf16.mxu0 %v699
        %1009 = vmatmul.mubr.bf16.gmra.mrb[0].mxu0 %v698
        %v1010 = vpop.f32.mrb[0].mxu0
        %v1011 = vadd.f32 %v486, %v1010
        %v1012 = vpop.f32.mrb[0].mxu0
        %v1013 = vpop.f32.mrb[0].mxu0
        %v1014 = vadd.f32 %v486, %v1013
        %v1015 = vpop.f32.mrb[0].mxu0
        %1016 = vmatprep.mubr.bf16.mxu0 %v701
        %1017 = vmatmul.mubr.bf16.gmra.mrb[0].mxu0 %v700
        %v1018 = vpop.f32.mrb[0].mxu0
        %v1019 = vadd.f32 %v486, %v1018
        %v1020 = vpop.f32.mrb[0].mxu0
        %v1021 = vpop.f32.mrb[0].mxu0
        %v1022 = vadd.f32 %v486, %v1021
        %v1023 = vpop.f32.mrb[0].mxu0
        %1024 = vmatprep.mubr.bf16.mxu0 %v703
        %1025 = vmatmul.mubr.bf16.gmra.mrb[0].mxu0 %v702
        %v1026 = vpop.f32.mrb[0].mxu0
        %v1027 = vadd.f32 %v486, %v1026
        %v1028 = vpop.f32.mrb[0].mxu0
        %v1029 = vpop.f32.mrb[0].mxu0
        %v1030 = vadd.f32 %v486, %v1029
        %v1031 = vpop.f32.mrb[0].mxu0
        %1032 = vmatprep.mubr.bf16.mxu0 %v705
        %1033 = vmatmul.mubr.bf16.gmra.mrb[0].mxu0 %v704
        %v1034 = vpop.f32.mrb[0].mxu0
        %v1035 = vadd.f32 %v486, %v1034
        %v1036 = vpop.f32.mrb[0].mxu0
        %v1037 = vpop.f32.mrb[0].mxu0
        %v1038 = vadd.f32 %v486, %v1037
        %v1039 = vpop.f32.mrb[0].mxu0
        %1040 = vmatprep.mubr.bf16.mxu0 %v707
        %1041 = vmatmul.mubr.bf16.gmra.mrb[0].mxu0 %v706
        %v1042 = vpop.f32.mrb[0].mxu0
        %v1043 = vadd.f32 %v486, %v1042
        %v1044 = vpop.f32.mrb[0].mxu0
        %v1045 = vpop.f32.mrb[0].mxu0
        %v1046 = vadd.f32 %v486, %v1045
        %v1047 = vpop.f32.mrb[0].mxu0
        %1048 = vmatprep.mubr.bf16.mxu0 %v709
        %1049 = vmatmul.mubr.bf16.gmra.mrb[0].mxu0 %v708
        %v1050 = vpop.f32.mrb[0].mxu0
        %v1051 = vadd.f32 %v486, %v1050
        %v1052 = vpop.f32.mrb[0].mxu0
        %v1053 = vpop.f32.mrb[0].mxu0
        %v1054 = vadd.f32 %v486, %v1053
        %v1055 = vpop.f32.mrb[0].mxu0
        %1056 = vmatprep.mubr.bf16.mxu0 %v711
        %1057 = vmatmul.mubr.bf16.gmra.mrb[0].mxu0 %v710
        %v1058 = vpop.f32.mrb[0].mxu0
        %v1059 = vadd.f32 %v486, %v1058
        %v1060 = vpop.f32.mrb[0].mxu0
        %v1061 = vpop.f32.mrb[0].mxu0
        %v1062 = vadd.f32 %v486, %v1061
        %v1063 = vpop.f32.mrb[0].mxu0
        %1064 = vmatprep.mubr.bf16.mxu0 %v713
        %1065 = vmatmul.mubr.bf16.gmra.mrb[0].mxu0 %v712
        %v1066 = vpop.f32.mrb[0].mxu0
        %v1067 = vadd.f32 %v486, %v1066
        %v1068 = vpop.f32.mrb[0].mxu0
        %v1069 = vpop.f32.mrb[0].mxu0
        %v1070 = vadd.f32 %v486, %v1069
        %v1071 = vpop.f32.mrb[0].mxu0
        %1072 = vmatprep.mubr.bf16.mxu0 %v715
        %1073 = vmatmul.mubr.bf16.gmra.mrb[0].mxu0 %v714
        %v1074 = vpop.f32.mrb[0].mxu0
        %v1075 = vadd.f32 %v486, %v1074
        %v1076 = vpop.f32.mrb[0].mxu0
        %v1077 = vpop.f32.mrb[0].mxu0
        %v1078 = vadd.f32 %v486, %v1077
        %v1079 = vpop.f32.mrb[0].mxu0
        %1080 = vmatprep.mubr.bf16.mxu0 %v717
        %1081 = vmatmul.mubr.bf16.gmra.mrb[0].mxu0 %v716
        %v1082 = vpop.f32.mrb[0].mxu0
        %v1083 = vadd.f32 %v486, %v1082
        %v1084 = vpop.f32.mrb[0].mxu0
        %v1085 = vpop.f32.mrb[0].mxu0
        %v1086 = vadd.f32 %v486, %v1085
        %v1087 = vpop.f32.mrb[0].mxu0
        %1088 = vmatprep.mubr.bf16.mxu0 %v719
        %1089 = vmatmul.mubr.bf16.gmra.mrb[0].mxu0 %v718
        %v1090 = vpop.f32.mrb[0].mxu0
        %v1091 = vadd.f32 %v486, %v1090
        %v1092 = vpop.f32.mrb[0].mxu0
        %v1093 = vpop.f32.mrb[0].mxu0
        %v1094 = vadd.f32 %v486, %v1093
        %v1095 = vpop.f32.mrb[0].mxu0
        %1096 = vmatprep.mubr.bf16.mxu0 %v721
        %1097 = vmatmul.mubr.bf16.gmra.mrb[0].mxu0 %v720
        %v1098 = vpop.f32.mrb[0].mxu0
        %v1099 = vadd.f32 %v486, %v1098
        %v1100 = vpop.f32.mrb[0].mxu0
        %v1101 = vpop.f32.mrb[0].mxu0
        %v1102 = vadd.f32 %v486, %v1101
        %v1103 = vpop.f32.mrb[0].mxu0
        %1104 = vmatprep.mubr.bf16.mxu0 %v723
        %1105 = vmatmul.mubr.bf16.gmra.mrb[0].mxu0 %v722
        %v1106 = vpop.f32.mrb[0].mxu0
        %v1107 = vadd.f32 %v486, %v1106
        %v1108 = vpop.f32.mrb[0].mxu0
        %v1109 = vpop.f32.mrb[0].mxu0
        %v1110 = vadd.f32 %v486, %v1109
        %v1111 = vpop.f32.mrb[0].mxu0
        %1112 = vmatprep.mubr.bf16.mxu0 %v725
        %1113 = vmatmul.mubr.bf16.gmra.mrb[0].mxu0 %v724
        %v1114 = vpop.f32.mrb[0].mxu0
        %v1115 = vadd.f32 %v486, %v1114
        %v1116 = vpop.f32.mrb[0].mxu0
        %v1117 = vpop.f32.mrb[0].mxu0
        %v1118 = vadd.f32 %v486, %v1117
        %v1119 = vpop.f32.mrb[0].mxu0
        %1120 = vmatprep.mubr.bf16.mxu0 %v727
        %1121 = vmatmul.mubr.bf16.gmra.mrb[0].mxu0 %v726
        %v1122 = vpop.f32.mrb[0].mxu0
        %v1123 = vadd.f32 %v486, %v1122
        %v1124 = vpop.f32.mrb[0].mxu0
        %v1125 = vpop.f32.mrb[0].mxu0
        %v1126 = vadd.f32 %v486, %v1125
        %v1127 = vpop.f32.mrb[0].mxu0
        %1128 = vmatprep.mubr.bf16.mxu0 %v729
        %1129 = vmatmul.mubr.bf16.gmra.mrb[0].mxu0 %v728
        %v1130 = vpop.f32.mrb[0].mxu0
        %v1131 = vadd.f32 %v486, %v1130
        %v1132 = vpop.f32.mrb[0].mxu0
        %v1133 = vpop.f32.mrb[0].mxu0
        %v1134 = vadd.f32 %v486, %v1133
        %v1135 = vpop.f32.mrb[0].mxu0
        %1136 = vmatprep.mubr.bf16.mxu0 %v731
        %1137 = vmatmul.mubr.bf16.gmra.mrb[0].mxu0 %v730
        %v1138 = vpop.f32.mrb[0].mxu0
        %v1139 = vadd.f32 %v486, %v1138
        %v1140 = vpop.f32.mrb[0].mxu0
        %v1141 = vpop.f32.mrb[0].mxu0
        %v1142 = vadd.f32 %v486, %v1141
        %v1143 = vpop.f32.mrb[0].mxu0
        %1144 = vmatprep.mubr.bf16.mxu0 %v733
        %1145 = vmatmul.mubr.bf16.gmra.mrb[0].mxu0 %v732
        %v1146 = vpop.f32.mrb[0].mxu0
        %v1147 = vadd.f32 %v486, %v1146
        %v1148 = vpop.f32.mrb[0].mxu0
        %v1149 = vpop.f32.mrb[0].mxu0
        %v1150 = vadd.f32 %v486, %v1149
        %v1151 = vpop.f32.mrb[0].mxu0
        %1152 = vmatprep.mubr.bf16.mxu0 %v735
        %1153 = vmatmul.mubr.bf16.gmra.mrb[0].mxu0 %v734
        %v1154 = vpop.f32.mrb[0].mxu0
        %v1155 = vadd.f32 %v486, %v1154
        %v1156 = vpop.f32.mrb[0].mxu0
        %v1157 = vpop.f32.mrb[0].mxu0
        %v1158 = vadd.f32 %v486, %v1157
        %v1159 = vpop.f32.mrb[0].mxu0
        %1160 = vmatprep.mubr.bf16.mxu0 %v737
        %1161 = vmatmul.mubr.bf16.gmra.mrb[0].mxu0 %v736
        %v1162 = vpop.f32.mrb[0].mxu0
        %v1163 = vadd.f32 %v486, %v1162
        %v1164 = vpop.f32.mrb[0].mxu0
        %v1165 = vpop.f32.mrb[0].mxu0
        %v1166 = vadd.f32 %v486, %v1165
        %v1167 = vpop.f32.mrb[0].mxu0
        %1168 = vmatprep.mubr.bf16.mxu0 %v739
        %1169 = vmatmul.mubr.bf16.gmra.mrb[0].mxu0 %v738
        %v1170 = vpop.f32.mrb[0].mxu0
        %v1171 = vadd.f32 %v486, %v1170
        %v1172 = vpop.f32.mrb[0].mxu0
        %v1173 = vpop.f32.mrb[0].mxu0
        %v1174 = vadd.f32 %v486, %v1173
        %v1175 = vpop.f32.mrb[0].mxu0
        %1176 = vmatprep.mubr.bf16.mxu0 %v741
        %1177 = vmatmul.mubr.bf16.gmra.mrb[0].mxu0 %v740
        %v1178 = vpop.f32.mrb[0].mxu0
        %v1179 = vadd.f32 %v486, %v1178
        %v1180 = vpop.f32.mrb[0].mxu0
        %v1181 = vpop.f32.mrb[0].mxu0
        %v1182 = vadd.f32 %v486, %v1181
        %v1183 = vpop.f32.mrb[0].mxu0
        %1184 = vmatprep.mubr.bf16.mxu0 %v743
        %1185 = vmatmul.mubr.bf16.gmra.mrb[0].mxu0 %v742
        %v1186 = vpop.f32.mrb[0].mxu0
        %v1187 = vadd.f32 %v486, %v1186
        %v1188 = vpop.f32.mrb[0].mxu0
        %v1189 = vpop.f32.mrb[0].mxu0
        %v1190 = vadd.f32 %v486, %v1189
        %v1191 = vpop.f32.mrb[0].mxu0
        %1192 = vdwg.mxu0
        %v1193 = vpack.c.bf16 %v942, %v939
        %v1194 = vpack.c.bf16 %v950, %v947
        %v1195 = vpack.c.bf16 %v958, %v955
        %v1196 = vpack.c.bf16 %v966, %v963
        %v1197 = vpack.c.bf16 %v974, %v971
        %v1198 = vpack.c.bf16 %v982, %v979
        %v1199 = vpack.c.bf16 %v990, %v987
        %v1200 = vpack.c.bf16 %v998, %v995
        %v1201 = vpack.c.bf16 %v1006, %v1003
        %v1202 = vpack.c.bf16 %v1014, %v1011
        %v1203 = vpack.c.bf16 %v1022, %v1019
        %v1204 = vpack.c.bf16 %v1030, %v1027
        %v1205 = vpack.c.bf16 %v1038, %v1035
        %v1206 = vpack.c.bf16 %v1046, %v1043
        %v1207 = vpack.c.bf16 %v1054, %v1051
        %v1208 = vpack.c.bf16 %v1062, %v1059
        %v1209 = vpack.c.bf16 %v1070, %v1067
        %v1210 = vpack.c.bf16 %v1078, %v1075
        %v1211 = vpack.c.bf16 %v1086, %v1083
        %v1212 = vpack.c.bf16 %v1094, %v1091
        %v1213 = vpack.c.bf16 %v1102, %v1099
        %v1214 = vpack.c.bf16 %v1110, %v1107
        %v1215 = vpack.c.bf16 %v1118, %v1115
        %v1216 = vpack.c.bf16 %v1126, %v1123
        %v1217 = vpack.c.bf16 %v1134, %v1131
        %v1218 = vpack.c.bf16 %v1142, %v1139
        %v1219 = vpack.c.bf16 %v1150, %v1147
        %v1220 = vpack.c.bf16 %v1158, %v1155
        %v1221 = vpack.c.bf16 %v1166, %v1163
        %v1222 = vpack.c.bf16 %v1174, %v1171
        %v1223 = vpack.c.bf16 %v1182, %v1179
        %v1224 = vpack.c.bf16 %v1190, %v1187
        %v1257 = vunpack.c.l.b16 %v1193
        %v1258 = vunpack.c.h.b16 %v1193
        %v1259 = vunpack.c.l.b16 %v1194
        %v1260 = vunpack.c.h.b16 %v1194
        %v1261 = vunpack.c.l.b16 %v1195
        %v1262 = vunpack.c.h.b16 %v1195
        %v1263 = vunpack.c.l.b16 %v1196
        %v1264 = vunpack.c.h.b16 %v1196
        %v1265 = vunpack.c.l.b16 %v1197
        %v1266 = vunpack.c.h.b16 %v1197
        %v1267 = vunpack.c.l.b16 %v1198
        %v1268 = vunpack.c.h.b16 %v1198
        %v1269 = vunpack.c.l.b16 %v1199
        %v1270 = vunpack.c.h.b16 %v1199
        %v1271 = vunpack.c.l.b16 %v1200
        %v1272 = vunpack.c.h.b16 %v1200
        %v1273 = vunpack.c.l.b16 %v1201
        %v1274 = vunpack.c.h.b16 %v1201
        %v1275 = vunpack.c.l.b16 %v1202
        %v1276 = vunpack.c.h.b16 %v1202
        %v1277 = vunpack.c.l.b16 %v1203
        %v1278 = vunpack.c.h.b16 %v1203
        %v1279 = vunpack.c.l.b16 %v1204
        %v1280 = vunpack.c.h.b16 %v1204
        %v1281 = vunpack.c.l.b16 %v1205
        %v1282 = vunpack.c.h.b16 %v1205
        %v1283 = vunpack.c.l.b16 %v1206
        %v1284 = vunpack.c.h.b16 %v1206
        %v1285 = vunpack.c.l.b16 %v1207
        %v1286 = vunpack.c.h.b16 %v1207
        %v1287 = vunpack.c.l.b16 %v1208
        %v1288 = vunpack.c.h.b16 %v1208
        %v1289 = vunpack.c.l.b16 %v1209
        %v1290 = vunpack.c.h.b16 %v1209
        %v1291 = vunpack.c.l.b16 %v1210
        %v1292 = vunpack.c.h.b16 %v1210
        %v1293 = vunpack.c.l.b16 %v1211
        %v1294 = vunpack.c.h.b16 %v1211
        %v1295 = vunpack.c.l.b16 %v1212
        %v1296 = vunpack.c.h.b16 %v1212
        %v1297 = vunpack.c.l.b16 %v1213
        %v1298 = vunpack.c.h.b16 %v1213
        %v1299 = vunpack.c.l.b16 %v1214
        %v1300 = vunpack.c.h.b16 %v1214
        %v1301 = vunpack.c.l.b16 %v1215
        %v1302 = vunpack.c.h.b16 %v1215
        %v1303 = vunpack.c.l.b16 %v1216
        %v1304 = vunpack.c.h.b16 %v1216
        %v1305 = vunpack.c.l.b16 %v1217
        %v1306 = vunpack.c.h.b16 %v1217
        %v1307 = vunpack.c.l.b16 %v1218
        %v1308 = vunpack.c.h.b16 %v1218
        %v1309 = vunpack.c.l.b16 %v1219
        %v1310 = vunpack.c.h.b16 %v1219
        %v1311 = vunpack.c.l.b16 %v1220
        %v1312 = vunpack.c.h.b16 %v1220
        %v1313 = vunpack.c.l.b16 %v1221
        %v1314 = vunpack.c.h.b16 %v1221
        %v1315 = vunpack.c.l.b16 %v1222
        %v1316 = vunpack.c.h.b16 %v1222
        %v1317 = vunpack.c.l.b16 %v1223
        %v1318 = vunpack.c.h.b16 %v1223
        %v1319 = vunpack.c.l.b16 %v1224
        %v1320 = vunpack.c.h.b16 %v1224
        %v1321 = vpack.c.b16 %v1257, %v1257
        %v1322 = vpack.c.b16 %v1258, %v1258
        %v1323 = vpack.c.b16 %v1259, %v1259
        %v1324 = vpack.c.b16 %v1260, %v1260
        %v1325 = vpack.c.b16 %v1261, %v1261
        %v1326 = vpack.c.b16 %v1262, %v1262
        %v1327 = vpack.c.b16 %v1263, %v1263
        %v1328 = vpack.c.b16 %v1264, %v1264
        %v1329 = vpack.c.b16 %v1265, %v1265
        %v1330 = vpack.c.b16 %v1266, %v1266
        %v1331 = vpack.c.b16 %v1267, %v1267
        %v1332 = vpack.c.b16 %v1268, %v1268
        %v1333 = vpack.c.b16 %v1269, %v1269
        %v1334 = vpack.c.b16 %v1270, %v1270
        %v1335 = vpack.c.b16 %v1271, %v1271
        %v1336 = vpack.c.b16 %v1272, %v1272
        %v1337 = vpack.c.b16 %v1273, %v1273
        %v1338 = vpack.c.b16 %v1274, %v1274
        %v1339 = vpack.c.b16 %v1275, %v1275
        %v1340 = vpack.c.b16 %v1276, %v1276
        %v1341 = vpack.c.b16 %v1277, %v1277
        %v1342 = vpack.c.b16 %v1278, %v1278
        %v1343 = vpack.c.b16 %v1279, %v1279
        %v1344 = vpack.c.b16 %v1280, %v1280
        %v1345 = vpack.c.b16 %v1281, %v1281
        %v1346 = vpack.c.b16 %v1282, %v1282
        %v1347 = vpack.c.b16 %v1283, %v1283
        %v1348 = vpack.c.b16 %v1284, %v1284
        %v1349 = vpack.c.b16 %v1285, %v1285
        %v1350 = vpack.c.b16 %v1286, %v1286
        %v1351 = vpack.c.b16 %v1287, %v1287
        %v1352 = vpack.c.b16 %v1288, %v1288
        %v1353 = vpack.c.b16 %v1289, %v1289
        %v1354 = vpack.c.b16 %v1290, %v1290
        %v1355 = vpack.c.b16 %v1291, %v1291
        %v1356 = vpack.c.b16 %v1292, %v1292
        %v1357 = vpack.c.b16 %v1293, %v1293
        %v1358 = vpack.c.b16 %v1294, %v1294
        %v1359 = vpack.c.b16 %v1295, %v1295
        %v1360 = vpack.c.b16 %v1296, %v1296
        %v1361 = vpack.c.b16 %v1297, %v1297
        %v1362 = vpack.c.b16 %v1298, %v1298
        %v1363 = vpack.c.b16 %v1299, %v1299
        %v1364 = vpack.c.b16 %v1300, %v1300
        %v1365 = vpack.c.b16 %v1301, %v1301
        %v1366 = vpack.c.b16 %v1302, %v1302
        %v1367 = vpack.c.b16 %v1303, %v1303
        %v1368 = vpack.c.b16 %v1304, %v1304
        %v1369 = vpack.c.b16 %v1305, %v1305
        %v1370 = vpack.c.b16 %v1306, %v1306
        %v1371 = vpack.c.b16 %v1307, %v1307
        %v1372 = vpack.c.b16 %v1308, %v1308
        %v1373 = vpack.c.b16 %v1309, %v1309
        %v1374 = vpack.c.b16 %v1310, %v1310
        %v1375 = vpack.c.b16 %v1311, %v1311
        %v1376 = vpack.c.b16 %v1312, %v1312
        %v1377 = vpack.c.b16 %v1313, %v1313
        %v1378 = vpack.c.b16 %v1314, %v1314
        %v1379 = vpack.c.b16 %v1315, %v1315
        %v1380 = vpack.c.b16 %v1316, %v1316
        %v1381 = vpack.c.b16 %v1317, %v1317
        %v1382 = vpack.c.b16 %v1318, %v1318
        %v1383 = vpack.c.b16 %v1319, %v1319
        %v1384 = vpack.c.b16 %v1320, %v1320
        %1449 = vst [vmem:[%s372] sm:$0xf] %v1321
        %1450 = vst [vmem:[%s372 + $0x4] sm:$0xf] %v1322
        %1451 = vst [vmem:[%s372 + $0x8] sm:$0xf] %v1323
        %1452 = vst [vmem:[%s372 + $0xc] sm:$0xf] %v1324
        %1453 = vst [vmem:[%s372 + $0x10] sm:$0xf] %v1325
        %1454 = vst [vmem:[%s372 + $0x14] sm:$0xf] %v1326
        %1455 = vst [vmem:[%s372 + $0x18] sm:$0xf] %v1327
        %1456 = vst [vmem:[%s372 + $0x1c] sm:$0xf] %v1328
        %1457 = vst [vmem:[%s372 + $0x20] sm:$0xf] %v1329
        %1458 = vst [vmem:[%s372 + $0x24] sm:$0xf] %v1330
        %1459 = vst [vmem:[%s372 + $0x28] sm:$0xf] %v1331
        %1460 = vst [vmem:[%s372 + $0x2c] sm:$0xf] %v1332
        %1461 = vst [vmem:[%s372 + $0x30] sm:$0xf] %v1333
        %1462 = vst [vmem:[%s372 + $0x34] sm:$0xf] %v1334
        %1463 = vst [vmem:[%s372 + $0x38] sm:$0xf] %v1335
        %1464 = vst [vmem:[%s372 + $0x3c] sm:$0xf] %v1336
        %1465 = vst [vmem:[%s372 + $0x40] sm:$0xf] %v1337
        %1466 = vst [vmem:[%s372 + $0x44] sm:$0xf] %v1338
        %1467 = vst [vmem:[%s372 + $0x48] sm:$0xf] %v1339
        %1468 = vst [vmem:[%s372 + $0x4c] sm:$0xf] %v1340
        %1469 = vst [vmem:[%s372 + $0x50] sm:$0xf] %v1341
        %1470 = vst [vmem:[%s372 + $0x54] sm:$0xf] %v1342
        %1471 = vst [vmem:[%s372 + $0x58] sm:$0xf] %v1343
        %1472 = vst [vmem:[%s372 + $0x5c] sm:$0xf] %v1344
        %1473 = vst [vmem:[%s372 + $0x60] sm:$0xf] %v1345
        %1474 = vst [vmem:[%s372 + $0x64] sm:$0xf] %v1346
        %1475 = vst [vmem:[%s372 + $0x68] sm:$0xf] %v1347
        %1476 = vst [vmem:[%s372 + $0x6c] sm:$0xf] %v1348
        %1477 = vst [vmem:[%s372 + $0x70] sm:$0xf] %v1349
        %1478 = vst [vmem:[%s372 + $0x74] sm:$0xf] %v1350
        %1479 = vst [vmem:[%s372 + $0x78] sm:$0xf] %v1351
        %1480 = vst [vmem:[%s372 + $0x7c] sm:$0xf] %v1352
        %1481 = vst [vmem:[%s372 + $0x80] sm:$0xf] %v1353
        %1482 = vst [vmem:[%s372 + $0x84] sm:$0xf] %v1354
        %1483 = vst [vmem:[%s372 + $0x88] sm:$0xf] %v1355
        %1484 = vst [vmem:[%s372 + $0x8c] sm:$0xf] %v1356
        %1485 = vst [vmem:[%s372 + $0x90] sm:$0xf] %v1357
        %1486 = vst [vmem:[%s372 + $0x94] sm:$0xf] %v1358
        %1487 = vst [vmem:[%s372 + $0x98] sm:$0xf] %v1359
        %1488 = vst [vmem:[%s372 + $0x9c] sm:$0xf] %v1360
        %1489 = vst [vmem:[%s372 + $0xa0] sm:$0xf] %v1361
        %1490 = vst [vmem:[%s372 + $0xa4] sm:$0xf] %v1362
        %1491 = vst [vmem:[%s372 + $0xa8] sm:$0xf] %v1363
        %1492 = vst [vmem:[%s372 + $0xac] sm:$0xf] %v1364
        %1493 = vst [vmem:[%s372 + $0xb0] sm:$0xf] %v1365
        %1494 = vst [vmem:[%s372 + $0xb4] sm:$0xf] %v1366
        %1495 = vst [vmem:[%s372 + $0xb8] sm:$0xf] %v1367
        %1496 = vst [vmem:[%s372 + $0xbc] sm:$0xf] %v1368
        %1497 = vst [vmem:[%s372 + $0xc0] sm:$0xf] %v1369
        %1498 = vst [vmem:[%s372 + $0xc4] sm:$0xf] %v1370
        %1499 = vst [vmem:[%s372 + $0xc8] sm:$0xf] %v1371
        %1500 = vst [vmem:[%s372 + $0xcc] sm:$0xf] %v1372
        %1501 = vst [vmem:[%s372 + $0xd0] sm:$0xf] %v1373
        %1502 = vst [vmem:[%s372 + $0xd4] sm:$0xf] %v1374
        %1503 = vst [vmem:[%s372 + $0xd8] sm:$0xf] %v1375
        %1504 = vst [vmem:[%s372 + $0xdc] sm:$0xf] %v1376
        %1505 = vst [vmem:[%s372 + $0xe0] sm:$0xf] %v1377
        %1506 = vst [vmem:[%s372 + $0xe4] sm:$0xf] %v1378
        %1507 = vst [vmem:[%s372 + $0xe8] sm:$0xf] %v1379
        %1508 = vst [vmem:[%s372 + $0xec] sm:$0xf] %v1380
        %1509 = vst [vmem:[%s372 + $0xf0] sm:$0xf] %v1381
        %1510 = vst [vmem:[%s372 + $0xf4] sm:$0xf] %v1382
        %1511 = vst [vmem:[%s372 + $0xf8] sm:$0xf] %v1383
        %1512 = vst [vmem:[%s372 + $0xfc] sm:$0xf] %v1384
        %s1513 = sand.u32 %s114, 1
        %s1514 = sand.u32 %s114, 1
        %s1515 = smul.addr %s1514, 256
        %s1516 = scalar_lea.vmem [#allocation3], %s1515
        // Predicated region
        $region74: #{astrous_forward.4} parent=68 // pred_check
          %p1517 = pneg %p124
        $region75: #{astrous_forward.4} parent=68 // pred_check_branch
          %1519 = sbr.rel (%p1517) target = $region77
        $region76: #{astrous_forward.4} parent=68 // pred_region
          %s1520 = smul.u32 64, %s18
          %s1521 = smul.addr %s1520, 2
          %s1522 = sadd.s32 %s19, %s1521
          %s1523 = smul.addr %s1522, 4
          %s1524 = scalar_lea.vmem %s3, %s1523
          // Predicated region
          $region78: #{astrous_forward.4} parent=76 // pred_check
            _
          $region79: #{astrous_forward.4} parent=76 // pred_check_branch
            %1526 = sbr.rel (0) target = $region81
          $region80: #{astrous_forward.4} parent=76 // pred_region
            // Predicated region
            $region82: #{astrous_forward.4} parent=80 // pred_check
              _
            $region83: #{astrous_forward.4} parent=80 // pred_check_branch
              %1528 = sbr.rel target = $region85
            $region84: #{astrous_forward.4} parent=80 // pred_region
              // Predicated region
              $region97: #{astrous_forward.4} parent=84 // pred_check
                _
              $region98: #{astrous_forward.4} parent=84 // pred_check_branch
                %1669 = sbr.rel (0) target = $region100
              $region99: #{astrous_forward.4} parent=84 // pred_region
                loop: start=0, step=1, limit=1
                $region101: #{astrous_forward.4} parent=99 // loop_pre_header
                  _
                $region102: #{astrous_forward.4} parent=99 // loop_header
                  %s1671 = sphi 0, %s1675
                  %p1672 = scmp.ge.s32.totalorder %s1671, 1
                  %s1676 = sphi %s1516, %s1516
                  %s1677 = sphi %s1524, %s1524
                $region103: #{astrous_forward.4} parent=99 // loop_header_branch
                  %1674 = sbr.rel (%p1672) target = $region107
                $region104: #{astrous_forward.4} parent=99 // loop_body
                  _
                $region105: #{astrous_forward.4} parent=99 // loop_footer
                  %s1675 = sadd.s32 1, %s1671
                $region106: #{astrous_forward.4} parent=99 // loop_footer_branch
                  %1670 = sbr.rel target = $region102
                $region107: #{astrous_forward.4} parent=99 // loop_exit
                  _
                loop: start=0, step=1, limit=1
                $region108: #{astrous_forward.4} parent=99 // loop_pre_header
                  _
                $region109: #{astrous_forward.4} parent=99 // loop_header
                  %s1680 = sphi 0, %s1684
                  %p1681 = scmp.ge.s32.totalorder %s1680, 1
                  %s1685 = sphi %s1516, %s1516
                  %s1686 = sphi %s1524, %s1524
                $region110: #{astrous_forward.4} parent=99 // loop_header_branch
                  %1683 = sbr.rel (%p1681) target = $region114
                $region111: #{astrous_forward.4} parent=99 // loop_body
                  %v1687 = vld [vmem:[%s1685] sm:$0xf]
                  %1688 = vst [vmem:[%s1686] sm:$0xf] %v1687
                  %v1689 = vld [vmem:[%s1685 + $0x4] sm:$0xf]
                  %1690 = vst [vmem:[%s1686 + $0x8] sm:$0xf] %v1689
                  %v1691 = vld [vmem:[%s1685 + $0x8] sm:$0xf]
                  %1692 = vst [vmem:[%s1686 + $0x10] sm:$0xf] %v1691
                  %v1693 = vld [vmem:[%s1685 + $0xc] sm:$0xf]
                  %1694 = vst [vmem:[%s1686 + $0x18] sm:$0xf] %v1693
                  %v1695 = vld [vmem:[%s1685 + $0x10] sm:$0xf]
                  %1696 = vst [vmem:[%s1686 + $0x20] sm:$0xf] %v1695
                  %v1697 = vld [vmem:[%s1685 + $0x14] sm:$0xf]
                  %1698 = vst [vmem:[%s1686 + $0x28] sm:$0xf] %v1697
                  %v1699 = vld [vmem:[%s1685 + $0x18] sm:$0xf]
                  %1700 = vst [vmem:[%s1686 + $0x30] sm:$0xf] %v1699
                  %v1701 = vld [vmem:[%s1685 + $0x1c] sm:$0xf]
                  %1702 = vst [vmem:[%s1686 + $0x38] sm:$0xf] %v1701
                  %v1703 = vld [vmem:[%s1685 + $0x20] sm:$0xf]
                  %1704 = vst [vmem:[%s1686 + $0x40] sm:$0xf] %v1703
                  %v1705 = vld [vmem:[%s1685 + $0x24] sm:$0xf]
                  %1706 = vst [vmem:[%s1686 + $0x48] sm:$0xf] %v1705
                  %v1707 = vld [vmem:[%s1685 + $0x28] sm:$0xf]
                  %1708 = vst [vmem:[%s1686 + $0x50] sm:$0xf] %v1707
                  %v1709 = vld [vmem:[%s1685 + $0x2c] sm:$0xf]
                  %1710 = vst [vmem:[%s1686 + $0x58] sm:$0xf] %v1709
                  %v1711 = vld [vmem:[%s1685 + $0x30] sm:$0xf]
                  %1712 = vst [vmem:[%s1686 + $0x60] sm:$0xf] %v1711
                  %v1713 = vld [vmem:[%s1685 + $0x34] sm:$0xf]
                  %1714 = vst [vmem:[%s1686 + $0x68] sm:$0xf] %v1713
                  %v1715 = vld [vmem:[%s1685 + $0x38] sm:$0xf]
                  %1716 = vst [vmem:[%s1686 + $0x70] sm:$0xf] %v1715
                  %v1717 = vld [vmem:[%s1685 + $0x3c] sm:$0xf]
                  %1718 = vst [vmem:[%s1686 + $0x78] sm:$0xf] %v1717
                  %v1719 = vld [vmem:[%s1685 + $0x40] sm:$0xf]
                  %1720 = vst [vmem:[%s1686 + $0x80] sm:$0xf] %v1719
                  %v1721 = vld [vmem:[%s1685 + $0x44] sm:$0xf]
                  %1722 = vst [vmem:[%s1686 + $0x88] sm:$0xf] %v1721
                  %v1723 = vld [vmem:[%s1685 + $0x48] sm:$0xf]
                  %1724 = vst [vmem:[%s1686 + $0x90] sm:$0xf] %v1723
                  %v1725 = vld [vmem:[%s1685 + $0x4c] sm:$0xf]
                  %1726 = vst [vmem:[%s1686 + $0x98] sm:$0xf] %v1725
                  %v1727 = vld [vmem:[%s1685 + $0x50] sm:$0xf]
                  %1728 = vst [vmem:[%s1686 + $0xa0] sm:$0xf] %v1727
                  %v1729 = vld [vmem:[%s1685 + $0x54] sm:$0xf]
                  %1730 = vst [vmem:[%s1686 + $0xa8] sm:$0xf] %v1729
                  %v1731 = vld [vmem:[%s1685 + $0x58] sm:$0xf]
                  %1732 = vst [vmem:[%s1686 + $0xb0] sm:$0xf] %v1731
                  %v1733 = vld [vmem:[%s1685 + $0x5c] sm:$0xf]
                  %1734 = vst [vmem:[%s1686 + $0xb8] sm:$0xf] %v1733
                  %v1735 = vld [vmem:[%s1685 + $0x60] sm:$0xf]
                  %1736 = vst [vmem:[%s1686 + $0xc0] sm:$0xf] %v1735
                  %v1737 = vld [vmem:[%s1685 + $0x64] sm:$0xf]
                  %1738 = vst [vmem:[%s1686 + $0xc8] sm:$0xf] %v1737
                  %v1739 = vld [vmem:[%s1685 + $0x68] sm:$0xf]
                  %1740 = vst [vmem:[%s1686 + $0xd0] sm:$0xf] %v1739
                  %v1741 = vld [vmem:[%s1685 + $0x6c] sm:$0xf]
                  %1742 = vst [vmem:[%s1686 + $0xd8] sm:$0xf] %v1741
                  %v1743 = vld [vmem:[%s1685 + $0x70] sm:$0xf]
                  %1744 = vst [vmem:[%s1686 + $0xe0] sm:$0xf] %v1743
                  %v1745 = vld [vmem:[%s1685 + $0x74] sm:$0xf]
                  %1746 = vst [vmem:[%s1686 + $0xe8] sm:$0xf] %v1745
                  %v1747 = vld [vmem:[%s1685 + $0x78] sm:$0xf]
                  %1748 = vst [vmem:[%s1686 + $0xf0] sm:$0xf] %v1747
                  %v1749 = vld [vmem:[%s1685 + $0x7c] sm:$0xf]
                  %1750 = vst [vmem:[%s1686 + $0xf8] sm:$0xf] %v1749
                  %v1751 = vld [vmem:[%s1685 + $0x80] sm:$0xf]
                  %1752 = vst [vmem:[%s1686 + $0x100] sm:$0xf] %v1751
                  %v1753 = vld [vmem:[%s1685 + $0x84] sm:$0xf]
                  %1754 = vst [vmem:[%s1686 + $0x108] sm:$0xf] %v1753
                  %v1755 = vld [vmem:[%s1685 + $0x88] sm:$0xf]
                  %1756 = vst [vmem:[%s1686 + $0x110] sm:$0xf] %v1755
                  %v1757 = vld [vmem:[%s1685 + $0x8c] sm:$0xf]
                  %1758 = vst [vmem:[%s1686 + $0x118] sm:$0xf] %v1757
                  %v1759 = vld [vmem:[%s1685 + $0x90] sm:$0xf]
                  %1760 = vst [vmem:[%s1686 + $0x120] sm:$0xf] %v1759
                  %v1761 = vld [vmem:[%s1685 + $0x94] sm:$0xf]
                  %1762 = vst [vmem:[%s1686 + $0x128] sm:$0xf] %v1761
                  %v1763 = vld [vmem:[%s1685 + $0x98] sm:$0xf]
                  %1764 = vst [vmem:[%s1686 + $0x130] sm:$0xf] %v1763
                  %v1765 = vld [vmem:[%s1685 + $0x9c] sm:$0xf]
                  %1766 = vst [vmem:[%s1686 + $0x138] sm:$0xf] %v1765
                  %v1767 = vld [vmem:[%s1685 + $0xa0] sm:$0xf]
                  %1768 = vst [vmem:[%s1686 + $0x140] sm:$0xf] %v1767
                  %v1769 = vld [vmem:[%s1685 + $0xa4] sm:$0xf]
                  %1770 = vst [vmem:[%s1686 + $0x148] sm:$0xf] %v1769
                  %v1771 = vld [vmem:[%s1685 + $0xa8] sm:$0xf]
                  %1772 = vst [vmem:[%s1686 + $0x150] sm:$0xf] %v1771
                  %v1773 = vld [vmem:[%s1685 + $0xac] sm:$0xf]
                  %1774 = vst [vmem:[%s1686 + $0x158] sm:$0xf] %v1773
                  %v1775 = vld [vmem:[%s1685 + $0xb0] sm:$0xf]
                  %1776 = vst [vmem:[%s1686 + $0x160] sm:$0xf] %v1775
                  %v1777 = vld [vmem:[%s1685 + $0xb4] sm:$0xf]
                  %1778 = vst [vmem:[%s1686 + $0x168] sm:$0xf] %v1777
                  %v1779 = vld [vmem:[%s1685 + $0xb8] sm:$0xf]
                  %1780 = vst [vmem:[%s1686 + $0x170] sm:$0xf] %v1779
                  %v1781 = vld [vmem:[%s1685 + $0xbc] sm:$0xf]
                  %1782 = vst [vmem:[%s1686 + $0x178] sm:$0xf] %v1781
                  %v1783 = vld [vmem:[%s1685 + $0xc0] sm:$0xf]
                  %1784 = vst [vmem:[%s1686 + $0x180] sm:$0xf] %v1783
                  %v1785 = vld [vmem:[%s1685 + $0xc4] sm:$0xf]
                  %1786 = vst [vmem:[%s1686 + $0x188] sm:$0xf] %v1785
                  %v1787 = vld [vmem:[%s1685 + $0xc8] sm:$0xf]
                  %1788 = vst [vmem:[%s1686 + $0x190] sm:$0xf] %v1787
                  %v1789 = vld [vmem:[%s1685 + $0xcc] sm:$0xf]
                  %1790 = vst [vmem:[%s1686 + $0x198] sm:$0xf] %v1789
                  %v1791 = vld [vmem:[%s1685 + $0xd0] sm:$0xf]
                  %1792 = vst [vmem:[%s1686 + $0x1a0] sm:$0xf] %v1791
                  %v1793 = vld [vmem:[%s1685 + $0xd4] sm:$0xf]
                  %1794 = vst [vmem:[%s1686 + $0x1a8] sm:$0xf] %v1793
                  %v1795 = vld [vmem:[%s1685 + $0xd8] sm:$0xf]
                  %1796 = vst [vmem:[%s1686 + $0x1b0] sm:$0xf] %v1795
                  %v1797 = vld [vmem:[%s1685 + $0xdc] sm:$0xf]
                  %1798 = vst [vmem:[%s1686 + $0x1b8] sm:$0xf] %v1797
                  %v1799 = vld [vmem:[%s1685 + $0xe0] sm:$0xf]
                  %1800 = vst [vmem:[%s1686 + $0x1c0] sm:$0xf] %v1799
                  %v1801 = vld [vmem:[%s1685 + $0xe4] sm:$0xf]
                  %1802 = vst [vmem:[%s1686 + $0x1c8] sm:$0xf] %v1801
                  %v1803 = vld [vmem:[%s1685 + $0xe8] sm:$0xf]
                  %1804 = vst [vmem:[%s1686 + $0x1d0] sm:$0xf] %v1803
                  %v1805 = vld [vmem:[%s1685 + $0xec] sm:$0xf]
                  %1806 = vst [vmem:[%s1686 + $0x1d8] sm:$0xf] %v1805
                  %v1807 = vld [vmem:[%s1685 + $0xf0] sm:$0xf]
                  %1808 = vst [vmem:[%s1686 + $0x1e0] sm:$0xf] %v1807
                  %v1809 = vld [vmem:[%s1685 + $0xf4] sm:$0xf]
                  %1810 = vst [vmem:[%s1686 + $0x1e8] sm:$0xf] %v1809
                  %v1811 = vld [vmem:[%s1685 + $0xf8] sm:$0xf]
                  %1812 = vst [vmem:[%s1686 + $0x1f0] sm:$0xf] %v1811
                  %v1813 = vld [vmem:[%s1685 + $0xfc] sm:$0xf]
                  %1814 = vst [vmem:[%s1686 + $0x1f8] sm:$0xf] %v1813
                $region112: #{astrous_forward.4} parent=99 // loop_footer
                  %s1684 = sadd.s32 1, %s1680
                $region113: #{astrous_forward.4} parent=99 // loop_footer_branch
                  %1679 = sbr.rel target = $region109
                $region114: #{astrous_forward.4} parent=99 // loop_exit
                  _
              $region100: #{astrous_forward.4} parent=84 // pred_fallthru
                _
            $region85: #{astrous_forward.4} parent=80 // pred_fallthru
              _
            // Predicated region
            $region86: #{astrous_forward.4} parent=80 // pred_check
              _
            $region87: #{astrous_forward.4} parent=80 // pred_check_branch
              %1530 = sbr.rel (0) target = $region89
            $region88: #{astrous_forward.4} parent=80 // pred_region
              loop: start=0, step=1, limit=1
              $region90: #{astrous_forward.4} parent=88 // loop_pre_header
                _
              $region91: #{astrous_forward.4} parent=88 // loop_header
                %s1533 = sphi 0, %s1537
                %p1534 = scmp.ge.s32.totalorder %s1533, 1
                %s1538 = sphi %s1516, %s1516
                %s1539 = sphi %s1524, %s1524
              $region92: #{astrous_forward.4} parent=88 // loop_header_branch
                %1536 = sbr.rel (%p1534) target = $region96
              $region93: #{astrous_forward.4} parent=88 // loop_body
                %v1540 = vld [vmem:[%s1538] sm:$0xf]
                %1541 = vst [vmem:[%s1539] sm:$0xf] %v1540
                %v1542 = vld [vmem:[%s1538 + $0x4] sm:$0xf]
                %1543 = vst [vmem:[%s1539 + $0x8] sm:$0xf] %v1542
                %v1544 = vld [vmem:[%s1538 + $0x8] sm:$0xf]
                %1545 = vst [vmem:[%s1539 + $0x10] sm:$0xf] %v1544
                %v1546 = vld [vmem:[%s1538 + $0xc] sm:$0xf]
                %1547 = vst [vmem:[%s1539 + $0x18] sm:$0xf] %v1546
                %v1548 = vld [vmem:[%s1538 + $0x10] sm:$0xf]
                %1549 = vst [vmem:[%s1539 + $0x20] sm:$0xf] %v1548
                %v1550 = vld [vmem:[%s1538 + $0x14] sm:$0xf]
                %1551 = vst [vmem:[%s1539 + $0x28] sm:$0xf] %v1550
                %v1552 = vld [vmem:[%s1538 + $0x18] sm:$0xf]
                %1553 = vst [vmem:[%s1539 + $0x30] sm:$0xf] %v1552
                %v1554 = vld [vmem:[%s1538 + $0x1c] sm:$0xf]
                %1555 = vst [vmem:[%s1539 + $0x38] sm:$0xf] %v1554
                %v1556 = vld [vmem:[%s1538 + $0x20] sm:$0xf]
                %1557 = vst [vmem:[%s1539 + $0x40] sm:$0xf] %v1556
                %v1558 = vld [vmem:[%s1538 + $0x24] sm:$0xf]
                %1559 = vst [vmem:[%s1539 + $0x48] sm:$0xf] %v1558
                %v1560 = vld [vmem:[%s1538 + $0x28] sm:$0xf]
                %1561 = vst [vmem:[%s1539 + $0x50] sm:$0xf] %v1560
                %v1562 = vld [vmem:[%s1538 + $0x2c] sm:$0xf]
                %1563 = vst [vmem:[%s1539 + $0x58] sm:$0xf] %v1562
                %v1564 = vld [vmem:[%s1538 + $0x30] sm:$0xf]
                %1565 = vst [vmem:[%s1539 + $0x60] sm:$0xf] %v1564
                %v1566 = vld [vmem:[%s1538 + $0x34] sm:$0xf]
                %1567 = vst [vmem:[%s1539 + $0x68] sm:$0xf] %v1566
                %v1568 = vld [vmem:[%s1538 + $0x38] sm:$0xf]
                %1569 = vst [vmem:[%s1539 + $0x70] sm:$0xf] %v1568
                %v1570 = vld [vmem:[%s1538 + $0x3c] sm:$0xf]
                %1571 = vst [vmem:[%s1539 + $0x78] sm:$0xf] %v1570
                %v1572 = vld [vmem:[%s1538 + $0x40] sm:$0xf]
                %1573 = vst [vmem:[%s1539 + $0x80] sm:$0xf] %v1572
                %v1574 = vld [vmem:[%s1538 + $0x44] sm:$0xf]
                %1575 = vst [vmem:[%s1539 + $0x88] sm:$0xf] %v1574
                %v1576 = vld [vmem:[%s1538 + $0x48] sm:$0xf]
                %1577 = vst [vmem:[%s1539 + $0x90] sm:$0xf] %v1576
                %v1578 = vld [vmem:[%s1538 + $0x4c] sm:$0xf]
                %1579 = vst [vmem:[%s1539 + $0x98] sm:$0xf] %v1578
                %v1580 = vld [vmem:[%s1538 + $0x50] sm:$0xf]
                %1581 = vst [vmem:[%s1539 + $0xa0] sm:$0xf] %v1580
                %v1582 = vld [vmem:[%s1538 + $0x54] sm:$0xf]
                %1583 = vst [vmem:[%s1539 + $0xa8] sm:$0xf] %v1582
                %v1584 = vld [vmem:[%s1538 + $0x58] sm:$0xf]
                %1585 = vst [vmem:[%s1539 + $0xb0] sm:$0xf] %v1584
                %v1586 = vld [vmem:[%s1538 + $0x5c] sm:$0xf]
                %1587 = vst [vmem:[%s1539 + $0xb8] sm:$0xf] %v1586
                %v1588 = vld [vmem:[%s1538 + $0x60] sm:$0xf]
                %1589 = vst [vmem:[%s1539 + $0xc0] sm:$0xf] %v1588
                %v1590 = vld [vmem:[%s1538 + $0x64] sm:$0xf]
                %1591 = vst [vmem:[%s1539 + $0xc8] sm:$0xf] %v1590
                %v1592 = vld [vmem:[%s1538 + $0x68] sm:$0xf]
                %1593 = vst [vmem:[%s1539 + $0xd0] sm:$0xf] %v1592
                %v1594 = vld [vmem:[%s1538 + $0x6c] sm:$0xf]
                %1595 = vst [vmem:[%s1539 + $0xd8] sm:$0xf] %v1594
                %v1596 = vld [vmem:[%s1538 + $0x70] sm:$0xf]
                %1597 = vst [vmem:[%s1539 + $0xe0] sm:$0xf] %v1596
                %v1598 = vld [vmem:[%s1538 + $0x74] sm:$0xf]
                %1599 = vst [vmem:[%s1539 + $0xe8] sm:$0xf] %v1598
                %v1600 = vld [vmem:[%s1538 + $0x78] sm:$0xf]
                %1601 = vst [vmem:[%s1539 + $0xf0] sm:$0xf] %v1600
                %v1602 = vld [vmem:[%s1538 + $0x7c] sm:$0xf]
                %1603 = vst [vmem:[%s1539 + $0xf8] sm:$0xf] %v1602
                %v1604 = vld [vmem:[%s1538 + $0x80] sm:$0xf]
                %1605 = vst [vmem:[%s1539 + $0x100] sm:$0xf] %v1604
                %v1606 = vld [vmem:[%s1538 + $0x84] sm:$0xf]
                %1607 = vst [vmem:[%s1539 + $0x108] sm:$0xf] %v1606
                %v1608 = vld [vmem:[%s1538 + $0x88] sm:$0xf]
                %1609 = vst [vmem:[%s1539 + $0x110] sm:$0xf] %v1608
                %v1610 = vld [vmem:[%s1538 + $0x8c] sm:$0xf]
                %1611 = vst [vmem:[%s1539 + $0x118] sm:$0xf] %v1610
                %v1612 = vld [vmem:[%s1538 + $0x90] sm:$0xf]
                %1613 = vst [vmem:[%s1539 + $0x120] sm:$0xf] %v1612
                %v1614 = vld [vmem:[%s1538 + $0x94] sm:$0xf]
                %1615 = vst [vmem:[%s1539 + $0x128] sm:$0xf] %v1614
                %v1616 = vld [vmem:[%s1538 + $0x98] sm:$0xf]
                %1617 = vst [vmem:[%s1539 + $0x130] sm:$0xf] %v1616
                %v1618 = vld [vmem:[%s1538 + $0x9c] sm:$0xf]
                %1619 = vst [vmem:[%s1539 + $0x138] sm:$0xf] %v1618
                %v1620 = vld [vmem:[%s1538 + $0xa0] sm:$0xf]
                %1621 = vst [vmem:[%s1539 + $0x140] sm:$0xf] %v1620
                %v1622 = vld [vmem:[%s1538 + $0xa4] sm:$0xf]
                %1623 = vst [vmem:[%s1539 + $0x148] sm:$0xf] %v1622
                %v1624 = vld [vmem:[%s1538 + $0xa8] sm:$0xf]
                %1625 = vst [vmem:[%s1539 + $0x150] sm:$0xf] %v1624
                %v1626 = vld [vmem:[%s1538 + $0xac] sm:$0xf]
                %1627 = vst [vmem:[%s1539 + $0x158] sm:$0xf] %v1626
                %v1628 = vld [vmem:[%s1538 + $0xb0] sm:$0xf]
                %1629 = vst [vmem:[%s1539 + $0x160] sm:$0xf] %v1628
                %v1630 = vld [vmem:[%s1538 + $0xb4] sm:$0xf]
                %1631 = vst [vmem:[%s1539 + $0x168] sm:$0xf] %v1630
                %v1632 = vld [vmem:[%s1538 + $0xb8] sm:$0xf]
                %1633 = vst [vmem:[%s1539 + $0x170] sm:$0xf] %v1632
                %v1634 = vld [vmem:[%s1538 + $0xbc] sm:$0xf]
                %1635 = vst [vmem:[%s1539 + $0x178] sm:$0xf] %v1634
                %v1636 = vld [vmem:[%s1538 + $0xc0] sm:$0xf]
                %1637 = vst [vmem:[%s1539 + $0x180] sm:$0xf] %v1636
                %v1638 = vld [vmem:[%s1538 + $0xc4] sm:$0xf]
                %1639 = vst [vmem:[%s1539 + $0x188] sm:$0xf] %v1638
                %v1640 = vld [vmem:[%s1538 + $0xc8] sm:$0xf]
                %1641 = vst [vmem:[%s1539 + $0x190] sm:$0xf] %v1640
                %v1642 = vld [vmem:[%s1538 + $0xcc] sm:$0xf]
                %1643 = vst [vmem:[%s1539 + $0x198] sm:$0xf] %v1642
                %v1644 = vld [vmem:[%s1538 + $0xd0] sm:$0xf]
                %1645 = vst [vmem:[%s1539 + $0x1a0] sm:$0xf] %v1644
                %v1646 = vld [vmem:[%s1538 + $0xd4] sm:$0xf]
                %1647 = vst [vmem:[%s1539 + $0x1a8] sm:$0xf] %v1646
                %v1648 = vld [vmem:[%s1538 + $0xd8] sm:$0xf]
                %1649 = vst [vmem:[%s1539 + $0x1b0] sm:$0xf] %v1648
                %v1650 = vld [vmem:[%s1538 + $0xdc] sm:$0xf]
                %1651 = vst [vmem:[%s1539 + $0x1b8] sm:$0xf] %v1650
                %v1652 = vld [vmem:[%s1538 + $0xe0] sm:$0xf]
                %1653 = vst [vmem:[%s1539 + $0x1c0] sm:$0xf] %v1652
                %v1654 = vld [vmem:[%s1538 + $0xe4] sm:$0xf]
                %1655 = vst [vmem:[%s1539 + $0x1c8] sm:$0xf] %v1654
                %v1656 = vld [vmem:[%s1538 + $0xe8] sm:$0xf]
                %1657 = vst [vmem:[%s1539 + $0x1d0] sm:$0xf] %v1656
                %v1658 = vld [vmem:[%s1538 + $0xec] sm:$0xf]
                %1659 = vst [vmem:[%s1539 + $0x1d8] sm:$0xf] %v1658
                %v1660 = vld [vmem:[%s1538 + $0xf0] sm:$0xf]
                %1661 = vst [vmem:[%s1539 + $0x1e0] sm:$0xf] %v1660
                %v1662 = vld [vmem:[%s1538 + $0xf4] sm:$0xf]
                %1663 = vst [vmem:[%s1539 + $0x1e8] sm:$0xf] %v1662
                %v1664 = vld [vmem:[%s1538 + $0xf8] sm:$0xf]
                %1665 = vst [vmem:[%s1539 + $0x1f0] sm:$0xf] %v1664
                %v1666 = vld [vmem:[%s1538 + $0xfc] sm:$0xf]
                %1667 = vst [vmem:[%s1539 + $0x1f8] sm:$0xf] %v1666
              $region94: #{astrous_forward.4} parent=88 // loop_footer
                %s1537 = sadd.s32 1, %s1533
              $region95: #{astrous_forward.4} parent=88 // loop_footer_branch
                %1532 = sbr.rel target = $region91
              $region96: #{astrous_forward.4} parent=88 // loop_exit
                _
            $region89: #{astrous_forward.4} parent=80 // pred_fallthru
              _
          $region81: #{astrous_forward.4} parent=76 // pred_fallthru
            _
          %1815 = vnop
        $region77: #{astrous_forward.4} parent=68 // pred_fallthru
          _
      $region69: #{astrous_forward.4} parent=5 // pred_fallthru
        _
      %p1816 = scmp.le.s32.totalorder 2, %s9
      // Predicated region
      $region115: #{astrous_forward.4} parent=5 // pred_check
        %p1817 = pneg %p1816
      $region116: #{astrous_forward.4} parent=5 // pred_check_branch
        %1819 = sbr.rel (%p1817) target = $region118
      $region117: #{astrous_forward.4} parent=5 // pred_region
        %s1820 = ssub.s32 %s9, 2
        // Predicated region
        $region119: #{astrous_forward.4} parent=117 // pred_check
          %p1821 = pneg %p130
        $region120: #{astrous_forward.4} parent=117 // pred_check_branch
          %1823 = sbr.rel (%p1821) target = $region122
        $region121: #{astrous_forward.4} parent=117 // pred_region
          %s1824 = sand.u32 %s115, 1
          %s1825 = sand.u32 %s115, 1
          %s1826 = smul.addr %s1825, 256
          %s1827 = scalar_lea.vmem [#allocation3], %s1826
        $region122: #{astrous_forward.4} parent=117 // pred_fallthru
          _
      $region118: #{astrous_forward.4} parent=5 // pred_fallthru
        _
    $region6: #{astrous_forward.4} parent=1 // loop_footer
      %s13 = sadd.s32 1, %s9
    $region7: #{astrous_forward.4} parent=1 // loop_footer_branch
      %8 = sbr.rel target = $region3
    $region8: #{astrous_forward.4} parent=1 // loop_exit
      _

// kernel: astrous_forward.5
$region0: #{astrous_forward.5}
  #allocation0 [shape = 'u32[]', space=smem, size = 0x4, offset = 0x4, fixed_abs, tag = 'smem constant byte address 0x4 - core index']
  #allocation1 [shape = 'u32[144,128]{1,0:T(1,128)}', space=vmem, size = 0x12000, scoped, tag = 'internal scratch']
  %s0 = inlined_call_operand.vmem [shape: bf16[512,256], index: 0, kind: input, shape index: {}]
  %s1 = inlined_call_operand.vmem [shape: bf16[256,128], index: 1, kind: input, shape index: {}]
  %s2 = inlined_call_operand.vmem [shape: f32[1,128], index: 2, kind: input, shape index: {}]
  %s3 = inlined_call_operand.hbm [shape: f32[512,128], index: 3, kind: output, shape index: {}]
  %s4 = sld [smem:[#allocation0]]
  $region22: #{astrous_forward.5} parent=0
    _
  %s6 = ssub.s32 1, %s4
  %s7 = scalar_select 0, %s6, %s4
  $region1: #{astrous_forward.5} parent=0
    #allocation2 [shape = 'u8[262144]{0}', space=vmem, size = 0x40000, scoped, tag = 'output window, operand 0, single buffered']
    #allocation3 [shape = 's32[1]{0}', space=sflag, size = 0x4, scoped, tag = 'scoped memory for astrous_forward.5']
    %8 = vsyncpa [#allocation3], 0
    // Predicated region
    $region2: #{astrous_forward.5} parent=1 // pred_check
      _
    $region3: #{astrous_forward.5} parent=1 // pred_check_branch
      %10 = sbr.rel (0) target = $region5
    $region4: #{astrous_forward.5} parent=1 // pred_region
      _
    $region5: #{astrous_forward.5} parent=1 // pred_fallthru
      _
    // Predicated region
    $region6: #{astrous_forward.5} parent=1 // pred_check
      _
    $region7: #{astrous_forward.5} parent=1 // pred_check_branch
      %12 = sbr.rel (0) target = $region9
    $region8: #{astrous_forward.5} parent=1 // pred_region
      _
    $region9: #{astrous_forward.5} parent=1 // pred_fallthru
      _
    // Predicated region
    $region10: #{astrous_forward.5} parent=1 // pred_check
      _
    $region11: #{astrous_forward.5} parent=1 // pred_check_branch
      %14 = sbr.rel (0) target = $region13
    $region12: #{astrous_forward.5} parent=1 // pred_region
      _
    $region13: #{astrous_forward.5} parent=1 // pred_fallthru
      _
    %v16 = vld [vmem:[%s0] sm:$0xff]
    %v17 = vld [vmem:[%s0 + $0x8] sm:$0xff]
    %v18 = vld [vmem:[%s0 + $0x10] sm:$0xff]
    %v19 = vld [vmem:[%s0 + $0x18] sm:$0xff]
    %v20 = vld [vmem:[%s0 + $0x20] sm:$0xff]
    %v21 = vld [vmem:[%s0 + $0x28] sm:$0xff]
    %v22 = vld [vmem:[%s0 + $0x30] sm:$0xff]
    %v23 = vld [vmem:[%s0 + $0x38] sm:$0xff]
    %v24 = vld [vmem:[%s0 + $0x40] sm:$0xff]
    %v25 = vld [vmem:[%s0 + $0x48] sm:$0xff]
    %v26 = vld [vmem:[%s0 + $0x50] sm:$0xff]
    %v27 = vld [vmem:[%s0 + $0x58] sm:$0xff]
    %v28 = vld [vmem:[%s0 + $0x60] sm:$0xff]
    %v29 = vld [vmem:[%s0 + $0x68] sm:$0xff]
    %v30 = vld [vmem:[%s0 + $0x70] sm:$0xff]
    %v31 = vld [vmem:[%s0 + $0x78] sm:$0xff]
    %v32 = vld [vmem:[%s0 + $0x80] sm:$0xff]
    %v33 = vld [vmem:[%s0 + $0x88] sm:$0xff]
    %v34 = vld [vmem:[%s0 + $0x90] sm:$0xff]
    %v35 = vld [vmem:[%s0 + $0x98] sm:$0xff]
    %v36 = vld [vmem:[%s0 + $0xa0] sm:$0xff]
    %v37 = vld [vmem:[%s0 + $0xa8] sm:$0xff]
    %v38 = vld [vmem:[%s0 + $0xb0] sm:$0xff]
    %v39 = vld [vmem:[%s0 + $0xb8] sm:$0xff]
    %v40 = vld [vmem:[%s0 + $0xc0] sm:$0xff]
    %v41 = vld [vmem:[%s0 + $0xc8] sm:$0xff]
    %v42 = vld [vmem:[%s0 + $0xd0] sm:$0xff]
    %v43 = vld [vmem:[%s0 + $0xd8] sm:$0xff]
    %v44 = vld [vmem:[%s0 + $0xe0] sm:$0xff]
    %v45 = vld [vmem:[%s0 + $0xe8] sm:$0xff]
    %v46 = vld [vmem:[%s0 + $0xf0] sm:$0xff]
    %v47 = vld [vmem:[%s0 + $0xf8] sm:$0xff]
    %v48 = vld [vmem:[%s0 + $0x100] sm:$0xff]
    %v49 = vld [vmem:[%s0 + $0x108] sm:$0xff]
    %v50 = vld [vmem:[%s0 + $0x110] sm:$0xff]
    %v51 = vld [vmem:[%s0 + $0x118] sm:$0xff]
    %v52 = vld [vmem:[%s0 + $0x120] sm:$0xff]
    %v53 = vld [vmem:[%s0 + $0x128] sm:$0xff]
    %v54 = vld [vmem:[%s0 + $0x130] sm:$0xff]
    %v55 = vld [vmem:[%s0 + $0x138] sm:$0xff]
    %v56 = vld [vmem:[%s0 + $0x140] sm:$0xff]
    %v57 = vld [vmem:[%s0 + $0x148] sm:$0xff]
    %v58 = vld [vmem:[%s0 + $0x150] sm:$0xff]
    %v59 = vld [vmem:[%s0 + $0x158] sm:$0xff]
    %v60 = vld [vmem:[%s0 + $0x160] sm:$0xff]
    %v61 = vld [vmem:[%s0 + $0x168] sm:$0xff]
    %v62 = vld [vmem:[%s0 + $0x170] sm:$0xff]
    %v63 = vld [vmem:[%s0 + $0x178] sm:$0xff]
    %v64 = vld [vmem:[%s0 + $0x180] sm:$0xff]
    %v65 = vld [vmem:[%s0 + $0x188] sm:$0xff]
    %v66 = vld [vmem:[%s0 + $0x190] sm:$0xff]
    %v67 = vld [vmem:[%s0 + $0x198] sm:$0xff]
    %v68 = vld [vmem:[%s0 + $0x1a0] sm:$0xff]
    %v69 = vld [vmem:[%s0 + $0x1a8] sm:$0xff]
    %v70 = vld [vmem:[%s0 + $0x1b0] sm:$0xff]
    %v71 = vld [vmem:[%s0 + $0x1b8] sm:$0xff]
    %v72 = vld [vmem:[%s0 + $0x1c0] sm:$0xff]
    %v73 = vld [vmem:[%s0 + $0x1c8] sm:$0xff]
    %v74 = vld [vmem:[%s0 + $0x1d0] sm:$0xff]
    %v75 = vld [vmem:[%s0 + $0x1d8] sm:$0xff]
    %v76 = vld [vmem:[%s0 + $0x1e0] sm:$0xff]
    %v77 = vld [vmem:[%s0 + $0x1e8] sm:$0xff]
    %v78 = vld [vmem:[%s0 + $0x1f0] sm:$0xff]
    %v79 = vld [vmem:[%s0 + $0x1f8] sm:$0xff]
    %v80 = vld [vmem:[%s1] sm:$0xf]
    %v81 = vld [vmem:[%s1 + $0x4] sm:$0xf]
    %v82 = vld [vmem:[%s1 + $0x8] sm:$0xf]
    %v83 = vld [vmem:[%s1 + $0xc] sm:$0xf]
    %v84 = vld [vmem:[%s1 + $0x10] sm:$0xf]
    %v85 = vld [vmem:[%s1 + $0x14] sm:$0xf]
    %v86 = vld [vmem:[%s1 + $0x18] sm:$0xf]
    %v87 = vld [vmem:[%s1 + $0x1c] sm:$0xf]
    %v88 = vld [vmem:[%s1 + $0x20] sm:$0xf]
    %v89 = vld [vmem:[%s1 + $0x24] sm:$0xf]
    %v90 = vld [vmem:[%s1 + $0x28] sm:$0xf]
    %v91 = vld [vmem:[%s1 + $0x2c] sm:$0xf]
    %v92 = vld [vmem:[%s1 + $0x30] sm:$0xf]
    %v93 = vld [vmem:[%s1 + $0x34] sm:$0xf]
    %v94 = vld [vmem:[%s1 + $0x38] sm:$0xf]
    %v95 = vld [vmem:[%s1 + $0x3c] sm:$0xf]
    %v96 = vld [vmem:[%s1 + $0x40] sm:$0xf]
    %v97 = vld [vmem:[%s1 + $0x44] sm:$0xf]
    %v98 = vld [vmem:[%s1 + $0x48] sm:$0xf]
    %v99 = vld [vmem:[%s1 + $0x4c] sm:$0xf]
    %v100 = vld [vmem:[%s1 + $0x50] sm:$0xf]
    %v101 = vld [vmem:[%s1 + $0x54] sm:$0xf]
    %v102 = vld [vmem:[%s1 + $0x58] sm:$0xf]
    %v103 = vld [vmem:[%s1 + $0x5c] sm:$0xf]
    %v104 = vld [vmem:[%s1 + $0x60] sm:$0xf]
    %v105 = vld [vmem:[%s1 + $0x64] sm:$0xf]
    %v106 = vld [vmem:[%s1 + $0x68] sm:$0xf]
    %v107 = vld [vmem:[%s1 + $0x6c] sm:$0xf]
    %v108 = vld [vmem:[%s1 + $0x70] sm:$0xf]
    %v109 = vld [vmem:[%s1 + $0x74] sm:$0xf]
    %v110 = vld [vmem:[%s1 + $0x78] sm:$0xf]
    %v111 = vld [vmem:[%s1 + $0x7c] sm:$0xf]
    %v112 = vld [vmem:[%s2] sm:$0x1]
    %v114 = vlaneseq
    %v115 = vshrl.u32 %v114, 7
    %v116 = vsub.s32 0, %v115
    %v117 = vrot.slane %v112, %v116
    %v183 = vunpack.c.l.b16 %v16
    %v184 = vunpack.c.h.b16 %v16
    %v185 = vunpack.c.l.b16 %v17
    %v186 = vunpack.c.h.b16 %v17
    %v187 = vunpack.c.l.b16 %v18
    %v188 = vunpack.c.h.b16 %v18
    %v189 = vunpack.c.l.b16 %v19
    %v190 = vunpack.c.h.b16 %v19
    %v191 = vunpack.c.l.b16 %v20
    %v192 = vunpack.c.h.b16 %v20
    %v193 = vunpack.c.l.b16 %v21
    %v194 = vunpack.c.h.b16 %v21
    %v195 = vunpack.c.l.b16 %v22
    %v196 = vunpack.c.h.b16 %v22
    %v197 = vunpack.c.l.b16 %v23
    %v198 = vunpack.c.h.b16 %v23
    %v199 = vunpack.c.l.b16 %v24
    %v200 = vunpack.c.h.b16 %v24
    %v201 = vunpack.c.l.b16 %v25
    %v202 = vunpack.c.h.b16 %v25
    %v203 = vunpack.c.l.b16 %v26
    %v204 = vunpack.c.h.b16 %v26
    %v205 = vunpack.c.l.b16 %v27
    %v206 = vunpack.c.h.b16 %v27
    %v207 = vunpack.c.l.b16 %v28
    %v208 = vunpack.c.h.b16 %v28
    %v209 = vunpack.c.l.b16 %v29
    %v210 = vunpack.c.h.b16 %v29
    %v211 = vunpack.c.l.b16 %v30
    %v212 = vunpack.c.h.b16 %v30
    %v213 = vunpack.c.l.b16 %v31
    %v214 = vunpack.c.h.b16 %v31
    %v215 = vunpack.c.l.b16 %v32
    %v216 = vunpack.c.h.b16 %v32
    %v217 = vunpack.c.l.b16 %v33
    %v218 = vunpack.c.h.b16 %v33
    %v219 = vunpack.c.l.b16 %v34
    %v220 = vunpack.c.h.b16 %v34
    %v221 = vunpack.c.l.b16 %v35
    %v222 = vunpack.c.h.b16 %v35
    %v223 = vunpack.c.l.b16 %v36
    %v224 = vunpack.c.h.b16 %v36
    %v225 = vunpack.c.l.b16 %v37
    %v226 = vunpack.c.h.b16 %v37
    %v227 = vunpack.c.l.b16 %v38
    %v228 = vunpack.c.h.b16 %v38
    %v229 = vunpack.c.l.b16 %v39
    %v230 = vunpack.c.h.b16 %v39
    %v231 = vunpack.c.l.b16 %v40
    %v232 = vunpack.c.h.b16 %v40
    %v233 = vunpack.c.l.b16 %v41
    %v234 = vunpack.c.h.b16 %v41
    %v235 = vunpack.c.l.b16 %v42
    %v236 = vunpack.c.h.b16 %v42
    %v237 = vunpack.c.l.b16 %v43
    %v238 = vunpack.c.h.b16 %v43
    %v239 = vunpack.c.l.b16 %v44
    %v240 = vunpack.c.h.b16 %v44
    %v241 = vunpack.c.l.b16 %v45
    %v242 = vunpack.c.h.b16 %v45
    %v243 = vunpack.c.l.b16 %v46
    %v244 = vunpack.c.h.b16 %v46
    %v245 = vunpack.c.l.b16 %v47
    %v246 = vunpack.c.h.b16 %v47
    %v247 = vunpack.c.l.b16 %v48
    %v248 = vunpack.c.h.b16 %v48
    %v249 = vunpack.c.l.b16 %v49
    %v250 = vunpack.c.h.b16 %v49
    %v251 = vunpack.c.l.b16 %v50
    %v252 = vunpack.c.h.b16 %v50
    %v253 = vunpack.c.l.b16 %v51
    %v254 = vunpack.c.h.b16 %v51
    %v255 = vunpack.c.l.b16 %v52
    %v256 = vunpack.c.h.b16 %v52
    %v257 = vunpack.c.l.b16 %v53
    %v258 = vunpack.c.h.b16 %v53
    %v259 = vunpack.c.l.b16 %v54
    %v260 = vunpack.c.h.b16 %v54
    %v261 = vunpack.c.l.b16 %v55
    %v262 = vunpack.c.h.b16 %v55
    %v263 = vunpack.c.l.b16 %v56
    %v264 = vunpack.c.h.b16 %v56
    %v265 = vunpack.c.l.b16 %v57
    %v266 = vunpack.c.h.b16 %v57
    %v267 = vunpack.c.l.b16 %v58
    %v268 = vunpack.c.h.b16 %v58
    %v269 = vunpack.c.l.b16 %v59
    %v270 = vunpack.c.h.b16 %v59
    %v271 = vunpack.c.l.b16 %v60
    %v272 = vunpack.c.h.b16 %v60
    %v273 = vunpack.c.l.b16 %v61
    %v274 = vunpack.c.h.b16 %v61
    %v275 = vunpack.c.l.b16 %v62
    %v276 = vunpack.c.h.b16 %v62
    %v277 = vunpack.c.l.b16 %v63
    %v278 = vunpack.c.h.b16 %v63
    %v279 = vunpack.c.l.b16 %v64
    %v280 = vunpack.c.h.b16 %v64
    %v281 = vunpack.c.l.b16 %v65
    %v282 = vunpack.c.h.b16 %v65
    %v283 = vunpack.c.l.b16 %v66
    %v284 = vunpack.c.h.b16 %v66
    %v285 = vunpack.c.l.b16 %v67
    %v286 = vunpack.c.h.b16 %v67
    %v287 = vunpack.c.l.b16 %v68
    %v288 = vunpack.c.h.b16 %v68
    %v289 = vunpack.c.l.b16 %v69
    %v290 = vunpack.c.h.b16 %v69
    %v291 = vunpack.c.l.b16 %v70
    %v292 = vunpack.c.h.b16 %v70
    %v293 = vunpack.c.l.b16 %v71
    %v294 = vunpack.c.h.b16 %v71
    %v295 = vunpack.c.l.b16 %v72
    %v296 = vunpack.c.h.b16 %v72
    %v297 = vunpack.c.l.b16 %v73
    %v298 = vunpack.c.h.b16 %v73
    %v299 = vunpack.c.l.b16 %v74
    %v300 = vunpack.c.h.b16 %v74
    %v301 = vunpack.c.l.b16 %v75
    %v302 = vunpack.c.h.b16 %v75
    %v303 = vunpack.c.l.b16 %v76
    %v304 = vunpack.c.h.b16 %v76
    %v305 = vunpack.c.l.b16 %v77
    %v306 = vunpack.c.h.b16 %v77
    %v307 = vunpack.c.l.b16 %v78
    %v308 = vunpack.c.h.b16 %v78
    %v309 = vunpack.c.l.b16 %v79
    %v310 = vunpack.c.h.b16 %v79
    %v311 = vpack.c.b16 %v185, %v183
    %v312 = vpack.c.b16 %v186, %v184
    %v313 = vpack.c.b16 %v189, %v187
    %v314 = vpack.c.b16 %v190, %v188
    %v315 = vpack.c.b16 %v193, %v191
    %v316 = vpack.c.b16 %v194, %v192
    %v317 = vpack.c.b16 %v197, %v195
    %v318 = vpack.c.b16 %v198, %v196
    %v319 = vpack.c.b16 %v201, %v199
    %v320 = vpack.c.b16 %v202, %v200
    %v321 = vpack.c.b16 %v205, %v203
    %v322 = vpack.c.b16 %v206, %v204
    %v323 = vpack.c.b16 %v209, %v207
    %v324 = vpack.c.b16 %v210, %v208
    %v325 = vpack.c.b16 %v213, %v211
    %v326 = vpack.c.b16 %v214, %v212
    %v327 = vpack.c.b16 %v217, %v215
    %v328 = vpack.c.b16 %v218, %v216
    %v329 = vpack.c.b16 %v221, %v219
    %v330 = vpack.c.b16 %v222, %v220
    %v331 = vpack.c.b16 %v225, %v223
    %v332 = vpack.c.b16 %v226, %v224
    %v333 = vpack.c.b16 %v229, %v227
    %v334 = vpack.c.b16 %v230, %v228
    %v335 = vpack.c.b16 %v233, %v231
    %v336 = vpack.c.b16 %v234, %v232
    %v337 = vpack.c.b16 %v237, %v235
    %v338 = vpack.c.b16 %v238, %v236
    %v339 = vpack.c.b16 %v241, %v239
    %v340 = vpack.c.b16 %v242, %v240
    %v341 = vpack.c.b16 %v245, %v243
    %v342 = vpack.c.b16 %v246, %v244
    %v343 = vpack.c.b16 %v249, %v247
    %v344 = vpack.c.b16 %v250, %v248
    %v345 = vpack.c.b16 %v253, %v251
    %v346 = vpack.c.b16 %v254, %v252
    %v347 = vpack.c.b16 %v257, %v255
    %v348 = vpack.c.b16 %v258, %v256
    %v349 = vpack.c.b16 %v261, %v259
    %v350 = vpack.c.b16 %v262, %v260
    %v351 = vpack.c.b16 %v265, %v263
    %v352 = vpack.c.b16 %v266, %v264
    %v353 = vpack.c.b16 %v269, %v267
    %v354 = vpack.c.b16 %v270, %v268
    %v355 = vpack.c.b16 %v273, %v271
    %v356 = vpack.c.b16 %v274, %v272
    %v357 = vpack.c.b16 %v277, %v275
    %v358 = vpack.c.b16 %v278, %v276
    %v359 = vpack.c.b16 %v281, %v279
    %v360 = vpack.c.b16 %v282, %v280
    %v361 = vpack.c.b16 %v285, %v283
    %v362 = vpack.c.b16 %v286, %v284
    %v363 = vpack.c.b16 %v289, %v287
    %v364 = vpack.c.b16 %v290, %v288
    %v365 = vpack.c.b16 %v293, %v291
    %v366 = vpack.c.b16 %v294, %v292
    %v367 = vpack.c.b16 %v297, %v295
    %v368 = vpack.c.b16 %v298, %v296
    %v369 = vpack.c.b16 %v301, %v299
    %v370 = vpack.c.b16 %v302, %v300
    %v371 = vpack.c.b16 %v305, %v303
    %v372 = vpack.c.b16 %v306, %v304
    %v373 = vpack.c.b16 %v309, %v307
    %v374 = vpack.c.b16 %v310, %v308
    %v471 = vunpack.c.l.b16 %v80
    %v472 = vunpack.c.l.b16 %v81
    %v473 = vunpack.c.l.b16 %v82
    %v474 = vunpack.c.l.b16 %v83
    %v475 = vunpack.c.l.b16 %v84
    %v476 = vunpack.c.l.b16 %v85
    %v477 = vunpack.c.l.b16 %v86
    %v478 = vunpack.c.l.b16 %v87
    %v479 = vunpack.c.l.b16 %v88
    %v480 = vunpack.c.l.b16 %v89
    %v481 = vunpack.c.l.b16 %v90
    %v482 = vunpack.c.l.b16 %v91
    %v483 = vunpack.c.l.b16 %v92
    %v484 = vunpack.c.l.b16 %v93
    %v485 = vunpack.c.l.b16 %v94
    %v486 = vunpack.c.l.b16 %v95
    %v487 = vunpack.c.l.b16 %v96
    %v488 = vunpack.c.l.b16 %v97
    %v489 = vunpack.c.l.b16 %v98
    %v490 = vunpack.c.l.b16 %v99
    %v491 = vunpack.c.l.b16 %v100
    %v492 = vunpack.c.l.b16 %v101
    %v493 = vunpack.c.l.b16 %v102
    %v494 = vunpack.c.l.b16 %v103
    %v495 = vunpack.c.l.b16 %v104
    %v496 = vunpack.c.l.b16 %v105
    %v497 = vunpack.c.l.b16 %v106
    %v498 = vunpack.c.l.b16 %v107
    %v499 = vunpack.c.l.b16 %v108
    %v500 = vunpack.c.l.b16 %v109
    %v501 = vunpack.c.l.b16 %v110
    %v502 = vunpack.c.l.b16 %v111
    %v503 = vpack.c.b16 %v472, %v471
    %v504 = vpack.c.b16 %v474, %v473
    %v505 = vpack.c.b16 %v476, %v475
    %v506 = vpack.c.b16 %v478, %v477
    %v507 = vpack.c.b16 %v480, %v479
    %v508 = vpack.c.b16 %v482, %v481
    %v509 = vpack.c.b16 %v484, %v483
    %v510 = vpack.c.b16 %v486, %v485
    %v511 = vpack.c.b16 %v488, %v487
    %v512 = vpack.c.b16 %v490, %v489
    %v513 = vpack.c.b16 %v492, %v491
    %v514 = vpack.c.b16 %v494, %v493
    %v515 = vpack.c.b16 %v496, %v495
    %v516 = vpack.c.b16 %v498, %v497
    %v517 = vpack.c.b16 %v500, %v499
    %v518 = vpack.c.b16 %v502, %v501
    %535 = vmatprep.subr.bf16.mxu0 0
    %536 = vmatpush1.bf16.msra.mxu0 %v503
    %537 = vmatprep.subr.bf16.mxu0 0
    %538 = vmatpush1.bf16.msra.mxu0 %v504
    %539 = vmatprep.subr.bf16.mxu0 0
    %540 = vmatpush1.bf16.msra.mxu0 %v505
    %541 = vmatprep.subr.bf16.mxu0 0
    %542 = vmatpush1.bf16.msra.mxu0 %v506
    %543 = vmatprep.subr.bf16.mxu0 0
    %544 = vmatpush1.bf16.msra.mxu0 %v507
    %545 = vmatprep.subr.bf16.mxu0 0
    %546 = vmatpush1.bf16.msra.mxu0 %v508
    %547 = vmatprep.subr.bf16.mxu0 0
    %548 = vmatpush1.bf16.msra.mxu0 %v509
    %549 = vmatprep.subr.bf16.mxu0 0
    %550 = vmatpush1.bf16.msra.mxu0 %v510
    %551 = vmatprep.subr.bf16.mxu0 0
    %552 = vmatpush1.bf16.msra.mxu0 %v511
    %553 = vmatprep.subr.bf16.mxu0 0
    %554 = vmatpush1.bf16.msra.mxu0 %v512
    %555 = vmatprep.subr.bf16.mxu0 0
    %556 = vmatpush1.bf16.msra.mxu0 %v513
    %557 = vmatprep.subr.bf16.mxu0 0
    %558 = vmatpush1.bf16.msra.mxu0 %v514
    %559 = vmatprep.subr.bf16.mxu0 0
    %560 = vmatpush1.bf16.msra.mxu0 %v515
    %561 = vmatprep.subr.bf16.mxu0 0
    %562 = vmatpush1.bf16.msra.mxu0 %v516
    %563 = vmatprep.subr.bf16.mxu0 0
    %564 = vmatpush1.bf16.msra.mxu0 %v517
    %565 = vmatprep.subr.bf16.mxu0 0
    %566 = vmatpush1.bf16.msra.mxu0 %v518
    %567 = vmatprep.mubr.bf16.mxu0 %v312
    %568 = vmatmul.mubr.bf16.gmra.mrb[0].mxu0 %v311
    %v569 = vpop.f32.mrb[0].mxu0
    %v570 = vadd.f32 %v117, %v569
    %v571 = vpop.f32.mrb[0].mxu0
    %v572 = vpop.f32.mrb[0].mxu0
    %v573 = vadd.f32 %v117, %v572
    %v574 = vpop.f32.mrb[0].mxu0
    %575 = vmatprep.mubr.bf16.mxu0 %v314
    %576 = vmatmul.mubr.bf16.gmra.mrb[0].mxu0 %v313
    %v577 = vpop.f32.mrb[0].mxu0
    %v578 = vadd.f32 %v117, %v577
    %v579 = vpop.f32.mrb[0].mxu0
    %v580 = vpop.f32.mrb[0].mxu0
    %v581 = vadd.f32 %v117, %v580
    %v582 = vpop.f32.mrb[0].mxu0
    %583 = vmatprep.mubr.bf16.mxu0 %v316
    %584 = vmatmul.mubr.bf16.gmra.mrb[0].mxu0 %v315
    %v585 = vpop.f32.mrb[0].mxu0
    %v586 = vadd.f32 %v117, %v585
    %v587 = vpop.f32.mrb[0].mxu0
    %v588 = vpop.f32.mrb[0].mxu0
    %v589 = vadd.f32 %v117, %v588
    %v590 = vpop.f32.mrb[0].mxu0
    %591 = vmatprep.mubr.bf16.mxu0 %v318
    %592 = vmatmul.mubr.bf16.gmra.mrb[0].mxu0 %v317
    %v593 = vpop.f32.mrb[0].mxu0
    %v594 = vadd.f32 %v117, %v593
    %v595 = vpop.f32.mrb[0].mxu0
    %v596 = vpop.f32.mrb[0].mxu0
    %v597 = vadd.f32 %v117, %v596
    %v598 = vpop.f32.mrb[0].mxu0
    %599 = vmatprep.mubr.bf16.mxu0 %v320
    %600 = vmatmul.mubr.bf16.gmra.mrb[0].mxu0 %v319
    %v601 = vpop.f32.mrb[0].mxu0
    %v602 = vadd.f32 %v117, %v601
    %v603 = vpop.f32.mrb[0].mxu0
    %v604 = vpop.f32.mrb[0].mxu0
    %v605 = vadd.f32 %v117, %v604
    %v606 = vpop.f32.mrb[0].mxu0
    %607 = vmatprep.mubr.bf16.mxu0 %v322
    %608 = vmatmul.mubr.bf16.gmra.mrb[0].mxu0 %v321
    %v609 = vpop.f32.mrb[0].mxu0
    %v610 = vadd.f32 %v117, %v609
    %v611 = vpop.f32.mrb[0].mxu0
    %v612 = vpop.f32.mrb[0].mxu0
    %v613 = vadd.f32 %v117, %v612
    %v614 = vpop.f32.mrb[0].mxu0
    %615 = vmatprep.mubr.bf16.mxu0 %v324
    %616 = vmatmul.mubr.bf16.gmra.mrb[0].mxu0 %v323
    %v617 = vpop.f32.mrb[0].mxu0
    %v618 = vadd.f32 %v117, %v617
    %v619 = vpop.f32.mrb[0].mxu0
    %v620 = vpop.f32.mrb[0].mxu0
    %v621 = vadd.f32 %v117, %v620
    %v622 = vpop.f32.mrb[0].mxu0
    %623 = vmatprep.mubr.bf16.mxu0 %v326
    %624 = vmatmul.mubr.bf16.gmra.mrb[0].mxu0 %v325
    %v625 = vpop.f32.mrb[0].mxu0
    %v626 = vadd.f32 %v117, %v625
    %v627 = vpop.f32.mrb[0].mxu0
    %v628 = vpop.f32.mrb[0].mxu0
    %v629 = vadd.f32 %v117, %v628
    %v630 = vpop.f32.mrb[0].mxu0
    %631 = vmatprep.mubr.bf16.mxu0 %v328
    %632 = vmatmul.mubr.bf16.gmra.mrb[0].mxu0 %v327
    %v633 = vpop.f32.mrb[0].mxu0
    %v634 = vadd.f32 %v117, %v633
    %v635 = vpop.f32.mrb[0].mxu0
    %v636 = vpop.f32.mrb[0].mxu0
    %v637 = vadd.f32 %v117, %v636
    %v638 = vpop.f32.mrb[0].mxu0
    %639 = vmatprep.mubr.bf16.mxu0 %v330
    %640 = vmatmul.mubr.bf16.gmra.mrb[0].mxu0 %v329
    %v641 = vpop.f32.mrb[0].mxu0
    %v642 = vadd.f32 %v117, %v641
    %v643 = vpop.f32.mrb[0].mxu0
    %v644 = vpop.f32.mrb[0].mxu0
    %v645 = vadd.f32 %v117, %v644
    %v646 = vpop.f32.mrb[0].mxu0
    %647 = vmatprep.mubr.bf16.mxu0 %v332
    %648 = vmatmul.mubr.bf16.gmra.mrb[0].mxu0 %v331
    %v649 = vpop.f32.mrb[0].mxu0
    %v650 = vadd.f32 %v117, %v649
    %v651 = vpop.f32.mrb[0].mxu0
    %v652 = vpop.f32.mrb[0].mxu0
    %v653 = vadd.f32 %v117, %v652
    %v654 = vpop.f32.mrb[0].mxu0
    %655 = vmatprep.mubr.bf16.mxu0 %v334
    %656 = vmatmul.mubr.bf16.gmra.mrb[0].mxu0 %v333
    %v657 = vpop.f32.mrb[0].mxu0
    %v658 = vadd.f32 %v117, %v657
    %v659 = vpop.f32.mrb[0].mxu0
    %v660 = vpop.f32.mrb[0].mxu0
    %v661 = vadd.f32 %v117, %v660
    %v662 = vpop.f32.mrb[0].mxu0
    %663 = vmatprep.mubr.bf16.mxu0 %v336
    %664 = vmatmul.mubr.bf16.gmra.mrb[0].mxu0 %v335
    %v665 = vpop.f32.mrb[0].mxu0
    %v666 = vadd.f32 %v117, %v665
    %v667 = vpop.f32.mrb[0].mxu0
    %v668 = vpop.f32.mrb[0].mxu0
    %v669 = vadd.f32 %v117, %v668
    %v670 = vpop.f32.mrb[0].mxu0
    %671 = vmatprep.mubr.bf16.mxu0 %v338
    %672 = vmatmul.mubr.bf16.gmra.mrb[0].mxu0 %v337
    %v673 = vpop.f32.mrb[0].mxu0
    %v674 = vadd.f32 %v117, %v673
    %v675 = vpop.f32.mrb[0].mxu0
    %v676 = vpop.f32.mrb[0].mxu0
    %v677 = vadd.f32 %v117, %v676
    %v678 = vpop.f32.mrb[0].mxu0
    %679 = vmatprep.mubr.bf16.mxu0 %v340
    %680 = vmatmul.mubr.bf16.gmra.mrb[0].mxu0 %v339
    %v681 = vpop.f32.mrb[0].mxu0
    %v682 = vadd.f32 %v117, %v681
    %v683 = vpop.f32.mrb[0].mxu0
    %v684 = vpop.f32.mrb[0].mxu0
    %v685 = vadd.f32 %v117, %v684
    %v686 = vpop.f32.mrb[0].mxu0
    %687 = vmatprep.mubr.bf16.mxu0 %v342
    %688 = vmatmul.mubr.bf16.gmra.mrb[0].mxu0 %v341
    %v689 = vpop.f32.mrb[0].mxu0
    %v690 = vadd.f32 %v117, %v689
    %v691 = vpop.f32.mrb[0].mxu0
    %v692 = vpop.f32.mrb[0].mxu0
    %v693 = vadd.f32 %v117, %v692
    %v694 = vpop.f32.mrb[0].mxu0
    %695 = vmatprep.mubr.bf16.mxu0 %v344
    %696 = vmatmul.mubr.bf16.gmra.mrb[0].mxu0 %v343
    %v697 = vpop.f32.mrb[0].mxu0
    %v698 = vadd.f32 %v117, %v697
    %v699 = vpop.f32.mrb[0].mxu0
    %v700 = vpop.f32.mrb[0].mxu0
    %v701 = vadd.f32 %v117, %v700
    %v702 = vpop.f32.mrb[0].mxu0
    %703 = vmatprep.mubr.bf16.mxu0 %v346
    %704 = vmatmul.mubr.bf16.gmra.mrb[0].mxu0 %v345
    %v705 = vpop.f32.mrb[0].mxu0
    %v706 = vadd.f32 %v117, %v705
    %v707 = vpop.f32.mrb[0].mxu0
    %v708 = vpop.f32.mrb[0].mxu0
    %v709 = vadd.f32 %v117, %v708
    %v710 = vpop.f32.mrb[0].mxu0
    %711 = vmatprep.mubr.bf16.mxu0 %v348
    %712 = vmatmul.mubr.bf16.gmra.mrb[0].mxu0 %v347
    %v713 = vpop.f32.mrb[0].mxu0
    %v714 = vadd.f32 %v117, %v713
    %v715 = vpop.f32.mrb[0].mxu0
    %v716 = vpop.f32.mrb[0].mxu0
    %v717 = vadd.f32 %v117, %v716
    %v718 = vpop.f32.mrb[0].mxu0
    %719 = vmatprep.mubr.bf16.mxu0 %v350
    %720 = vmatmul.mubr.bf16.gmra.mrb[0].mxu0 %v349
    %v721 = vpop.f32.mrb[0].mxu0
    %v722 = vadd.f32 %v117, %v721
    %v723 = vpop.f32.mrb[0].mxu0
    %v724 = vpop.f32.mrb[0].mxu0
    %v725 = vadd.f32 %v117, %v724
    %v726 = vpop.f32.mrb[0].mxu0
    %727 = vmatprep.mubr.bf16.mxu0 %v352
    %728 = vmatmul.mubr.bf16.gmra.mrb[0].mxu0 %v351
    %v729 = vpop.f32.mrb[0].mxu0
    %v730 = vadd.f32 %v117, %v729
    %v731 = vpop.f32.mrb[0].mxu0
    %v732 = vpop.f32.mrb[0].mxu0
    %v733 = vadd.f32 %v117, %v732
    %v734 = vpop.f32.mrb[0].mxu0
    %735 = vmatprep.mubr.bf16.mxu0 %v354
    %736 = vmatmul.mubr.bf16.gmra.mrb[0].mxu0 %v353
    %v737 = vpop.f32.mrb[0].mxu0
    %v738 = vadd.f32 %v117, %v737
    %v739 = vpop.f32.mrb[0].mxu0
    %v740 = vpop.f32.mrb[0].mxu0
    %v741 = vadd.f32 %v117, %v740
    %v742 = vpop.f32.mrb[0].mxu0
    %743 = vmatprep.mubr.bf16.mxu0 %v356
    %744 = vmatmul.mubr.bf16.gmra.mrb[0].mxu0 %v355
    %v745 = vpop.f32.mrb[0].mxu0
    %v746 = vadd.f32 %v117, %v745
    %v747 = vpop.f32.mrb[0].mxu0
    %v748 = vpop.f32.mrb[0].mxu0
    %v749 = vadd.f32 %v117, %v748
    %v750 = vpop.f32.mrb[0].mxu0
    %751 = vmatprep.mubr.bf16.mxu0 %v358
    %752 = vmatmul.mubr.bf16.gmra.mrb[0].mxu0 %v357
    %v753 = vpop.f32.mrb[0].mxu0
    %v754 = vadd.f32 %v117, %v753
    %v755 = vpop.f32.mrb[0].mxu0
    %v756 = vpop.f32.mrb[0].mxu0
    %v757 = vadd.f32 %v117, %v756
    %v758 = vpop.f32.mrb[0].mxu0
    %759 = vmatprep.mubr.bf16.mxu0 %v360
    %760 = vmatmul.mubr.bf16.gmra.mrb[0].mxu0 %v359
    %v761 = vpop.f32.mrb[0].mxu0
    %v762 = vadd.f32 %v117, %v761
    %v763 = vpop.f32.mrb[0].mxu0
    %v764 = vpop.f32.mrb[0].mxu0
    %v765 = vadd.f32 %v117, %v764
    %v766 = vpop.f32.mrb[0].mxu0
    %767 = vmatprep.mubr.bf16.mxu0 %v362
    %768 = vmatmul.mubr.bf16.gmra.mrb[0].mxu0 %v361
    %v769 = vpop.f32.mrb[0].mxu0
    %v770 = vadd.f32 %v117, %v769
    %v771 = vpop.f32.mrb[0].mxu0
    %v772 = vpop.f32.mrb[0].mxu0
    %v773 = vadd.f32 %v117, %v772
    %v774 = vpop.f32.mrb[0].mxu0
    %775 = vmatprep.mubr.bf16.mxu0 %v364
    %776 = vmatmul.mubr.bf16.gmra.mrb[0].mxu0 %v363
    %v777 = vpop.f32.mrb[0].mxu0
    %v778 = vadd.f32 %v117, %v777
    %v779 = vpop.f32.mrb[0].mxu0
    %v780 = vpop.f32.mrb[0].mxu0
    %v781 = vadd.f32 %v117, %v780
    %v782 = vpop.f32.mrb[0].mxu0
    %783 = vmatprep.mubr.bf16.mxu0 %v366
    %784 = vmatmul.mubr.bf16.gmra.mrb[0].mxu0 %v365
    %v785 = vpop.f32.mrb[0].mxu0
    %v786 = vadd.f32 %v117, %v785
    %v787 = vpop.f32.mrb[0].mxu0
    %v788 = vpop.f32.mrb[0].mxu0
    %v789 = vadd.f32 %v117, %v788
    %v790 = vpop.f32.mrb[0].mxu0
    %791 = vmatprep.mubr.bf16.mxu0 %v368
    %792 = vmatmul.mubr.bf16.gmra.mrb[0].mxu0 %v367
    %v793 = vpop.f32.mrb[0].mxu0
    %v794 = vadd.f32 %v117, %v793
    %v795 = vpop.f32.mrb[0].mxu0
    %v796 = vpop.f32.mrb[0].mxu0
    %v797 = vadd.f32 %v117, %v796
    %v798 = vpop.f32.mrb[0].mxu0
    %799 = vmatprep.mubr.bf16.mxu0 %v370
    %800 = vmatmul.mubr.bf16.gmra.mrb[0].mxu0 %v369
    %v801 = vpop.f32.mrb[0].mxu0
    %v802 = vadd.f32 %v117, %v801
    %v803 = vpop.f32.mrb[0].mxu0
    %v804 = vpop.f32.mrb[0].mxu0
    %v805 = vadd.f32 %v117, %v804
    %v806 = vpop.f32.mrb[0].mxu0
    %807 = vmatprep.mubr.bf16.mxu0 %v372
    %808 = vmatmul.mubr.bf16.gmra.mrb[0].mxu0 %v371
    %v809 = vpop.f32.mrb[0].mxu0
    %v810 = vadd.f32 %v117, %v809
    %v811 = vpop.f32.mrb[0].mxu0
    %v812 = vpop.f32.mrb[0].mxu0
    %v813 = vadd.f32 %v117, %v812
    %v814 = vpop.f32.mrb[0].mxu0
    %815 = vmatprep.mubr.bf16.mxu0 %v374
    %816 = vmatmul.mubr.bf16.gmra.mrb[0].mxu0 %v373
    %v817 = vpop.f32.mrb[0].mxu0
    %v818 = vadd.f32 %v117, %v817
    %v819 = vpop.f32.mrb[0].mxu0
    %v820 = vpop.f32.mrb[0].mxu0
    %v821 = vadd.f32 %v117, %v820
    %v822 = vpop.f32.mrb[0].mxu0
    %823 = vdwg.mxu0
    %824 = vst [vmem:[#allocation2] sm:$0xff] %v570
    %825 = vst [vmem:[#allocation2 + $0x8] sm:$0xff] %v573
    %826 = vst [vmem:[#allocation2 + $0x10] sm:$0xff] %v578
    %827 = vst [vmem:[#allocation2 + $0x18] sm:$0xff] %v581
    %828 = vst [vmem:[#allocation2 + $0x20] sm:$0xff] %v586
    %829 = vst [vmem:[#allocation2 + $0x28] sm:$0xff] %v589
    %830 = vst [vmem:[#allocation2 + $0x30] sm:$0xff] %v594
    %831 = vst [vmem:[#allocation2 + $0x38] sm:$0xff] %v597
    %832 = vst [vmem:[#allocation2 + $0x40] sm:$0xff] %v602
    %833 = vst [vmem:[#allocation2 + $0x48] sm:$0xff] %v605
    %834 = vst [vmem:[#allocation2 + $0x50] sm:$0xff] %v610
    %835 = vst [vmem:[#allocation2 + $0x58] sm:$0xff] %v613
    %836 = vst [vmem:[#allocation2 + $0x60] sm:$0xff] %v618
    %837 = vst [vmem:[#allocation2 + $0x68] sm:$0xff] %v621
    %838 = vst [vmem:[#allocation2 + $0x70] sm:$0xff] %v626
    %839 = vst [vmem:[#allocation2 + $0x78] sm:$0xff] %v629
    %840 = vst [vmem:[#allocation2 + $0x80] sm:$0xff] %v634
    %841 = vst [vmem:[#allocation2 + $0x88] sm:$0xff] %v637
    %842 = vst [vmem:[#allocation2 + $0x90] sm:$0xff] %v642
    %843 = vst [vmem:[#allocation2 + $0x98] sm:$0xff] %v645
    %844 = vst [vmem:[#allocation2 + $0xa0] sm:$0xff] %v650
    %845 = vst [vmem:[#allocation2 + $0xa8] sm:$0xff] %v653
    %846 = vst [vmem:[#allocation2 + $0xb0] sm:$0xff] %v658
    %847 = vst [vmem:[#allocation2 + $0xb8] sm:$0xff] %v661
    %848 = vst [vmem:[#allocation2 + $0xc0] sm:$0xff] %v666
    %849 = vst [vmem:[#allocation2 + $0xc8] sm:$0xff] %v669
    %850 = vst [vmem:[#allocation2 + $0xd0] sm:$0xff] %v674
    %851 = vst [vmem:[#allocation2 + $0xd8] sm:$0xff] %v677
    %852 = vst [vmem:[#allocation2 + $0xe0] sm:$0xff] %v682
    %853 = vst [vmem:[#allocation2 + $0xe8] sm:$0xff] %v685
    %854 = vst [vmem:[#allocation2 + $0xf0] sm:$0xff] %v690
    %855 = vst [vmem:[#allocation2 + $0xf8] sm:$0xff] %v693
    %856 = vst [vmem:[#allocation2 + $0x100] sm:$0xff] %v698
    %857 = vst [vmem:[#allocation2 + $0x108] sm:$0xff] %v701
    %858 = vst [vmem:[#allocation2 + $0x110] sm:$0xff] %v706
    %859 = vst [vmem:[#allocation2 + $0x118] sm:$0xff] %v709
    %860 = vst [vmem:[#allocation2 + $0x120] sm:$0xff] %v714
    %861 = vst [vmem:[#allocation2 + $0x128] sm:$0xff] %v717
    %862 = vst [vmem:[#allocation2 + $0x130] sm:$0xff] %v722
    %863 = vst [vmem:[#allocation2 + $0x138] sm:$0xff] %v725
    %864 = vst [vmem:[#allocation2 + $0x140] sm:$0xff] %v730
    %865 = vst [vmem:[#allocation2 + $0x148] sm:$0xff] %v733
    %866 = vst [vmem:[#allocation2 + $0x150] sm:$0xff] %v738
    %867 = vst [vmem:[#allocation2 + $0x158] sm:$0xff] %v741
    %868 = vst [vmem:[#allocation2 + $0x160] sm:$0xff] %v746
    %869 = vst [vmem:[#allocation2 + $0x168] sm:$0xff] %v749
    %870 = vst [vmem:[#allocation2 + $0x170] sm:$0xff] %v754
    %871 = vst [vmem:[#allocation2 + $0x178] sm:$0xff] %v757
    %872 = vst [vmem:[#allocation2 + $0x180] sm:$0xff] %v762
    %873 = vst [vmem:[#allocation2 + $0x188] sm:$0xff] %v765
    %874 = vst [vmem:[#allocation2 + $0x190] sm:$0xff] %v770
    %875 = vst [vmem:[#allocation2 + $0x198] sm:$0xff] %v773
    %876 = vst [vmem:[#allocation2 + $0x1a0] sm:$0xff] %v778
    %877 = vst [vmem:[#allocation2 + $0x1a8] sm:$0xff] %v781
    %878 = vst [vmem:[#allocation2 + $0x1b0] sm:$0xff] %v786
    %879 = vst [vmem:[#allocation2 + $0x1b8] sm:$0xff] %v789
    %880 = vst [vmem:[#allocation2 + $0x1c0] sm:$0xff] %v794
    %881 = vst [vmem:[#allocation2 + $0x1c8] sm:$0xff] %v797
    %882 = vst [vmem:[#allocation2 + $0x1d0] sm:$0xff] %v802
    %883 = vst [vmem:[#allocation2 + $0x1d8] sm:$0xff] %v805
    %884 = vst [vmem:[#allocation2 + $0x1e0] sm:$0xff] %v810
    %885 = vst [vmem:[#allocation2 + $0x1e8] sm:$0xff] %v813
    %886 = vst [vmem:[#allocation2 + $0x1f0] sm:$0xff] %v818
    %887 = vst [vmem:[#allocation2 + $0x1f8] sm:$0xff] %v821
    // Predicated region
    $region14: #{astrous_forward.5} parent=1 // pred_check
      _
    $region15: #{astrous_forward.5} parent=1 // pred_check_branch
      %889 = sbr.rel (0) target = $region17
    $region16: #{astrous_forward.5} parent=1 // pred_region
      %s891 = ssub.s32 8192, 8192
      %892 = vsyncadd [#allocation3], %s891
      %s893 = sshll.u32 [#allocation2], 4
      %s894 = int_to_ptr.vmem [resolvable:$true] %s893
      %899 = dma.vmem_to_hbm [thread:$0]  %s894, 8192, %s3, [#allocation3], 128, 128, 8
    $region17: #{astrous_forward.5} parent=1 // pred_fallthru
      _
    // Predicated region
    $region18: #{astrous_forward.5} parent=1 // pred_check
      _
    $region19: #{astrous_forward.5} parent=1 // pred_check_branch
      %901 = sbr.rel (0) target = $region21
    $region20: #{astrous_forward.5} parent=1 // pred_region
      %902 = dma.done [#allocation3], 8192
    $region21: #{astrous_forward.5} parent=1 // pred_fallthru
      _
    %903 = vsyncpa [#allocation3], 1

// kernel: astrous_forward.3
$region0: #{astrous_forward.3}
  #allocation0 [shape = 'u32[]', space=smem, size = 0x4, offset = 0x4, fixed_abs, tag = 'smem constant byte address 0x4 - core index']
  #allocation1 [shape = 'u32[144,128]{1,0:T(1,128)}', space=vmem, size = 0x12000, scoped, tag = 'internal scratch']
  #allocation2 [shape = 'f32[512,128]{1,0:T(8,128)}', space=vmem, size = 0x40000, scoped, tag = 'scratch operand']
  %s0 = inlined_call_operand.vmem [shape: bf16[3,32,28,512], index: 0, kind: input, shape index: {}]
  %s1 = inlined_call_operand.vmem [shape: bf16[3,3,512,256], index: 1, kind: input, shape index: {}]
  %s2 = inlined_call_operand.vmem [shape: f32[1,256], index: 2, kind: input, shape index: {}]
  %s3 = inlined_call_operand.vmem [shape: bf16[512,256], index: 3, kind: output, shape index: {}]
  %s4 = sld [smem:[#allocation0]]
  $region131: #{astrous_forward.3} parent=0
    _
  %s6 = ssub.s32 1, %s4
  %s7 = scalar_select 0, %s6, %s4
  $region1: #{astrous_forward.3} parent=0
    #allocation3 [shape = 'u8[786432]{0}', space=vmem, size = 0xc0000, scoped, tag = 'input window, operand 1']
    #allocation4 [shape = 'u8[262144]{0}', space=vmem, size = 0x40000, scoped, tag = 'output window, operand 0']
    loop: start=0, step=1, limit=8
    $region2: #{astrous_forward.3} parent=1 // loop_pre_header
      _
    $region3: #{astrous_forward.3} parent=1 // loop_header
      %s9 = sphi 0, %s13
      %p10 = scmp.ge.s32.totalorder %s9, 8
      %s16 = sphi 0, %s35
      %s17 = sphi 0, %s31
      %s18 = sphi 0, %s27
      %s19 = sphi 0, %s16
      %s20 = sphi 0, %s17
      %s21 = sphi 0, %s18
      %s22 = sphi 0, %s19
      %s23 = sphi 0, %s20
      %s24 = sphi 0, %s21
      %s40 = sphi 0, %s42
      %s43 = sphi 0, %s40
      %s44 = sphi 0, %s43
      %s60 = sphi 0, %s44
      %s68 = sphi 0, %s70
      %s71 = sphi 0, %s68
      %s72 = sphi 0, %s71
      %s88 = sphi 0, %s72
      %s94 = sphi 0, %s96
      %s97 = sphi 0, %s94
      %s98 = sphi 0, %s97
      %s114 = sphi 0, %s98
      %s122 = sphi 0, %s124
      %s125 = sphi 0, %s122
      %s126 = sphi 0, %s125
      %s142 = sphi 0, %s126
    $region4: #{astrous_forward.3} parent=1 // loop_header_branch
      %12 = sbr.rel (%p10) target = $region8
    $region5: #{astrous_forward.3} parent=1 // loop_body
      %s14 = ssub.s32 %s9, 1
      %s15 = ssub.s32 %s9, 2
      %s25 = sadd.s32 1, %s18
      %p26 = scmp.ge.s32.totalorder %s25, 3
      %s27 = scalar_select %p26, 0, %s25
      %s28 = sadd.s32 1, %s17
      %s29 = scalar_select %p26, %s28, %s17
      %p30 = scmp.ge.s32.totalorder %s29, 2
      %s31 = scalar_select %p30, 0, %s29
      %s32 = sadd.s32 1, %s16
      %s33 = scalar_select %p30, %s32, %s16
      %p34 = scmp.ge.s32.totalorder %s33, 1
      %s35 = scalar_select %p34, 0, %s33
      %s36 = ssub.s32 %s18, %s27
      %s37 = ssub.s32 %s16, %s35
      %s38 = sor.u32 %s36, %s37
      %p39 = scmp.eq.s32.totalorder %s38, 0
      %s41 = sadd.s32 %s40, 1
      %s42 = scalar_select %p39, %s40, %s41
      %p45 = pneg %p39
      %p46 = scmp.eq.s32.totalorder %s9, 5
      %p47 = por %p45, %p46
      %p48 = scmp.ne.s32.totalorder %s40, %s43
      %p49 = scmp.eq.s32.totalorder %s9, 0
      %p50 = por %p48, %p49
      %p51 = scmp.ne.s32.totalorder %s40, %s43
      %p52 = scmp.eq.s32.totalorder %s14, 5
      %p53 = por %p51, %p52
      %p54 = scmp.ne.s32.totalorder %s43, %s44
      %p55 = scmp.eq.s32.totalorder %s14, 0
      %p56 = por %p54, %p55
      %p57 = scmp.ne.s32.totalorder %s43, %s44
      %p58 = scmp.eq.s32.totalorder %s15, 5
      %p59 = por %p57, %p58
      %p61 = scmp.ne.s32.totalorder %s44, %s60
      %p62 = scmp.eq.s32.totalorder %s15, 0
      %p63 = por %p61, %p62
      %s64 = ssub.s32 %s18, %s27
      %s65 = ssub.s32 %s17, %s31
      %s66 = sor.u32 %s64, %s65
      %p67 = scmp.eq.s32.totalorder %s66, 0
      %s69 = sadd.s32 %s68, 1
      %s70 = scalar_select %p67, %s68, %s69
      %p73 = pneg %p67
      %p74 = scmp.eq.s32.totalorder %s9, 5
      %p75 = por %p73, %p74
      %p76 = scmp.ne.s32.totalorder %s68, %s71
      %p77 = scmp.eq.s32.totalorder %s9, 0
      %p78 = por %p76, %p77
      %p79 = scmp.ne.s32.totalorder %s68, %s71
      %p80 = scmp.eq.s32.totalorder %s14, 5
      %p81 = por %p79, %p80
      %p82 = scmp.ne.s32.totalorder %s71, %s72
      %p83 = scmp.eq.s32.totalorder %s14, 0
      %p84 = por %p82, %p83
      %p85 = scmp.ne.s32.totalorder %s71, %s72
      %p86 = scmp.eq.s32.totalorder %s15, 5
      %p87 = por %p85, %p86
      %p89 = scmp.ne.s32.totalorder %s72, %s88
      %p90 = scmp.eq.s32.totalorder %s15, 0
      %p91 = por %p89, %p90
      %s92 = ssub.s32 %s17, %s31
      %p93 = scmp.eq.s32.totalorder %s92, 0
      %s95 = sadd.s32 %s94, 1
      %s96 = scalar_select %p93, %s94, %s95
      %p99 = pneg %p93
      %p100 = scmp.eq.s32.totalorder %s9, 5
      %p101 = por %p99, %p100
      %p102 = scmp.ne.s32.totalorder %s94, %s97
      %p103 = scmp.eq.s32.totalorder %s9, 0
      %p104 = por %p102, %p103
      %p105 = scmp.ne.s32.totalorder %s94, %s97
      %p106 = scmp.eq.s32.totalorder %s14, 5
      %p107 = por %p105, %p106
      %p108 = scmp.ne.s32.totalorder %s97, %s98
      %p109 = scmp.eq.s32.totalorder %s14, 0
      %p110 = por %p108, %p109
      %p111 = scmp.ne.s32.totalorder %s97, %s98
      %p112 = scmp.eq.s32.totalorder %s15, 5
      %p113 = por %p111, %p112
      %p115 = scmp.ne.s32.totalorder %s98, %s114
      %p116 = scmp.eq.s32.totalorder %s15, 0
      %p117 = por %p115, %p116
      %s118 = ssub.s32 %s16, %s35
      %s119 = ssub.s32 %s17, %s31
      %s120 = sor.u32 %s118, %s119
      %p121 = scmp.eq.s32.totalorder %s120, 0
      %s123 = sadd.s32 %s122, 1
      %s124 = scalar_select %p121, %s122, %s123
      %p127 = pneg %p121
      %p128 = scmp.eq.s32.totalorder %s9, 5
      %p129 = por %p127, %p128
      %p130 = scmp.ne.s32.totalorder %s122, %s125
      %p131 = scmp.eq.s32.totalorder %s9, 0
      %p132 = por %p130, %p131
      %p133 = scmp.ne.s32.totalorder %s122, %s125
      %p134 = scmp.eq.s32.totalorder %s14, 5
      %p135 = por %p133, %p134
      %p136 = scmp.ne.s32.totalorder %s125, %s126
      %p137 = scmp.eq.s32.totalorder %s14, 0
      %p138 = por %p136, %p137
      %p139 = scmp.ne.s32.totalorder %s125, %s126
      %p140 = scmp.eq.s32.totalorder %s15, 5
      %p141 = por %p139, %p140
      %p143 = scmp.ne.s32.totalorder %s126, %s142
      %p144 = scmp.eq.s32.totalorder %s15, 0
      %p145 = por %p143, %p144
      %p146 = scmp.le.s32.totalorder 1, %s9
      %p147 = scmp.lt.s32.totalorder %s9, 7
      %p148 = pnand %p146, %p147
      %p149 = pneg %p148
      // Predicated region
      $region9: #{astrous_forward.3} parent=5 // pred_check
        _
      $region10: #{astrous_forward.3} parent=5 // pred_check_branch
        %151 = sbr.rel (%p148) target = $region12
      $region11: #{astrous_forward.3} parent=5 // pred_region
        %s152 = ssub.s32 %s9, 1
      $region12: #{astrous_forward.3} parent=5 // pred_fallthru
        _
      %p153 = scmp.lt.s32.totalorder %s9, 6
      // Predicated region
      $region13: #{astrous_forward.3} parent=5 // pred_check
        %p154 = pneg %p153
      $region14: #{astrous_forward.3} parent=5 // pred_check_branch
        %156 = sbr.rel (%p154) target = $region16
      $region15: #{astrous_forward.3} parent=5 // pred_region
        // Predicated region
        $region17: #{astrous_forward.3} parent=15 // pred_check
          %p157 = pneg %p50
        $region18: #{astrous_forward.3} parent=15 // pred_check_branch
          %159 = sbr.rel (%p157) target = $region20
        $region19: #{astrous_forward.3} parent=15 // pred_region
          %s160 = smul.u32 32, %s16
          %p161 = scmp.lt.s32.totalorder %s18, 2
          %s162 = scalar_select %p161, %s18, 2
          %p163 = scmp.lt.s32.totalorder %s160, 31
          %s164 = scalar_select %p163, %s160, 31
          %s165 = smul.addr %s164, 16
          %s166 = smul.addr %s162, 512
          %s167 = sadd.s32 %s165, %s166
          %s168 = smul.addr %s167, 4
          %s169 = scalar_lea.vmem %s0, %s168
          %s170 = smul.u32 32, %s16
        $region20: #{astrous_forward.3} parent=15 // pred_fallthru
          _
        // Predicated region
        $region21: #{astrous_forward.3} parent=15 // pred_check
          %p171 = pneg %p78
        $region22: #{astrous_forward.3} parent=15 // pred_check_branch
          %173 = sbr.rel (%p171) target = $region24
        $region23: #{astrous_forward.3} parent=15 // pred_region
          %s174 = sand.u32 %s68, 1
          %s175 = sand.u32 %s68, 1
          %s176 = smul.addr %s175, 768
          %s177 = scalar_lea.vmem [#allocation3], %s176
          %s178 = smul.addr %s18, 384
          %s179 = sadd.s32 %s17, %s178
          %s180 = smul.addr %s179, 4
          %s181 = scalar_lea.vmem %s1, %s180
          // Predicated region
          $region25: #{astrous_forward.3} parent=23 // pred_check
            _
          $region26: #{astrous_forward.3} parent=23 // pred_check_branch
            %183 = sbr.rel (0) target = $region28
          $region27: #{astrous_forward.3} parent=23 // pred_region
            // Predicated region
            $region29: #{astrous_forward.3} parent=27 // pred_check
              _
            $region30: #{astrous_forward.3} parent=27 // pred_check_branch
              %185 = sbr.rel target = $region32
            $region31: #{astrous_forward.3} parent=27 // pred_region
              // Predicated region
              $region44: #{astrous_forward.3} parent=31 // pred_check
                _
              $region45: #{astrous_forward.3} parent=31 // pred_check_branch
                %582 = sbr.rel (0) target = $region47
              $region46: #{astrous_forward.3} parent=31 // pred_region
                loop: start=0, step=1, limit=1
                $region48: #{astrous_forward.3} parent=46 // loop_pre_header
                  _
                $region49: #{astrous_forward.3} parent=46 // loop_header
                  %s584 = sphi 0, %s588
                  %p585 = scmp.ge.s32.totalorder %s584, 1
                  %s589 = sphi %s181, %s181
                  %s590 = sphi %s177, %s177
                $region50: #{astrous_forward.3} parent=46 // loop_header_branch
                  %587 = sbr.rel (%p585) target = $region54
                $region51: #{astrous_forward.3} parent=46 // loop_body
                  _
                $region52: #{astrous_forward.3} parent=46 // loop_footer
                  %s588 = sadd.s32 1, %s584
                $region53: #{astrous_forward.3} parent=46 // loop_footer_branch
                  %583 = sbr.rel target = $region49
                $region54: #{astrous_forward.3} parent=46 // loop_exit
                  _
                loop: start=0, step=1, limit=1
                $region55: #{astrous_forward.3} parent=46 // loop_pre_header
                  _
                $region56: #{astrous_forward.3} parent=46 // loop_header
                  %s593 = sphi 0, %s597
                  %p594 = scmp.ge.s32.totalorder %s593, 1
                  %s598 = sphi %s181, %s181
                  %s599 = sphi %s177, %s177
                $region57: #{astrous_forward.3} parent=46 // loop_header_branch
                  %596 = sbr.rel (%p594) target = $region61
                $region58: #{astrous_forward.3} parent=46 // loop_body
                  %v600 = vld [vmem:[%s598] sm:$0xf]
                  %601 = vst [vmem:[%s599] sm:$0xf] %v600
                  %v602 = vld [vmem:[%s598 + $0x8] sm:$0xf]
                  %603 = vst [vmem:[%s599 + $0x4] sm:$0xf] %v602
                  %v604 = vld [vmem:[%s598 + $0x10] sm:$0xf]
                  %605 = vst [vmem:[%s599 + $0x8] sm:$0xf] %v604
                  %v606 = vld [vmem:[%s598 + $0x18] sm:$0xf]
                  %607 = vst [vmem:[%s599 + $0xc] sm:$0xf] %v606
                  %v608 = vld [vmem:[%s598 + $0x20] sm:$0xf]
                  %609 = vst [vmem:[%s599 + $0x10] sm:$0xf] %v608
                  %v610 = vld [vmem:[%s598 + $0x28] sm:$0xf]
                  %611 = vst [vmem:[%s599 + $0x14] sm:$0xf] %v610
                  %v612 = vld [vmem:[%s598 + $0x30] sm:$0xf]
                  %613 = vst [vmem:[%s599 + $0x18] sm:$0xf] %v612
                  %v614 = vld [vmem:[%s598 + $0x38] sm:$0xf]
                  %615 = vst [vmem:[%s599 + $0x1c] sm:$0xf] %v614
                  %v616 = vld [vmem:[%s598 + $0x40] sm:$0xf]
                  %617 = vst [vmem:[%s599 + $0x20] sm:$0xf] %v616
                  %v618 = vld [vmem:[%s598 + $0x48] sm:$0xf]
                  %619 = vst [vmem:[%s599 + $0x24] sm:$0xf] %v618
                  %v620 = vld [vmem:[%s598 + $0x50] sm:$0xf]
                  %621 = vst [vmem:[%s599 + $0x28] sm:$0xf] %v620
                  %v622 = vld [vmem:[%s598 + $0x58] sm:$0xf]
                  %623 = vst [vmem:[%s599 + $0x2c] sm:$0xf] %v622
                  %v624 = vld [vmem:[%s598 + $0x60] sm:$0xf]
                  %625 = vst [vmem:[%s599 + $0x30] sm:$0xf] %v624
                  %v626 = vld [vmem:[%s598 + $0x68] sm:$0xf]
                  %627 = vst [vmem:[%s599 + $0x34] sm:$0xf] %v626
                  %v628 = vld [vmem:[%s598 + $0x70] sm:$0xf]
                  %629 = vst [vmem:[%s599 + $0x38] sm:$0xf] %v628
                  %v630 = vld [vmem:[%s598 + $0x78] sm:$0xf]
                  %631 = vst [vmem:[%s599 + $0x3c] sm:$0xf] %v630
                  %v632 = vld [vmem:[%s598 + $0x80] sm:$0xf]
                  %633 = vst [vmem:[%s599 + $0x40] sm:$0xf] %v632
                  %v634 = vld [vmem:[%s598 + $0x88] sm:$0xf]
                  %635 = vst [vmem:[%s599 + $0x44] sm:$0xf] %v634
                  %v636 = vld [vmem:[%s598 + $0x90] sm:$0xf]
                  %637 = vst [vmem:[%s599 + $0x48] sm:$0xf] %v636
                  %v638 = vld [vmem:[%s598 + $0x98] sm:$0xf]
                  %639 = vst [vmem:[%s599 + $0x4c] sm:$0xf] %v638
                  %v640 = vld [vmem:[%s598 + $0xa0] sm:$0xf]
                  %641 = vst [vmem:[%s599 + $0x50] sm:$0xf] %v640
                  %v642 = vld [vmem:[%s598 + $0xa8] sm:$0xf]
                  %643 = vst [vmem:[%s599 + $0x54] sm:$0xf] %v642
                  %v644 = vld [vmem:[%s598 + $0xb0] sm:$0xf]
                  %645 = vst [vmem:[%s599 + $0x58] sm:$0xf] %v644
                  %v646 = vld [vmem:[%s598 + $0xb8] sm:$0xf]
                  %647 = vst [vmem:[%s599 + $0x5c] sm:$0xf] %v646
                  %v648 = vld [vmem:[%s598 + $0xc0] sm:$0xf]
                  %649 = vst [vmem:[%s599 + $0x60] sm:$0xf] %v648
                  %v650 = vld [vmem:[%s598 + $0xc8] sm:$0xf]
                  %651 = vst [vmem:[%s599 + $0x64] sm:$0xf] %v650
                  %v652 = vld [vmem:[%s598 + $0xd0] sm:$0xf]
                  %653 = vst [vmem:[%s599 + $0x68] sm:$0xf] %v652
                  %v654 = vld [vmem:[%s598 + $0xd8] sm:$0xf]
                  %655 = vst [vmem:[%s599 + $0x6c] sm:$0xf] %v654
                  %v656 = vld [vmem:[%s598 + $0xe0] sm:$0xf]
                  %657 = vst [vmem:[%s599 + $0x70] sm:$0xf] %v656
                  %v658 = vld [vmem:[%s598 + $0xe8] sm:$0xf]
                  %659 = vst [vmem:[%s599 + $0x74] sm:$0xf] %v658
                  %v660 = vld [vmem:[%s598 + $0xf0] sm:$0xf]
                  %661 = vst [vmem:[%s599 + $0x78] sm:$0xf] %v660
                  %v662 = vld [vmem:[%s598 + $0xf8] sm:$0xf]
                  %663 = vst [vmem:[%s599 + $0x7c] sm:$0xf] %v662
                  %v664 = vld [vmem:[%s598 + $0x100] sm:$0xf]
                  %665 = vst [vmem:[%s599 + $0x80] sm:$0xf] %v664
                  %v666 = vld [vmem:[%s598 + $0x108] sm:$0xf]
                  %667 = vst [vmem:[%s599 + $0x84] sm:$0xf] %v666
                  %v668 = vld [vmem:[%s598 + $0x110] sm:$0xf]
                  %669 = vst [vmem:[%s599 + $0x88] sm:$0xf] %v668
                  %v670 = vld [vmem:[%s598 + $0x118] sm:$0xf]
                  %671 = vst [vmem:[%s599 + $0x8c] sm:$0xf] %v670
                  %v672 = vld [vmem:[%s598 + $0x120] sm:$0xf]
                  %673 = vst [vmem:[%s599 + $0x90] sm:$0xf] %v672
                  %v674 = vld [vmem:[%s598 + $0x128] sm:$0xf]
                  %675 = vst [vmem:[%s599 + $0x94] sm:$0xf] %v674
                  %v676 = vld [vmem:[%s598 + $0x130] sm:$0xf]
                  %677 = vst [vmem:[%s599 + $0x98] sm:$0xf] %v676
                  %v678 = vld [vmem:[%s598 + $0x138] sm:$0xf]
                  %679 = vst [vmem:[%s599 + $0x9c] sm:$0xf] %v678
                  %v680 = vld [vmem:[%s598 + $0x140] sm:$0xf]
                  %681 = vst [vmem:[%s599 + $0xa0] sm:$0xf] %v680
                  %v682 = vld [vmem:[%s598 + $0x148] sm:$0xf]
                  %683 = vst [vmem:[%s599 + $0xa4] sm:$0xf] %v682
                  %v684 = vld [vmem:[%s598 + $0x150] sm:$0xf]
                  %685 = vst [vmem:[%s599 + $0xa8] sm:$0xf] %v684
                  %v686 = vld [vmem:[%s598 + $0x158] sm:$0xf]
                  %687 = vst [vmem:[%s599 + $0xac] sm:$0xf] %v686
                  %v688 = vld [vmem:[%s598 + $0x160] sm:$0xf]
                  %689 = vst [vmem:[%s599 + $0xb0] sm:$0xf] %v688
                  %v690 = vld [vmem:[%s598 + $0x168] sm:$0xf]
                  %691 = vst [vmem:[%s599 + $0xb4] sm:$0xf] %v690
                  %v692 = vld [vmem:[%s598 + $0x170] sm:$0xf]
                  %693 = vst [vmem:[%s599 + $0xb8] sm:$0xf] %v692
                  %v694 = vld [vmem:[%s598 + $0x178] sm:$0xf]
                  %695 = vst [vmem:[%s599 + $0xbc] sm:$0xf] %v694
                  %v696 = vld [vmem:[%s598 + $0x180] sm:$0xf]
                  %697 = vst [vmem:[%s599 + $0xc0] sm:$0xf] %v696
                  %v698 = vld [vmem:[%s598 + $0x188] sm:$0xf]
                  %699 = vst [vmem:[%s599 + $0xc4] sm:$0xf] %v698
                  %v700 = vld [vmem:[%s598 + $0x190] sm:$0xf]
                  %701 = vst [vmem:[%s599 + $0xc8] sm:$0xf] %v700
                  %v702 = vld [vmem:[%s598 + $0x198] sm:$0xf]
                  %703 = vst [vmem:[%s599 + $0xcc] sm:$0xf] %v702
                  %v704 = vld [vmem:[%s598 + $0x1a0] sm:$0xf]
                  %705 = vst [vmem:[%s599 + $0xd0] sm:$0xf] %v704
                  %v706 = vld [vmem:[%s598 + $0x1a8] sm:$0xf]
                  %707 = vst [vmem:[%s599 + $0xd4] sm:$0xf] %v706
                  %v708 = vld [vmem:[%s598 + $0x1b0] sm:$0xf]
                  %709 = vst [vmem:[%s599 + $0xd8] sm:$0xf] %v708
                  %v710 = vld [vmem:[%s598 + $0x1b8] sm:$0xf]
                  %711 = vst [vmem:[%s599 + $0xdc] sm:$0xf] %v710
                  %v712 = vld [vmem:[%s598 + $0x1c0] sm:$0xf]
                  %713 = vst [vmem:[%s599 + $0xe0] sm:$0xf] %v712
                  %v714 = vld [vmem:[%s598 + $0x1c8] sm:$0xf]
                  %715 = vst [vmem:[%s599 + $0xe4] sm:$0xf] %v714
                  %v716 = vld [vmem:[%s598 + $0x1d0] sm:$0xf]
                  %717 = vst [vmem:[%s599 + $0xe8] sm:$0xf] %v716
                  %v718 = vld [vmem:[%s598 + $0x1d8] sm:$0xf]
                  %719 = vst [vmem:[%s599 + $0xec] sm:$0xf] %v718
                  %v720 = vld [vmem:[%s598 + $0x1e0] sm:$0xf]
                  %721 = vst [vmem:[%s599 + $0xf0] sm:$0xf] %v720
                  %v722 = vld [vmem:[%s598 + $0x1e8] sm:$0xf]
                  %723 = vst [vmem:[%s599 + $0xf4] sm:$0xf] %v722
                  %v724 = vld [vmem:[%s598 + $0x1f0] sm:$0xf]
                  %725 = vst [vmem:[%s599 + $0xf8] sm:$0xf] %v724
                  %v726 = vld [vmem:[%s598 + $0x1f8] sm:$0xf]
                  %727 = vst [vmem:[%s599 + $0xfc] sm:$0xf] %v726
                  %v728 = vld [vmem:[%s598 + $0x200] sm:$0xf]
                  %729 = vst [vmem:[%s599 + $0x100] sm:$0xf] %v728
                  %v730 = vld [vmem:[%s598 + $0x208] sm:$0xf]
                  %731 = vst [vmem:[%s599 + $0x104] sm:$0xf] %v730
                  %v732 = vld [vmem:[%s598 + $0x210] sm:$0xf]
                  %733 = vst [vmem:[%s599 + $0x108] sm:$0xf] %v732
                  %v734 = vld [vmem:[%s598 + $0x218] sm:$0xf]
                  %735 = vst [vmem:[%s599 + $0x10c] sm:$0xf] %v734
                  %v736 = vld [vmem:[%s598 + $0x220] sm:$0xf]
                  %737 = vst [vmem:[%s599 + $0x110] sm:$0xf] %v736
                  %v738 = vld [vmem:[%s598 + $0x228] sm:$0xf]
                  %739 = vst [vmem:[%s599 + $0x114] sm:$0xf] %v738
                  %v740 = vld [vmem:[%s598 + $0x230] sm:$0xf]
                  %741 = vst [vmem:[%s599 + $0x118] sm:$0xf] %v740
                  %v742 = vld [vmem:[%s598 + $0x238] sm:$0xf]
                  %743 = vst [vmem:[%s599 + $0x11c] sm:$0xf] %v742
                  %v744 = vld [vmem:[%s598 + $0x240] sm:$0xf]
                  %745 = vst [vmem:[%s599 + $0x120] sm:$0xf] %v744
                  %v746 = vld [vmem:[%s598 + $0x248] sm:$0xf]
                  %747 = vst [vmem:[%s599 + $0x124] sm:$0xf] %v746
                  %v748 = vld [vmem:[%s598 + $0x250] sm:$0xf]
                  %749 = vst [vmem:[%s599 + $0x128] sm:$0xf] %v748
                  %v750 = vld [vmem:[%s598 + $0x258] sm:$0xf]
                  %751 = vst [vmem:[%s599 + $0x12c] sm:$0xf] %v750
                  %v752 = vld [vmem:[%s598 + $0x260] sm:$0xf]
                  %753 = vst [vmem:[%s599 + $0x130] sm:$0xf] %v752
                  %v754 = vld [vmem:[%s598 + $0x268] sm:$0xf]
                  %755 = vst [vmem:[%s599 + $0x134] sm:$0xf] %v754
                  %v756 = vld [vmem:[%s598 + $0x270] sm:$0xf]
                  %757 = vst [vmem:[%s599 + $0x138] sm:$0xf] %v756
                  %v758 = vld [vmem:[%s598 + $0x278] sm:$0xf]
                  %759 = vst [vmem:[%s599 + $0x13c] sm:$0xf] %v758
                  %v760 = vld [vmem:[%s598 + $0x280] sm:$0xf]
                  %761 = vst [vmem:[%s599 + $0x140] sm:$0xf] %v760
                  %v762 = vld [vmem:[%s598 + $0x288] sm:$0xf]
                  %763 = vst [vmem:[%s599 + $0x144] sm:$0xf] %v762
                  %v764 = vld [vmem:[%s598 + $0x290] sm:$0xf]
                  %765 = vst [vmem:[%s599 + $0x148] sm:$0xf] %v764
                  %v766 = vld [vmem:[%s598 + $0x298] sm:$0xf]
                  %767 = vst [vmem:[%s599 + $0x14c] sm:$0xf] %v766
                  %v768 = vld [vmem:[%s598 + $0x2a0] sm:$0xf]
                  %769 = vst [vmem:[%s599 + $0x150] sm:$0xf] %v768
                  %v770 = vld [vmem:[%s598 + $0x2a8] sm:$0xf]
                  %771 = vst [vmem:[%s599 + $0x154] sm:$0xf] %v770
                  %v772 = vld [vmem:[%s598 + $0x2b0] sm:$0xf]
                  %773 = vst [vmem:[%s599 + $0x158] sm:$0xf] %v772
                  %v774 = vld [vmem:[%s598 + $0x2b8] sm:$0xf]
                  %775 = vst [vmem:[%s599 + $0x15c] sm:$0xf] %v774
                  %v776 = vld [vmem:[%s598 + $0x2c0] sm:$0xf]
                  %777 = vst [vmem:[%s599 + $0x160] sm:$0xf] %v776
                  %v778 = vld [vmem:[%s598 + $0x2c8] sm:$0xf]
                  %779 = vst [vmem:[%s599 + $0x164] sm:$0xf] %v778
                  %v780 = vld [vmem:[%s598 + $0x2d0] sm:$0xf]
                  %781 = vst [vmem:[%s599 + $0x168] sm:$0xf] %v780
                  %v782 = vld [vmem:[%s598 + $0x2d8] sm:$0xf]
                  %783 = vst [vmem:[%s599 + $0x16c] sm:$0xf] %v782
                  %v784 = vld [vmem:[%s598 + $0x2e0] sm:$0xf]
                  %785 = vst [vmem:[%s599 + $0x170] sm:$0xf] %v784
                  %v786 = vld [vmem:[%s598 + $0x2e8] sm:$0xf]
                  %787 = vst [vmem:[%s599 + $0x174] sm:$0xf] %v786
                  %v788 = vld [vmem:[%s598 + $0x2f0] sm:$0xf]
                  %789 = vst [vmem:[%s599 + $0x178] sm:$0xf] %v788
                  %v790 = vld [vmem:[%s598 + $0x2f8] sm:$0xf]
                  %791 = vst [vmem:[%s599 + $0x17c] sm:$0xf] %v790
                  %v792 = vld [vmem:[%s598 + $0x300] sm:$0xf]
                  %793 = vst [vmem:[%s599 + $0x180] sm:$0xf] %v792
                  %v794 = vld [vmem:[%s598 + $0x308] sm:$0xf]
                  %795 = vst [vmem:[%s599 + $0x184] sm:$0xf] %v794
                  %v796 = vld [vmem:[%s598 + $0x310] sm:$0xf]
                  %797 = vst [vmem:[%s599 + $0x188] sm:$0xf] %v796
                  %v798 = vld [vmem:[%s598 + $0x318] sm:$0xf]
                  %799 = vst [vmem:[%s599 + $0x18c] sm:$0xf] %v798
                  %v800 = vld [vmem:[%s598 + $0x320] sm:$0xf]
                  %801 = vst [vmem:[%s599 + $0x190] sm:$0xf] %v800
                  %v802 = vld [vmem:[%s598 + $0x328] sm:$0xf]
                  %803 = vst [vmem:[%s599 + $0x194] sm:$0xf] %v802
                  %v804 = vld [vmem:[%s598 + $0x330] sm:$0xf]
                  %805 = vst [vmem:[%s599 + $0x198] sm:$0xf] %v804
                  %v806 = vld [vmem:[%s598 + $0x338] sm:$0xf]
                  %807 = vst [vmem:[%s599 + $0x19c] sm:$0xf] %v806
                  %v808 = vld [vmem:[%s598 + $0x340] sm:$0xf]
                  %809 = vst [vmem:[%s599 + $0x1a0] sm:$0xf] %v808
                  %v810 = vld [vmem:[%s598 + $0x348] sm:$0xf]
                  %811 = vst [vmem:[%s599 + $0x1a4] sm:$0xf] %v810
                  %v812 = vld [vmem:[%s598 + $0x350] sm:$0xf]
                  %813 = vst [vmem:[%s599 + $0x1a8] sm:$0xf] %v812
                  %v814 = vld [vmem:[%s598 + $0x358] sm:$0xf]
                  %815 = vst [vmem:[%s599 + $0x1ac] sm:$0xf] %v814
                  %v816 = vld [vmem:[%s598 + $0x360] sm:$0xf]
                  %817 = vst [vmem:[%s599 + $0x1b0] sm:$0xf] %v816
                  %v818 = vld [vmem:[%s598 + $0x368] sm:$0xf]
                  %819 = vst [vmem:[%s599 + $0x1b4] sm:$0xf] %v818
                  %v820 = vld [vmem:[%s598 + $0x370] sm:$0xf]
                  %821 = vst [vmem:[%s599 + $0x1b8] sm:$0xf] %v820
                  %v822 = vld [vmem:[%s598 + $0x378] sm:$0xf]
                  %823 = vst [vmem:[%s599 + $0x1bc] sm:$0xf] %v822
                  %v824 = vld [vmem:[%s598 + $0x380] sm:$0xf]
                  %825 = vst [vmem:[%s599 + $0x1c0] sm:$0xf] %v824
                  %v826 = vld [vmem:[%s598 + $0x388] sm:$0xf]
                  %827 = vst [vmem:[%s599 + $0x1c4] sm:$0xf] %v826
                  %v828 = vld [vmem:[%s598 + $0x390] sm:$0xf]
                  %829 = vst [vmem:[%s599 + $0x1c8] sm:$0xf] %v828
                  %v830 = vld [vmem:[%s598 + $0x398] sm:$0xf]
                  %831 = vst [vmem:[%s599 + $0x1cc] sm:$0xf] %v830
                  %v832 = vld [vmem:[%s598 + $0x3a0] sm:$0xf]
                  %833 = vst [vmem:[%s599 + $0x1d0] sm:$0xf] %v832
                  %v834 = vld [vmem:[%s598 + $0x3a8] sm:$0xf]
                  %835 = vst [vmem:[%s599 + $0x1d4] sm:$0xf] %v834
                  %v836 = vld [vmem:[%s598 + $0x3b0] sm:$0xf]
                  %837 = vst [vmem:[%s599 + $0x1d8] sm:$0xf] %v836
                  %v838 = vld [vmem:[%s598 + $0x3b8] sm:$0xf]
                  %839 = vst [vmem:[%s599 + $0x1dc] sm:$0xf] %v838
                  %v840 = vld [vmem:[%s598 + $0x3c0] sm:$0xf]
                  %841 = vst [vmem:[%s599 + $0x1e0] sm:$0xf] %v840
                  %v842 = vld [vmem:[%s598 + $0x3c8] sm:$0xf]
                  %843 = vst [vmem:[%s599 + $0x1e4] sm:$0xf] %v842
                  %v844 = vld [vmem:[%s598 + $0x3d0] sm:$0xf]
                  %845 = vst [vmem:[%s599 + $0x1e8] sm:$0xf] %v844
                  %v846 = vld [vmem:[%s598 + $0x3d8] sm:$0xf]
                  %847 = vst [vmem:[%s599 + $0x1ec] sm:$0xf] %v846
                  %v848 = vld [vmem:[%s598 + $0x3e0] sm:$0xf]
                  %849 = vst [vmem:[%s599 + $0x1f0] sm:$0xf] %v848
                  %v850 = vld [vmem:[%s598 + $0x3e8] sm:$0xf]
                  %851 = vst [vmem:[%s599 + $0x1f4] sm:$0xf] %v850
                  %v852 = vld [vmem:[%s598 + $0x3f0] sm:$0xf]
                  %853 = vst [vmem:[%s599 + $0x1f8] sm:$0xf] %v852
                  %v854 = vld [vmem:[%s598 + $0x3f8] sm:$0xf]
                  %855 = vst [vmem:[%s599 + $0x1fc] sm:$0xf] %v854
                  %v856 = vld [vmem:[%s598 + $0x400] sm:$0xf]
                  %857 = vst [vmem:[%s599 + $0x200] sm:$0xf] %v856
                  %v858 = vld [vmem:[%s598 + $0x408] sm:$0xf]
                  %859 = vst [vmem:[%s599 + $0x204] sm:$0xf] %v858
                  %v860 = vld [vmem:[%s598 + $0x410] sm:$0xf]
                  %861 = vst [vmem:[%s599 + $0x208] sm:$0xf] %v860
                  %v862 = vld [vmem:[%s598 + $0x418] sm:$0xf]
                  %863 = vst [vmem:[%s599 + $0x20c] sm:$0xf] %v862
                  %v864 = vld [vmem:[%s598 + $0x420] sm:$0xf]
                  %865 = vst [vmem:[%s599 + $0x210] sm:$0xf] %v864
                  %v866 = vld [vmem:[%s598 + $0x428] sm:$0xf]
                  %867 = vst [vmem:[%s599 + $0x214] sm:$0xf] %v866
                  %v868 = vld [vmem:[%s598 + $0x430] sm:$0xf]
                  %869 = vst [vmem:[%s599 + $0x218] sm:$0xf] %v868
                  %v870 = vld [vmem:[%s598 + $0x438] sm:$0xf]
                  %871 = vst [vmem:[%s599 + $0x21c] sm:$0xf] %v870
                  %v872 = vld [vmem:[%s598 + $0x440] sm:$0xf]
                  %873 = vst [vmem:[%s599 + $0x220] sm:$0xf] %v872
                  %v874 = vld [vmem:[%s598 + $0x448] sm:$0xf]
                  %875 = vst [vmem:[%s599 + $0x224] sm:$0xf] %v874
                  %v876 = vld [vmem:[%s598 + $0x450] sm:$0xf]
                  %877 = vst [vmem:[%s599 + $0x228] sm:$0xf] %v876
                  %v878 = vld [vmem:[%s598 + $0x458] sm:$0xf]
                  %879 = vst [vmem:[%s599 + $0x22c] sm:$0xf] %v878
                  %v880 = vld [vmem:[%s598 + $0x460] sm:$0xf]
                  %881 = vst [vmem:[%s599 + $0x230] sm:$0xf] %v880
                  %v882 = vld [vmem:[%s598 + $0x468] sm:$0xf]
                  %883 = vst [vmem:[%s599 + $0x234] sm:$0xf] %v882
                  %v884 = vld [vmem:[%s598 + $0x470] sm:$0xf]
                  %885 = vst [vmem:[%s599 + $0x238] sm:$0xf] %v884
                  %v886 = vld [vmem:[%s598 + $0x478] sm:$0xf]
                  %887 = vst [vmem:[%s599 + $0x23c] sm:$0xf] %v886
                  %v888 = vld [vmem:[%s598 + $0x480] sm:$0xf]
                  %889 = vst [vmem:[%s599 + $0x240] sm:$0xf] %v888
                  %v890 = vld [vmem:[%s598 + $0x488] sm:$0xf]
                  %891 = vst [vmem:[%s599 + $0x244] sm:$0xf] %v890
                  %v892 = vld [vmem:[%s598 + $0x490] sm:$0xf]
                  %893 = vst [vmem:[%s599 + $0x248] sm:$0xf] %v892
                  %v894 = vld [vmem:[%s598 + $0x498] sm:$0xf]
                  %895 = vst [vmem:[%s599 + $0x24c] sm:$0xf] %v894
                  %v896 = vld [vmem:[%s598 + $0x4a0] sm:$0xf]
                  %897 = vst [vmem:[%s599 + $0x250] sm:$0xf] %v896
                  %v898 = vld [vmem:[%s598 + $0x4a8] sm:$0xf]
                  %899 = vst [vmem:[%s599 + $0x254] sm:$0xf] %v898
                  %v900 = vld [vmem:[%s598 + $0x4b0] sm:$0xf]
                  %901 = vst [vmem:[%s599 + $0x258] sm:$0xf] %v900
                  %v902 = vld [vmem:[%s598 + $0x4b8] sm:$0xf]
                  %903 = vst [vmem:[%s599 + $0x25c] sm:$0xf] %v902
                  %v904 = vld [vmem:[%s598 + $0x4c0] sm:$0xf]
                  %905 = vst [vmem:[%s599 + $0x260] sm:$0xf] %v904
                  %v906 = vld [vmem:[%s598 + $0x4c8] sm:$0xf]
                  %907 = vst [vmem:[%s599 + $0x264] sm:$0xf] %v906
                  %v908 = vld [vmem:[%s598 + $0x4d0] sm:$0xf]
                  %909 = vst [vmem:[%s599 + $0x268] sm:$0xf] %v908
                  %v910 = vld [vmem:[%s598 + $0x4d8] sm:$0xf]
                  %911 = vst [vmem:[%s599 + $0x26c] sm:$0xf] %v910
                  %v912 = vld [vmem:[%s598 + $0x4e0] sm:$0xf]
                  %913 = vst [vmem:[%s599 + $0x270] sm:$0xf] %v912
                  %v914 = vld [vmem:[%s598 + $0x4e8] sm:$0xf]
                  %915 = vst [vmem:[%s599 + $0x274] sm:$0xf] %v914
                  %v916 = vld [vmem:[%s598 + $0x4f0] sm:$0xf]
                  %917 = vst [vmem:[%s599 + $0x278] sm:$0xf] %v916
                  %v918 = vld [vmem:[%s598 + $0x4f8] sm:$0xf]
                  %919 = vst [vmem:[%s599 + $0x27c] sm:$0xf] %v918
                  %v920 = vld [vmem:[%s598 + $0x500] sm:$0xf]
                  %921 = vst [vmem:[%s599 + $0x280] sm:$0xf] %v920
                  %v922 = vld [vmem:[%s598 + $0x508] sm:$0xf]
                  %923 = vst [vmem:[%s599 + $0x284] sm:$0xf] %v922
                  %v924 = vld [vmem:[%s598 + $0x510] sm:$0xf]
                  %925 = vst [vmem:[%s599 + $0x288] sm:$0xf] %v924
                  %v926 = vld [vmem:[%s598 + $0x518] sm:$0xf]
                  %927 = vst [vmem:[%s599 + $0x28c] sm:$0xf] %v926
                  %v928 = vld [vmem:[%s598 + $0x520] sm:$0xf]
                  %929 = vst [vmem:[%s599 + $0x290] sm:$0xf] %v928
                  %v930 = vld [vmem:[%s598 + $0x528] sm:$0xf]
                  %931 = vst [vmem:[%s599 + $0x294] sm:$0xf] %v930
                  %v932 = vld [vmem:[%s598 + $0x530] sm:$0xf]
                  %933 = vst [vmem:[%s599 + $0x298] sm:$0xf] %v932
                  %v934 = vld [vmem:[%s598 + $0x538] sm:$0xf]
                  %935 = vst [vmem:[%s599 + $0x29c] sm:$0xf] %v934
                  %v936 = vld [vmem:[%s598 + $0x540] sm:$0xf]
                  %937 = vst [vmem:[%s599 + $0x2a0] sm:$0xf] %v936
                  %v938 = vld [vmem:[%s598 + $0x548] sm:$0xf]
                  %939 = vst [vmem:[%s599 + $0x2a4] sm:$0xf] %v938
                  %v940 = vld [vmem:[%s598 + $0x550] sm:$0xf]
                  %941 = vst [vmem:[%s599 + $0x2a8] sm:$0xf] %v940
                  %v942 = vld [vmem:[%s598 + $0x558] sm:$0xf]
                  %943 = vst [vmem:[%s599 + $0x2ac] sm:$0xf] %v942
                  %v944 = vld [vmem:[%s598 + $0x560] sm:$0xf]
                  %945 = vst [vmem:[%s599 + $0x2b0] sm:$0xf] %v944
                  %v946 = vld [vmem:[%s598 + $0x568] sm:$0xf]
                  %947 = vst [vmem:[%s599 + $0x2b4] sm:$0xf] %v946
                  %v948 = vld [vmem:[%s598 + $0x570] sm:$0xf]
                  %949 = vst [vmem:[%s599 + $0x2b8] sm:$0xf] %v948
                  %v950 = vld [vmem:[%s598 + $0x578] sm:$0xf]
                  %951 = vst [vmem:[%s599 + $0x2bc] sm:$0xf] %v950
                  %v952 = vld [vmem:[%s598 + $0x580] sm:$0xf]
                  %953 = vst [vmem:[%s599 + $0x2c0] sm:$0xf] %v952
                  %v954 = vld [vmem:[%s598 + $0x588] sm:$0xf]
                  %955 = vst [vmem:[%s599 + $0x2c4] sm:$0xf] %v954
                  %v956 = vld [vmem:[%s598 + $0x590] sm:$0xf]
                  %957 = vst [vmem:[%s599 + $0x2c8] sm:$0xf] %v956
                  %v958 = vld [vmem:[%s598 + $0x598] sm:$0xf]
                  %959 = vst [vmem:[%s599 + $0x2cc] sm:$0xf] %v958
                  %v960 = vld [vmem:[%s598 + $0x5a0] sm:$0xf]
                  %961 = vst [vmem:[%s599 + $0x2d0] sm:$0xf] %v960
                  %v962 = vld [vmem:[%s598 + $0x5a8] sm:$0xf]
                  %963 = vst [vmem:[%s599 + $0x2d4] sm:$0xf] %v962
                  %v964 = vld [vmem:[%s598 + $0x5b0] sm:$0xf]
                  %965 = vst [vmem:[%s599 + $0x2d8] sm:$0xf] %v964
                  %v966 = vld [vmem:[%s598 + $0x5b8] sm:$0xf]
                  %967 = vst [vmem:[%s599 + $0x2dc] sm:$0xf] %v966
                  %v968 = vld [vmem:[%s598 + $0x5c0] sm:$0xf]
                  %969 = vst [vmem:[%s599 + $0x2e0] sm:$0xf] %v968
                  %v970 = vld [vmem:[%s598 + $0x5c8] sm:$0xf]
                  %971 = vst [vmem:[%s599 + $0x2e4] sm:$0xf] %v970
                  %v972 = vld [vmem:[%s598 + $0x5d0] sm:$0xf]
                  %973 = vst [vmem:[%s599 + $0x2e8] sm:$0xf] %v972
                  %v974 = vld [vmem:[%s598 + $0x5d8] sm:$0xf]
                  %975 = vst [vmem:[%s599 + $0x2ec] sm:$0xf] %v974
                  %v976 = vld [vmem:[%s598 + $0x5e0] sm:$0xf]
                  %977 = vst [vmem:[%s599 + $0x2f0] sm:$0xf] %v976
                  %v978 = vld [vmem:[%s598 + $0x5e8] sm:$0xf]
                  %979 = vst [vmem:[%s599 + $0x2f4] sm:$0xf] %v978
                  %v980 = vld [vmem:[%s598 + $0x5f0] sm:$0xf]
                  %981 = vst [vmem:[%s599 + $0x2f8] sm:$0xf] %v980
                  %v982 = vld [vmem:[%s598 + $0x5f8] sm:$0xf]
                  %983 = vst [vmem:[%s599 + $0x2fc] sm:$0xf] %v982
                $region59: #{astrous_forward.3} parent=46 // loop_footer
                  %s597 = sadd.s32 1, %s593
                $region60: #{astrous_forward.3} parent=46 // loop_footer_branch
                  %592 = sbr.rel target = $region56
                $region61: #{astrous_forward.3} parent=46 // loop_exit
                  _
              $region47: #{astrous_forward.3} parent=31 // pred_fallthru
                _
            $region32: #{astrous_forward.3} parent=27 // pred_fallthru
              _
            // Predicated region
            $region33: #{astrous_forward.3} parent=27 // pred_check
              _
            $region34: #{astrous_forward.3} parent=27 // pred_check_branch
              %187 = sbr.rel (0) target = $region36
            $region35: #{astrous_forward.3} parent=27 // pred_region
              loop: start=0, step=1, limit=1
              $region37: #{astrous_forward.3} parent=35 // loop_pre_header
                _
              $region38: #{astrous_forward.3} parent=35 // loop_header
                %s190 = sphi 0, %s194
                %p191 = scmp.ge.s32.totalorder %s190, 1
                %s195 = sphi %s181, %s181
                %s196 = sphi %s177, %s177
              $region39: #{astrous_forward.3} parent=35 // loop_header_branch
                %193 = sbr.rel (%p191) target = $region43
              $region40: #{astrous_forward.3} parent=35 // loop_body
                %v197 = vld [vmem:[%s195] sm:$0xf]
                %198 = vst [vmem:[%s196] sm:$0xf] %v197
                %v199 = vld [vmem:[%s195 + $0x8] sm:$0xf]
                %200 = vst [vmem:[%s196 + $0x4] sm:$0xf] %v199
                %v201 = vld [vmem:[%s195 + $0x10] sm:$0xf]
                %202 = vst [vmem:[%s196 + $0x8] sm:$0xf] %v201
                %v203 = vld [vmem:[%s195 + $0x18] sm:$0xf]
                %204 = vst [vmem:[%s196 + $0xc] sm:$0xf] %v203
                %v205 = vld [vmem:[%s195 + $0x20] sm:$0xf]
                %206 = vst [vmem:[%s196 + $0x10] sm:$0xf] %v205
                %v207 = vld [vmem:[%s195 + $0x28] sm:$0xf]
                %208 = vst [vmem:[%s196 + $0x14] sm:$0xf] %v207
                %v209 = vld [vmem:[%s195 + $0x30] sm:$0xf]
                %210 = vst [vmem:[%s196 + $0x18] sm:$0xf] %v209
                %v211 = vld [vmem:[%s195 + $0x38] sm:$0xf]
                %212 = vst [vmem:[%s196 + $0x1c] sm:$0xf] %v211
                %v213 = vld [vmem:[%s195 + $0x40] sm:$0xf]
                %214 = vst [vmem:[%s196 + $0x20] sm:$0xf] %v213
                %v215 = vld [vmem:[%s195 + $0x48] sm:$0xf]
                %216 = vst [vmem:[%s196 + $0x24] sm:$0xf] %v215
                %v217 = vld [vmem:[%s195 + $0x50] sm:$0xf]
                %218 = vst [vmem:[%s196 + $0x28] sm:$0xf] %v217
                %v219 = vld [vmem:[%s195 + $0x58] sm:$0xf]
                %220 = vst [vmem:[%s196 + $0x2c] sm:$0xf] %v219
                %v221 = vld [vmem:[%s195 + $0x60] sm:$0xf]
                %222 = vst [vmem:[%s196 + $0x30] sm:$0xf] %v221
                %v223 = vld [vmem:[%s195 + $0x68] sm:$0xf]
                %224 = vst [vmem:[%s196 + $0x34] sm:$0xf] %v223
                %v225 = vld [vmem:[%s195 + $0x70] sm:$0xf]
                %226 = vst [vmem:[%s196 + $0x38] sm:$0xf] %v225
                %v227 = vld [vmem:[%s195 + $0x78] sm:$0xf]
                %228 = vst [vmem:[%s196 + $0x3c] sm:$0xf] %v227
                %v229 = vld [vmem:[%s195 + $0x80] sm:$0xf]
                %230 = vst [vmem:[%s196 + $0x40] sm:$0xf] %v229
                %v231 = vld [vmem:[%s195 + $0x88] sm:$0xf]
                %232 = vst [vmem:[%s196 + $0x44] sm:$0xf] %v231
                %v233 = vld [vmem:[%s195 + $0x90] sm:$0xf]
                %234 = vst [vmem:[%s196 + $0x48] sm:$0xf] %v233
                %v235 = vld [vmem:[%s195 + $0x98] sm:$0xf]
                %236 = vst [vmem:[%s196 + $0x4c] sm:$0xf] %v235
                %v237 = vld [vmem:[%s195 + $0xa0] sm:$0xf]
                %238 = vst [vmem:[%s196 + $0x50] sm:$0xf] %v237
                %v239 = vld [vmem:[%s195 + $0xa8] sm:$0xf]
                %240 = vst [vmem:[%s196 + $0x54] sm:$0xf] %v239
                %v241 = vld [vmem:[%s195 + $0xb0] sm:$0xf]
                %242 = vst [vmem:[%s196 + $0x58] sm:$0xf] %v241
                %v243 = vld [vmem:[%s195 + $0xb8] sm:$0xf]
                %244 = vst [vmem:[%s196 + $0x5c] sm:$0xf] %v243
                %v245 = vld [vmem:[%s195 + $0xc0] sm:$0xf]
                %246 = vst [vmem:[%s196 + $0x60] sm:$0xf] %v245
                %v247 = vld [vmem:[%s195 + $0xc8] sm:$0xf]
                %248 = vst [vmem:[%s196 + $0x64] sm:$0xf] %v247
                %v249 = vld [vmem:[%s195 + $0xd0] sm:$0xf]
                %250 = vst [vmem:[%s196 + $0x68] sm:$0xf] %v249
                %v251 = vld [vmem:[%s195 + $0xd8] sm:$0xf]
                %252 = vst [vmem:[%s196 + $0x6c] sm:$0xf] %v251
                %v253 = vld [vmem:[%s195 + $0xe0] sm:$0xf]
                %254 = vst [vmem:[%s196 + $0x70] sm:$0xf] %v253
                %v255 = vld [vmem:[%s195 + $0xe8] sm:$0xf]
                %256 = vst [vmem:[%s196 + $0x74] sm:$0xf] %v255
                %v257 = vld [vmem:[%s195 + $0xf0] sm:$0xf]
                %258 = vst [vmem:[%s196 + $0x78] sm:$0xf] %v257
                %v259 = vld [vmem:[%s195 + $0xf8] sm:$0xf]
                %260 = vst [vmem:[%s196 + $0x7c] sm:$0xf] %v259
                %v261 = vld [vmem:[%s195 + $0x100] sm:$0xf]
                %262 = vst [vmem:[%s196 + $0x80] sm:$0xf] %v261
                %v263 = vld [vmem:[%s195 + $0x108] sm:$0xf]
                %264 = vst [vmem:[%s196 + $0x84] sm:$0xf] %v263
                %v265 = vld [vmem:[%s195 + $0x110] sm:$0xf]
                %266 = vst [vmem:[%s196 + $0x88] sm:$0xf] %v265
                %v267 = vld [vmem:[%s195 + $0x118] sm:$0xf]
                %268 = vst [vmem:[%s196 + $0x8c] sm:$0xf] %v267
                %v269 = vld [vmem:[%s195 + $0x120] sm:$0xf]
                %270 = vst [vmem:[%s196 + $0x90] sm:$0xf] %v269
                %v271 = vld [vmem:[%s195 + $0x128] sm:$0xf]
                %272 = vst [vmem:[%s196 + $0x94] sm:$0xf] %v271
                %v273 = vld [vmem:[%s195 + $0x130] sm:$0xf]
                %274 = vst [vmem:[%s196 + $0x98] sm:$0xf] %v273
                %v275 = vld [vmem:[%s195 + $0x138] sm:$0xf]
                %276 = vst [vmem:[%s196 + $0x9c] sm:$0xf] %v275
                %v277 = vld [vmem:[%s195 + $0x140] sm:$0xf]
                %278 = vst [vmem:[%s196 + $0xa0] sm:$0xf] %v277
                %v279 = vld [vmem:[%s195 + $0x148] sm:$0xf]
                %280 = vst [vmem:[%s196 + $0xa4] sm:$0xf] %v279
                %v281 = vld [vmem:[%s195 + $0x150] sm:$0xf]
                %282 = vst [vmem:[%s196 + $0xa8] sm:$0xf] %v281
                %v283 = vld [vmem:[%s195 + $0x158] sm:$0xf]
                %284 = vst [vmem:[%s196 + $0xac] sm:$0xf] %v283
                %v285 = vld [vmem:[%s195 + $0x160] sm:$0xf]
                %286 = vst [vmem:[%s196 + $0xb0] sm:$0xf] %v285
                %v287 = vld [vmem:[%s195 + $0x168] sm:$0xf]
                %288 = vst [vmem:[%s196 + $0xb4] sm:$0xf] %v287
                %v289 = vld [vmem:[%s195 + $0x170] sm:$0xf]
                %290 = vst [vmem:[%s196 + $0xb8] sm:$0xf] %v289
                %v291 = vld [vmem:[%s195 + $0x178] sm:$0xf]
                %292 = vst [vmem:[%s196 + $0xbc] sm:$0xf] %v291
                %v293 = vld [vmem:[%s195 + $0x180] sm:$0xf]
                %294 = vst [vmem:[%s196 + $0xc0] sm:$0xf] %v293
                %v295 = vld [vmem:[%s195 + $0x188] sm:$0xf]
                %296 = vst [vmem:[%s196 + $0xc4] sm:$0xf] %v295
                %v297 = vld [vmem:[%s195 + $0x190] sm:$0xf]
                %298 = vst [vmem:[%s196 + $0xc8] sm:$0xf] %v297
                %v299 = vld [vmem:[%s195 + $0x198] sm:$0xf]
                %300 = vst [vmem:[%s196 + $0xcc] sm:$0xf] %v299
                %v301 = vld [vmem:[%s195 + $0x1a0] sm:$0xf]
                %302 = vst [vmem:[%s196 + $0xd0] sm:$0xf] %v301
                %v303 = vld [vmem:[%s195 + $0x1a8] sm:$0xf]
                %304 = vst [vmem:[%s196 + $0xd4] sm:$0xf] %v303
                %v305 = vld [vmem:[%s195 + $0x1b0] sm:$0xf]
                %306 = vst [vmem:[%s196 + $0xd8] sm:$0xf] %v305
                %v307 = vld [vmem:[%s195 + $0x1b8] sm:$0xf]
                %308 = vst [vmem:[%s196 + $0xdc] sm:$0xf] %v307
                %v309 = vld [vmem:[%s195 + $0x1c0] sm:$0xf]
                %310 = vst [vmem:[%s196 + $0xe0] sm:$0xf] %v309
                %v311 = vld [vmem:[%s195 + $0x1c8] sm:$0xf]
                %312 = vst [vmem:[%s196 + $0xe4] sm:$0xf] %v311
                %v313 = vld [vmem:[%s195 + $0x1d0] sm:$0xf]
                %314 = vst [vmem:[%s196 + $0xe8] sm:$0xf] %v313
                %v315 = vld [vmem:[%s195 + $0x1d8] sm:$0xf]
                %316 = vst [vmem:[%s196 + $0xec] sm:$0xf] %v315
                %v317 = vld [vmem:[%s195 + $0x1e0] sm:$0xf]
                %318 = vst [vmem:[%s196 + $0xf0] sm:$0xf] %v317
                %v319 = vld [vmem:[%s195 + $0x1e8] sm:$0xf]
                %320 = vst [vmem:[%s196 + $0xf4] sm:$0xf] %v319
                %v321 = vld [vmem:[%s195 + $0x1f0] sm:$0xf]
                %322 = vst [vmem:[%s196 + $0xf8] sm:$0xf] %v321
                %v323 = vld [vmem:[%s195 + $0x1f8] sm:$0xf]
                %324 = vst [vmem:[%s196 + $0xfc] sm:$0xf] %v323
                %v325 = vld [vmem:[%s195 + $0x200] sm:$0xf]
                %326 = vst [vmem:[%s196 + $0x100] sm:$0xf] %v325
                %v327 = vld [vmem:[%s195 + $0x208] sm:$0xf]
                %328 = vst [vmem:[%s196 + $0x104] sm:$0xf] %v327
                %v329 = vld [vmem:[%s195 + $0x210] sm:$0xf]
                %330 = vst [vmem:[%s196 + $0x108] sm:$0xf] %v329
                %v331 = vld [vmem:[%s195 + $0x218] sm:$0xf]
                %332 = vst [vmem:[%s196 + $0x10c] sm:$0xf] %v331
                %v333 = vld [vmem:[%s195 + $0x220] sm:$0xf]
                %334 = vst [vmem:[%s196 + $0x110] sm:$0xf] %v333
                %v335 = vld [vmem:[%s195 + $0x228] sm:$0xf]
                %336 = vst [vmem:[%s196 + $0x114] sm:$0xf] %v335
                %v337 = vld [vmem:[%s195 + $0x230] sm:$0xf]
                %338 = vst [vmem:[%s196 + $0x118] sm:$0xf] %v337
                %v339 = vld [vmem:[%s195 + $0x238] sm:$0xf]
                %340 = vst [vmem:[%s196 + $0x11c] sm:$0xf] %v339
                %v341 = vld [vmem:[%s195 + $0x240] sm:$0xf]
                %342 = vst [vmem:[%s196 + $0x120] sm:$0xf] %v341
                %v343 = vld [vmem:[%s195 + $0x248] sm:$0xf]
                %344 = vst [vmem:[%s196 + $0x124] sm:$0xf] %v343
                %v345 = vld [vmem:[%s195 + $0x250] sm:$0xf]
                %346 = vst [vmem:[%s196 + $0x128] sm:$0xf] %v345
                %v347 = vld [vmem:[%s195 + $0x258] sm:$0xf]
                %348 = vst [vmem:[%s196 + $0x12c] sm:$0xf] %v347
                %v349 = vld [vmem:[%s195 + $0x260] sm:$0xf]
                %350 = vst [vmem:[%s196 + $0x130] sm:$0xf] %v349
                %v351 = vld [vmem:[%s195 + $0x268] sm:$0xf]
                %352 = vst [vmem:[%s196 + $0x134] sm:$0xf] %v351
                %v353 = vld [vmem:[%s195 + $0x270] sm:$0xf]
                %354 = vst [vmem:[%s196 + $0x138] sm:$0xf] %v353
                %v355 = vld [vmem:[%s195 + $0x278] sm:$0xf]
                %356 = vst [vmem:[%s196 + $0x13c] sm:$0xf] %v355
                %v357 = vld [vmem:[%s195 + $0x280] sm:$0xf]
                %358 = vst [vmem:[%s196 + $0x140] sm:$0xf] %v357
                %v359 = vld [vmem:[%s195 + $0x288] sm:$0xf]
                %360 = vst [vmem:[%s196 + $0x144] sm:$0xf] %v359
                %v361 = vld [vmem:[%s195 + $0x290] sm:$0xf]
                %362 = vst [vmem:[%s196 + $0x148] sm:$0xf] %v361
                %v363 = vld [vmem:[%s195 + $0x298] sm:$0xf]
                %364 = vst [vmem:[%s196 + $0x14c] sm:$0xf] %v363
                %v365 = vld [vmem:[%s195 + $0x2a0] sm:$0xf]
                %366 = vst [vmem:[%s196 + $0x150] sm:$0xf] %v365
                %v367 = vld [vmem:[%s195 + $0x2a8] sm:$0xf]
                %368 = vst [vmem:[%s196 + $0x154] sm:$0xf] %v367
                %v369 = vld [vmem:[%s195 + $0x2b0] sm:$0xf]
                %370 = vst [vmem:[%s196 + $0x158] sm:$0xf] %v369
                %v371 = vld [vmem:[%s195 + $0x2b8] sm:$0xf]
                %372 = vst [vmem:[%s196 + $0x15c] sm:$0xf] %v371
                %v373 = vld [vmem:[%s195 + $0x2c0] sm:$0xf]
                %374 = vst [vmem:[%s196 + $0x160] sm:$0xf] %v373
                %v375 = vld [vmem:[%s195 + $0x2c8] sm:$0xf]
                %376 = vst [vmem:[%s196 + $0x164] sm:$0xf] %v375
                %v377 = vld [vmem:[%s195 + $0x2d0] sm:$0xf]
                %378 = vst [vmem:[%s196 + $0x168] sm:$0xf] %v377
                %v379 = vld [vmem:[%s195 + $0x2d8] sm:$0xf]
                %380 = vst [vmem:[%s196 + $0x16c] sm:$0xf] %v379
                %v381 = vld [vmem:[%s195 + $0x2e0] sm:$0xf]
                %382 = vst [vmem:[%s196 + $0x170] sm:$0xf] %v381
                %v383 = vld [vmem:[%s195 + $0x2e8] sm:$0xf]
                %384 = vst [vmem:[%s196 + $0x174] sm:$0xf] %v383
                %v385 = vld [vmem:[%s195 + $0x2f0] sm:$0xf]
                %386 = vst [vmem:[%s196 + $0x178] sm:$0xf] %v385
                %v387 = vld [vmem:[%s195 + $0x2f8] sm:$0xf]
                %388 = vst [vmem:[%s196 + $0x17c] sm:$0xf] %v387
                %v389 = vld [vmem:[%s195 + $0x300] sm:$0xf]
                %390 = vst [vmem:[%s196 + $0x180] sm:$0xf] %v389
                %v391 = vld [vmem:[%s195 + $0x308] sm:$0xf]
                %392 = vst [vmem:[%s196 + $0x184] sm:$0xf] %v391
                %v393 = vld [vmem:[%s195 + $0x310] sm:$0xf]
                %394 = vst [vmem:[%s196 + $0x188] sm:$0xf] %v393
                %v395 = vld [vmem:[%s195 + $0x318] sm:$0xf]
                %396 = vst [vmem:[%s196 + $0x18c] sm:$0xf] %v395
                %v397 = vld [vmem:[%s195 + $0x320] sm:$0xf]
                %398 = vst [vmem:[%s196 + $0x190] sm:$0xf] %v397
                %v399 = vld [vmem:[%s195 + $0x328] sm:$0xf]
                %400 = vst [vmem:[%s196 + $0x194] sm:$0xf] %v399
                %v401 = vld [vmem:[%s195 + $0x330] sm:$0xf]
                %402 = vst [vmem:[%s196 + $0x198] sm:$0xf] %v401
                %v403 = vld [vmem:[%s195 + $0x338] sm:$0xf]
                %404 = vst [vmem:[%s196 + $0x19c] sm:$0xf] %v403
                %v405 = vld [vmem:[%s195 + $0x340] sm:$0xf]
                %406 = vst [vmem:[%s196 + $0x1a0] sm:$0xf] %v405
                %v407 = vld [vmem:[%s195 + $0x348] sm:$0xf]
                %408 = vst [vmem:[%s196 + $0x1a4] sm:$0xf] %v407
                %v409 = vld [vmem:[%s195 + $0x350] sm:$0xf]
                %410 = vst [vmem:[%s196 + $0x1a8] sm:$0xf] %v409
                %v411 = vld [vmem:[%s195 + $0x358] sm:$0xf]
                %412 = vst [vmem:[%s196 + $0x1ac] sm:$0xf] %v411
                %v413 = vld [vmem:[%s195 + $0x360] sm:$0xf]
                %414 = vst [vmem:[%s196 + $0x1b0] sm:$0xf] %v413
                %v415 = vld [vmem:[%s195 + $0x368] sm:$0xf]
                %416 = vst [vmem:[%s196 + $0x1b4] sm:$0xf] %v415
                %v417 = vld [vmem:[%s195 + $0x370] sm:$0xf]
                %418 = vst [vmem:[%s196 + $0x1b8] sm:$0xf] %v417
                %v419 = vld [vmem:[%s195 + $0x378] sm:$0xf]
                %420 = vst [vmem:[%s196 + $0x1bc] sm:$0xf] %v419
                %v421 = vld [vmem:[%s195 + $0x380] sm:$0xf]
                %422 = vst [vmem:[%s196 + $0x1c0] sm:$0xf] %v421
                %v423 = vld [vmem:[%s195 + $0x388] sm:$0xf]
                %424 = vst [vmem:[%s196 + $0x1c4] sm:$0xf] %v423
                %v425 = vld [vmem:[%s195 + $0x390] sm:$0xf]
                %426 = vst [vmem:[%s196 + $0x1c8] sm:$0xf] %v425
                %v427 = vld [vmem:[%s195 + $0x398] sm:$0xf]
                %428 = vst [vmem:[%s196 + $0x1cc] sm:$0xf] %v427
                %v429 = vld [vmem:[%s195 + $0x3a0] sm:$0xf]
                %430 = vst [vmem:[%s196 + $0x1d0] sm:$0xf] %v429
                %v431 = vld [vmem:[%s195 + $0x3a8] sm:$0xf]
                %432 = vst [vmem:[%s196 + $0x1d4] sm:$0xf] %v431
                %v433 = vld [vmem:[%s195 + $0x3b0] sm:$0xf]
                %434 = vst [vmem:[%s196 + $0x1d8] sm:$0xf] %v433
                %v435 = vld [vmem:[%s195 + $0x3b8] sm:$0xf]
                %436 = vst [vmem:[%s196 + $0x1dc] sm:$0xf] %v435
                %v437 = vld [vmem:[%s195 + $0x3c0] sm:$0xf]
                %438 = vst [vmem:[%s196 + $0x1e0] sm:$0xf] %v437
                %v439 = vld [vmem:[%s195 + $0x3c8] sm:$0xf]
                %440 = vst [vmem:[%s196 + $0x1e4] sm:$0xf] %v439
                %v441 = vld [vmem:[%s195 + $0x3d0] sm:$0xf]
                %442 = vst [vmem:[%s196 + $0x1e8] sm:$0xf] %v441
                %v443 = vld [vmem:[%s195 + $0x3d8] sm:$0xf]
                %444 = vst [vmem:[%s196 + $0x1ec] sm:$0xf] %v443
                %v445 = vld [vmem:[%s195 + $0x3e0] sm:$0xf]
                %446 = vst [vmem:[%s196 + $0x1f0] sm:$0xf] %v445
                %v447 = vld [vmem:[%s195 + $0x3e8] sm:$0xf]
                %448 = vst [vmem:[%s196 + $0x1f4] sm:$0xf] %v447
                %v449 = vld [vmem:[%s195 + $0x3f0] sm:$0xf]
                %450 = vst [vmem:[%s196 + $0x1f8] sm:$0xf] %v449
                %v451 = vld [vmem:[%s195 + $0x3f8] sm:$0xf]
                %452 = vst [vmem:[%s196 + $0x1fc] sm:$0xf] %v451
                %v453 = vld [vmem:[%s195 + $0x400] sm:$0xf]
                %454 = vst [vmem:[%s196 + $0x200] sm:$0xf] %v453
                %v455 = vld [vmem:[%s195 + $0x408] sm:$0xf]
                %456 = vst [vmem:[%s196 + $0x204] sm:$0xf] %v455
                %v457 = vld [vmem:[%s195 + $0x410] sm:$0xf]
                %458 = vst [vmem:[%s196 + $0x208] sm:$0xf] %v457
                %v459 = vld [vmem:[%s195 + $0x418] sm:$0xf]
                %460 = vst [vmem:[%s196 + $0x20c] sm:$0xf] %v459
                %v461 = vld [vmem:[%s195 + $0x420] sm:$0xf]
                %462 = vst [vmem:[%s196 + $0x210] sm:$0xf] %v461
                %v463 = vld [vmem:[%s195 + $0x428] sm:$0xf]
                %464 = vst [vmem:[%s196 + $0x214] sm:$0xf] %v463
                %v465 = vld [vmem:[%s195 + $0x430] sm:$0xf]
                %466 = vst [vmem:[%s196 + $0x218] sm:$0xf] %v465
                %v467 = vld [vmem:[%s195 + $0x438] sm:$0xf]
                %468 = vst [vmem:[%s196 + $0x21c] sm:$0xf] %v467
                %v469 = vld [vmem:[%s195 + $0x440] sm:$0xf]
                %470 = vst [vmem:[%s196 + $0x220] sm:$0xf] %v469
                %v471 = vld [vmem:[%s195 + $0x448] sm:$0xf]
                %472 = vst [vmem:[%s196 + $0x224] sm:$0xf] %v471
                %v473 = vld [vmem:[%s195 + $0x450] sm:$0xf]
                %474 = vst [vmem:[%s196 + $0x228] sm:$0xf] %v473
                %v475 = vld [vmem:[%s195 + $0x458] sm:$0xf]
                %476 = vst [vmem:[%s196 + $0x22c] sm:$0xf] %v475
                %v477 = vld [vmem:[%s195 + $0x460] sm:$0xf]
                %478 = vst [vmem:[%s196 + $0x230] sm:$0xf] %v477
                %v479 = vld [vmem:[%s195 + $0x468] sm:$0xf]
                %480 = vst [vmem:[%s196 + $0x234] sm:$0xf] %v479
                %v481 = vld [vmem:[%s195 + $0x470] sm:$0xf]
                %482 = vst [vmem:[%s196 + $0x238] sm:$0xf] %v481
                %v483 = vld [vmem:[%s195 + $0x478] sm:$0xf]
                %484 = vst [vmem:[%s196 + $0x23c] sm:$0xf] %v483
                %v485 = vld [vmem:[%s195 + $0x480] sm:$0xf]
                %486 = vst [vmem:[%s196 + $0x240] sm:$0xf] %v485
                %v487 = vld [vmem:[%s195 + $0x488] sm:$0xf]
                %488 = vst [vmem:[%s196 + $0x244] sm:$0xf] %v487
                %v489 = vld [vmem:[%s195 + $0x490] sm:$0xf]
                %490 = vst [vmem:[%s196 + $0x248] sm:$0xf] %v489
                %v491 = vld [vmem:[%s195 + $0x498] sm:$0xf]
                %492 = vst [vmem:[%s196 + $0x24c] sm:$0xf] %v491
                %v493 = vld [vmem:[%s195 + $0x4a0] sm:$0xf]
                %494 = vst [vmem:[%s196 + $0x250] sm:$0xf] %v493
                %v495 = vld [vmem:[%s195 + $0x4a8] sm:$0xf]
                %496 = vst [vmem:[%s196 + $0x254] sm:$0xf] %v495
                %v497 = vld [vmem:[%s195 + $0x4b0] sm:$0xf]
                %498 = vst [vmem:[%s196 + $0x258] sm:$0xf] %v497
                %v499 = vld [vmem:[%s195 + $0x4b8] sm:$0xf]
                %500 = vst [vmem:[%s196 + $0x25c] sm:$0xf] %v499
                %v501 = vld [vmem:[%s195 + $0x4c0] sm:$0xf]
                %502 = vst [vmem:[%s196 + $0x260] sm:$0xf] %v501
                %v503 = vld [vmem:[%s195 + $0x4c8] sm:$0xf]
                %504 = vst [vmem:[%s196 + $0x264] sm:$0xf] %v503
                %v505 = vld [vmem:[%s195 + $0x4d0] sm:$0xf]
                %506 = vst [vmem:[%s196 + $0x268] sm:$0xf] %v505
                %v507 = vld [vmem:[%s195 + $0x4d8] sm:$0xf]
                %508 = vst [vmem:[%s196 + $0x26c] sm:$0xf] %v507
                %v509 = vld [vmem:[%s195 + $0x4e0] sm:$0xf]
                %510 = vst [vmem:[%s196 + $0x270] sm:$0xf] %v509
                %v511 = vld [vmem:[%s195 + $0x4e8] sm:$0xf]
                %512 = vst [vmem:[%s196 + $0x274] sm:$0xf] %v511
                %v513 = vld [vmem:[%s195 + $0x4f0] sm:$0xf]
                %514 = vst [vmem:[%s196 + $0x278] sm:$0xf] %v513
                %v515 = vld [vmem:[%s195 + $0x4f8] sm:$0xf]
                %516 = vst [vmem:[%s196 + $0x27c] sm:$0xf] %v515
                %v517 = vld [vmem:[%s195 + $0x500] sm:$0xf]
                %518 = vst [vmem:[%s196 + $0x280] sm:$0xf] %v517
                %v519 = vld [vmem:[%s195 + $0x508] sm:$0xf]
                %520 = vst [vmem:[%s196 + $0x284] sm:$0xf] %v519
                %v521 = vld [vmem:[%s195 + $0x510] sm:$0xf]
                %522 = vst [vmem:[%s196 + $0x288] sm:$0xf] %v521
                %v523 = vld [vmem:[%s195 + $0x518] sm:$0xf]
                %524 = vst [vmem:[%s196 + $0x28c] sm:$0xf] %v523
                %v525 = vld [vmem:[%s195 + $0x520] sm:$0xf]
                %526 = vst [vmem:[%s196 + $0x290] sm:$0xf] %v525
                %v527 = vld [vmem:[%s195 + $0x528] sm:$0xf]
                %528 = vst [vmem:[%s196 + $0x294] sm:$0xf] %v527
                %v529 = vld [vmem:[%s195 + $0x530] sm:$0xf]
                %530 = vst [vmem:[%s196 + $0x298] sm:$0xf] %v529
                %v531 = vld [vmem:[%s195 + $0x538] sm:$0xf]
                %532 = vst [vmem:[%s196 + $0x29c] sm:$0xf] %v531
                %v533 = vld [vmem:[%s195 + $0x540] sm:$0xf]
                %534 = vst [vmem:[%s196 + $0x2a0] sm:$0xf] %v533
                %v535 = vld [vmem:[%s195 + $0x548] sm:$0xf]
                %536 = vst [vmem:[%s196 + $0x2a4] sm:$0xf] %v535
                %v537 = vld [vmem:[%s195 + $0x550] sm:$0xf]
                %538 = vst [vmem:[%s196 + $0x2a8] sm:$0xf] %v537
                %v539 = vld [vmem:[%s195 + $0x558] sm:$0xf]
                %540 = vst [vmem:[%s196 + $0x2ac] sm:$0xf] %v539
                %v541 = vld [vmem:[%s195 + $0x560] sm:$0xf]
                %542 = vst [vmem:[%s196 + $0x2b0] sm:$0xf] %v541
                %v543 = vld [vmem:[%s195 + $0x568] sm:$0xf]
                %544 = vst [vmem:[%s196 + $0x2b4] sm:$0xf] %v543
                %v545 = vld [vmem:[%s195 + $0x570] sm:$0xf]
                %546 = vst [vmem:[%s196 + $0x2b8] sm:$0xf] %v545
                %v547 = vld [vmem:[%s195 + $0x578] sm:$0xf]
                %548 = vst [vmem:[%s196 + $0x2bc] sm:$0xf] %v547
                %v549 = vld [vmem:[%s195 + $0x580] sm:$0xf]
                %550 = vst [vmem:[%s196 + $0x2c0] sm:$0xf] %v549
                %v551 = vld [vmem:[%s195 + $0x588] sm:$0xf]
                %552 = vst [vmem:[%s196 + $0x2c4] sm:$0xf] %v551
                %v553 = vld [vmem:[%s195 + $0x590] sm:$0xf]
                %554 = vst [vmem:[%s196 + $0x2c8] sm:$0xf] %v553
                %v555 = vld [vmem:[%s195 + $0x598] sm:$0xf]
                %556 = vst [vmem:[%s196 + $0x2cc] sm:$0xf] %v555
                %v557 = vld [vmem:[%s195 + $0x5a0] sm:$0xf]
                %558 = vst [vmem:[%s196 + $0x2d0] sm:$0xf] %v557
                %v559 = vld [vmem:[%s195 + $0x5a8] sm:$0xf]
                %560 = vst [vmem:[%s196 + $0x2d4] sm:$0xf] %v559
                %v561 = vld [vmem:[%s195 + $0x5b0] sm:$0xf]
                %562 = vst [vmem:[%s196 + $0x2d8] sm:$0xf] %v561
                %v563 = vld [vmem:[%s195 + $0x5b8] sm:$0xf]
                %564 = vst [vmem:[%s196 + $0x2dc] sm:$0xf] %v563
                %v565 = vld [vmem:[%s195 + $0x5c0] sm:$0xf]
                %566 = vst [vmem:[%s196 + $0x2e0] sm:$0xf] %v565
                %v567 = vld [vmem:[%s195 + $0x5c8] sm:$0xf]
                %568 = vst [vmem:[%s196 + $0x2e4] sm:$0xf] %v567
                %v569 = vld [vmem:[%s195 + $0x5d0] sm:$0xf]
                %570 = vst [vmem:[%s196 + $0x2e8] sm:$0xf] %v569
                %v571 = vld [vmem:[%s195 + $0x5d8] sm:$0xf]
                %572 = vst [vmem:[%s196 + $0x2ec] sm:$0xf] %v571
                %v573 = vld [vmem:[%s195 + $0x5e0] sm:$0xf]
                %574 = vst [vmem:[%s196 + $0x2f0] sm:$0xf] %v573
                %v575 = vld [vmem:[%s195 + $0x5e8] sm:$0xf]
                %576 = vst [vmem:[%s196 + $0x2f4] sm:$0xf] %v575
                %v577 = vld [vmem:[%s195 + $0x5f0] sm:$0xf]
                %578 = vst [vmem:[%s196 + $0x2f8] sm:$0xf] %v577
                %v579 = vld [vmem:[%s195 + $0x5f8] sm:$0xf]
                %580 = vst [vmem:[%s196 + $0x2fc] sm:$0xf] %v579
              $region41: #{astrous_forward.3} parent=35 // loop_footer
                %s194 = sadd.s32 1, %s190
              $region42: #{astrous_forward.3} parent=35 // loop_footer_branch
                %189 = sbr.rel target = $region38
              $region43: #{astrous_forward.3} parent=35 // loop_exit
                _
            $region36: #{astrous_forward.3} parent=27 // pred_fallthru
              _
          $region28: #{astrous_forward.3} parent=23 // pred_fallthru
            _
          %984 = vnop
        $region24: #{astrous_forward.3} parent=15 // pred_fallthru
          _
        // Predicated region
        $region62: #{astrous_forward.3} parent=15 // pred_check
          %p985 = pneg %p104
        $region63: #{astrous_forward.3} parent=15 // pred_check_branch
          %987 = sbr.rel (%p985) target = $region65
        $region64: #{astrous_forward.3} parent=15 // pred_region
          %p988 = scmp.lt.s32.totalorder %s17, 1
          %s989 = scalar_select %p988, %s17, 1
          %s990 = scalar_lea.vmem %s2, %s989
        $region65: #{astrous_forward.3} parent=15 // pred_fallthru
          _
      $region16: #{astrous_forward.3} parent=5 // pred_fallthru
        _
      %p991 = scmp.le.s32.totalorder 1, %s9
      %p992 = scmp.lt.s32.totalorder %s9, 7
      %p993 = pnand %p991, %p992
      %p994 = pneg %p993
      // Predicated region
      $region66: #{astrous_forward.3} parent=5 // pred_check
        _
      $region67: #{astrous_forward.3} parent=5 // pred_check_branch
        %996 = sbr.rel (%p993) target = $region69
      $region68: #{astrous_forward.3} parent=5 // pred_region
        %s997 = ssub.s32 %s9, 1
        %s998 = sand.u32 %s71, 1
        %s999 = sand.u32 %s71, 1
        %s1000 = smul.addr %s999, 768
        %s1001 = scalar_lea.vmem [#allocation3], %s1000
        // Predicated region
        $region70: #{astrous_forward.3} parent=68 // pred_check
          %p1002 = pneg %p84
        $region71: #{astrous_forward.3} parent=68 // pred_check_branch
          %1004 = sbr.rel (%p1002) target = $region73
        $region72: #{astrous_forward.3} parent=68 // pred_region
          _
        $region73: #{astrous_forward.3} parent=68 // pred_fallthru
          _
        %s1005 = smul.u32 32, %s19
        %p1006 = scmp.lt.s32.totalorder %s21, 2
        %s1007 = scalar_select %p1006, %s21, 2
        %p1008 = scmp.lt.s32.totalorder %s1005, 31
        %s1009 = scalar_select %p1008, %s1005, 31
        %s1010 = smul.addr %s1009, 16
        %s1011 = smul.addr %s1007, 512
        %s1012 = sadd.s32 %s1010, %s1011
        %s1013 = smul.addr %s1012, 4
        %s1014 = scalar_lea.vmem %s0, %s1013
        %p1015 = pneg %p56
        %p1016 = pneg %p53
        %s1017 = sand.u32 %s71, 1
        %s1018 = sand.u32 %s71, 1
        %s1019 = smul.addr %s1018, 768
        %s1020 = scalar_lea.vmem [#allocation3], %s1019
        %p1021 = pneg %p84
        %p1022 = pneg %p81
        %p1023 = scmp.lt.s32.totalorder %s20, 1
        %s1024 = scalar_select %p1023, %s20, 1
        %s1025 = scalar_lea.vmem %s2, %s1024
        %p1026 = pneg %p110
        %p1027 = pneg %p107
        %p1028 = pneg %p138
        %p1029 = pneg %p135
        %s1030 = sand.u32 %s125, 1
        %s1031 = sand.u32 %s125, 1
        %s1032 = smul.addr %s1031, 256
        %s1033 = scalar_lea.vmem [#allocation4], %s1032
        %s1034 = smul.u32 32, %s19
        %p1035 = scmp.lt.s32.totalorder %s21, 2
        %s1036 = scalar_select %p1035, %s21, 2
        %p1037 = scmp.lt.s32.totalorder %s1034, 31
        %s1038 = scalar_select %p1037, %s1034, 31
        %s1039 = smul.addr %s1038, 16
        %s1040 = smul.addr %s1036, 512
        %s1041 = sadd.s32 %s1039, %s1040
        %s1042 = smul.addr %s1041, 4
        %s1043 = scalar_lea.vmem %s0, %s1042
        %s1044 = smul.u32 32, %s19
        %p1045 = scmp.lt.s32.totalorder %s20, 1
        %s1046 = scalar_select %p1045, %s20, 1
        %s1047 = scalar_lea.vmem %s2, %s1046
        %s1048 = smul.u32 64, %s19
        %p1050 = scmp.eq.s32.totalorder %s21, 0
        // Predicated region
        $region74: #{astrous_forward.3} parent=68 // pred_check
          %p1051 = pneg %p1050
        $region75: #{astrous_forward.3} parent=68 // pred_check_branch
          %1053 = sbr.rel (%p1051) target = $region77
        $region76: #{astrous_forward.3} parent=68 // pred_region
          %1054 = vst [vmem:[#allocation2] sm:$0xff] 0.0
          %1055 = vst [vmem:[#allocation2 + $0x8] sm:$0xff] 0.0
          %1056 = vst [vmem:[#allocation2 + $0x10] sm:$0xff] 0.0
          %1057 = vst [vmem:[#allocation2 + $0x18] sm:$0xff] 0.0
          %1058 = vst [vmem:[#allocation2 + $0x20] sm:$0xff] 0.0
          %1059 = vst [vmem:[#allocation2 + $0x28] sm:$0xff] 0.0
          %1060 = vst [vmem:[#allocation2 + $0x30] sm:$0xff] 0.0
          %1061 = vst [vmem:[#allocation2 + $0x38] sm:$0xff] 0.0
          %1062 = vst [vmem:[#allocation2 + $0x40] sm:$0xff] 0.0
          %1063 = vst [vmem:[#allocation2 + $0x48] sm:$0xff] 0.0
          %1064 = vst [vmem:[#allocation2 + $0x50] sm:$0xff] 0.0
          %1065 = vst [vmem:[#allocation2 + $0x58] sm:$0xff] 0.0
          %1066 = vst [vmem:[#allocation2 + $0x60] sm:$0xff] 0.0
          %1067 = vst [vmem:[#allocation2 + $0x68] sm:$0xff] 0.0
          %1068 = vst [vmem:[#allocation2 + $0x70] sm:$0xff] 0.0
          %1069 = vst [vmem:[#allocation2 + $0x78] sm:$0xff] 0.0
          %1070 = vst [vmem:[#allocation2 + $0x80] sm:$0xff] 0.0
          %1071 = vst [vmem:[#allocation2 + $0x88] sm:$0xff] 0.0
          %1072 = vst [vmem:[#allocation2 + $0x90] sm:$0xff] 0.0
          %1073 = vst [vmem:[#allocation2 + $0x98] sm:$0xff] 0.0
          %1074 = vst [vmem:[#allocation2 + $0xa0] sm:$0xff] 0.0
          %1075 = vst [vmem:[#allocation2 + $0xa8] sm:$0xff] 0.0
          %1076 = vst [vmem:[#allocation2 + $0xb0] sm:$0xff] 0.0
          %1077 = vst [vmem:[#allocation2 + $0xb8] sm:$0xff] 0.0
          %1078 = vst [vmem:[#allocation2 + $0xc0] sm:$0xff] 0.0
          %1079 = vst [vmem:[#allocation2 + $0xc8] sm:$0xff] 0.0
          %1080 = vst [vmem:[#allocation2 + $0xd0] sm:$0xff] 0.0
          %1081 = vst [vmem:[#allocation2 + $0xd8] sm:$0xff] 0.0
          %1082 = vst [vmem:[#allocation2 + $0xe0] sm:$0xff] 0.0
          %1083 = vst [vmem:[#allocation2 + $0xe8] sm:$0xff] 0.0
          %1084 = vst [vmem:[#allocation2 + $0xf0] sm:$0xff] 0.0
          %1085 = vst [vmem:[#allocation2 + $0xf8] sm:$0xff] 0.0
          %1086 = vst [vmem:[#allocation2 + $0x100] sm:$0xff] 0.0
          %1087 = vst [vmem:[#allocation2 + $0x108] sm:$0xff] 0.0
          %1088 = vst [vmem:[#allocation2 + $0x110] sm:$0xff] 0.0
          %1089 = vst [vmem:[#allocation2 + $0x118] sm:$0xff] 0.0
          %1090 = vst [vmem:[#allocation2 + $0x120] sm:$0xff] 0.0
          %1091 = vst [vmem:[#allocation2 + $0x128] sm:$0xff] 0.0
          %1092 = vst [vmem:[#allocation2 + $0x130] sm:$0xff] 0.0
          %1093 = vst [vmem:[#allocation2 + $0x138] sm:$0xff] 0.0
          %1094 = vst [vmem:[#allocation2 + $0x140] sm:$0xff] 0.0
          %1095 = vst [vmem:[#allocation2 + $0x148] sm:$0xff] 0.0
          %1096 = vst [vmem:[#allocation2 + $0x150] sm:$0xff] 0.0
          %1097 = vst [vmem:[#allocation2 + $0x158] sm:$0xff] 0.0
          %1098 = vst [vmem:[#allocation2 + $0x160] sm:$0xff] 0.0
          %1099 = vst [vmem:[#allocation2 + $0x168] sm:$0xff] 0.0
          %1100 = vst [vmem:[#allocation2 + $0x170] sm:$0xff] 0.0
          %1101 = vst [vmem:[#allocation2 + $0x178] sm:$0xff] 0.0
          %1102 = vst [vmem:[#allocation2 + $0x180] sm:$0xff] 0.0
          %1103 = vst [vmem:[#allocation2 + $0x188] sm:$0xff] 0.0
          %1104 = vst [vmem:[#allocation2 + $0x190] sm:$0xff] 0.0
          %1105 = vst [vmem:[#allocation2 + $0x198] sm:$0xff] 0.0
          %1106 = vst [vmem:[#allocation2 + $0x1a0] sm:$0xff] 0.0
          %1107 = vst [vmem:[#allocation2 + $0x1a8] sm:$0xff] 0.0
          %1108 = vst [vmem:[#allocation2 + $0x1b0] sm:$0xff] 0.0
          %1109 = vst [vmem:[#allocation2 + $0x1b8] sm:$0xff] 0.0
          %1110 = vst [vmem:[#allocation2 + $0x1c0] sm:$0xff] 0.0
          %1111 = vst [vmem:[#allocation2 + $0x1c8] sm:$0xff] 0.0
          %1112 = vst [vmem:[#allocation2 + $0x1d0] sm:$0xff] 0.0
          %1113 = vst [vmem:[#allocation2 + $0x1d8] sm:$0xff] 0.0
          %1114 = vst [vmem:[#allocation2 + $0x1e0] sm:$0xff] 0.0
          %1115 = vst [vmem:[#allocation2 + $0x1e8] sm:$0xff] 0.0
          %1116 = vst [vmem:[#allocation2 + $0x1f0] sm:$0xff] 0.0
          %1117 = vst [vmem:[#allocation2 + $0x1f8] sm:$0xff] 0.0
        $region77: #{astrous_forward.3} parent=68 // pred_fallthru
          _
        %v1118 = vld [vmem:[%s1043] sm:$0xff]
        %v1119 = vld [vmem:[%s1043 + $0x8] sm:$0xff]
        %v1120 = vld [vmem:[%s1043 + $0x10] sm:$0xff]
        %v1121 = vld [vmem:[%s1043 + $0x18] sm:$0xff]
        %v1122 = vld [vmem:[%s1043 + $0x40] sm:$0xff]
        %v1123 = vld [vmem:[%s1043 + $0x48] sm:$0xff]
        %v1124 = vld [vmem:[%s1043 + $0x50] sm:$0xff]
        %v1125 = vld [vmem:[%s1043 + $0x58] sm:$0xff]
        %v1126 = vld [vmem:[%s1043 + $0x80] sm:$0xff]
        %v1127 = vld [vmem:[%s1043 + $0x88] sm:$0xff]
        %v1128 = vld [vmem:[%s1043 + $0x90] sm:$0xff]
        %v1129 = vld [vmem:[%s1043 + $0x98] sm:$0xff]
        %v1130 = vld [vmem:[%s1043 + $0xc0] sm:$0xff]
        %v1131 = vld [vmem:[%s1043 + $0xc8] sm:$0xff]
        %v1132 = vld [vmem:[%s1043 + $0xd0] sm:$0xff]
        %v1133 = vld [vmem:[%s1043 + $0xd8] sm:$0xff]
        %v1134 = vld [vmem:[%s1043 + $0x100] sm:$0xff]
        %v1135 = vld [vmem:[%s1043 + $0x108] sm:$0xff]
        %v1136 = vld [vmem:[%s1043 + $0x110] sm:$0xff]
        %v1137 = vld [vmem:[%s1043 + $0x118] sm:$0xff]
        %v1138 = vld [vmem:[%s1043 + $0x140] sm:$0xff]
        %v1139 = vld [vmem:[%s1043 + $0x148] sm:$0xff]
        %v1140 = vld [vmem:[%s1043 + $0x150] sm:$0xff]
        %v1141 = vld [vmem:[%s1043 + $0x158] sm:$0xff]
        %v1142 = vld [vmem:[%s1043 + $0x180] sm:$0xff]
        %v1143 = vld [vmem:[%s1043 + $0x188] sm:$0xff]
        %v1144 = vld [vmem:[%s1043 + $0x190] sm:$0xff]
        %v1145 = vld [vmem:[%s1043 + $0x198] sm:$0xff]
        %v1146 = vld [vmem:[%s1043 + $0x1c0] sm:$0xff]
        %v1147 = vld [vmem:[%s1043 + $0x1c8] sm:$0xff]
        %v1148 = vld [vmem:[%s1043 + $0x1d0] sm:$0xff]
        %v1149 = vld [vmem:[%s1043 + $0x1d8] sm:$0xff]
        %v1150 = vld [vmem:[%s1043 + $0x200] sm:$0xff]
        %v1151 = vld [vmem:[%s1043 + $0x208] sm:$0xff]
        %v1152 = vld [vmem:[%s1043 + $0x210] sm:$0xff]
        %v1153 = vld [vmem:[%s1043 + $0x218] sm:$0xff]
        %v1154 = vld [vmem:[%s1043 + $0x240] sm:$0xff]
        %v1155 = vld [vmem:[%s1043 + $0x248] sm:$0xff]
        %v1156 = vld [vmem:[%s1043 + $0x250] sm:$0xff]
        %v1157 = vld [vmem:[%s1043 + $0x258] sm:$0xff]
        %v1158 = vld [vmem:[%s1043 + $0x280] sm:$0xff]
        %v1159 = vld [vmem:[%s1043 + $0x288] sm:$0xff]
        %v1160 = vld [vmem:[%s1043 + $0x290] sm:$0xff]
        %v1161 = vld [vmem:[%s1043 + $0x298] sm:$0xff]
        %v1162 = vld [vmem:[%s1043 + $0x2c0] sm:$0xff]
        %v1163 = vld [vmem:[%s1043 + $0x2c8] sm:$0xff]
        %v1164 = vld [vmem:[%s1043 + $0x2d0] sm:$0xff]
        %v1165 = vld [vmem:[%s1043 + $0x2d8] sm:$0xff]
        %v1166 = vld [vmem:[%s1043 + $0x300] sm:$0xff]
        %v1167 = vld [vmem:[%s1043 + $0x308] sm:$0xff]
        %v1168 = vld [vmem:[%s1043 + $0x310] sm:$0xff]
        %v1169 = vld [vmem:[%s1043 + $0x318] sm:$0xff]
        %v1170 = vld [vmem:[%s1043 + $0x340] sm:$0xff]
        %v1171 = vld [vmem:[%s1043 + $0x348] sm:$0xff]
        %v1172 = vld [vmem:[%s1043 + $0x350] sm:$0xff]
        %v1173 = vld [vmem:[%s1043 + $0x358] sm:$0xff]
        %v1174 = vld [vmem:[%s1043 + $0x380] sm:$0xff]
        %v1175 = vld [vmem:[%s1043 + $0x388] sm:$0xff]
        %v1176 = vld [vmem:[%s1043 + $0x390] sm:$0xff]
        %v1177 = vld [vmem:[%s1043 + $0x398] sm:$0xff]
        %v1178 = vld [vmem:[%s1043 + $0x3c0] sm:$0xff]
        %v1179 = vld [vmem:[%s1043 + $0x3c8] sm:$0xff]
        %v1180 = vld [vmem:[%s1043 + $0x3d0] sm:$0xff]
        %v1181 = vld [vmem:[%s1043 + $0x3d8] sm:$0xff]
        %v1182 = vld [vmem:[%s1043 + $0x400] sm:$0xff]
        %v1183 = vld [vmem:[%s1043 + $0x408] sm:$0xff]
        %v1184 = vld [vmem:[%s1043 + $0x410] sm:$0xff]
        %v1185 = vld [vmem:[%s1043 + $0x418] sm:$0xff]
        %v1186 = vld [vmem:[%s1043 + $0x440] sm:$0xff]
        %v1187 = vld [vmem:[%s1043 + $0x448] sm:$0xff]
        %v1188 = vld [vmem:[%s1043 + $0x450] sm:$0xff]
        %v1189 = vld [vmem:[%s1043 + $0x458] sm:$0xff]
        %v1190 = vld [vmem:[%s1043 + $0x480] sm:$0xff]
        %v1191 = vld [vmem:[%s1043 + $0x488] sm:$0xff]
        %v1192 = vld [vmem:[%s1043 + $0x490] sm:$0xff]
        %v1193 = vld [vmem:[%s1043 + $0x498] sm:$0xff]
        %v1194 = vld [vmem:[%s1043 + $0x4c0] sm:$0xff]
        %v1195 = vld [vmem:[%s1043 + $0x4c8] sm:$0xff]
        %v1196 = vld [vmem:[%s1043 + $0x4d0] sm:$0xff]
        %v1197 = vld [vmem:[%s1043 + $0x4d8] sm:$0xff]
        %v1198 = vld [vmem:[%s1043 + $0x500] sm:$0xff]
        %v1199 = vld [vmem:[%s1043 + $0x508] sm:$0xff]
        %v1200 = vld [vmem:[%s1043 + $0x510] sm:$0xff]
        %v1201 = vld [vmem:[%s1043 + $0x518] sm:$0xff]
        %v1202 = vld [vmem:[%s1043 + $0x540] sm:$0xff]
        %v1203 = vld [vmem:[%s1043 + $0x548] sm:$0xff]
        %v1204 = vld [vmem:[%s1043 + $0x550] sm:$0xff]
        %v1205 = vld [vmem:[%s1043 + $0x558] sm:$0xff]
        %v1206 = vld [vmem:[%s1043 + $0x580] sm:$0xff]
        %v1207 = vld [vmem:[%s1043 + $0x588] sm:$0xff]
        %v1208 = vld [vmem:[%s1043 + $0x590] sm:$0xff]
        %v1209 = vld [vmem:[%s1043 + $0x598] sm:$0xff]
        %v1210 = vld [vmem:[%s1043 + $0x5c0] sm:$0xff]
        %v1211 = vld [vmem:[%s1043 + $0x5c8] sm:$0xff]
        %v1212 = vld [vmem:[%s1043 + $0x5d0] sm:$0xff]
        %v1213 = vld [vmem:[%s1043 + $0x5d8] sm:$0xff]
        %v1214 = vld [vmem:[%s1043 + $0x600] sm:$0xff]
        %v1215 = vld [vmem:[%s1043 + $0x608] sm:$0xff]
        %v1216 = vld [vmem:[%s1043 + $0x610] sm:$0xff]
        %v1217 = vld [vmem:[%s1043 + $0x618] sm:$0xff]
        %v1218 = vld [vmem:[%s1043 + $0x640] sm:$0xff]
        %v1219 = vld [vmem:[%s1043 + $0x648] sm:$0xff]
        %v1220 = vld [vmem:[%s1043 + $0x650] sm:$0xff]
        %v1221 = vld [vmem:[%s1043 + $0x658] sm:$0xff]
        %v1222 = vld [vmem:[%s1043 + $0x680] sm:$0xff]
        %v1223 = vld [vmem:[%s1043 + $0x688] sm:$0xff]
        %v1224 = vld [vmem:[%s1043 + $0x690] sm:$0xff]
        %v1225 = vld [vmem:[%s1043 + $0x698] sm:$0xff]
        %v1226 = vld [vmem:[%s1043 + $0x6c0] sm:$0xff]
        %v1227 = vld [vmem:[%s1043 + $0x6c8] sm:$0xff]
        %v1228 = vld [vmem:[%s1043 + $0x6d0] sm:$0xff]
        %v1229 = vld [vmem:[%s1043 + $0x6d8] sm:$0xff]
        %v1230 = vld [vmem:[%s1043 + $0x700] sm:$0xff]
        %v1231 = vld [vmem:[%s1043 + $0x708] sm:$0xff]
        %v1232 = vld [vmem:[%s1043 + $0x710] sm:$0xff]
        %v1233 = vld [vmem:[%s1043 + $0x718] sm:$0xff]
        %v1234 = vld [vmem:[%s1043 + $0x740] sm:$0xff]
        %v1235 = vld [vmem:[%s1043 + $0x748] sm:$0xff]
        %v1236 = vld [vmem:[%s1043 + $0x750] sm:$0xff]
        %v1237 = vld [vmem:[%s1043 + $0x758] sm:$0xff]
        %v1238 = vld [vmem:[%s1043 + $0x780] sm:$0xff]
        %v1239 = vld [vmem:[%s1043 + $0x788] sm:$0xff]
        %v1240 = vld [vmem:[%s1043 + $0x790] sm:$0xff]
        %v1241 = vld [vmem:[%s1043 + $0x798] sm:$0xff]
        %v1242 = vld [vmem:[%s1043 + $0x7c0] sm:$0xff]
        %v1243 = vld [vmem:[%s1043 + $0x7c8] sm:$0xff]
        %v1244 = vld [vmem:[%s1043 + $0x7d0] sm:$0xff]
        %v1245 = vld [vmem:[%s1043 + $0x7d8] sm:$0xff]
        %v1246 = vld [vmem:[#allocation2] sm:$0xff]
        %v1247 = vld [vmem:[#allocation2 + $0x8] sm:$0xff]
        %v1248 = vld [vmem:[#allocation2 + $0x10] sm:$0xff]
        %v1249 = vld [vmem:[#allocation2 + $0x18] sm:$0xff]
        %v1250 = vld [vmem:[#allocation2 + $0x20] sm:$0xff]
        %v1251 = vld [vmem:[#allocation2 + $0x28] sm:$0xff]
        %v1252 = vld [vmem:[#allocation2 + $0x30] sm:$0xff]
        %v1253 = vld [vmem:[#allocation2 + $0x38] sm:$0xff]
        %v1254 = vld [vmem:[#allocation2 + $0x40] sm:$0xff]
        %v1255 = vld [vmem:[#allocation2 + $0x48] sm:$0xff]
        %v1256 = vld [vmem:[#allocation2 + $0x50] sm:$0xff]
        %v1257 = vld [vmem:[#allocation2 + $0x58] sm:$0xff]
        %v1258 = vld [vmem:[#allocation2 + $0x60] sm:$0xff]
        %v1259 = vld [vmem:[#allocation2 + $0x68] sm:$0xff]
        %v1260 = vld [vmem:[#allocation2 + $0x70] sm:$0xff]
        %v1261 = vld [vmem:[#allocation2 + $0x78] sm:$0xff]
        %v1262 = vld [vmem:[#allocation2 + $0x80] sm:$0xff]
        %v1263 = vld [vmem:[#allocation2 + $0x88] sm:$0xff]
        %v1264 = vld [vmem:[#allocation2 + $0x90] sm:$0xff]
        %v1265 = vld [vmem:[#allocation2 + $0x98] sm:$0xff]
        %v1266 = vld [vmem:[#allocation2 + $0xa0] sm:$0xff]
        %v1267 = vld [vmem:[#allocation2 + $0xa8] sm:$0xff]
        %v1268 = vld [vmem:[#allocation2 + $0xb0] sm:$0xff]
        %v1269 = vld [vmem:[#allocation2 + $0xb8] sm:$0xff]
        %v1270 = vld [vmem:[#allocation2 + $0xc0] sm:$0xff]
        %v1271 = vld [vmem:[#allocation2 + $0xc8] sm:$0xff]
        %v1272 = vld [vmem:[#allocation2 + $0xd0] sm:$0xff]
        %v1273 = vld [vmem:[#allocation2 + $0xd8] sm:$0xff]
        %v1274 = vld [vmem:[#allocation2 + $0xe0] sm:$0xff]
        %v1275 = vld [vmem:[#allocation2 + $0xe8] sm:$0xff]
        %v1276 = vld [vmem:[#allocation2 + $0xf0] sm:$0xff]
        %v1277 = vld [vmem:[#allocation2 + $0xf8] sm:$0xff]
        %v1278 = vld [vmem:[#allocation2 + $0x100] sm:$0xff]
        %v1279 = vld [vmem:[#allocation2 + $0x108] sm:$0xff]
        %v1280 = vld [vmem:[#allocation2 + $0x110] sm:$0xff]
        %v1281 = vld [vmem:[#allocation2 + $0x118] sm:$0xff]
        %v1282 = vld [vmem:[#allocation2 + $0x120] sm:$0xff]
        %v1283 = vld [vmem:[#allocation2 + $0x128] sm:$0xff]
        %v1284 = vld [vmem:[#allocation2 + $0x130] sm:$0xff]
        %v1285 = vld [vmem:[#allocation2 + $0x138] sm:$0xff]
        %v1286 = vld [vmem:[#allocation2 + $0x140] sm:$0xff]
        %v1287 = vld [vmem:[#allocation2 + $0x148] sm:$0xff]
        %v1288 = vld [vmem:[#allocation2 + $0x150] sm:$0xff]
        %v1289 = vld [vmem:[#allocation2 + $0x158] sm:$0xff]
        %v1290 = vld [vmem:[#allocation2 + $0x160] sm:$0xff]
        %v1291 = vld [vmem:[#allocation2 + $0x168] sm:$0xff]
        %v1292 = vld [vmem:[#allocation2 + $0x170] sm:$0xff]
        %v1293 = vld [vmem:[#allocation2 + $0x178] sm:$0xff]
        %v1294 = vld [vmem:[#allocation2 + $0x180] sm:$0xff]
        %v1295 = vld [vmem:[#allocation2 + $0x188] sm:$0xff]
        %v1296 = vld [vmem:[#allocation2 + $0x190] sm:$0xff]
        %v1297 = vld [vmem:[#allocation2 + $0x198] sm:$0xff]
        %v1298 = vld [vmem:[#allocation2 + $0x1a0] sm:$0xff]
        %v1299 = vld [vmem:[#allocation2 + $0x1a8] sm:$0xff]
        %v1300 = vld [vmem:[#allocation2 + $0x1b0] sm:$0xff]
        %v1301 = vld [vmem:[#allocation2 + $0x1b8] sm:$0xff]
        %v1302 = vld [vmem:[#allocation2 + $0x1c0] sm:$0xff]
        %v1303 = vld [vmem:[#allocation2 + $0x1c8] sm:$0xff]
        %v1304 = vld [vmem:[#allocation2 + $0x1d0] sm:$0xff]
        %v1305 = vld [vmem:[#allocation2 + $0x1d8] sm:$0xff]
        %v1306 = vld [vmem:[#allocation2 + $0x1e0] sm:$0xff]
        %v1307 = vld [vmem:[#allocation2 + $0x1e8] sm:$0xff]
        %v1308 = vld [vmem:[#allocation2 + $0x1f0] sm:$0xff]
        %v1309 = vld [vmem:[#allocation2 + $0x1f8] sm:$0xff]
        %v1310 = vld [vmem:[%s1001] sm:$0xf]
        %v1311 = vld [vmem:[%s1001 + $0x4] sm:$0xf]
        %v1312 = vld [vmem:[%s1001 + $0x8] sm:$0xf]
        %v1313 = vld [vmem:[%s1001 + $0xc] sm:$0xf]
        %v1314 = vld [vmem:[%s1001 + $0x10] sm:$0xf]
        %v1315 = vld [vmem:[%s1001 + $0x14] sm:$0xf]
        %v1316 = vld [vmem:[%s1001 + $0x18] sm:$0xf]
        %v1317 = vld [vmem:[%s1001 + $0x1c] sm:$0xf]
        %v1318 = vld [vmem:[%s1001 + $0x20] sm:$0xf]
        %v1319 = vld [vmem:[%s1001 + $0x24] sm:$0xf]
        %v1320 = vld [vmem:[%s1001 + $0x28] sm:$0xf]
        %v1321 = vld [vmem:[%s1001 + $0x2c] sm:$0xf]
        %v1322 = vld [vmem:[%s1001 + $0x30] sm:$0xf]
        %v1323 = vld [vmem:[%s1001 + $0x34] sm:$0xf]
        %v1324 = vld [vmem:[%s1001 + $0x38] sm:$0xf]
        %v1325 = vld [vmem:[%s1001 + $0x3c] sm:$0xf]
        %v1326 = vld [vmem:[%s1001 + $0x40] sm:$0xf]
        %v1327 = vld [vmem:[%s1001 + $0x44] sm:$0xf]
        %v1328 = vld [vmem:[%s1001 + $0x48] sm:$0xf]
        %v1329 = vld [vmem:[%s1001 + $0x4c] sm:$0xf]
        %v1330 = vld [vmem:[%s1001 + $0x50] sm:$0xf]
        %v1331 = vld [vmem:[%s1001 + $0x54] sm:$0xf]
        %v1332 = vld [vmem:[%s1001 + $0x58] sm:$0xf]
        %v1333 = vld [vmem:[%s1001 + $0x5c] sm:$0xf]
        %v1334 = vld [vmem:[%s1001 + $0x60] sm:$0xf]
        %v1335 = vld [vmem:[%s1001 + $0x64] sm:$0xf]
        %v1336 = vld [vmem:[%s1001 + $0x68] sm:$0xf]
        %v1337 = vld [vmem:[%s1001 + $0x6c] sm:$0xf]
        %v1338 = vld [vmem:[%s1001 + $0x70] sm:$0xf]
        %v1339 = vld [vmem:[%s1001 + $0x74] sm:$0xf]
        %v1340 = vld [vmem:[%s1001 + $0x78] sm:$0xf]
        %v1341 = vld [vmem:[%s1001 + $0x7c] sm:$0xf]
        %v1342 = vld [vmem:[%s1001 + $0x80] sm:$0xf]
        %v1343 = vld [vmem:[%s1001 + $0x84] sm:$0xf]
        %v1344 = vld [vmem:[%s1001 + $0x88] sm:$0xf]
        %v1345 = vld [vmem:[%s1001 + $0x8c] sm:$0xf]
        %v1346 = vld [vmem:[%s1001 + $0x90] sm:$0xf]
        %v1347 = vld [vmem:[%s1001 + $0x94] sm:$0xf]
        %v1348 = vld [vmem:[%s1001 + $0x98] sm:$0xf]
        %v1349 = vld [vmem:[%s1001 + $0x9c] sm:$0xf]
        %v1350 = vld [vmem:[%s1001 + $0xa0] sm:$0xf]
        %v1351 = vld [vmem:[%s1001 + $0xa4] sm:$0xf]
        %v1352 = vld [vmem:[%s1001 + $0xa8] sm:$0xf]
        %v1353 = vld [vmem:[%s1001 + $0xac] sm:$0xf]
        %v1354 = vld [vmem:[%s1001 + $0xb0] sm:$0xf]
        %v1355 = vld [vmem:[%s1001 + $0xb4] sm:$0xf]
        %v1356 = vld [vmem:[%s1001 + $0xb8] sm:$0xf]
        %v1357 = vld [vmem:[%s1001 + $0xbc] sm:$0xf]
        %v1358 = vld [vmem:[%s1001 + $0xc0] sm:$0xf]
        %v1359 = vld [vmem:[%s1001 + $0xc4] sm:$0xf]
        %v1360 = vld [vmem:[%s1001 + $0xc8] sm:$0xf]
        %v1361 = vld [vmem:[%s1001 + $0xcc] sm:$0xf]
        %v1362 = vld [vmem:[%s1001 + $0xd0] sm:$0xf]
        %v1363 = vld [vmem:[%s1001 + $0xd4] sm:$0xf]
        %v1364 = vld [vmem:[%s1001 + $0xd8] sm:$0xf]
        %v1365 = vld [vmem:[%s1001 + $0xdc] sm:$0xf]
        %v1366 = vld [vmem:[%s1001 + $0xe0] sm:$0xf]
        %v1367 = vld [vmem:[%s1001 + $0xe4] sm:$0xf]
        %v1368 = vld [vmem:[%s1001 + $0xe8] sm:$0xf]
        %v1369 = vld [vmem:[%s1001 + $0xec] sm:$0xf]
        %v1370 = vld [vmem:[%s1001 + $0xf0] sm:$0xf]
        %v1371 = vld [vmem:[%s1001 + $0xf4] sm:$0xf]
        %v1372 = vld [vmem:[%s1001 + $0xf8] sm:$0xf]
        %v1373 = vld [vmem:[%s1001 + $0xfc] sm:$0xf]
        %v1502 = vunpack.c.l.b16 %v1118
        %v1503 = vunpack.c.h.b16 %v1118
        %v1504 = vunpack.c.l.b16 %v1119
        %v1505 = vunpack.c.h.b16 %v1119
        %v1506 = vunpack.c.l.b16 %v1120
        %v1507 = vunpack.c.h.b16 %v1120
        %v1508 = vunpack.c.l.b16 %v1121
        %v1509 = vunpack.c.h.b16 %v1121
        %v1510 = vunpack.c.l.b16 %v1122
        %v1511 = vunpack.c.h.b16 %v1122
        %v1512 = vunpack.c.l.b16 %v1123
        %v1513 = vunpack.c.h.b16 %v1123
        %v1514 = vunpack.c.l.b16 %v1124
        %v1515 = vunpack.c.h.b16 %v1124
        %v1516 = vunpack.c.l.b16 %v1125
        %v1517 = vunpack.c.h.b16 %v1125
        %v1518 = vunpack.c.l.b16 %v1126
        %v1519 = vunpack.c.h.b16 %v1126
        %v1520 = vunpack.c.l.b16 %v1127
        %v1521 = vunpack.c.h.b16 %v1127
        %v1522 = vunpack.c.l.b16 %v1128
        %v1523 = vunpack.c.h.b16 %v1128
        %v1524 = vunpack.c.l.b16 %v1129
        %v1525 = vunpack.c.h.b16 %v1129
        %v1526 = vunpack.c.l.b16 %v1130
        %v1527 = vunpack.c.h.b16 %v1130
        %v1528 = vunpack.c.l.b16 %v1131
        %v1529 = vunpack.c.h.b16 %v1131
        %v1530 = vunpack.c.l.b16 %v1132
        %v1531 = vunpack.c.h.b16 %v1132
        %v1532 = vunpack.c.l.b16 %v1133
        %v1533 = vunpack.c.h.b16 %v1133
        %v1534 = vunpack.c.l.b16 %v1134
        %v1535 = vunpack.c.h.b16 %v1134
        %v1536 = vunpack.c.l.b16 %v1135
        %v1537 = vunpack.c.h.b16 %v1135
        %v1538 = vunpack.c.l.b16 %v1136
        %v1539 = vunpack.c.h.b16 %v1136
        %v1540 = vunpack.c.l.b16 %v1137
        %v1541 = vunpack.c.h.b16 %v1137
        %v1542 = vunpack.c.l.b16 %v1138
        %v1543 = vunpack.c.h.b16 %v1138
        %v1544 = vunpack.c.l.b16 %v1139
        %v1545 = vunpack.c.h.b16 %v1139
        %v1546 = vunpack.c.l.b16 %v1140
        %v1547 = vunpack.c.h.b16 %v1140
        %v1548 = vunpack.c.l.b16 %v1141
        %v1549 = vunpack.c.h.b16 %v1141
        %v1550 = vunpack.c.l.b16 %v1142
        %v1551 = vunpack.c.h.b16 %v1142
        %v1552 = vunpack.c.l.b16 %v1143
        %v1553 = vunpack.c.h.b16 %v1143
        %v1554 = vunpack.c.l.b16 %v1144
        %v1555 = vunpack.c.h.b16 %v1144
        %v1556 = vunpack.c.l.b16 %v1145
        %v1557 = vunpack.c.h.b16 %v1145
        %v1558 = vunpack.c.l.b16 %v1146
        %v1559 = vunpack.c.h.b16 %v1146
        %v1560 = vunpack.c.l.b16 %v1147
        %v1561 = vunpack.c.h.b16 %v1147
        %v1562 = vunpack.c.l.b16 %v1148
        %v1563 = vunpack.c.h.b16 %v1148
        %v1564 = vunpack.c.l.b16 %v1149
        %v1565 = vunpack.c.h.b16 %v1149
        %v1566 = vunpack.c.l.b16 %v1150
        %v1567 = vunpack.c.h.b16 %v1150
        %v1568 = vunpack.c.l.b16 %v1151
        %v1569 = vunpack.c.h.b16 %v1151
        %v1570 = vunpack.c.l.b16 %v1152
        %v1571 = vunpack.c.h.b16 %v1152
        %v1572 = vunpack.c.l.b16 %v1153
        %v1573 = vunpack.c.h.b16 %v1153
        %v1574 = vunpack.c.l.b16 %v1154
        %v1575 = vunpack.c.h.b16 %v1154
        %v1576 = vunpack.c.l.b16 %v1155
        %v1577 = vunpack.c.h.b16 %v1155
        %v1578 = vunpack.c.l.b16 %v1156
        %v1579 = vunpack.c.h.b16 %v1156
        %v1580 = vunpack.c.l.b16 %v1157
        %v1581 = vunpack.c.h.b16 %v1157
        %v1582 = vunpack.c.l.b16 %v1158
        %v1583 = vunpack.c.h.b16 %v1158
        %v1584 = vunpack.c.l.b16 %v1159
        %v1585 = vunpack.c.h.b16 %v1159
        %v1586 = vunpack.c.l.b16 %v1160
        %v1587 = vunpack.c.h.b16 %v1160
        %v1588 = vunpack.c.l.b16 %v1161
        %v1589 = vunpack.c.h.b16 %v1161
        %v1590 = vunpack.c.l.b16 %v1162
        %v1591 = vunpack.c.h.b16 %v1162
        %v1592 = vunpack.c.l.b16 %v1163
        %v1593 = vunpack.c.h.b16 %v1163
        %v1594 = vunpack.c.l.b16 %v1164
        %v1595 = vunpack.c.h.b16 %v1164
        %v1596 = vunpack.c.l.b16 %v1165
        %v1597 = vunpack.c.h.b16 %v1165
        %v1598 = vunpack.c.l.b16 %v1166
        %v1599 = vunpack.c.h.b16 %v1166
        %v1600 = vunpack.c.l.b16 %v1167
        %v1601 = vunpack.c.h.b16 %v1167
        %v1602 = vunpack.c.l.b16 %v1168
        %v1603 = vunpack.c.h.b16 %v1168
        %v1604 = vunpack.c.l.b16 %v1169
        %v1605 = vunpack.c.h.b16 %v1169
        %v1606 = vunpack.c.l.b16 %v1170
        %v1607 = vunpack.c.h.b16 %v1170
        %v1608 = vunpack.c.l.b16 %v1171
        %v1609 = vunpack.c.h.b16 %v1171
        %v1610 = vunpack.c.l.b16 %v1172
        %v1611 = vunpack.c.h.b16 %v1172
        %v1612 = vunpack.c.l.b16 %v1173
        %v1613 = vunpack.c.h.b16 %v1173
        %v1614 = vunpack.c.l.b16 %v1174
        %v1615 = vunpack.c.h.b16 %v1174
        %v1616 = vunpack.c.l.b16 %v1175
        %v1617 = vunpack.c.h.b16 %v1175
        %v1618 = vunpack.c.l.b16 %v1176
        %v1619 = vunpack.c.h.b16 %v1176
        %v1620 = vunpack.c.l.b16 %v1177
        %v1621 = vunpack.c.h.b16 %v1177
        %v1622 = vunpack.c.l.b16 %v1178
        %v1623 = vunpack.c.h.b16 %v1178
        %v1624 = vunpack.c.l.b16 %v1179
        %v1625 = vunpack.c.h.b16 %v1179
        %v1626 = vunpack.c.l.b16 %v1180
        %v1627 = vunpack.c.h.b16 %v1180
        %v1628 = vunpack.c.l.b16 %v1181
        %v1629 = vunpack.c.h.b16 %v1181
        %v1630 = vunpack.c.l.b16 %v1182
        %v1631 = vunpack.c.h.b16 %v1182
        %v1632 = vunpack.c.l.b16 %v1183
        %v1633 = vunpack.c.h.b16 %v1183
        %v1634 = vunpack.c.l.b16 %v1184
        %v1635 = vunpack.c.h.b16 %v1184
        %v1636 = vunpack.c.l.b16 %v1185
        %v1637 = vunpack.c.h.b16 %v1185
        %v1638 = vunpack.c.l.b16 %v1186
        %v1639 = vunpack.c.h.b16 %v1186
        %v1640 = vunpack.c.l.b16 %v1187
        %v1641 = vunpack.c.h.b16 %v1187
        %v1642 = vunpack.c.l.b16 %v1188
        %v1643 = vunpack.c.h.b16 %v1188
        %v1644 = vunpack.c.l.b16 %v1189
        %v1645 = vunpack.c.h.b16 %v1189
        %v1646 = vunpack.c.l.b16 %v1190
        %v1647 = vunpack.c.h.b16 %v1190
        %v1648 = vunpack.c.l.b16 %v1191
        %v1649 = vunpack.c.h.b16 %v1191
        %v1650 = vunpack.c.l.b16 %v1192
        %v1651 = vunpack.c.h.b16 %v1192
        %v1652 = vunpack.c.l.b16 %v1193
        %v1653 = vunpack.c.h.b16 %v1193
        %v1654 = vunpack.c.l.b16 %v1194
        %v1655 = vunpack.c.h.b16 %v1194
        %v1656 = vunpack.c.l.b16 %v1195
        %v1657 = vunpack.c.h.b16 %v1195
        %v1658 = vunpack.c.l.b16 %v1196
        %v1659 = vunpack.c.h.b16 %v1196
        %v1660 = vunpack.c.l.b16 %v1197
        %v1661 = vunpack.c.h.b16 %v1197
        %v1662 = vunpack.c.l.b16 %v1198
        %v1663 = vunpack.c.h.b16 %v1198
        %v1664 = vunpack.c.l.b16 %v1199
        %v1665 = vunpack.c.h.b16 %v1199
        %v1666 = vunpack.c.l.b16 %v1200
        %v1667 = vunpack.c.h.b16 %v1200
        %v1668 = vunpack.c.l.b16 %v1201
        %v1669 = vunpack.c.h.b16 %v1201
        %v1670 = vunpack.c.l.b16 %v1202
        %v1671 = vunpack.c.h.b16 %v1202
        %v1672 = vunpack.c.l.b16 %v1203
        %v1673 = vunpack.c.h.b16 %v1203
        %v1674 = vunpack.c.l.b16 %v1204
        %v1675 = vunpack.c.h.b16 %v1204
        %v1676 = vunpack.c.l.b16 %v1205
        %v1677 = vunpack.c.h.b16 %v1205
        %v1678 = vunpack.c.l.b16 %v1206
        %v1679 = vunpack.c.h.b16 %v1206
        %v1680 = vunpack.c.l.b16 %v1207
        %v1681 = vunpack.c.h.b16 %v1207
        %v1682 = vunpack.c.l.b16 %v1208
        %v1683 = vunpack.c.h.b16 %v1208
        %v1684 = vunpack.c.l.b16 %v1209
        %v1685 = vunpack.c.h.b16 %v1209
        %v1686 = vunpack.c.l.b16 %v1210
        %v1687 = vunpack.c.h.b16 %v1210
        %v1688 = vunpack.c.l.b16 %v1211
        %v1689 = vunpack.c.h.b16 %v1211
        %v1690 = vunpack.c.l.b16 %v1212
        %v1691 = vunpack.c.h.b16 %v1212
        %v1692 = vunpack.c.l.b16 %v1213
        %v1693 = vunpack.c.h.b16 %v1213
        %v1694 = vunpack.c.l.b16 %v1214
        %v1695 = vunpack.c.h.b16 %v1214
        %v1696 = vunpack.c.l.b16 %v1215
        %v1697 = vunpack.c.h.b16 %v1215
        %v1698 = vunpack.c.l.b16 %v1216
        %v1699 = vunpack.c.h.b16 %v1216
        %v1700 = vunpack.c.l.b16 %v1217
        %v1701 = vunpack.c.h.b16 %v1217
        %v1702 = vunpack.c.l.b16 %v1218
        %v1703 = vunpack.c.h.b16 %v1218
        %v1704 = vunpack.c.l.b16 %v1219
        %v1705 = vunpack.c.h.b16 %v1219
        %v1706 = vunpack.c.l.b16 %v1220
        %v1707 = vunpack.c.h.b16 %v1220
        %v1708 = vunpack.c.l.b16 %v1221
        %v1709 = vunpack.c.h.b16 %v1221
        %v1710 = vunpack.c.l.b16 %v1222
        %v1711 = vunpack.c.h.b16 %v1222
        %v1712 = vunpack.c.l.b16 %v1223
        %v1713 = vunpack.c.h.b16 %v1223
        %v1714 = vunpack.c.l.b16 %v1224
        %v1715 = vunpack.c.h.b16 %v1224
        %v1716 = vunpack.c.l.b16 %v1225
        %v1717 = vunpack.c.h.b16 %v1225
        %v1718 = vunpack.c.l.b16 %v1226
        %v1719 = vunpack.c.h.b16 %v1226
        %v1720 = vunpack.c.l.b16 %v1227
        %v1721 = vunpack.c.h.b16 %v1227
        %v1722 = vunpack.c.l.b16 %v1228
        %v1723 = vunpack.c.h.b16 %v1228
        %v1724 = vunpack.c.l.b16 %v1229
        %v1725 = vunpack.c.h.b16 %v1229
        %v1726 = vunpack.c.l.b16 %v1230
        %v1727 = vunpack.c.h.b16 %v1230
        %v1728 = vunpack.c.l.b16 %v1231
        %v1729 = vunpack.c.h.b16 %v1231
        %v1730 = vunpack.c.l.b16 %v1232
        %v1731 = vunpack.c.h.b16 %v1232
        %v1732 = vunpack.c.l.b16 %v1233
        %v1733 = vunpack.c.h.b16 %v1233
        %v1734 = vunpack.c.l.b16 %v1234
        %v1735 = vunpack.c.h.b16 %v1234
        %v1736 = vunpack.c.l.b16 %v1235
        %v1737 = vunpack.c.h.b16 %v1235
        %v1738 = vunpack.c.l.b16 %v1236
        %v1739 = vunpack.c.h.b16 %v1236
        %v1740 = vunpack.c.l.b16 %v1237
        %v1741 = vunpack.c.h.b16 %v1237
        %v1742 = vunpack.c.l.b16 %v1238
        %v1743 = vunpack.c.h.b16 %v1238
        %v1744 = vunpack.c.l.b16 %v1239
        %v1745 = vunpack.c.h.b16 %v1239
        %v1746 = vunpack.c.l.b16 %v1240
        %v1747 = vunpack.c.h.b16 %v1240
        %v1748 = vunpack.c.l.b16 %v1241
        %v1749 = vunpack.c.h.b16 %v1241
        %v1750 = vunpack.c.l.b16 %v1242
        %v1751 = vunpack.c.h.b16 %v1242
        %v1752 = vunpack.c.l.b16 %v1243
        %v1753 = vunpack.c.h.b16 %v1243
        %v1754 = vunpack.c.l.b16 %v1244
        %v1755 = vunpack.c.h.b16 %v1244
        %v1756 = vunpack.c.l.b16 %v1245
        %v1757 = vunpack.c.h.b16 %v1245
        %v1758 = vpack.c.b16 %v1506, %v1502
        %v1759 = vpack.c.b16 %v1507, %v1503
        %v1760 = vpack.c.b16 %v1508, %v1504
        %v1761 = vpack.c.b16 %v1509, %v1505
        %v1762 = vpack.c.b16 %v1514, %v1510
        %v1763 = vpack.c.b16 %v1515, %v1511
        %v1764 = vpack.c.b16 %v1516, %v1512
        %v1765 = vpack.c.b16 %v1517, %v1513
        %v1766 = vpack.c.b16 %v1522, %v1518
        %v1767 = vpack.c.b16 %v1523, %v1519
        %v1768 = vpack.c.b16 %v1524, %v1520
        %v1769 = vpack.c.b16 %v1525, %v1521
        %v1770 = vpack.c.b16 %v1530, %v1526
        %v1771 = vpack.c.b16 %v1531, %v1527
        %v1772 = vpack.c.b16 %v1532, %v1528
        %v1773 = vpack.c.b16 %v1533, %v1529
        %v1774 = vpack.c.b16 %v1538, %v1534
        %v1775 = vpack.c.b16 %v1539, %v1535
        %v1776 = vpack.c.b16 %v1540, %v1536
        %v1777 = vpack.c.b16 %v1541, %v1537
        %v1778 = vpack.c.b16 %v1546, %v1542
        %v1779 = vpack.c.b16 %v1547, %v1543
        %v1780 = vpack.c.b16 %v1548, %v1544
        %v1781 = vpack.c.b16 %v1549, %v1545
        %v1782 = vpack.c.b16 %v1554, %v1550
        %v1783 = vpack.c.b16 %v1555, %v1551
        %v1784 = vpack.c.b16 %v1556, %v1552
        %v1785 = vpack.c.b16 %v1557, %v1553
        %v1786 = vpack.c.b16 %v1562, %v1558
        %v1787 = vpack.c.b16 %v1563, %v1559
        %v1788 = vpack.c.b16 %v1564, %v1560
        %v1789 = vpack.c.b16 %v1565, %v1561
        %v1790 = vpack.c.b16 %v1570, %v1566
        %v1791 = vpack.c.b16 %v1571, %v1567
        %v1792 = vpack.c.b16 %v1572, %v1568
        %v1793 = vpack.c.b16 %v1573, %v1569
        %v1794 = vpack.c.b16 %v1578, %v1574
        %v1795 = vpack.c.b16 %v1579, %v1575
        %v1796 = vpack.c.b16 %v1580, %v1576
        %v1797 = vpack.c.b16 %v1581, %v1577
        %v1798 = vpack.c.b16 %v1586, %v1582
        %v1799 = vpack.c.b16 %v1587, %v1583
        %v1800 = vpack.c.b16 %v1588, %v1584
        %v1801 = vpack.c.b16 %v1589, %v1585
        %v1802 = vpack.c.b16 %v1594, %v1590
        %v1803 = vpack.c.b16 %v1595, %v1591
        %v1804 = vpack.c.b16 %v1596, %v1592
        %v1805 = vpack.c.b16 %v1597, %v1593
        %v1806 = vpack.c.b16 %v1602, %v1598
        %v1807 = vpack.c.b16 %v1603, %v1599
        %v1808 = vpack.c.b16 %v1604, %v1600
        %v1809 = vpack.c.b16 %v1605, %v1601
        %v1810 = vpack.c.b16 %v1610, %v1606
        %v1811 = vpack.c.b16 %v1611, %v1607
        %v1812 = vpack.c.b16 %v1612, %v1608
        %v1813 = vpack.c.b16 %v1613, %v1609
        %v1814 = vpack.c.b16 %v1618, %v1614
        %v1815 = vpack.c.b16 %v1619, %v1615
        %v1816 = vpack.c.b16 %v1620, %v1616
        %v1817 = vpack.c.b16 %v1621, %v1617
        %v1818 = vpack.c.b16 %v1626, %v1622
        %v1819 = vpack.c.b16 %v1627, %v1623
        %v1820 = vpack.c.b16 %v1628, %v1624
        %v1821 = vpack.c.b16 %v1629, %v1625
        %v1822 = vpack.c.b16 %v1634, %v1630
        %v1823 = vpack.c.b16 %v1635, %v1631
        %v1824 = vpack.c.b16 %v1636, %v1632
        %v1825 = vpack.c.b16 %v1637, %v1633
        %v1826 = vpack.c.b16 %v1642, %v1638
        %v1827 = vpack.c.b16 %v1643, %v1639
        %v1828 = vpack.c.b16 %v1644, %v1640
        %v1829 = vpack.c.b16 %v1645, %v1641
        %v1830 = vpack.c.b16 %v1650, %v1646
        %v1831 = vpack.c.b16 %v1651, %v1647
        %v1832 = vpack.c.b16 %v1652, %v1648
        %v1833 = vpack.c.b16 %v1653, %v1649
        %v1834 = vpack.c.b16 %v1658, %v1654
        %v1835 = vpack.c.b16 %v1659, %v1655
        %v1836 = vpack.c.b16 %v1660, %v1656
        %v1837 = vpack.c.b16 %v1661, %v1657
        %v1838 = vpack.c.b16 %v1666, %v1662
        %v1839 = vpack.c.b16 %v1667, %v1663
        %v1840 = vpack.c.b16 %v1668, %v1664
        %v1841 = vpack.c.b16 %v1669, %v1665
        %v1842 = vpack.c.b16 %v1674, %v1670
        %v1843 = vpack.c.b16 %v1675, %v1671
        %v1844 = vpack.c.b16 %v1676, %v1672
        %v1845 = vpack.c.b16 %v1677, %v1673
        %v1846 = vpack.c.b16 %v1682, %v1678
        %v1847 = vpack.c.b16 %v1683, %v1679
        %v1848 = vpack.c.b16 %v1684, %v1680
        %v1849 = vpack.c.b16 %v1685, %v1681
        %v1850 = vpack.c.b16 %v1690, %v1686
        %v1851 = vpack.c.b16 %v1691, %v1687
        %v1852 = vpack.c.b16 %v1692, %v1688
        %v1853 = vpack.c.b16 %v1693, %v1689
        %v1854 = vpack.c.b16 %v1698, %v1694
        %v1855 = vpack.c.b16 %v1699, %v1695
        %v1856 = vpack.c.b16 %v1700, %v1696
        %v1857 = vpack.c.b16 %v1701, %v1697
        %v1858 = vpack.c.b16 %v1706, %v1702
        %v1859 = vpack.c.b16 %v1707, %v1703
        %v1860 = vpack.c.b16 %v1708, %v1704
        %v1861 = vpack.c.b16 %v1709, %v1705
        %v1862 = vpack.c.b16 %v1714, %v1710
        %v1863 = vpack.c.b16 %v1715, %v1711
        %v1864 = vpack.c.b16 %v1716, %v1712
        %v1865 = vpack.c.b16 %v1717, %v1713
        %v1866 = vpack.c.b16 %v1722, %v1718
        %v1867 = vpack.c.b16 %v1723, %v1719
        %v1868 = vpack.c.b16 %v1724, %v1720
        %v1869 = vpack.c.b16 %v1725, %v1721
        %v1870 = vpack.c.b16 %v1730, %v1726
        %v1871 = vpack.c.b16 %v1731, %v1727
        %v1872 = vpack.c.b16 %v1732, %v1728
        %v1873 = vpack.c.b16 %v1733, %v1729
        %v1874 = vpack.c.b16 %v1738, %v1734
        %v1875 = vpack.c.b16 %v1739, %v1735
        %v1876 = vpack.c.b16 %v1740, %v1736
        %v1877 = vpack.c.b16 %v1741, %v1737
        %v1878 = vpack.c.b16 %v1746, %v1742
        %v1879 = vpack.c.b16 %v1747, %v1743
        %v1880 = vpack.c.b16 %v1748, %v1744
        %v1881 = vpack.c.b16 %v1749, %v1745
        %v1882 = vpack.c.b16 %v1754, %v1750
        %v1883 = vpack.c.b16 %v1755, %v1751
        %v1884 = vpack.c.b16 %v1756, %v1752
        %v1885 = vpack.c.b16 %v1757, %v1753
        %v2078 = vunpack.c.l.b16 %v1310
        %v2079 = vunpack.c.l.b16 %v1311
        %v2080 = vunpack.c.l.b16 %v1312
        %v2081 = vunpack.c.l.b16 %v1313
        %v2082 = vunpack.c.l.b16 %v1314
        %v2083 = vunpack.c.l.b16 %v1315
        %v2084 = vunpack.c.l.b16 %v1316
        %v2085 = vunpack.c.l.b16 %v1317
        %v2086 = vunpack.c.l.b16 %v1318
        %v2087 = vunpack.c.l.b16 %v1319
        %v2088 = vunpack.c.l.b16 %v1320
        %v2089 = vunpack.c.l.b16 %v1321
        %v2090 = vunpack.c.l.b16 %v1322
        %v2091 = vunpack.c.l.b16 %v1323
        %v2092 = vunpack.c.l.b16 %v1324
        %v2093 = vunpack.c.l.b16 %v1325
        %v2094 = vunpack.c.l.b16 %v1326
        %v2095 = vunpack.c.l.b16 %v1327
        %v2096 = vunpack.c.l.b16 %v1328
        %v2097 = vunpack.c.l.b16 %v1329
        %v2098 = vunpack.c.l.b16 %v1330
        %v2099 = vunpack.c.l.b16 %v1331
        %v2100 = vunpack.c.l.b16 %v1332
        %v2101 = vunpack.c.l.b16 %v1333
        %v2102 = vunpack.c.l.b16 %v1334
        %v2103 = vunpack.c.l.b16 %v1335
        %v2104 = vunpack.c.l.b16 %v1336
        %v2105 = vunpack.c.l.b16 %v1337
        %v2106 = vunpack.c.l.b16 %v1338
        %v2107 = vunpack.c.l.b16 %v1339
        %v2108 = vunpack.c.l.b16 %v1340
        %v2109 = vunpack.c.l.b16 %v1341
        %v2110 = vunpack.c.l.b16 %v1342
        %v2111 = vunpack.c.l.b16 %v1343
        %v2112 = vunpack.c.l.b16 %v1344
        %v2113 = vunpack.c.l.b16 %v1345
        %v2114 = vunpack.c.l.b16 %v1346
        %v2115 = vunpack.c.l.b16 %v1347
        %v2116 = vunpack.c.l.b16 %v1348
        %v2117 = vunpack.c.l.b16 %v1349
        %v2118 = vunpack.c.l.b16 %v1350
        %v2119 = vunpack.c.l.b16 %v1351
        %v2120 = vunpack.c.l.b16 %v1352
        %v2121 = vunpack.c.l.b16 %v1353
        %v2122 = vunpack.c.l.b16 %v1354
        %v2123 = vunpack.c.l.b16 %v1355
        %v2124 = vunpack.c.l.b16 %v1356
        %v2125 = vunpack.c.l.b16 %v1357
        %v2126 = vunpack.c.l.b16 %v1358
        %v2127 = vunpack.c.l.b16 %v1359
        %v2128 = vunpack.c.l.b16 %v1360
        %v2129 = vunpack.c.l.b16 %v1361
        %v2130 = vunpack.c.l.b16 %v1362
        %v2131 = vunpack.c.l.b16 %v1363
        %v2132 = vunpack.c.l.b16 %v1364
        %v2133 = vunpack.c.l.b16 %v1365
        %v2134 = vunpack.c.l.b16 %v1366
        %v2135 = vunpack.c.l.b16 %v1367
        %v2136 = vunpack.c.l.b16 %v1368
        %v2137 = vunpack.c.l.b16 %v1369
        %v2138 = vunpack.c.l.b16 %v1370
        %v2139 = vunpack.c.l.b16 %v1371
        %v2140 = vunpack.c.l.b16 %v1372
        %v2141 = vunpack.c.l.b16 %v1373
        %v2142 = vpack.c.b16 %v2079, %v2078
        %v2143 = vpack.c.b16 %v2081, %v2080
        %v2144 = vpack.c.b16 %v2083, %v2082
        %v2145 = vpack.c.b16 %v2085, %v2084
        %v2146 = vpack.c.b16 %v2087, %v2086
        %v2147 = vpack.c.b16 %v2089, %v2088
        %v2148 = vpack.c.b16 %v2091, %v2090
        %v2149 = vpack.c.b16 %v2093, %v2092
        %v2150 = vpack.c.b16 %v2095, %v2094
        %v2151 = vpack.c.b16 %v2097, %v2096
        %v2152 = vpack.c.b16 %v2099, %v2098
        %v2153 = vpack.c.b16 %v2101, %v2100
        %v2154 = vpack.c.b16 %v2103, %v2102
        %v2155 = vpack.c.b16 %v2105, %v2104
        %v2156 = vpack.c.b16 %v2107, %v2106
        %v2157 = vpack.c.b16 %v2109, %v2108
        %v2158 = vpack.c.b16 %v2111, %v2110
        %v2159 = vpack.c.b16 %v2113, %v2112
        %v2160 = vpack.c.b16 %v2115, %v2114
        %v2161 = vpack.c.b16 %v2117, %v2116
        %v2162 = vpack.c.b16 %v2119, %v2118
        %v2163 = vpack.c.b16 %v2121, %v2120
        %v2164 = vpack.c.b16 %v2123, %v2122
        %v2165 = vpack.c.b16 %v2125, %v2124
        %v2166 = vpack.c.b16 %v2127, %v2126
        %v2167 = vpack.c.b16 %v2129, %v2128
        %v2168 = vpack.c.b16 %v2131, %v2130
        %v2169 = vpack.c.b16 %v2133, %v2132
        %v2170 = vpack.c.b16 %v2135, %v2134
        %v2171 = vpack.c.b16 %v2137, %v2136
        %v2172 = vpack.c.b16 %v2139, %v2138
        %v2173 = vpack.c.b16 %v2141, %v2140
        %2206 = vmatprep.subr.bf16.mxu0 0
        %2207 = vmatpush1.bf16.msra.mxu0 %v2142
        %2208 = vmatprep.subr.bf16.mxu0 0
        %2209 = vmatpush1.bf16.msra.mxu0 %v2143
        %2210 = vmatprep.subr.bf16.mxu0 0
        %2211 = vmatpush1.bf16.msra.mxu0 %v2144
        %2212 = vmatprep.subr.bf16.mxu0 0
        %2213 = vmatpush1.bf16.msra.mxu0 %v2145
        %2214 = vmatprep.subr.bf16.mxu0 0
        %2215 = vmatpush1.bf16.msra.mxu0 %v2146
        %2216 = vmatprep.subr.bf16.mxu0 0
        %2217 = vmatpush1.bf16.msra.mxu0 %v2147
        %2218 = vmatprep.subr.bf16.mxu0 0
        %2219 = vmatpush1.bf16.msra.mxu0 %v2148
        %2220 = vmatprep.subr.bf16.mxu0 0
        %2221 = vmatpush1.bf16.msra.mxu0 %v2149
        %2222 = vmatprep.subr.bf16.mxu0 0
        %2223 = vmatpush1.bf16.msra.mxu0 %v2150
        %2224 = vmatprep.subr.bf16.mxu0 0
        %2225 = vmatpush1.bf16.msra.mxu0 %v2151
        %2226 = vmatprep.subr.bf16.mxu0 0
        %2227 = vmatpush1.bf16.msra.mxu0 %v2152
        %2228 = vmatprep.subr.bf16.mxu0 0
        %2229 = vmatpush1.bf16.msra.mxu0 %v2153
        %2230 = vmatprep.subr.bf16.mxu0 0
        %2231 = vmatpush1.bf16.msra.mxu0 %v2154
        %2232 = vmatprep.subr.bf16.mxu0 0
        %2233 = vmatpush1.bf16.msra.mxu0 %v2155
        %2234 = vmatprep.subr.bf16.mxu0 0
        %2235 = vmatpush1.bf16.msra.mxu0 %v2156
        %2236 = vmatprep.subr.bf16.mxu0 0
        %2237 = vmatpush1.bf16.msra.mxu0 %v2157
        %2238 = vmatprep.mubr.bf16.mxu0 %v1759
        %2239 = vmatmul.mubr.bf16.gmra.mrb[0].mxu0 %v1758
        %v2240 = vpop.f32.mrb[0].mxu0
        %v2241 = vadd.f32 0.0, %v2240
        %v2242 = vpop.f32.mrb[0].mxu0
        %v2243 = vpop.f32.mrb[0].mxu0
        %v2244 = vadd.f32 0.0, %v2243
        %v2245 = vpop.f32.mrb[0].mxu0
        %2246 = vmatprep.mubr.bf16.mxu0 %v1763
        %2247 = vmatmul.mubr.bf16.gmra.mrb[0].mxu0 %v1762
        %v2248 = vpop.f32.mrb[0].mxu0
        %v2249 = vadd.f32 0.0, %v2248
        %v2250 = vpop.f32.mrb[0].mxu0
        %v2251 = vpop.f32.mrb[0].mxu0
        %v2252 = vadd.f32 0.0, %v2251
        %v2253 = vpop.f32.mrb[0].mxu0
        %2254 = vmatprep.mubr.bf16.mxu0 %v1767
        %2255 = vmatmul.mubr.bf16.gmra.mrb[0].mxu0 %v1766
        %v2256 = vpop.f32.mrb[0].mxu0
        %v2257 = vadd.f32 0.0, %v2256
        %v2258 = vpop.f32.mrb[0].mxu0
        %v2259 = vpop.f32.mrb[0].mxu0
        %v2260 = vadd.f32 0.0, %v2259
        %v2261 = vpop.f32.mrb[0].mxu0
        %2262 = vmatprep.mubr.bf16.mxu0 %v1771
        %2263 = vmatmul.mubr.bf16.gmra.mrb[0].mxu0 %v1770
        %v2264 = vpop.f32.mrb[0].mxu0
        %v2265 = vadd.f32 0.0, %v2264
        %v2266 = vpop.f32.mrb[0].mxu0
        %v2267 = vpop.f32.mrb[0].mxu0
        %v2268 = vadd.f32 0.0, %v2267
        %v2269 = vpop.f32.mrb[0].mxu0
        %2270 = vmatprep.mubr.bf16.mxu0 %v1775
        %2271 = vmatmul.mubr.bf16.gmra.mrb[0].mxu0 %v1774
        %v2272 = vpop.f32.mrb[0].mxu0
        %v2273 = vadd.f32 0.0, %v2272
        %v2274 = vpop.f32.mrb[0].mxu0
        %v2275 = vpop.f32.mrb[0].mxu0
        %v2276 = vadd.f32 0.0, %v2275
        %v2277 = vpop.f32.mrb[0].mxu0
        %2278 = vmatprep.mubr.bf16.mxu0 %v1779
        %2279 = vmatmul.mubr.bf16.gmra.mrb[0].mxu0 %v1778
        %v2280 = vpop.f32.mrb[0].mxu0
        %v2281 = vadd.f32 0.0, %v2280
        %v2282 = vpop.f32.mrb[0].mxu0
        %v2283 = vpop.f32.mrb[0].mxu0
        %v2284 = vadd.f32 0.0, %v2283
        %v2285 = vpop.f32.mrb[0].mxu0
        %2286 = vmatprep.mubr.bf16.mxu0 %v1783
        %2287 = vmatmul.mubr.bf16.gmra.mrb[0].mxu0 %v1782
        %v2288 = vpop.f32.mrb[0].mxu0
        %v2289 = vadd.f32 0.0, %v2288
        %v2290 = vpop.f32.mrb[0].mxu0
        %v2291 = vpop.f32.mrb[0].mxu0
        %v2292 = vadd.f32 0.0, %v2291
        %v2293 = vpop.f32.mrb[0].mxu0
        %2294 = vmatprep.mubr.bf16.mxu0 %v1787
        %2295 = vmatmul.mubr.bf16.gmra.mrb[0].mxu0 %v1786
        %v2296 = vpop.f32.mrb[0].mxu0
        %v2297 = vadd.f32 0.0, %v2296
        %v2298 = vpop.f32.mrb[0].mxu0
        %v2299 = vpop.f32.mrb[0].mxu0
        %v2300 = vadd.f32 0.0, %v2299
        %v2301 = vpop.f32.mrb[0].mxu0
        %2302 = vmatprep.mubr.bf16.mxu0 %v1791
        %2303 = vmatmul.mubr.bf16.gmra.mrb[0].mxu0 %v1790
        %v2304 = vpop.f32.mrb[0].mxu0
        %v2305 = vadd.f32 0.0, %v2304
        %v2306 = vpop.f32.mrb[0].mxu0
        %v2307 = vpop.f32.mrb[0].mxu0
        %v2308 = vadd.f32 0.0, %v2307
        %v2309 = vpop.f32.mrb[0].mxu0
        %2310 = vmatprep.mubr.bf16.mxu0 %v1795
        %2311 = vmatmul.mubr.bf16.gmra.mrb[0].mxu0 %v1794
        %v2312 = vpop.f32.mrb[0].mxu0
        %v2313 = vadd.f32 0.0, %v2312
        %v2314 = vpop.f32.mrb[0].mxu0
        %v2315 = vpop.f32.mrb[0].mxu0
        %v2316 = vadd.f32 0.0, %v2315
        %v2317 = vpop.f32.mrb[0].mxu0
        %2318 = vmatprep.mubr.bf16.mxu0 %v1799
        %2319 = vmatmul.mubr.bf16.gmra.mrb[0].mxu0 %v1798
        %v2320 = vpop.f32.mrb[0].mxu0
        %v2321 = vadd.f32 0.0, %v2320
        %v2322 = vpop.f32.mrb[0].mxu0
        %v2323 = vpop.f32.mrb[0].mxu0
        %v2324 = vadd.f32 0.0, %v2323
        %v2325 = vpop.f32.mrb[0].mxu0
        %2326 = vmatprep.mubr.bf16.mxu0 %v1803
        %2327 = vmatmul.mubr.bf16.gmra.mrb[0].mxu0 %v1802
        %v2328 = vpop.f32.mrb[0].mxu0
        %v2329 = vadd.f32 0.0, %v2328
        %v2330 = vpop.f32.mrb[0].mxu0
        %v2331 = vpop.f32.mrb[0].mxu0
        %v2332 = vadd.f32 0.0, %v2331
        %v2333 = vpop.f32.mrb[0].mxu0
        %2334 = vmatprep.mubr.bf16.mxu0 %v1807
        %2335 = vmatmul.mubr.bf16.gmra.mrb[0].mxu0 %v1806
        %v2336 = vpop.f32.mrb[0].mxu0
        %v2337 = vadd.f32 0.0, %v2336
        %v2338 = vpop.f32.mrb[0].mxu0
        %v2339 = vpop.f32.mrb[0].mxu0
        %v2340 = vadd.f32 0.0, %v2339
        %v2341 = vpop.f32.mrb[0].mxu0
        %2342 = vmatprep.mubr.bf16.mxu0 %v1811
        %2343 = vmatmul.mubr.bf16.gmra.mrb[0].mxu0 %v1810
        %v2344 = vpop.f32.mrb[0].mxu0
        %v2345 = vadd.f32 0.0, %v2344
        %v2346 = vpop.f32.mrb[0].mxu0
        %v2347 = vpop.f32.mrb[0].mxu0
        %v2348 = vadd.f32 0.0, %v2347
        %v2349 = vpop.f32.mrb[0].mxu0
        %2350 = vmatprep.mubr.bf16.mxu0 %v1815
        %2351 = vmatmul.mubr.bf16.gmra.mrb[0].mxu0 %v1814
        %v2352 = vpop.f32.mrb[0].mxu0
        %v2353 = vadd.f32 0.0, %v2352
        %v2354 = vpop.f32.mrb[0].mxu0
        %v2355 = vpop.f32.mrb[0].mxu0
        %v2356 = vadd.f32 0.0, %v2355
        %v2357 = vpop.f32.mrb[0].mxu0
        %2358 = vmatprep.mubr.bf16.mxu0 %v1819
        %2359 = vmatmul.mubr.bf16.gmra.mrb[0].mxu0 %v1818
        %v2360 = vpop.f32.mrb[0].mxu0
        %v2361 = vadd.f32 0.0, %v2360
        %v2362 = vpop.f32.mrb[0].mxu0
        %v2363 = vpop.f32.mrb[0].mxu0
        %v2364 = vadd.f32 0.0, %v2363
        %v2365 = vpop.f32.mrb[0].mxu0
        %2366 = vmatprep.mubr.bf16.mxu0 %v1823
        %2367 = vmatmul.mubr.bf16.gmra.mrb[0].mxu0 %v1822
        %v2368 = vpop.f32.mrb[0].mxu0
        %v2369 = vadd.f32 0.0, %v2368
        %v2370 = vpop.f32.mrb[0].mxu0
        %v2371 = vpop.f32.mrb[0].mxu0
        %v2372 = vadd.f32 0.0, %v2371
        %v2373 = vpop.f32.mrb[0].mxu0
        %2374 = vmatprep.mubr.bf16.mxu0 %v1827
        %2375 = vmatmul.mubr.bf16.gmra.mrb[0].mxu0 %v1826
        %v2376 = vpop.f32.mrb[0].mxu0
        %v2377 = vadd.f32 0.0, %v2376
        %v2378 = vpop.f32.mrb[0].mxu0
        %v2379 = vpop.f32.mrb[0].mxu0
        %v2380 = vadd.f32 0.0, %v2379
        %v2381 = vpop.f32.mrb[0].mxu0
        %2382 = vmatprep.mubr.bf16.mxu0 %v1831
        %2383 = vmatmul.mubr.bf16.gmra.mrb[0].mxu0 %v1830
        %v2384 = vpop.f32.mrb[0].mxu0
        %v2385 = vadd.f32 0.0, %v2384
        %v2386 = vpop.f32.mrb[0].mxu0
        %v2387 = vpop.f32.mrb[0].mxu0
        %v2388 = vadd.f32 0.0, %v2387
        %v2389 = vpop.f32.mrb[0].mxu0
        %2390 = vmatprep.mubr.bf16.mxu0 %v1835
        %2391 = vmatmul.mubr.bf16.gmra.mrb[0].mxu0 %v1834
        %v2392 = vpop.f32.mrb[0].mxu0
        %v2393 = vadd.f32 0.0, %v2392
        %v2394 = vpop.f32.mrb[0].mxu0
        %v2395 = vpop.f32.mrb[0].mxu0
        %v2396 = vadd.f32 0.0, %v2395
        %v2397 = vpop.f32.mrb[0].mxu0
        %2398 = vmatprep.mubr.bf16.mxu0 %v1839
        %2399 = vmatmul.mubr.bf16.gmra.mrb[0].mxu0 %v1838
        %v2400 = vpop.f32.mrb[0].mxu0
        %v2401 = vadd.f32 0.0, %v2400
        %v2402 = vpop.f32.mrb[0].mxu0
        %v2403 = vpop.f32.mrb[0].mxu0
        %v2404 = vadd.f32 0.0, %v2403
        %v2405 = vpop.f32.mrb[0].mxu0
        %2406 = vmatprep.mubr.bf16.mxu0 %v1843
        %2407 = vmatmul.mubr.bf16.gmra.mrb[0].mxu0 %v1842
        %v2408 = vpop.f32.mrb[0].mxu0
        %v2409 = vadd.f32 0.0, %v2408
        %v2410 = vpop.f32.mrb[0].mxu0
        %v2411 = vpop.f32.mrb[0].mxu0
        %v2412 = vadd.f32 0.0, %v2411
        %v2413 = vpop.f32.mrb[0].mxu0
        %2414 = vmatprep.mubr.bf16.mxu0 %v1847
        %2415 = vmatmul.mubr.bf16.gmra.mrb[0].mxu0 %v1846
        %v2416 = vpop.f32.mrb[0].mxu0
        %v2417 = vadd.f32 0.0, %v2416
        %v2418 = vpop.f32.mrb[0].mxu0
        %v2419 = vpop.f32.mrb[0].mxu0
        %v2420 = vadd.f32 0.0, %v2419
        %v2421 = vpop.f32.mrb[0].mxu0
        %2422 = vmatprep.mubr.bf16.mxu0 %v1851
        %2423 = vmatmul.mubr.bf16.gmra.mrb[0].mxu0 %v1850
        %v2424 = vpop.f32.mrb[0].mxu0
        %v2425 = vadd.f32 0.0, %v2424
        %v2426 = vpop.f32.mrb[0].mxu0
        %v2427 = vpop.f32.mrb[0].mxu0
        %v2428 = vadd.f32 0.0, %v2427
        %v2429 = vpop.f32.mrb[0].mxu0
        %2430 = vmatprep.mubr.bf16.mxu0 %v1855
        %2431 = vmatmul.mubr.bf16.gmra.mrb[0].mxu0 %v1854
        %v2432 = vpop.f32.mrb[0].mxu0
        %v2433 = vadd.f32 0.0, %v2432
        %v2434 = vpop.f32.mrb[0].mxu0
        %v2435 = vpop.f32.mrb[0].mxu0
        %v2436 = vadd.f32 0.0, %v2435
        %v2437 = vpop.f32.mrb[0].mxu0
        %2438 = vmatprep.mubr.bf16.mxu0 %v1859
        %2439 = vmatmul.mubr.bf16.gmra.mrb[0].mxu0 %v1858
        %v2440 = vpop.f32.mrb[0].mxu0
        %v2441 = vadd.f32 0.0, %v2440
        %v2442 = vpop.f32.mrb[0].mxu0
        %v2443 = vpop.f32.mrb[0].mxu0
        %v2444 = vadd.f32 0.0, %v2443
        %v2445 = vpop.f32.mrb[0].mxu0
        %2446 = vmatprep.mubr.bf16.mxu0 %v1863
        %2447 = vmatmul.mubr.bf16.gmra.mrb[0].mxu0 %v1862
        %v2448 = vpop.f32.mrb[0].mxu0
        %v2449 = vadd.f32 0.0, %v2448
        %v2450 = vpop.f32.mrb[0].mxu0
        %v2451 = vpop.f32.mrb[0].mxu0
        %v2452 = vadd.f32 0.0, %v2451
        %v2453 = vpop.f32.mrb[0].mxu0
        %2454 = vmatprep.mubr.bf16.mxu0 %v1867
        %2455 = vmatmul.mubr.bf16.gmra.mrb[0].mxu0 %v1866
        %v2456 = vpop.f32.mrb[0].mxu0
        %v2457 = vadd.f32 0.0, %v2456
        %v2458 = vpop.f32.mrb[0].mxu0
        %v2459 = vpop.f32.mrb[0].mxu0
        %v2460 = vadd.f32 0.0, %v2459
        %v2461 = vpop.f32.mrb[0].mxu0
        %2462 = vmatprep.mubr.bf16.mxu0 %v1871
        %2463 = vmatmul.mubr.bf16.gmra.mrb[0].mxu0 %v1870
        %v2464 = vpop.f32.mrb[0].mxu0
        %v2465 = vadd.f32 0.0, %v2464
        %v2466 = vpop.f32.mrb[0].mxu0
        %v2467 = vpop.f32.mrb[0].mxu0
        %v2468 = vadd.f32 0.0, %v2467
        %v2469 = vpop.f32.mrb[0].mxu0
        %2470 = vmatprep.mubr.bf16.mxu0 %v1875
        %2471 = vmatmul.mubr.bf16.gmra.mrb[0].mxu0 %v1874
        %v2472 = vpop.f32.mrb[0].mxu0
        %v2473 = vadd.f32 0.0, %v2472
        %v2474 = vpop.f32.mrb[0].mxu0
        %v2475 = vpop.f32.mrb[0].mxu0
        %v2476 = vadd.f32 0.0, %v2475
        %v2477 = vpop.f32.mrb[0].mxu0
        %2478 = vmatprep.mubr.bf16.mxu0 %v1879
        %2479 = vmatmul.mubr.bf16.gmra.mrb[0].mxu0 %v1878
        %v2480 = vpop.f32.mrb[0].mxu0
        %v2481 = vadd.f32 0.0, %v2480
        %v2482 = vpop.f32.mrb[0].mxu0
        %v2483 = vpop.f32.mrb[0].mxu0
        %v2484 = vadd.f32 0.0, %v2483
        %v2485 = vpop.f32.mrb[0].mxu0
        %2486 = vmatprep.mubr.bf16.mxu0 %v1883
        %2487 = vmatmul.mubr.bf16.gmra.mrb[0].mxu0 %v1882
        %v2488 = vpop.f32.mrb[0].mxu0
        %v2489 = vadd.f32 0.0, %v2488
        %v2490 = vpop.f32.mrb[0].mxu0
        %v2491 = vpop.f32.mrb[0].mxu0
        %v2492 = vadd.f32 0.0, %v2491
        %v2493 = vpop.f32.mrb[0].mxu0
        %2494 = vdwg.mxu0
        %2495 = vmatprep.subr.bf16.mxu0 0
        %2496 = vmatpush1.bf16.msra.mxu0 %v2158
        %2497 = vmatprep.subr.bf16.mxu0 0
        %2498 = vmatpush1.bf16.msra.mxu0 %v2159
        %2499 = vmatprep.subr.bf16.mxu0 0
        %2500 = vmatpush1.bf16.msra.mxu0 %v2160
        %2501 = vmatprep.subr.bf16.mxu0 0
        %2502 = vmatpush1.bf16.msra.mxu0 %v2161
        %2503 = vmatprep.subr.bf16.mxu0 0
        %2504 = vmatpush1.bf16.msra.mxu0 %v2162
        %2505 = vmatprep.subr.bf16.mxu0 0
        %2506 = vmatpush1.bf16.msra.mxu0 %v2163
        %2507 = vmatprep.subr.bf16.mxu0 0
        %2508 = vmatpush1.bf16.msra.mxu0 %v2164
        %2509 = vmatprep.subr.bf16.mxu0 0
        %2510 = vmatpush1.bf16.msra.mxu0 %v2165
        %2511 = vmatprep.subr.bf16.mxu0 0
        %2512 = vmatpush1.bf16.msra.mxu0 %v2166
        %2513 = vmatprep.subr.bf16.mxu0 0
        %2514 = vmatpush1.bf16.msra.mxu0 %v2167
        %2515 = vmatprep.subr.bf16.mxu0 0
        %2516 = vmatpush1.bf16.msra.mxu0 %v2168
        %2517 = vmatprep.subr.bf16.mxu0 0
        %2518 = vmatpush1.bf16.msra.mxu0 %v2169
        %2519 = vmatprep.subr.bf16.mxu0 0
        %2520 = vmatpush1.bf16.msra.mxu0 %v2170
        %2521 = vmatprep.subr.bf16.mxu0 0
        %2522 = vmatpush1.bf16.msra.mxu0 %v2171
        %2523 = vmatprep.subr.bf16.mxu0 0
        %2524 = vmatpush1.bf16.msra.mxu0 %v2172
        %2525 = vmatprep.subr.bf16.mxu0 0
        %2526 = vmatpush1.bf16.msra.mxu0 %v2173
        %2527 = vmatprep.mubr.bf16.mxu0 %v1761
        %2528 = vmatmul.mubr.bf16.gmra.mrb[0].mxu0 %v1760
        %v2529 = vpop.f32.mrb[0].mxu0
        %v2530 = vadd.f32 %v2241, %v2529
        %v2531 = vpop.f32.mrb[0].mxu0
        %v2532 = vpop.f32.mrb[0].mxu0
        %v2533 = vadd.f32 %v2244, %v2532
        %v2534 = vpop.f32.mrb[0].mxu0
        %2535 = vmatprep.mubr.bf16.mxu0 %v1765
        %2536 = vmatmul.mubr.bf16.gmra.mrb[0].mxu0 %v1764
        %v2537 = vpop.f32.mrb[0].mxu0
        %v2538 = vadd.f32 %v2249, %v2537
        %v2539 = vpop.f32.mrb[0].mxu0
        %v2540 = vpop.f32.mrb[0].mxu0
        %v2541 = vadd.f32 %v2252, %v2540
        %v2542 = vpop.f32.mrb[0].mxu0
        %2543 = vmatprep.mubr.bf16.mxu0 %v1769
        %2544 = vmatmul.mubr.bf16.gmra.mrb[0].mxu0 %v1768
        %v2545 = vpop.f32.mrb[0].mxu0
        %v2546 = vadd.f32 %v2257, %v2545
        %v2547 = vpop.f32.mrb[0].mxu0
        %v2548 = vpop.f32.mrb[0].mxu0
        %v2549 = vadd.f32 %v2260, %v2548
        %v2550 = vpop.f32.mrb[0].mxu0
        %2551 = vmatprep.mubr.bf16.mxu0 %v1773
        %2552 = vmatmul.mubr.bf16.gmra.mrb[0].mxu0 %v1772
        %v2553 = vpop.f32.mrb[0].mxu0
        %v2554 = vadd.f32 %v2265, %v2553
        %v2555 = vpop.f32.mrb[0].mxu0
        %v2556 = vpop.f32.mrb[0].mxu0
        %v2557 = vadd.f32 %v2268, %v2556
        %v2558 = vpop.f32.mrb[0].mxu0
        %2559 = vmatprep.mubr.bf16.mxu0 %v1777
        %2560 = vmatmul.mubr.bf16.gmra.mrb[0].mxu0 %v1776
        %v2561 = vpop.f32.mrb[0].mxu0
        %v2562 = vadd.f32 %v2273, %v2561
        %v2563 = vpop.f32.mrb[0].mxu0
        %v2564 = vpop.f32.mrb[0].mxu0
        %v2565 = vadd.f32 %v2276, %v2564
        %v2566 = vpop.f32.mrb[0].mxu0
        %2567 = vmatprep.mubr.bf16.mxu0 %v1781
        %2568 = vmatmul.mubr.bf16.gmra.mrb[0].mxu0 %v1780
        %v2569 = vpop.f32.mrb[0].mxu0
        %v2570 = vadd.f32 %v2281, %v2569
        %v2571 = vpop.f32.mrb[0].mxu0
        %v2572 = vpop.f32.mrb[0].mxu0
        %v2573 = vadd.f32 %v2284, %v2572
        %v2574 = vpop.f32.mrb[0].mxu0
        %2575 = vmatprep.mubr.bf16.mxu0 %v1785
        %2576 = vmatmul.mubr.bf16.gmra.mrb[0].mxu0 %v1784
        %v2577 = vpop.f32.mrb[0].mxu0
        %v2578 = vadd.f32 %v2289, %v2577
        %v2579 = vpop.f32.mrb[0].mxu0
        %v2580 = vpop.f32.mrb[0].mxu0
        %v2581 = vadd.f32 %v2292, %v2580
        %v2582 = vpop.f32.mrb[0].mxu0
        %2583 = vmatprep.mubr.bf16.mxu0 %v1789
        %2584 = vmatmul.mubr.bf16.gmra.mrb[0].mxu0 %v1788
        %v2585 = vpop.f32.mrb[0].mxu0
        %v2586 = vadd.f32 %v2297, %v2585
        %v2587 = vpop.f32.mrb[0].mxu0
        %v2588 = vpop.f32.mrb[0].mxu0
        %v2589 = vadd.f32 %v2300, %v2588
        %v2590 = vpop.f32.mrb[0].mxu0
        %2591 = vmatprep.mubr.bf16.mxu0 %v1793
        %2592 = vmatmul.mubr.bf16.gmra.mrb[0].mxu0 %v1792
        %v2593 = vpop.f32.mrb[0].mxu0
        %v2594 = vadd.f32 %v2305, %v2593
        %v2595 = vpop.f32.mrb[0].mxu0
        %v2596 = vpop.f32.mrb[0].mxu0
        %v2597 = vadd.f32 %v2308, %v2596
        %v2598 = vpop.f32.mrb[0].mxu0
        %2599 = vmatprep.mubr.bf16.mxu0 %v1797
        %2600 = vmatmul.mubr.bf16.gmra.mrb[0].mxu0 %v1796
        %v2601 = vpop.f32.mrb[0].mxu0
        %v2602 = vadd.f32 %v2313, %v2601
        %v2603 = vpop.f32.mrb[0].mxu0
        %v2604 = vpop.f32.mrb[0].mxu0
        %v2605 = vadd.f32 %v2316, %v2604
        %v2606 = vpop.f32.mrb[0].mxu0
        %2607 = vmatprep.mubr.bf16.mxu0 %v1801
        %2608 = vmatmul.mubr.bf16.gmra.mrb[0].mxu0 %v1800
        %v2609 = vpop.f32.mrb[0].mxu0
        %v2610 = vadd.f32 %v2321, %v2609
        %v2611 = vpop.f32.mrb[0].mxu0
        %v2612 = vpop.f32.mrb[0].mxu0
        %v2613 = vadd.f32 %v2324, %v2612
        %v2614 = vpop.f32.mrb[0].mxu0
        %2615 = vmatprep.mubr.bf16.mxu0 %v1805
        %2616 = vmatmul.mubr.bf16.gmra.mrb[0].mxu0 %v1804
        %v2617 = vpop.f32.mrb[0].mxu0
        %v2618 = vadd.f32 %v2329, %v2617
        %v2619 = vpop.f32.mrb[0].mxu0
        %v2620 = vpop.f32.mrb[0].mxu0
        %v2621 = vadd.f32 %v2332, %v2620
        %v2622 = vpop.f32.mrb[0].mxu0
        %2623 = vmatprep.mubr.bf16.mxu0 %v1809
        %2624 = vmatmul.mubr.bf16.gmra.mrb[0].mxu0 %v1808
        %v2625 = vpop.f32.mrb[0].mxu0
        %v2626 = vadd.f32 %v2337, %v2625
        %v2627 = vpop.f32.mrb[0].mxu0
        %v2628 = vpop.f32.mrb[0].mxu0
        %v2629 = vadd.f32 %v2340, %v2628
        %v2630 = vpop.f32.mrb[0].mxu0
        %2631 = vmatprep.mubr.bf16.mxu0 %v1813
        %2632 = vmatmul.mubr.bf16.gmra.mrb[0].mxu0 %v1812
        %v2633 = vpop.f32.mrb[0].mxu0
        %v2634 = vadd.f32 %v2345, %v2633
        %v2635 = vpop.f32.mrb[0].mxu0
        %v2636 = vpop.f32.mrb[0].mxu0
        %v2637 = vadd.f32 %v2348, %v2636
        %v2638 = vpop.f32.mrb[0].mxu0
        %2639 = vmatprep.mubr.bf16.mxu0 %v1817
        %2640 = vmatmul.mubr.bf16.gmra.mrb[0].mxu0 %v1816
        %v2641 = vpop.f32.mrb[0].mxu0
        %v2642 = vadd.f32 %v2353, %v2641
        %v2643 = vpop.f32.mrb[0].mxu0
        %v2644 = vpop.f32.mrb[0].mxu0
        %v2645 = vadd.f32 %v2356, %v2644
        %v2646 = vpop.f32.mrb[0].mxu0
        %2647 = vmatprep.mubr.bf16.mxu0 %v1821
        %2648 = vmatmul.mubr.bf16.gmra.mrb[0].mxu0 %v1820
        %v2649 = vpop.f32.mrb[0].mxu0
        %v2650 = vadd.f32 %v2361, %v2649
        %v2651 = vpop.f32.mrb[0].mxu0
        %v2652 = vpop.f32.mrb[0].mxu0
        %v2653 = vadd.f32 %v2364, %v2652
        %v2654 = vpop.f32.mrb[0].mxu0
        %2655 = vmatprep.mubr.bf16.mxu0 %v1825
        %2656 = vmatmul.mubr.bf16.gmra.mrb[0].mxu0 %v1824
        %v2657 = vpop.f32.mrb[0].mxu0
        %v2658 = vadd.f32 %v2369, %v2657
        %v2659 = vpop.f32.mrb[0].mxu0
        %v2660 = vpop.f32.mrb[0].mxu0
        %v2661 = vadd.f32 %v2372, %v2660
        %v2662 = vpop.f32.mrb[0].mxu0
        %2663 = vmatprep.mubr.bf16.mxu0 %v1829
        %2664 = vmatmul.mubr.bf16.gmra.mrb[0].mxu0 %v1828
        %v2665 = vpop.f32.mrb[0].mxu0
        %v2666 = vadd.f32 %v2377, %v2665
        %v2667 = vpop.f32.mrb[0].mxu0
        %v2668 = vpop.f32.mrb[0].mxu0
        %v2669 = vadd.f32 %v2380, %v2668
        %v2670 = vpop.f32.mrb[0].mxu0
        %2671 = vmatprep.mubr.bf16.mxu0 %v1833
        %2672 = vmatmul.mubr.bf16.gmra.mrb[0].mxu0 %v1832
        %v2673 = vpop.f32.mrb[0].mxu0
        %v2674 = vadd.f32 %v2385, %v2673
        %v2675 = vpop.f32.mrb[0].mxu0
        %v2676 = vpop.f32.mrb[0].mxu0
        %v2677 = vadd.f32 %v2388, %v2676
        %v2678 = vpop.f32.mrb[0].mxu0
        %2679 = vmatprep.mubr.bf16.mxu0 %v1837
        %2680 = vmatmul.mubr.bf16.gmra.mrb[0].mxu0 %v1836
        %v2681 = vpop.f32.mrb[0].mxu0
        %v2682 = vadd.f32 %v2393, %v2681
        %v2683 = vpop.f32.mrb[0].mxu0
        %v2684 = vpop.f32.mrb[0].mxu0
        %v2685 = vadd.f32 %v2396, %v2684
        %v2686 = vpop.f32.mrb[0].mxu0
        %2687 = vmatprep.mubr.bf16.mxu0 %v1841
        %2688 = vmatmul.mubr.bf16.gmra.mrb[0].mxu0 %v1840
        %v2689 = vpop.f32.mrb[0].mxu0
        %v2690 = vadd.f32 %v2401, %v2689
        %v2691 = vpop.f32.mrb[0].mxu0
        %v2692 = vpop.f32.mrb[0].mxu0
        %v2693 = vadd.f32 %v2404, %v2692
        %v2694 = vpop.f32.mrb[0].mxu0
        %2695 = vmatprep.mubr.bf16.mxu0 %v1845
        %2696 = vmatmul.mubr.bf16.gmra.mrb[0].mxu0 %v1844
        %v2697 = vpop.f32.mrb[0].mxu0
        %v2698 = vadd.f32 %v2409, %v2697
        %v2699 = vpop.f32.mrb[0].mxu0
        %v2700 = vpop.f32.mrb[0].mxu0
        %v2701 = vadd.f32 %v2412, %v2700
        %v2702 = vpop.f32.mrb[0].mxu0
        %2703 = vmatprep.mubr.bf16.mxu0 %v1849
        %2704 = vmatmul.mubr.bf16.gmra.mrb[0].mxu0 %v1848
        %v2705 = vpop.f32.mrb[0].mxu0
        %v2706 = vadd.f32 %v2417, %v2705
        %v2707 = vpop.f32.mrb[0].mxu0
        %v2708 = vpop.f32.mrb[0].mxu0
        %v2709 = vadd.f32 %v2420, %v2708
        %v2710 = vpop.f32.mrb[0].mxu0
        %2711 = vmatprep.mubr.bf16.mxu0 %v1853
        %2712 = vmatmul.mubr.bf16.gmra.mrb[0].mxu0 %v1852
        %v2713 = vpop.f32.mrb[0].mxu0
        %v2714 = vadd.f32 %v2425, %v2713
        %v2715 = vpop.f32.mrb[0].mxu0
        %v2716 = vpop.f32.mrb[0].mxu0
        %v2717 = vadd.f32 %v2428, %v2716
        %v2718 = vpop.f32.mrb[0].mxu0
        %2719 = vmatprep.mubr.bf16.mxu0 %v1857
        %2720 = vmatmul.mubr.bf16.gmra.mrb[0].mxu0 %v1856
        %v2721 = vpop.f32.mrb[0].mxu0
        %v2722 = vadd.f32 %v2433, %v2721
        %v2723 = vpop.f32.mrb[0].mxu0
        %v2724 = vpop.f32.mrb[0].mxu0
        %v2725 = vadd.f32 %v2436, %v2724
        %v2726 = vpop.f32.mrb[0].mxu0
        %2727 = vmatprep.mubr.bf16.mxu0 %v1861
        %2728 = vmatmul.mubr.bf16.gmra.mrb[0].mxu0 %v1860
        %v2729 = vpop.f32.mrb[0].mxu0
        %v2730 = vadd.f32 %v2441, %v2729
        %v2731 = vpop.f32.mrb[0].mxu0
        %v2732 = vpop.f32.mrb[0].mxu0
        %v2733 = vadd.f32 %v2444, %v2732
        %v2734 = vpop.f32.mrb[0].mxu0
        %2735 = vmatprep.mubr.bf16.mxu0 %v1865
        %2736 = vmatmul.mubr.bf16.gmra.mrb[0].mxu0 %v1864
        %v2737 = vpop.f32.mrb[0].mxu0
        %v2738 = vadd.f32 %v2449, %v2737
        %v2739 = vpop.f32.mrb[0].mxu0
        %v2740 = vpop.f32.mrb[0].mxu0
        %v2741 = vadd.f32 %v2452, %v2740
        %v2742 = vpop.f32.mrb[0].mxu0
        %2743 = vmatprep.mubr.bf16.mxu0 %v1869
        %2744 = vmatmul.mubr.bf16.gmra.mrb[0].mxu0 %v1868
        %v2745 = vpop.f32.mrb[0].mxu0
        %v2746 = vadd.f32 %v2457, %v2745
        %v2747 = vpop.f32.mrb[0].mxu0
        %v2748 = vpop.f32.mrb[0].mxu0
        %v2749 = vadd.f32 %v2460, %v2748
        %v2750 = vpop.f32.mrb[0].mxu0
        %2751 = vmatprep.mubr.bf16.mxu0 %v1873
        %2752 = vmatmul.mubr.bf16.gmra.mrb[0].mxu0 %v1872
        %v2753 = vpop.f32.mrb[0].mxu0
        %v2754 = vadd.f32 %v2465, %v2753
        %v2755 = vpop.f32.mrb[0].mxu0
        %v2756 = vpop.f32.mrb[0].mxu0
        %v2757 = vadd.f32 %v2468, %v2756
        %v2758 = vpop.f32.mrb[0].mxu0
        %2759 = vmatprep.mubr.bf16.mxu0 %v1877
        %2760 = vmatmul.mubr.bf16.gmra.mrb[0].mxu0 %v1876
        %v2761 = vpop.f32.mrb[0].mxu0
        %v2762 = vadd.f32 %v2473, %v2761
        %v2763 = vpop.f32.mrb[0].mxu0
        %v2764 = vpop.f32.mrb[0].mxu0
        %v2765 = vadd.f32 %v2476, %v2764
        %v2766 = vpop.f32.mrb[0].mxu0
        %2767 = vmatprep.mubr.bf16.mxu0 %v1881
        %2768 = vmatmul.mubr.bf16.gmra.mrb[0].mxu0 %v1880
        %v2769 = vpop.f32.mrb[0].mxu0
        %v2770 = vadd.f32 %v2481, %v2769
        %v2771 = vpop.f32.mrb[0].mxu0
        %v2772 = vpop.f32.mrb[0].mxu0
        %v2773 = vadd.f32 %v2484, %v2772
        %v2774 = vpop.f32.mrb[0].mxu0
        %2775 = vmatprep.mubr.bf16.mxu0 %v1885
        %2776 = vmatmul.mubr.bf16.gmra.mrb[0].mxu0 %v1884
        %v2777 = vpop.f32.mrb[0].mxu0
        %v2778 = vadd.f32 %v2489, %v2777
        %v2779 = vpop.f32.mrb[0].mxu0
        %v2780 = vpop.f32.mrb[0].mxu0
        %v2781 = vadd.f32 %v2492, %v2780
        %v2782 = vpop.f32.mrb[0].mxu0
        %2783 = vdwg.mxu0
        %v2784 = vadd.f32 %v1246, %v2530
        %v2785 = vadd.f32 %v1247, %v2533
        %v2786 = vadd.f32 %v1248, %v2538
        %v2787 = vadd.f32 %v1249, %v2541
        %v2788 = vadd.f32 %v1250, %v2546
        %v2789 = vadd.f32 %v1251, %v2549
        %v2790 = vadd.f32 %v1252, %v2554
        %v2791 = vadd.f32 %v1253, %v2557
        %v2792 = vadd.f32 %v1254, %v2562
        %v2793 = vadd.f32 %v1255, %v2565
        %v2794 = vadd.f32 %v1256, %v2570
        %v2795 = vadd.f32 %v1257, %v2573
        %v2796 = vadd.f32 %v1258, %v2578
        %v2797 = vadd.f32 %v1259, %v2581
        %v2798 = vadd.f32 %v1260, %v2586
        %v2799 = vadd.f32 %v1261, %v2589
        %v2800 = vadd.f32 %v1262, %v2594
        %v2801 = vadd.f32 %v1263, %v2597
        %v2802 = vadd.f32 %v1264, %v2602
        %v2803 = vadd.f32 %v1265, %v2605
        %v2804 = vadd.f32 %v1266, %v2610
        %v2805 = vadd.f32 %v1267, %v2613
        %v2806 = vadd.f32 %v1268, %v2618
        %v2807 = vadd.f32 %v1269, %v2621
        %v2808 = vadd.f32 %v1270, %v2626
        %v2809 = vadd.f32 %v1271, %v2629
        %v2810 = vadd.f32 %v1272, %v2634
        %v2811 = vadd.f32 %v1273, %v2637
        %v2812 = vadd.f32 %v1274, %v2642
        %v2813 = vadd.f32 %v1275, %v2645
        %v2814 = vadd.f32 %v1276, %v2650
        %v2815 = vadd.f32 %v1277, %v2653
        %v2816 = vadd.f32 %v1278, %v2658
        %v2817 = vadd.f32 %v1279, %v2661
        %v2818 = vadd.f32 %v1280, %v2666
        %v2819 = vadd.f32 %v1281, %v2669
        %v2820 = vadd.f32 %v1282, %v2674
        %v2821 = vadd.f32 %v1283, %v2677
        %v2822 = vadd.f32 %v1284, %v2682
        %v2823 = vadd.f32 %v1285, %v2685
        %v2824 = vadd.f32 %v1286, %v2690
        %v2825 = vadd.f32 %v1287, %v2693
        %v2826 = vadd.f32 %v1288, %v2698
        %v2827 = vadd.f32 %v1289, %v2701
        %v2828 = vadd.f32 %v1290, %v2706
        %v2829 = vadd.f32 %v1291, %v2709
        %v2830 = vadd.f32 %v1292, %v2714
        %v2831 = vadd.f32 %v1293, %v2717
        %v2832 = vadd.f32 %v1294, %v2722
        %v2833 = vadd.f32 %v1295, %v2725
        %v2834 = vadd.f32 %v1296, %v2730
        %v2835 = vadd.f32 %v1297, %v2733
        %v2836 = vadd.f32 %v1298, %v2738
        %v2837 = vadd.f32 %v1299, %v2741
        %v2838 = vadd.f32 %v1300, %v2746
        %v2839 = vadd.f32 %v1301, %v2749
        %v2840 = vadd.f32 %v1302, %v2754
        %v2841 = vadd.f32 %v1303, %v2757
        %v2842 = vadd.f32 %v1304, %v2762
        %v2843 = vadd.f32 %v1305, %v2765
        %v2844 = vadd.f32 %v1306, %v2770
        %v2845 = vadd.f32 %v1307, %v2773
        %v2846 = vadd.f32 %v1308, %v2778
        %v2847 = vadd.f32 %v1309, %v2781
        %2848 = vst [vmem:[#allocation2] sm:$0xff] %v2784
        %2849 = vst [vmem:[#allocation2 + $0x8] sm:$0xff] %v2785
        %2850 = vst [vmem:[#allocation2 + $0x10] sm:$0xff] %v2786
        %2851 = vst [vmem:[#allocation2 + $0x18] sm:$0xff] %v2787
        %2852 = vst [vmem:[#allocation2 + $0x20] sm:$0xff] %v2788
        %2853 = vst [vmem:[#allocation2 + $0x28] sm:$0xff] %v2789
        %2854 = vst [vmem:[#allocation2 + $0x30] sm:$0xff] %v2790
        %2855 = vst [vmem:[#allocation2 + $0x38] sm:$0xff] %v2791
        %2856 = vst [vmem:[#allocation2 + $0x40] sm:$0xff] %v2792
        %2857 = vst [vmem:[#allocation2 + $0x48] sm:$0xff] %v2793
        %2858 = vst [vmem:[#allocation2 + $0x50] sm:$0xff] %v2794
        %2859 = vst [vmem:[#allocation2 + $0x58] sm:$0xff] %v2795
        %2860 = vst [vmem:[#allocation2 + $0x60] sm:$0xff] %v2796
        %2861 = vst [vmem:[#allocation2 + $0x68] sm:$0xff] %v2797
        %2862 = vst [vmem:[#allocation2 + $0x70] sm:$0xff] %v2798
        %2863 = vst [vmem:[#allocation2 + $0x78] sm:$0xff] %v2799
        %2864 = vst [vmem:[#allocation2 + $0x80] sm:$0xff] %v2800
        %2865 = vst [vmem:[#allocation2 + $0x88] sm:$0xff] %v2801
        %2866 = vst [vmem:[#allocation2 + $0x90] sm:$0xff] %v2802
        %2867 = vst [vmem:[#allocation2 + $0x98] sm:$0xff] %v2803
        %2868 = vst [vmem:[#allocation2 + $0xa0] sm:$0xff] %v2804
        %2869 = vst [vmem:[#allocation2 + $0xa8] sm:$0xff] %v2805
        %2870 = vst [vmem:[#allocation2 + $0xb0] sm:$0xff] %v2806
        %2871 = vst [vmem:[#allocation2 + $0xb8] sm:$0xff] %v2807
        %2872 = vst [vmem:[#allocation2 + $0xc0] sm:$0xff] %v2808
        %2873 = vst [vmem:[#allocation2 + $0xc8] sm:$0xff] %v2809
        %2874 = vst [vmem:[#allocation2 + $0xd0] sm:$0xff] %v2810
        %2875 = vst [vmem:[#allocation2 + $0xd8] sm:$0xff] %v2811
        %2876 = vst [vmem:[#allocation2 + $0xe0] sm:$0xff] %v2812
        %2877 = vst [vmem:[#allocation2 + $0xe8] sm:$0xff] %v2813
        %2878 = vst [vmem:[#allocation2 + $0xf0] sm:$0xff] %v2814
        %2879 = vst [vmem:[#allocation2 + $0xf8] sm:$0xff] %v2815
        %2880 = vst [vmem:[#allocation2 + $0x100] sm:$0xff] %v2816
        %2881 = vst [vmem:[#allocation2 + $0x108] sm:$0xff] %v2817
        %2882 = vst [vmem:[#allocation2 + $0x110] sm:$0xff] %v2818
        %2883 = vst [vmem:[#allocation2 + $0x118] sm:$0xff] %v2819
        %2884 = vst [vmem:[#allocation2 + $0x120] sm:$0xff] %v2820
        %2885 = vst [vmem:[#allocation2 + $0x128] sm:$0xff] %v2821
        %2886 = vst [vmem:[#allocation2 + $0x130] sm:$0xff] %v2822
        %2887 = vst [vmem:[#allocation2 + $0x138] sm:$0xff] %v2823
        %2888 = vst [vmem:[#allocation2 + $0x140] sm:$0xff] %v2824
        %2889 = vst [vmem:[#allocation2 + $0x148] sm:$0xff] %v2825
        %2890 = vst [vmem:[#allocation2 + $0x150] sm:$0xff] %v2826
        %2891 = vst [vmem:[#allocation2 + $0x158] sm:$0xff] %v2827
        %2892 = vst [vmem:[#allocation2 + $0x160] sm:$0xff] %v2828
        %2893 = vst [vmem:[#allocation2 + $0x168] sm:$0xff] %v2829
        %2894 = vst [vmem:[#allocation2 + $0x170] sm:$0xff] %v2830
        %2895 = vst [vmem:[#allocation2 + $0x178] sm:$0xff] %v2831
        %2896 = vst [vmem:[#allocation2 + $0x180] sm:$0xff] %v2832
        %2897 = vst [vmem:[#allocation2 + $0x188] sm:$0xff] %v2833
        %2898 = vst [vmem:[#allocation2 + $0x190] sm:$0xff] %v2834
        %2899 = vst [vmem:[#allocation2 + $0x198] sm:$0xff] %v2835
        %2900 = vst [vmem:[#allocation2 + $0x1a0] sm:$0xff] %v2836
        %2901 = vst [vmem:[#allocation2 + $0x1a8] sm:$0xff] %v2837
        %2902 = vst [vmem:[#allocation2 + $0x1b0] sm:$0xff] %v2838
        %2903 = vst [vmem:[#allocation2 + $0x1b8] sm:$0xff] %v2839
        %2904 = vst [vmem:[#allocation2 + $0x1c0] sm:$0xff] %v2840
        %2905 = vst [vmem:[#allocation2 + $0x1c8] sm:$0xff] %v2841
        %2906 = vst [vmem:[#allocation2 + $0x1d0] sm:$0xff] %v2842
        %2907 = vst [vmem:[#allocation2 + $0x1d8] sm:$0xff] %v2843
        %2908 = vst [vmem:[#allocation2 + $0x1e0] sm:$0xff] %v2844
        %2909 = vst [vmem:[#allocation2 + $0x1e8] sm:$0xff] %v2845
        %2910 = vst [vmem:[#allocation2 + $0x1f0] sm:$0xff] %v2846
        %2911 = vst [vmem:[#allocation2 + $0x1f8] sm:$0xff] %v2847
        %v2912 = vld [vmem:[%s1043] sm:$0x88]
        %v2913 = vld [vmem:[%s1043 + $0x8] sm:$0x88]
        %v2914 = vld [vmem:[%s1043 + $0x10] sm:$0xff]
        %v2915 = vld [vmem:[%s1043 + $0x18] sm:$0xff]
        %v2916 = vld [vmem:[%s1043 + $0x20] sm:$0x77]
        %v2917 = vld [vmem:[%s1043 + $0x28] sm:$0x77]
        %v2918 = vld [vmem:[%s1043 + $0x40] sm:$0x88]
        %v2919 = vld [vmem:[%s1043 + $0x48] sm:$0x88]
        %v2920 = vld [vmem:[%s1043 + $0x50] sm:$0xff]
        %v2921 = vld [vmem:[%s1043 + $0x58] sm:$0xff]
        %v2922 = vld [vmem:[%s1043 + $0x60] sm:$0x77]
        %v2923 = vld [vmem:[%s1043 + $0x68] sm:$0x77]
        %v2924 = vld [vmem:[%s1043 + $0x80] sm:$0x88]
        %v2925 = vld [vmem:[%s1043 + $0x88] sm:$0x88]
        %v2926 = vld [vmem:[%s1043 + $0x90] sm:$0xff]
        %v2927 = vld [vmem:[%s1043 + $0x98] sm:$0xff]
        %v2928 = vld [vmem:[%s1043 + $0xa0] sm:$0x77]
        %v2929 = vld [vmem:[%s1043 + $0xa8] sm:$0x77]
        %v2930 = vld [vmem:[%s1043 + $0xc0] sm:$0x88]
        %v2931 = vld [vmem:[%s1043 + $0xc8] sm:$0x88]
        %v2932 = vld [vmem:[%s1043 + $0xd0] sm:$0xff]
        %v2933 = vld [vmem:[%s1043 + $0xd8] sm:$0xff]
        %v2934 = vld [vmem:[%s1043 + $0xe0] sm:$0x77]
        %v2935 = vld [vmem:[%s1043 + $0xe8] sm:$0x77]
        %v2936 = vld [vmem:[%s1043 + $0x100] sm:$0x88]
        %v2937 = vld [vmem:[%s1043 + $0x108] sm:$0x88]
        %v2938 = vld [vmem:[%s1043 + $0x110] sm:$0xff]
        %v2939 = vld [vmem:[%s1043 + $0x118] sm:$0xff]
        %v2940 = vld [vmem:[%s1043 + $0x120] sm:$0x77]
        %v2941 = vld [vmem:[%s1043 + $0x128] sm:$0x77]
        %v2942 = vld [vmem:[%s1043 + $0x140] sm:$0x88]
        %v2943 = vld [vmem:[%s1043 + $0x148] sm:$0x88]
        %v2944 = vld [vmem:[%s1043 + $0x150] sm:$0xff]
        %v2945 = vld [vmem:[%s1043 + $0x158] sm:$0xff]
        %v2946 = vld [vmem:[%s1043 + $0x160] sm:$0x77]
        %v2947 = vld [vmem:[%s1043 + $0x168] sm:$0x77]
        %v2948 = vld [vmem:[%s1043 + $0x180] sm:$0x88]
        %v2949 = vld [vmem:[%s1043 + $0x188] sm:$0x88]
        %v2950 = vld [vmem:[%s1043 + $0x190] sm:$0xff]
        %v2951 = vld [vmem:[%s1043 + $0x198] sm:$0xff]
        %v2952 = vld [vmem:[%s1043 + $0x1a0] sm:$0x77]
        %v2953 = vld [vmem:[%s1043 + $0x1a8] sm:$0x77]
        %v2954 = vld [vmem:[%s1043 + $0x1c0] sm:$0x88]
        %v2955 = vld [vmem:[%s1043 + $0x1c8] sm:$0x88]
        %v2956 = vld [vmem:[%s1043 + $0x1d0] sm:$0xff]
        %v2957 = vld [vmem:[%s1043 + $0x1d8] sm:$0xff]
        %v2958 = vld [vmem:[%s1043 + $0x1e0] sm:$0x77]
        %v2959 = vld [vmem:[%s1043 + $0x1e8] sm:$0x77]
        %v2960 = vld [vmem:[%s1043 + $0x200] sm:$0x88]
        %v2961 = vld [vmem:[%s1043 + $0x208] sm:$0x88]
        %v2962 = vld [vmem:[%s1043 + $0x210] sm:$0xff]
        %v2963 = vld [vmem:[%s1043 + $0x218] sm:$0xff]
        %v2964 = vld [vmem:[%s1043 + $0x220] sm:$0x77]
        %v2965 = vld [vmem:[%s1043 + $0x228] sm:$0x77]
        %v2966 = vld [vmem:[%s1043 + $0x240] sm:$0x88]
        %v2967 = vld [vmem:[%s1043 + $0x248] sm:$0x88]
        %v2968 = vld [vmem:[%s1043 + $0x250] sm:$0xff]
        %v2969 = vld [vmem:[%s1043 + $0x258] sm:$0xff]
        %v2970 = vld [vmem:[%s1043 + $0x260] sm:$0x77]
        %v2971 = vld [vmem:[%s1043 + $0x268] sm:$0x77]
        %v2972 = vld [vmem:[%s1043 + $0x280] sm:$0x88]
        %v2973 = vld [vmem:[%s1043 + $0x288] sm:$0x88]
        %v2974 = vld [vmem:[%s1043 + $0x290] sm:$0xff]
        %v2975 = vld [vmem:[%s1043 + $0x298] sm:$0xff]
        %v2976 = vld [vmem:[%s1043 + $0x2a0] sm:$0x77]
        %v2977 = vld [vmem:[%s1043 + $0x2a8] sm:$0x77]
        %v2978 = vld [vmem:[%s1043 + $0x2c0] sm:$0x88]
        %v2979 = vld [vmem:[%s1043 + $0x2c8] sm:$0x88]
        %v2980 = vld [vmem:[%s1043 + $0x2d0] sm:$0xff]
        %v2981 = vld [vmem:[%s1043 + $0x2d8] sm:$0xff]
        %v2982 = vld [vmem:[%s1043 + $0x2e0] sm:$0x77]
        %v2983 = vld [vmem:[%s1043 + $0x2e8] sm:$0x77]
        %v2984 = vld [vmem:[%s1043 + $0x300] sm:$0x88]
        %v2985 = vld [vmem:[%s1043 + $0x308] sm:$0x88]
        %v2986 = vld [vmem:[%s1043 + $0x310] sm:$0xff]
        %v2987 = vld [vmem:[%s1043 + $0x318] sm:$0xff]
        %v2988 = vld [vmem:[%s1043 + $0x320] sm:$0x77]
        %v2989 = vld [vmem:[%s1043 + $0x328] sm:$0x77]
        %v2990 = vld [vmem:[%s1043 + $0x340] sm:$0x88]
        %v2991 = vld [vmem:[%s1043 + $0x348] sm:$0x88]
        %v2992 = vld [vmem:[%s1043 + $0x350] sm:$0xff]
        %v2993 = vld [vmem:[%s1043 + $0x358] sm:$0xff]
        %v2994 = vld [vmem:[%s1043 + $0x360] sm:$0x77]
        %v2995 = vld [vmem:[%s1043 + $0x368] sm:$0x77]
        %v2996 = vld [vmem:[%s1043 + $0x380] sm:$0x88]
        %v2997 = vld [vmem:[%s1043 + $0x388] sm:$0x88]
        %v2998 = vld [vmem:[%s1043 + $0x390] sm:$0xff]
        %v2999 = vld [vmem:[%s1043 + $0x398] sm:$0xff]
        %v3000 = vld [vmem:[%s1043 + $0x3a0] sm:$0x77]
        %v3001 = vld [vmem:[%s1043 + $0x3a8] sm:$0x77]
        %v3002 = vld [vmem:[%s1043 + $0x3c0] sm:$0x88]
        %v3003 = vld [vmem:[%s1043 + $0x3c8] sm:$0x88]
        %v3004 = vld [vmem:[%s1043 + $0x3d0] sm:$0xff]
        %v3005 = vld [vmem:[%s1043 + $0x3d8] sm:$0xff]
        %v3006 = vld [vmem:[%s1043 + $0x3e0] sm:$0x77]
        %v3007 = vld [vmem:[%s1043 + $0x3e8] sm:$0x77]
        %v3008 = vld [vmem:[%s1043 + $0x400] sm:$0x88]
        %v3009 = vld [vmem:[%s1043 + $0x408] sm:$0x88]
        %v3010 = vld [vmem:[%s1043 + $0x410] sm:$0xff]
        %v3011 = vld [vmem:[%s1043 + $0x418] sm:$0xff]
        %v3012 = vld [vmem:[%s1043 + $0x420] sm:$0x77]
        %v3013 = vld [vmem:[%s1043 + $0x428] sm:$0x77]
        %v3014 = vld [vmem:[%s1043 + $0x440] sm:$0x88]
        %v3015 = vld [vmem:[%s1043 + $0x448] sm:$0x88]
        %v3016 = vld [vmem:[%s1043 + $0x450] sm:$0xff]
        %v3017 = vld [vmem:[%s1043 + $0x458] sm:$0xff]
        %v3018 = vld [vmem:[%s1043 + $0x460] sm:$0x77]
        %v3019 = vld [vmem:[%s1043 + $0x468] sm:$0x77]
        %v3020 = vld [vmem:[%s1043 + $0x480] sm:$0x88]
        %v3021 = vld [vmem:[%s1043 + $0x488] sm:$0x88]
        %v3022 = vld [vmem:[%s1043 + $0x490] sm:$0xff]
        %v3023 = vld [vmem:[%s1043 + $0x498] sm:$0xff]
        %v3024 = vld [vmem:[%s1043 + $0x4a0] sm:$0x77]
        %v3025 = vld [vmem:[%s1043 + $0x4a8] sm:$0x77]
        %v3026 = vld [vmem:[%s1043 + $0x4c0] sm:$0x88]
        %v3027 = vld [vmem:[%s1043 + $0x4c8] sm:$0x88]
        %v3028 = vld [vmem:[%s1043 + $0x4d0] sm:$0xff]
        %v3029 = vld [vmem:[%s1043 + $0x4d8] sm:$0xff]
        %v3030 = vld [vmem:[%s1043 + $0x4e0] sm:$0x77]
        %v3031 = vld [vmem:[%s1043 + $0x4e8] sm:$0x77]
        %v3032 = vld [vmem:[%s1043 + $0x500] sm:$0x88]
        %v3033 = vld [vmem:[%s1043 + $0x508] sm:$0x88]
        %v3034 = vld [vmem:[%s1043 + $0x510] sm:$0xff]
        %v3035 = vld [vmem:[%s1043 + $0x518] sm:$0xff]
        %v3036 = vld [vmem:[%s1043 + $0x520] sm:$0x77]
        %v3037 = vld [vmem:[%s1043 + $0x528] sm:$0x77]
        %v3038 = vld [vmem:[%s1043 + $0x540] sm:$0x88]
        %v3039 = vld [vmem:[%s1043 + $0x548] sm:$0x88]
        %v3040 = vld [vmem:[%s1043 + $0x550] sm:$0xff]
        %v3041 = vld [vmem:[%s1043 + $0x558] sm:$0xff]
        %v3042 = vld [vmem:[%s1043 + $0x560] sm:$0x77]
        %v3043 = vld [vmem:[%s1043 + $0x568] sm:$0x77]
        %v3044 = vld [vmem:[%s1043 + $0x580] sm:$0x88]
        %v3045 = vld [vmem:[%s1043 + $0x588] sm:$0x88]
        %v3046 = vld [vmem:[%s1043 + $0x590] sm:$0xff]
        %v3047 = vld [vmem:[%s1043 + $0x598] sm:$0xff]
        %v3048 = vld [vmem:[%s1043 + $0x5a0] sm:$0x77]
        %v3049 = vld [vmem:[%s1043 + $0x5a8] sm:$0x77]
        %v3050 = vld [vmem:[%s1043 + $0x5c0] sm:$0x88]
        %v3051 = vld [vmem:[%s1043 + $0x5c8] sm:$0x88]
        %v3052 = vld [vmem:[%s1043 + $0x5d0] sm:$0xff]
        %v3053 = vld [vmem:[%s1043 + $0x5d8] sm:$0xff]
        %v3054 = vld [vmem:[%s1043 + $0x5e0] sm:$0x77]
        %v3055 = vld [vmem:[%s1043 + $0x5e8] sm:$0x77]
        %v3056 = vld [vmem:[%s1043 + $0x600] sm:$0x88]
        %v3057 = vld [vmem:[%s1043 + $0x608] sm:$0x88]
        %v3058 = vld [vmem:[%s1043 + $0x610] sm:$0xff]
        %v3059 = vld [vmem:[%s1043 + $0x618] sm:$0xff]
        %v3060 = vld [vmem:[%s1043 + $0x620] sm:$0x77]
        %v3061 = vld [vmem:[%s1043 + $0x628] sm:$0x77]
        %v3062 = vld [vmem:[%s1043 + $0x640] sm:$0x88]
        %v3063 = vld [vmem:[%s1043 + $0x648] sm:$0x88]
        %v3064 = vld [vmem:[%s1043 + $0x650] sm:$0xff]
        %v3065 = vld [vmem:[%s1043 + $0x658] sm:$0xff]
        %v3066 = vld [vmem:[%s1043 + $0x660] sm:$0x77]
        %v3067 = vld [vmem:[%s1043 + $0x668] sm:$0x77]
        %v3068 = vld [vmem:[%s1043 + $0x680] sm:$0x88]
        %v3069 = vld [vmem:[%s1043 + $0x688] sm:$0x88]
        %v3070 = vld [vmem:[%s1043 + $0x690] sm:$0xff]
        %v3071 = vld [vmem:[%s1043 + $0x698] sm:$0xff]
        %v3072 = vld [vmem:[%s1043 + $0x6a0] sm:$0x77]
        %v3073 = vld [vmem:[%s1043 + $0x6a8] sm:$0x77]
        %v3074 = vld [vmem:[%s1043 + $0x6c0] sm:$0x88]
        %v3075 = vld [vmem:[%s1043 + $0x6c8] sm:$0x88]
        %v3076 = vld [vmem:[%s1043 + $0x6d0] sm:$0xff]
        %v3077 = vld [vmem:[%s1043 + $0x6d8] sm:$0xff]
        %v3078 = vld [vmem:[%s1043 + $0x6e0] sm:$0x77]
        %v3079 = vld [vmem:[%s1043 + $0x6e8] sm:$0x77]
        %v3080 = vld [vmem:[%s1043 + $0x700] sm:$0x88]
        %v3081 = vld [vmem:[%s1043 + $0x708] sm:$0x88]
        %v3082 = vld [vmem:[%s1043 + $0x710] sm:$0xff]
        %v3083 = vld [vmem:[%s1043 + $0x718] sm:$0xff]
        %v3084 = vld [vmem:[%s1043 + $0x720] sm:$0x77]
        %v3085 = vld [vmem:[%s1043 + $0x728] sm:$0x77]
        %v3086 = vld [vmem:[%s1043 + $0x740] sm:$0x88]
        %v3087 = vld [vmem:[%s1043 + $0x748] sm:$0x88]
        %v3088 = vld [vmem:[%s1043 + $0x750] sm:$0xff]
        %v3089 = vld [vmem:[%s1043 + $0x758] sm:$0xff]
        %v3090 = vld [vmem:[%s1043 + $0x760] sm:$0x77]
        %v3091 = vld [vmem:[%s1043 + $0x768] sm:$0x77]
        %v3092 = vld [vmem:[%s1043 + $0x780] sm:$0x88]
        %v3093 = vld [vmem:[%s1043 + $0x788] sm:$0x88]
        %v3094 = vld [vmem:[%s1043 + $0x790] sm:$0xff]
        %v3095 = vld [vmem:[%s1043 + $0x798] sm:$0xff]
        %v3096 = vld [vmem:[%s1043 + $0x7a0] sm:$0x77]
        %v3097 = vld [vmem:[%s1043 + $0x7a8] sm:$0x77]
        %v3098 = vld [vmem:[%s1043 + $0x7c0] sm:$0x88]
        %v3099 = vld [vmem:[%s1043 + $0x7c8] sm:$0x88]
        %v3100 = vld [vmem:[%s1043 + $0x7d0] sm:$0xff]
        %v3101 = vld [vmem:[%s1043 + $0x7d8] sm:$0xff]
        %v3102 = vld [vmem:[%s1043 + $0x7e0] sm:$0x77]
        %v3103 = vld [vmem:[%s1043 + $0x7e8] sm:$0x77]
        %vm3296 = vcmask 1040384
        %vm3297 = vcmask 1044484
        %vm3298 = vmor %vm3296, %vm3297
        %v3299 = vrot.slane %v2912, 7
        %v3300 = vrot.slane %v3299, 4
        %v3301 = vrot.slane %v2914, 7
        %v3302 = vsel %vm3298, %v3300, %v3301
        %v3303 = vrot.slane %v2913, 7
        %v3304 = vrot.slane %v3303, 4
        %v3305 = vrot.slane %v2915, 7
        %v3306 = vsel %vm3298, %v3304, %v3305
        %v3307 = vrot.slane %v3301, 4
        %v3308 = vrot.slane %v2916, 7
        %v3309 = vsel %vm3298, %v3307, %v3308
        %v3310 = vrot.slane %v3305, 4
        %v3311 = vrot.slane %v2917, 7
        %v3312 = vsel %vm3298, %v3310, %v3311
        %v3313 = vrot.slane %v2918, 7
        %v3314 = vrot.slane %v3313, 4
        %v3315 = vrot.slane %v2920, 7
        %v3316 = vsel %vm3298, %v3314, %v3315
        %v3317 = vrot.slane %v2919, 7
        %v3318 = vrot.slane %v3317, 4
        %v3319 = vrot.slane %v2921, 7
        %v3320 = vsel %vm3298, %v3318, %v3319
        %v3321 = vrot.slane %v3315, 4
        %v3322 = vrot.slane %v2922, 7
        %v3323 = vsel %vm3298, %v3321, %v3322
        %v3324 = vrot.slane %v3319, 4
        %v3325 = vrot.slane %v2923, 7
        %v3326 = vsel %vm3298, %v3324, %v3325
        %v3327 = vrot.slane %v2924, 7
        %v3328 = vrot.slane %v3327, 4
        %v3329 = vrot.slane %v2926, 7
        %v3330 = vsel %vm3298, %v3328, %v3329
        %v3331 = vrot.slane %v2925, 7
        %v3332 = vrot.slane %v3331, 4
        %v3333 = vrot.slane %v2927, 7
        %v3334 = vsel %vm3298, %v3332, %v3333
        %v3335 = vrot.slane %v3329, 4
        %v3336 = vrot.slane %v2928, 7
        %v3337 = vsel %vm3298, %v3335, %v3336
        %v3338 = vrot.slane %v3333, 4
        %v3339 = vrot.slane %v2929, 7
        %v3340 = vsel %vm3298, %v3338, %v3339
        %v3341 = vrot.slane %v2930, 7
        %v3342 = vrot.slane %v3341, 4
        %v3343 = vrot.slane %v2932, 7
        %v3344 = vsel %vm3298, %v3342, %v3343
        %v3345 = vrot.slane %v2931, 7
        %v3346 = vrot.slane %v3345, 4
        %v3347 = vrot.slane %v2933, 7
        %v3348 = vsel %vm3298, %v3346, %v3347
        %v3349 = vrot.slane %v3343, 4
        %v3350 = vrot.slane %v2934, 7
        %v3351 = vsel %vm3298, %v3349, %v3350
        %v3352 = vrot.slane %v3347, 4
        %v3353 = vrot.slane %v2935, 7
        %v3354 = vsel %vm3298, %v3352, %v3353
        %v3355 = vrot.slane %v2936, 7
        %v3356 = vrot.slane %v3355, 4
        %v3357 = vrot.slane %v2938, 7
        %v3358 = vsel %vm3298, %v3356, %v3357
        %v3359 = vrot.slane %v2937, 7
        %v3360 = vrot.slane %v3359, 4
        %v3361 = vrot.slane %v2939, 7
        %v3362 = vsel %vm3298, %v3360, %v3361
        %v3363 = vrot.slane %v3357, 4
        %v3364 = vrot.slane %v2940, 7
        %v3365 = vsel %vm3298, %v3363, %v3364
        %v3366 = vrot.slane %v3361, 4
        %v3367 = vrot.slane %v2941, 7
        %v3368 = vsel %vm3298, %v3366, %v3367
        %v3369 = vrot.slane %v2942, 7
        %v3370 = vrot.slane %v3369, 4
        %v3371 = vrot.slane %v2944, 7
        %v3372 = vsel %vm3298, %v3370, %v3371
        %v3373 = vrot.slane %v2943, 7
        %v3374 = vrot.slane %v3373, 4
        %v3375 = vrot.slane %v2945, 7
        %v3376 = vsel %vm3298, %v3374, %v3375
        %v3377 = vrot.slane %v3371, 4
        %v3378 = vrot.slane %v2946, 7
        %v3379 = vsel %vm3298, %v3377, %v3378
        %v3380 = vrot.slane %v3375, 4
        %v3381 = vrot.slane %v2947, 7
        %v3382 = vsel %vm3298, %v3380, %v3381
        %v3383 = vrot.slane %v2948, 7
        %v3384 = vrot.slane %v3383, 4
        %v3385 = vrot.slane %v2950, 7
        %v3386 = vsel %vm3298, %v3384, %v3385
        %v3387 = vrot.slane %v2949, 7
        %v3388 = vrot.slane %v3387, 4
        %v3389 = vrot.slane %v2951, 7
        %v3390 = vsel %vm3298, %v3388, %v3389
        %v3391 = vrot.slane %v3385, 4
        %v3392 = vrot.slane %v2952, 7
        %v3393 = vsel %vm3298, %v3391, %v3392
        %v3394 = vrot.slane %v3389, 4
        %v3395 = vrot.slane %v2953, 7
        %v3396 = vsel %vm3298, %v3394, %v3395
        %v3397 = vrot.slane %v2954, 7
        %v3398 = vrot.slane %v3397, 4
        %v3399 = vrot.slane %v2956, 7
        %v3400 = vsel %vm3298, %v3398, %v3399
        %v3401 = vrot.slane %v2955, 7
        %v3402 = vrot.slane %v3401, 4
        %v3403 = vrot.slane %v2957, 7
        %v3404 = vsel %vm3298, %v3402, %v3403
        %v3405 = vrot.slane %v3399, 4
        %v3406 = vrot.slane %v2958, 7
        %v3407 = vsel %vm3298, %v3405, %v3406
        %v3408 = vrot.slane %v3403, 4
        %v3409 = vrot.slane %v2959, 7
        %v3410 = vsel %vm3298, %v3408, %v3409
        %v3411 = vrot.slane %v2960, 7
        %v3412 = vrot.slane %v3411, 4
        %v3413 = vrot.slane %v2962, 7
        %v3414 = vsel %vm3298, %v3412, %v3413
        %v3415 = vrot.slane %v2961, 7
        %v3416 = vrot.slane %v3415, 4
        %v3417 = vrot.slane %v2963, 7
        %v3418 = vsel %vm3298, %v3416, %v3417
        %v3419 = vrot.slane %v3413, 4
        %v3420 = vrot.slane %v2964, 7
        %v3421 = vsel %vm3298, %v3419, %v3420
        %v3422 = vrot.slane %v3417, 4
        %v3423 = vrot.slane %v2965, 7
        %v3424 = vsel %vm3298, %v3422, %v3423
        %v3425 = vrot.slane %v2966, 7
        %v3426 = vrot.slane %v3425, 4
        %v3427 = vrot.slane %v2968, 7
        %v3428 = vsel %vm3298, %v3426, %v3427
        %v3429 = vrot.slane %v2967, 7
        %v3430 = vrot.slane %v3429, 4
        %v3431 = vrot.slane %v2969, 7
        %v3432 = vsel %vm3298, %v3430, %v3431
        %v3433 = vrot.slane %v3427, 4
        %v3434 = vrot.slane %v2970, 7
        %v3435 = vsel %vm3298, %v3433, %v3434
        %v3436 = vrot.slane %v3431, 4
        %v3437 = vrot.slane %v2971, 7
        %v3438 = vsel %vm3298, %v3436, %v3437
        %v3439 = vrot.slane %v2972, 7
        %v3440 = vrot.slane %v3439, 4
        %v3441 = vrot.slane %v2974, 7
        %v3442 = vsel %vm3298, %v3440, %v3441
        %v3443 = vrot.slane %v2973, 7
        %v3444 = vrot.slane %v3443, 4
        %v3445 = vrot.slane %v2975, 7
        %v3446 = vsel %vm3298, %v3444, %v3445
        %v3447 = vrot.slane %v3441, 4
        %v3448 = vrot.slane %v2976, 7
        %v3449 = vsel %vm3298, %v3447, %v3448
        %v3450 = vrot.slane %v3445, 4
        %v3451 = vrot.slane %v2977, 7
        %v3452 = vsel %vm3298, %v3450, %v3451
        %v3453 = vrot.slane %v2978, 7
        %v3454 = vrot.slane %v3453, 4
        %v3455 = vrot.slane %v2980, 7
        %v3456 = vsel %vm3298, %v3454, %v3455
        %v3457 = vrot.slane %v2979, 7
        %v3458 = vrot.slane %v3457, 4
        %v3459 = vrot.slane %v2981, 7
        %v3460 = vsel %vm3298, %v3458, %v3459
        %v3461 = vrot.slane %v3455, 4
        %v3462 = vrot.slane %v2982, 7
        %v3463 = vsel %vm3298, %v3461, %v3462
        %v3464 = vrot.slane %v3459, 4
        %v3465 = vrot.slane %v2983, 7
        %v3466 = vsel %vm3298, %v3464, %v3465
        %v3467 = vrot.slane %v2984, 7
        %v3468 = vrot.slane %v3467, 4
        %v3469 = vrot.slane %v2986, 7
        %v3470 = vsel %vm3298, %v3468, %v3469
        %v3471 = vrot.slane %v2985, 7
        %v3472 = vrot.slane %v3471, 4
        %v3473 = vrot.slane %v2987, 7
        %v3474 = vsel %vm3298, %v3472, %v3473
        %v3475 = vrot.slane %v3469, 4
        %v3476 = vrot.slane %v2988, 7
        %v3477 = vsel %vm3298, %v3475, %v3476
        %v3478 = vrot.slane %v3473, 4
        %v3479 = vrot.slane %v2989, 7
        %v3480 = vsel %vm3298, %v3478, %v3479
        %v3481 = vrot.slane %v2990, 7
        %v3482 = vrot.slane %v3481, 4
        %v3483 = vrot.slane %v2992, 7
        %v3484 = vsel %vm3298, %v3482, %v3483
        %v3485 = vrot.slane %v2991, 7
        %v3486 = vrot.slane %v3485, 4
        %v3487 = vrot.slane %v2993, 7
        %v3488 = vsel %vm3298, %v3486, %v3487
        %v3489 = vrot.slane %v3483, 4
        %v3490 = vrot.slane %v2994, 7
        %v3491 = vsel %vm3298, %v3489, %v3490
        %v3492 = vrot.slane %v3487, 4
        %v3493 = vrot.slane %v2995, 7
        %v3494 = vsel %vm3298, %v3492, %v3493
        %v3495 = vrot.slane %v2996, 7
        %v3496 = vrot.slane %v3495, 4
        %v3497 = vrot.slane %v2998, 7
        %v3498 = vsel %vm3298, %v3496, %v3497
        %v3499 = vrot.slane %v2997, 7
        %v3500 = vrot.slane %v3499, 4
        %v3501 = vrot.slane %v2999, 7
        %v3502 = vsel %vm3298, %v3500, %v3501
        %v3503 = vrot.slane %v3497, 4
        %v3504 = vrot.slane %v3000, 7
        %v3505 = vsel %vm3298, %v3503, %v3504
        %v3506 = vrot.slane %v3501, 4
        %v3507 = vrot.slane %v3001, 7
        %v3508 = vsel %vm3298, %v3506, %v3507
        %v3509 = vrot.slane %v3002, 7
        %v3510 = vrot.slane %v3509, 4
        %v3511 = vrot.slane %v3004, 7
        %v3512 = vsel %vm3298, %v3510, %v3511
        %v3513 = vrot.slane %v3003, 7
        %v3514 = vrot.slane %v3513, 4
        %v3515 = vrot.slane %v3005, 7
        %v3516 = vsel %vm3298, %v3514, %v3515
        %v3517 = vrot.slane %v3511, 4
        %v3518 = vrot.slane %v3006, 7
        %v3519 = vsel %vm3298, %v3517, %v3518
        %v3520 = vrot.slane %v3515, 4
        %v3521 = vrot.slane %v3007, 7
        %v3522 = vsel %vm3298, %v3520, %v3521
        %v3523 = vrot.slane %v3008, 7
        %v3524 = vrot.slane %v3523, 4
        %v3525 = vrot.slane %v3010, 7
        %v3526 = vsel %vm3298, %v3524, %v3525
        %v3527 = vrot.slane %v3009, 7
        %v3528 = vrot.slane %v3527, 4
        %v3529 = vrot.slane %v3011, 7
        %v3530 = vsel %vm3298, %v3528, %v3529
        %v3531 = vrot.slane %v3525, 4
        %v3532 = vrot.slane %v3012, 7
        %v3533 = vsel %vm3298, %v3531, %v3532
        %v3534 = vrot.slane %v3529, 4
        %v3535 = vrot.slane %v3013, 7
        %v3536 = vsel %vm3298, %v3534, %v3535
        %v3537 = vrot.slane %v3014, 7
        %v3538 = vrot.slane %v3537, 4
        %v3539 = vrot.slane %v3016, 7
        %v3540 = vsel %vm3298, %v3538, %v3539
        %v3541 = vrot.slane %v3015, 7
        %v3542 = vrot.slane %v3541, 4
        %v3543 = vrot.slane %v3017, 7
        %v3544 = vsel %vm3298, %v3542, %v3543
        %v3545 = vrot.slane %v3539, 4
        %v3546 = vrot.slane %v3018, 7
        %v3547 = vsel %vm3298, %v3545, %v3546
        %v3548 = vrot.slane %v3543, 4
        %v3549 = vrot.slane %v3019, 7
        %v3550 = vsel %vm3298, %v3548, %v3549
        %v3551 = vrot.slane %v3020, 7
        %v3552 = vrot.slane %v3551, 4
        %v3553 = vrot.slane %v3022, 7
        %v3554 = vsel %vm3298, %v3552, %v3553
        %v3555 = vrot.slane %v3021, 7
        %v3556 = vrot.slane %v3555, 4
        %v3557 = vrot.slane %v3023, 7
        %v3558 = vsel %vm3298, %v3556, %v3557
        %v3559 = vrot.slane %v3553, 4
        %v3560 = vrot.slane %v3024, 7
        %v3561 = vsel %vm3298, %v3559, %v3560
        %v3562 = vrot.slane %v3557, 4
        %v3563 = vrot.slane %v3025, 7
        %v3564 = vsel %vm3298, %v3562, %v3563
        %v3565 = vrot.slane %v3026, 7
        %v3566 = vrot.slane %v3565, 4
        %v3567 = vrot.slane %v3028, 7
        %v3568 = vsel %vm3298, %v3566, %v3567
        %v3569 = vrot.slane %v3027, 7
        %v3570 = vrot.slane %v3569, 4
        %v3571 = vrot.slane %v3029, 7
        %v3572 = vsel %vm3298, %v3570, %v3571
        %v3573 = vrot.slane %v3567, 4
        %v3574 = vrot.slane %v3030, 7
        %v3575 = vsel %vm3298, %v3573, %v3574
        %v3576 = vrot.slane %v3571, 4
        %v3577 = vrot.slane %v3031, 7
        %v3578 = vsel %vm3298, %v3576, %v3577
        %v3579 = vrot.slane %v3032, 7
        %v3580 = vrot.slane %v3579, 4
        %v3581 = vrot.slane %v3034, 7
        %v3582 = vsel %vm3298, %v3580, %v3581
        %v3583 = vrot.slane %v3033, 7
        %v3584 = vrot.slane %v3583, 4
        %v3585 = vrot.slane %v3035, 7
        %v3586 = vsel %vm3298, %v3584, %v3585
        %v3587 = vrot.slane %v3581, 4
        %v3588 = vrot.slane %v3036, 7
        %v3589 = vsel %vm3298, %v3587, %v3588
        %v3590 = vrot.slane %v3585, 4
        %v3591 = vrot.slane %v3037, 7
        %v3592 = vsel %vm3298, %v3590, %v3591
        %v3593 = vrot.slane %v3038, 7
        %v3594 = vrot.slane %v3593, 4
        %v3595 = vrot.slane %v3040, 7
        %v3596 = vsel %vm3298, %v3594, %v3595
        %v3597 = vrot.slane %v3039, 7
        %v3598 = vrot.slane %v3597, 4
        %v3599 = vrot.slane %v3041, 7
        %v3600 = vsel %vm3298, %v3598, %v3599
        %v3601 = vrot.slane %v3595, 4
        %v3602 = vrot.slane %v3042, 7
        %v3603 = vsel %vm3298, %v3601, %v3602
        %v3604 = vrot.slane %v3599, 4
        %v3605 = vrot.slane %v3043, 7
        %v3606 = vsel %vm3298, %v3604, %v3605
        %v3607 = vrot.slane %v3044, 7
        %v3608 = vrot.slane %v3607, 4
        %v3609 = vrot.slane %v3046, 7
        %v3610 = vsel %vm3298, %v3608, %v3609
        %v3611 = vrot.slane %v3045, 7
        %v3612 = vrot.slane %v3611, 4
        %v3613 = vrot.slane %v3047, 7
        %v3614 = vsel %vm3298, %v3612, %v3613
        %v3615 = vrot.slane %v3609, 4
        %v3616 = vrot.slane %v3048, 7
        %v3617 = vsel %vm3298, %v3615, %v3616
        %v3618 = vrot.slane %v3613, 4
        %v3619 = vrot.slane %v3049, 7
        %v3620 = vsel %vm3298, %v3618, %v3619
        %v3621 = vrot.slane %v3050, 7
        %v3622 = vrot.slane %v3621, 4
        %v3623 = vrot.slane %v3052, 7
        %v3624 = vsel %vm3298, %v3622, %v3623
        %v3625 = vrot.slane %v3051, 7
        %v3626 = vrot.slane %v3625, 4
        %v3627 = vrot.slane %v3053, 7
        %v3628 = vsel %vm3298, %v3626, %v3627
        %v3629 = vrot.slane %v3623, 4
        %v3630 = vrot.slane %v3054, 7
        %v3631 = vsel %vm3298, %v3629, %v3630
        %v3632 = vrot.slane %v3627, 4
        %v3633 = vrot.slane %v3055, 7
        %v3634 = vsel %vm3298, %v3632, %v3633
        %v3635 = vrot.slane %v3056, 7
        %v3636 = vrot.slane %v3635, 4
        %v3637 = vrot.slane %v3058, 7
        %v3638 = vsel %vm3298, %v3636, %v3637
        %v3639 = vrot.slane %v3057, 7
        %v3640 = vrot.slane %v3639, 4
        %v3641 = vrot.slane %v3059, 7
        %v3642 = vsel %vm3298, %v3640, %v3641
        %v3643 = vrot.slane %v3637, 4
        %v3644 = vrot.slane %v3060, 7
        %v3645 = vsel %vm3298, %v3643, %v3644
        %v3646 = vrot.slane %v3641, 4
        %v3647 = vrot.slane %v3061, 7
        %v3648 = vsel %vm3298, %v3646, %v3647
        %v3649 = vrot.slane %v3062, 7
        %v3650 = vrot.slane %v3649, 4
        %v3651 = vrot.slane %v3064, 7
        %v3652 = vsel %vm3298, %v3650, %v3651
        %v3653 = vrot.slane %v3063, 7
        %v3654 = vrot.slane %v3653, 4
        %v3655 = vrot.slane %v3065, 7
        %v3656 = vsel %vm3298, %v3654, %v3655
        %v3657 = vrot.slane %v3651, 4
        %v3658 = vrot.slane %v3066, 7
        %v3659 = vsel %vm3298, %v3657, %v3658
        %v3660 = vrot.slane %v3655, 4
        %v3661 = vrot.slane %v3067, 7
        %v3662 = vsel %vm3298, %v3660, %v3661
        %v3663 = vrot.slane %v3068, 7
        %v3664 = vrot.slane %v3663, 4
        %v3665 = vrot.slane %v3070, 7
        %v3666 = vsel %vm3298, %v3664, %v3665
        %v3667 = vrot.slane %v3069, 7
        %v3668 = vrot.slane %v3667, 4
        %v3669 = vrot.slane %v3071, 7
        %v3670 = vsel %vm3298, %v3668, %v3669
        %v3671 = vrot.slane %v3665, 4
        %v3672 = vrot.slane %v3072, 7
        %v3673 = vsel %vm3298, %v3671, %v3672
        %v3674 = vrot.slane %v3669, 4
        %v3675 = vrot.slane %v3073, 7
        %v3676 = vsel %vm3298, %v3674, %v3675
        %v3677 = vrot.slane %v3074, 7
        %v3678 = vrot.slane %v3677, 4
        %v3679 = vrot.slane %v3076, 7
        %v3680 = vsel %vm3298, %v3678, %v3679
        %v3681 = vrot.slane %v3075, 7
        %v3682 = vrot.slane %v3681, 4
        %v3683 = vrot.slane %v3077, 7
        %v3684 = vsel %vm3298, %v3682, %v3683
        %v3685 = vrot.slane %v3679, 4
        %v3686 = vrot.slane %v3078, 7
        %v3687 = vsel %vm3298, %v3685, %v3686
        %v3688 = vrot.slane %v3683, 4
        %v3689 = vrot.slane %v3079, 7
        %v3690 = vsel %vm3298, %v3688, %v3689
        %v3691 = vrot.slane %v3080, 7
        %v3692 = vrot.slane %v3691, 4
        %v3693 = vrot.slane %v3082, 7
        %v3694 = vsel %vm3298, %v3692, %v3693
        %v3695 = vrot.slane %v3081, 7
        %v3696 = vrot.slane %v3695, 4
        %v3697 = vrot.slane %v3083, 7
        %v3698 = vsel %vm3298, %v3696, %v3697
        %v3699 = vrot.slane %v3693, 4
        %v3700 = vrot.slane %v3084, 7
        %v3701 = vsel %vm3298, %v3699, %v3700
        %v3702 = vrot.slane %v3697, 4
        %v3703 = vrot.slane %v3085, 7
        %v3704 = vsel %vm3298, %v3702, %v3703
        %v3705 = vrot.slane %v3086, 7
        %v3706 = vrot.slane %v3705, 4
        %v3707 = vrot.slane %v3088, 7
        %v3708 = vsel %vm3298, %v3706, %v3707
        %v3709 = vrot.slane %v3087, 7
        %v3710 = vrot.slane %v3709, 4
        %v3711 = vrot.slane %v3089, 7
        %v3712 = vsel %vm3298, %v3710, %v3711
        %v3713 = vrot.slane %v3707, 4
        %v3714 = vrot.slane %v3090, 7
        %v3715 = vsel %vm3298, %v3713, %v3714
        %v3716 = vrot.slane %v3711, 4
        %v3717 = vrot.slane %v3091, 7
        %v3718 = vsel %vm3298, %v3716, %v3717
        %v3719 = vrot.slane %v3092, 7
        %v3720 = vrot.slane %v3719, 4
        %v3721 = vrot.slane %v3094, 7
        %v3722 = vsel %vm3298, %v3720, %v3721
        %v3723 = vrot.slane %v3093, 7
        %v3724 = vrot.slane %v3723, 4
        %v3725 = vrot.slane %v3095, 7
        %v3726 = vsel %vm3298, %v3724, %v3725
        %v3727 = vrot.slane %v3721, 4
        %v3728 = vrot.slane %v3096, 7
        %v3729 = vsel %vm3298, %v3727, %v3728
        %v3730 = vrot.slane %v3725, 4
        %v3731 = vrot.slane %v3097, 7
        %v3732 = vsel %vm3298, %v3730, %v3731
        %v3733 = vrot.slane %v3098, 7
        %v3734 = vrot.slane %v3733, 4
        %v3735 = vrot.slane %v3100, 7
        %v3736 = vsel %vm3298, %v3734, %v3735
        %v3737 = vrot.slane %v3099, 7
        %v3738 = vrot.slane %v3737, 4
        %v3739 = vrot.slane %v3101, 7
        %v3740 = vsel %vm3298, %v3738, %v3739
        %v3741 = vrot.slane %v3735, 4
        %v3742 = vrot.slane %v3102, 7
        %v3743 = vsel %vm3298, %v3741, %v3742
        %v3744 = vrot.slane %v3739, 4
        %v3745 = vrot.slane %v3103, 7
        %v3746 = vsel %vm3298, %v3744, %v3745
        %v3747 = vld [vmem:[#allocation2] sm:$0xff]
        %v3748 = vld [vmem:[#allocation2 + $0x8] sm:$0xff]
        %v3749 = vld [vmem:[#allocation2 + $0x10] sm:$0xff]
        %v3750 = vld [vmem:[#allocation2 + $0x18] sm:$0xff]
        %v3751 = vld [vmem:[#allocation2 + $0x20] sm:$0xff]
        %v3752 = vld [vmem:[#allocation2 + $0x28] sm:$0xff]
        %v3753 = vld [vmem:[#allocation2 + $0x30] sm:$0xff]
        %v3754 = vld [vmem:[#allocation2 + $0x38] sm:$0xff]
        %v3755 = vld [vmem:[#allocation2 + $0x40] sm:$0xff]
        %v3756 = vld [vmem:[#allocation2 + $0x48] sm:$0xff]
        %v3757 = vld [vmem:[#allocation2 + $0x50] sm:$0xff]
        %v3758 = vld [vmem:[#allocation2 + $0x58] sm:$0xff]
        %v3759 = vld [vmem:[#allocation2 + $0x60] sm:$0xff]
        %v3760 = vld [vmem:[#allocation2 + $0x68] sm:$0xff]
        %v3761 = vld [vmem:[#allocation2 + $0x70] sm:$0xff]
        %v3762 = vld [vmem:[#allocation2 + $0x78] sm:$0xff]
        %v3763 = vld [vmem:[#allocation2 + $0x80] sm:$0xff]
        %v3764 = vld [vmem:[#allocation2 + $0x88] sm:$0xff]
        %v3765 = vld [vmem:[#allocation2 + $0x90] sm:$0xff]
        %v3766 = vld [vmem:[#allocation2 + $0x98] sm:$0xff]
        %v3767 = vld [vmem:[#allocation2 + $0xa0] sm:$0xff]
        %v3768 = vld [vmem:[#allocation2 + $0xa8] sm:$0xff]
        %v3769 = vld [vmem:[#allocation2 + $0xb0] sm:$0xff]
        %v3770 = vld [vmem:[#allocation2 + $0xb8] sm:$0xff]
        %v3771 = vld [vmem:[#allocation2 + $0xc0] sm:$0xff]
        %v3772 = vld [vmem:[#allocation2 + $0xc8] sm:$0xff]
        %v3773 = vld [vmem:[#allocation2 + $0xd0] sm:$0xff]
        %v3774 = vld [vmem:[#allocation2 + $0xd8] sm:$0xff]
        %v3775 = vld [vmem:[#allocation2 + $0xe0] sm:$0xff]
        %v3776 = vld [vmem:[#allocation2 + $0xe8] sm:$0xff]
        %v3777 = vld [vmem:[#allocation2 + $0xf0] sm:$0xff]
        %v3778 = vld [vmem:[#allocation2 + $0xf8] sm:$0xff]
        %v3779 = vld [vmem:[#allocation2 + $0x100] sm:$0xff]
        %v3780 = vld [vmem:[#allocation2 + $0x108] sm:$0xff]
        %v3781 = vld [vmem:[#allocation2 + $0x110] sm:$0xff]
        %v3782 = vld [vmem:[#allocation2 + $0x118] sm:$0xff]
        %v3783 = vld [vmem:[#allocation2 + $0x120] sm:$0xff]
        %v3784 = vld [vmem:[#allocation2 + $0x128] sm:$0xff]
        %v3785 = vld [vmem:[#allocation2 + $0x130] sm:$0xff]
        %v3786 = vld [vmem:[#allocation2 + $0x138] sm:$0xff]
        %v3787 = vld [vmem:[#allocation2 + $0x140] sm:$0xff]
        %v3788 = vld [vmem:[#allocation2 + $0x148] sm:$0xff]
        %v3789 = vld [vmem:[#allocation2 + $0x150] sm:$0xff]
        %v3790 = vld [vmem:[#allocation2 + $0x158] sm:$0xff]
        %v3791 = vld [vmem:[#allocation2 + $0x160] sm:$0xff]
        %v3792 = vld [vmem:[#allocation2 + $0x168] sm:$0xff]
        %v3793 = vld [vmem:[#allocation2 + $0x170] sm:$0xff]
        %v3794 = vld [vmem:[#allocation2 + $0x178] sm:$0xff]
        %v3795 = vld [vmem:[#allocation2 + $0x180] sm:$0xff]
        %v3796 = vld [vmem:[#allocation2 + $0x188] sm:$0xff]
        %v3797 = vld [vmem:[#allocation2 + $0x190] sm:$0xff]
        %v3798 = vld [vmem:[#allocation2 + $0x198] sm:$0xff]
        %v3799 = vld [vmem:[#allocation2 + $0x1a0] sm:$0xff]
        %v3800 = vld [vmem:[#allocation2 + $0x1a8] sm:$0xff]
        %v3801 = vld [vmem:[#allocation2 + $0x1b0] sm:$0xff]
        %v3802 = vld [vmem:[#allocation2 + $0x1b8] sm:$0xff]
        %v3803 = vld [vmem:[#allocation2 + $0x1c0] sm:$0xff]
        %v3804 = vld [vmem:[#allocation2 + $0x1c8] sm:$0xff]
        %v3805 = vld [vmem:[#allocation2 + $0x1d0] sm:$0xff]
        %v3806 = vld [vmem:[#allocation2 + $0x1d8] sm:$0xff]
        %v3807 = vld [vmem:[#allocation2 + $0x1e0] sm:$0xff]
        %v3808 = vld [vmem:[#allocation2 + $0x1e8] sm:$0xff]
        %v3809 = vld [vmem:[#allocation2 + $0x1f0] sm:$0xff]
        %v3810 = vld [vmem:[#allocation2 + $0x1f8] sm:$0xff]
        %s3811 = scalar_lea.vmem %s1001, 256 [#allocation3]
        %v3812 = vld [vmem:[%s3811] sm:$0xf]
        %v3813 = vld [vmem:[%s3811 + $0x4] sm:$0xf]
        %v3814 = vld [vmem:[%s3811 + $0x8] sm:$0xf]
        %v3815 = vld [vmem:[%s3811 + $0xc] sm:$0xf]
        %v3816 = vld [vmem:[%s3811 + $0x10] sm:$0xf]
        %v3817 = vld [vmem:[%s3811 + $0x14] sm:$0xf]
        %v3818 = vld [vmem:[%s3811 + $0x18] sm:$0xf]
        %v3819 = vld [vmem:[%s3811 + $0x1c] sm:$0xf]
        %v3820 = vld [vmem:[%s3811 + $0x20] sm:$0xf]
        %v3821 = vld [vmem:[%s3811 + $0x24] sm:$0xf]
        %v3822 = vld [vmem:[%s3811 + $0x28] sm:$0xf]
        %v3823 = vld [vmem:[%s3811 + $0x2c] sm:$0xf]
        %v3824 = vld [vmem:[%s3811 + $0x30] sm:$0xf]
        %v3825 = vld [vmem:[%s3811 + $0x34] sm:$0xf]
        %v3826 = vld [vmem:[%s3811 + $0x38] sm:$0xf]
        %v3827 = vld [vmem:[%s3811 + $0x3c] sm:$0xf]
        %v3828 = vld [vmem:[%s3811 + $0x40] sm:$0xf]
        %v3829 = vld [vmem:[%s3811 + $0x44] sm:$0xf]
        %v3830 = vld [vmem:[%s3811 + $0x48] sm:$0xf]
        %v3831 = vld [vmem:[%s3811 + $0x4c] sm:$0xf]
        %v3832 = vld [vmem:[%s3811 + $0x50] sm:$0xf]
        %v3833 = vld [vmem:[%s3811 + $0x54] sm:$0xf]
        %v3834 = vld [vmem:[%s3811 + $0x58] sm:$0xf]
        %v3835 = vld [vmem:[%s3811 + $0x5c] sm:$0xf]
        %v3836 = vld [vmem:[%s3811 + $0x60] sm:$0xf]
        %v3837 = vld [vmem:[%s3811 + $0x64] sm:$0xf]
        %v3838 = vld [vmem:[%s3811 + $0x68] sm:$0xf]
        %v3839 = vld [vmem:[%s3811 + $0x6c] sm:$0xf]
        %v3840 = vld [vmem:[%s3811 + $0x70] sm:$0xf]
        %v3841 = vld [vmem:[%s3811 + $0x74] sm:$0xf]
        %v3842 = vld [vmem:[%s3811 + $0x78] sm:$0xf]
        %v3843 = vld [vmem:[%s3811 + $0x7c] sm:$0xf]
        %v3844 = vld [vmem:[%s3811 + $0x80] sm:$0xf]
        %v3845 = vld [vmem:[%s3811 + $0x84] sm:$0xf]
        %v3846 = vld [vmem:[%s3811 + $0x88] sm:$0xf]
        %v3847 = vld [vmem:[%s3811 + $0x8c] sm:$0xf]
        %v3848 = vld [vmem:[%s3811 + $0x90] sm:$0xf]
        %v3849 = vld [vmem:[%s3811 + $0x94] sm:$0xf]
        %v3850 = vld [vmem:[%s3811 + $0x98] sm:$0xf]
        %v3851 = vld [vmem:[%s3811 + $0x9c] sm:$0xf]
        %v3852 = vld [vmem:[%s3811 + $0xa0] sm:$0xf]
        %v3853 = vld [vmem:[%s3811 + $0xa4] sm:$0xf]
        %v3854 = vld [vmem:[%s3811 + $0xa8] sm:$0xf]
        %v3855 = vld [vmem:[%s3811 + $0xac] sm:$0xf]
        %v3856 = vld [vmem:[%s3811 + $0xb0] sm:$0xf]
        %v3857 = vld [vmem:[%s3811 + $0xb4] sm:$0xf]
        %v3858 = vld [vmem:[%s3811 + $0xb8] sm:$0xf]
        %v3859 = vld [vmem:[%s3811 + $0xbc] sm:$0xf]
        %v3860 = vld [vmem:[%s3811 + $0xc0] sm:$0xf]
        %v3861 = vld [vmem:[%s3811 + $0xc4] sm:$0xf]
        %v3862 = vld [vmem:[%s3811 + $0xc8] sm:$0xf]
        %v3863 = vld [vmem:[%s3811 + $0xcc] sm:$0xf]
        %v3864 = vld [vmem:[%s3811 + $0xd0] sm:$0xf]
        %v3865 = vld [vmem:[%s3811 + $0xd4] sm:$0xf]
        %v3866 = vld [vmem:[%s3811 + $0xd8] sm:$0xf]
        %v3867 = vld [vmem:[%s3811 + $0xdc] sm:$0xf]
        %v3868 = vld [vmem:[%s3811 + $0xe0] sm:$0xf]
        %v3869 = vld [vmem:[%s3811 + $0xe4] sm:$0xf]
        %v3870 = vld [vmem:[%s3811 + $0xe8] sm:$0xf]
        %v3871 = vld [vmem:[%s3811 + $0xec] sm:$0xf]
        %v3872 = vld [vmem:[%s3811 + $0xf0] sm:$0xf]
        %v3873 = vld [vmem:[%s3811 + $0xf4] sm:$0xf]
        %v3874 = vld [vmem:[%s3811 + $0xf8] sm:$0xf]
        %v3875 = vld [vmem:[%s3811 + $0xfc] sm:$0xf]
        %v3876 = vunpack.c.l.b16 %v3302
        %v3877 = vunpack.c.h.b16 %v3302
        %v3878 = vunpack.c.l.b16 %v3306
        %v3879 = vunpack.c.h.b16 %v3306
        %v3880 = vunpack.c.l.b16 %v3309
        %v3881 = vunpack.c.h.b16 %v3309
        %v3882 = vunpack.c.l.b16 %v3312
        %v3883 = vunpack.c.h.b16 %v3312
        %v3884 = vunpack.c.l.b16 %v3316
        %v3885 = vunpack.c.h.b16 %v3316
        %v3886 = vunpack.c.l.b16 %v3320
        %v3887 = vunpack.c.h.b16 %v3320
        %v3888 = vunpack.c.l.b16 %v3323
        %v3889 = vunpack.c.h.b16 %v3323
        %v3890 = vunpack.c.l.b16 %v3326
        %v3891 = vunpack.c.h.b16 %v3326
        %v3892 = vunpack.c.l.b16 %v3330
        %v3893 = vunpack.c.h.b16 %v3330
        %v3894 = vunpack.c.l.b16 %v3334
        %v3895 = vunpack.c.h.b16 %v3334
        %v3896 = vunpack.c.l.b16 %v3337
        %v3897 = vunpack.c.h.b16 %v3337
        %v3898 = vunpack.c.l.b16 %v3340
        %v3899 = vunpack.c.h.b16 %v3340
        %v3900 = vunpack.c.l.b16 %v3344
        %v3901 = vunpack.c.h.b16 %v3344
        %v3902 = vunpack.c.l.b16 %v3348
        %v3903 = vunpack.c.h.b16 %v3348
        %v3904 = vunpack.c.l.b16 %v3351
        %v3905 = vunpack.c.h.b16 %v3351
        %v3906 = vunpack.c.l.b16 %v3354
        %v3907 = vunpack.c.h.b16 %v3354
        %v3908 = vunpack.c.l.b16 %v3358
        %v3909 = vunpack.c.h.b16 %v3358
        %v3910 = vunpack.c.l.b16 %v3362
        %v3911 = vunpack.c.h.b16 %v3362
        %v3912 = vunpack.c.l.b16 %v3365
        %v3913 = vunpack.c.h.b16 %v3365
        %v3914 = vunpack.c.l.b16 %v3368
        %v3915 = vunpack.c.h.b16 %v3368
        %v3916 = vunpack.c.l.b16 %v3372
        %v3917 = vunpack.c.h.b16 %v3372
        %v3918 = vunpack.c.l.b16 %v3376
        %v3919 = vunpack.c.h.b16 %v3376
        %v3920 = vunpack.c.l.b16 %v3379
        %v3921 = vunpack.c.h.b16 %v3379
        %v3922 = vunpack.c.l.b16 %v3382
        %v3923 = vunpack.c.h.b16 %v3382
        %v3924 = vunpack.c.l.b16 %v3386
        %v3925 = vunpack.c.h.b16 %v3386
        %v3926 = vunpack.c.l.b16 %v3390
        %v3927 = vunpack.c.h.b16 %v3390
        %v3928 = vunpack.c.l.b16 %v3393
        %v3929 = vunpack.c.h.b16 %v3393
        %v3930 = vunpack.c.l.b16 %v3396
        %v3931 = vunpack.c.h.b16 %v3396
        %v3932 = vunpack.c.l.b16 %v3400
        %v3933 = vunpack.c.h.b16 %v3400
        %v3934 = vunpack.c.l.b16 %v3404
        %v3935 = vunpack.c.h.b16 %v3404
        %v3936 = vunpack.c.l.b16 %v3407
        %v3937 = vunpack.c.h.b16 %v3407
        %v3938 = vunpack.c.l.b16 %v3410
        %v3939 = vunpack.c.h.b16 %v3410
        %v3940 = vunpack.c.l.b16 %v3414
        %v3941 = vunpack.c.h.b16 %v3414
        %v3942 = vunpack.c.l.b16 %v3418
        %v3943 = vunpack.c.h.b16 %v3418
        %v3944 = vunpack.c.l.b16 %v3421
        %v3945 = vunpack.c.h.b16 %v3421
        %v3946 = vunpack.c.l.b16 %v3424
        %v3947 = vunpack.c.h.b16 %v3424
        %v3948 = vunpack.c.l.b16 %v3428
        %v3949 = vunpack.c.h.b16 %v3428
        %v3950 = vunpack.c.l.b16 %v3432
        %v3951 = vunpack.c.h.b16 %v3432
        %v3952 = vunpack.c.l.b16 %v3435
        %v3953 = vunpack.c.h.b16 %v3435
        %v3954 = vunpack.c.l.b16 %v3438
        %v3955 = vunpack.c.h.b16 %v3438
        %v3956 = vunpack.c.l.b16 %v3442
        %v3957 = vunpack.c.h.b16 %v3442
        %v3958 = vunpack.c.l.b16 %v3446
        %v3959 = vunpack.c.h.b16 %v3446
        %v3960 = vunpack.c.l.b16 %v3449
        %v3961 = vunpack.c.h.b16 %v3449
        %v3962 = vunpack.c.l.b16 %v3452
        %v3963 = vunpack.c.h.b16 %v3452
        %v3964 = vunpack.c.l.b16 %v3456
        %v3965 = vunpack.c.h.b16 %v3456
        %v3966 = vunpack.c.l.b16 %v3460
        %v3967 = vunpack.c.h.b16 %v3460
        %v3968 = vunpack.c.l.b16 %v3463
        %v3969 = vunpack.c.h.b16 %v3463
        %v3970 = vunpack.c.l.b16 %v3466
        %v3971 = vunpack.c.h.b16 %v3466
        %v3972 = vunpack.c.l.b16 %v3470
        %v3973 = vunpack.c.h.b16 %v3470
        %v3974 = vunpack.c.l.b16 %v3474
        %v3975 = vunpack.c.h.b16 %v3474
        %v3976 = vunpack.c.l.b16 %v3477
        %v3977 = vunpack.c.h.b16 %v3477
        %v3978 = vunpack.c.l.b16 %v3480
        %v3979 = vunpack.c.h.b16 %v3480
        %v3980 = vunpack.c.l.b16 %v3484
        %v3981 = vunpack.c.h.b16 %v3484
        %v3982 = vunpack.c.l.b16 %v3488
        %v3983 = vunpack.c.h.b16 %v3488
        %v3984 = vunpack.c.l.b16 %v3491
        %v3985 = vunpack.c.h.b16 %v3491
        %v3986 = vunpack.c.l.b16 %v3494
        %v3987 = vunpack.c.h.b16 %v3494
        %v3988 = vunpack.c.l.b16 %v3498
        %v3989 = vunpack.c.h.b16 %v3498
        %v3990 = vunpack.c.l.b16 %v3502
        %v3991 = vunpack.c.h.b16 %v3502
        %v3992 = vunpack.c.l.b16 %v3505
        %v3993 = vunpack.c.h.b16 %v3505
        %v3994 = vunpack.c.l.b16 %v3508
        %v3995 = vunpack.c.h.b16 %v3508
        %v3996 = vunpack.c.l.b16 %v3512
        %v3997 = vunpack.c.h.b16 %v3512
        %v3998 = vunpack.c.l.b16 %v3516
        %v3999 = vunpack.c.h.b16 %v3516
        %v4000 = vunpack.c.l.b16 %v3519
        %v4001 = vunpack.c.h.b16 %v3519
        %v4002 = vunpack.c.l.b16 %v3522
        %v4003 = vunpack.c.h.b16 %v3522
        %v4004 = vunpack.c.l.b16 %v3526
        %v4005 = vunpack.c.h.b16 %v3526
        %v4006 = vunpack.c.l.b16 %v3530
        %v4007 = vunpack.c.h.b16 %v3530
        %v4008 = vunpack.c.l.b16 %v3533
        %v4009 = vunpack.c.h.b16 %v3533
        %v4010 = vunpack.c.l.b16 %v3536
        %v4011 = vunpack.c.h.b16 %v3536
        %v4012 = vunpack.c.l.b16 %v3540
        %v4013 = vunpack.c.h.b16 %v3540
        %v4014 = vunpack.c.l.b16 %v3544
        %v4015 = vunpack.c.h.b16 %v3544
        %v4016 = vunpack.c.l.b16 %v3547
        %v4017 = vunpack.c.h.b16 %v3547
        %v4018 = vunpack.c.l.b16 %v3550
        %v4019 = vunpack.c.h.b16 %v3550
        %v4020 = vunpack.c.l.b16 %v3554
        %v4021 = vunpack.c.h.b16 %v3554
        %v4022 = vunpack.c.l.b16 %v3558
        %v4023 = vunpack.c.h.b16 %v3558
        %v4024 = vunpack.c.l.b16 %v3561
        %v4025 = vunpack.c.h.b16 %v3561
        %v4026 = vunpack.c.l.b16 %v3564
        %v4027 = vunpack.c.h.b16 %v3564
        %v4028 = vunpack.c.l.b16 %v3568
        %v4029 = vunpack.c.h.b16 %v3568
        %v4030 = vunpack.c.l.b16 %v3572
        %v4031 = vunpack.c.h.b16 %v3572
        %v4032 = vunpack.c.l.b16 %v3575
        %v4033 = vunpack.c.h.b16 %v3575
        %v4034 = vunpack.c.l.b16 %v3578
        %v4035 = vunpack.c.h.b16 %v3578
        %v4036 = vunpack.c.l.b16 %v3582
        %v4037 = vunpack.c.h.b16 %v3582
        %v4038 = vunpack.c.l.b16 %v3586
        %v4039 = vunpack.c.h.b16 %v3586
        %v4040 = vunpack.c.l.b16 %v3589
        %v4041 = vunpack.c.h.b16 %v3589
        %v4042 = vunpack.c.l.b16 %v3592
        %v4043 = vunpack.c.h.b16 %v3592
        %v4044 = vunpack.c.l.b16 %v3596
        %v4045 = vunpack.c.h.b16 %v3596
        %v4046 = vunpack.c.l.b16 %v3600
        %v4047 = vunpack.c.h.b16 %v3600
        %v4048 = vunpack.c.l.b16 %v3603
        %v4049 = vunpack.c.h.b16 %v3603
        %v4050 = vunpack.c.l.b16 %v3606
        %v4051 = vunpack.c.h.b16 %v3606
        %v4052 = vunpack.c.l.b16 %v3610
        %v4053 = vunpack.c.h.b16 %v3610
        %v4054 = vunpack.c.l.b16 %v3614
        %v4055 = vunpack.c.h.b16 %v3614
        %v4056 = vunpack.c.l.b16 %v3617
        %v4057 = vunpack.c.h.b16 %v3617
        %v4058 = vunpack.c.l.b16 %v3620
        %v4059 = vunpack.c.h.b16 %v3620
        %v4060 = vunpack.c.l.b16 %v3624
        %v4061 = vunpack.c.h.b16 %v3624
        %v4062 = vunpack.c.l.b16 %v3628
        %v4063 = vunpack.c.h.b16 %v3628
        %v4064 = vunpack.c.l.b16 %v3631
        %v4065 = vunpack.c.h.b16 %v3631
        %v4066 = vunpack.c.l.b16 %v3634
        %v4067 = vunpack.c.h.b16 %v3634
        %v4068 = vunpack.c.l.b16 %v3638
        %v4069 = vunpack.c.h.b16 %v3638
        %v4070 = vunpack.c.l.b16 %v3642
        %v4071 = vunpack.c.h.b16 %v3642
        %v4072 = vunpack.c.l.b16 %v3645
        %v4073 = vunpack.c.h.b16 %v3645
        %v4074 = vunpack.c.l.b16 %v3648
        %v4075 = vunpack.c.h.b16 %v3648
        %v4076 = vunpack.c.l.b16 %v3652
        %v4077 = vunpack.c.h.b16 %v3652
        %v4078 = vunpack.c.l.b16 %v3656
        %v4079 = vunpack.c.h.b16 %v3656
        %v4080 = vunpack.c.l.b16 %v3659
        %v4081 = vunpack.c.h.b16 %v3659
        %v4082 = vunpack.c.l.b16 %v3662
        %v4083 = vunpack.c.h.b16 %v3662
        %v4084 = vunpack.c.l.b16 %v3666
        %v4085 = vunpack.c.h.b16 %v3666
        %v4086 = vunpack.c.l.b16 %v3670
        %v4087 = vunpack.c.h.b16 %v3670
        %v4088 = vunpack.c.l.b16 %v3673
        %v4089 = vunpack.c.h.b16 %v3673
        %v4090 = vunpack.c.l.b16 %v3676
        %v4091 = vunpack.c.h.b16 %v3676
        %v4092 = vunpack.c.l.b16 %v3680
        %v4093 = vunpack.c.h.b16 %v3680
        %v4094 = vunpack.c.l.b16 %v3684
        %v4095 = vunpack.c.h.b16 %v3684
        %v4096 = vunpack.c.l.b16 %v3687
        %v4097 = vunpack.c.h.b16 %v3687
        %v4098 = vunpack.c.l.b16 %v3690
        %v4099 = vunpack.c.h.b16 %v3690
        %v4100 = vunpack.c.l.b16 %v3694
        %v4101 = vunpack.c.h.b16 %v3694
        %v4102 = vunpack.c.l.b16 %v3698
        %v4103 = vunpack.c.h.b16 %v3698
        %v4104 = vunpack.c.l.b16 %v3701
        %v4105 = vunpack.c.h.b16 %v3701
        %v4106 = vunpack.c.l.b16 %v3704
        %v4107 = vunpack.c.h.b16 %v3704
        %v4108 = vunpack.c.l.b16 %v3708
        %v4109 = vunpack.c.h.b16 %v3708
        %v4110 = vunpack.c.l.b16 %v3712
        %v4111 = vunpack.c.h.b16 %v3712
        %v4112 = vunpack.c.l.b16 %v3715
        %v4113 = vunpack.c.h.b16 %v3715
        %v4114 = vunpack.c.l.b16 %v3718
        %v4115 = vunpack.c.h.b16 %v3718
        %v4116 = vunpack.c.l.b16 %v3722
        %v4117 = vunpack.c.h.b16 %v3722
        %v4118 = vunpack.c.l.b16 %v3726
        %v4119 = vunpack.c.h.b16 %v3726
        %v4120 = vunpack.c.l.b16 %v3729
        %v4121 = vunpack.c.h.b16 %v3729
        %v4122 = vunpack.c.l.b16 %v3732
        %v4123 = vunpack.c.h.b16 %v3732
        %v4124 = vunpack.c.l.b16 %v3736
        %v4125 = vunpack.c.h.b16 %v3736
        %v4126 = vunpack.c.l.b16 %v3740
        %v4127 = vunpack.c.h.b16 %v3740
        %v4128 = vunpack.c.l.b16 %v3743
        %v4129 = vunpack.c.h.b16 %v3743
        %v4130 = vunpack.c.l.b16 %v3746
        %v4131 = vunpack.c.h.b16 %v3746
        %v4132 = vpack.c.b16 %v3880, %v3876
        %v4133 = vpack.c.b16 %v3881, %v3877
        %v4134 = vpack.c.b16 %v3882, %v3878
        %v4135 = vpack.c.b16 %v3883, %v3879
        %v4136 = vpack.c.b16 %v3888, %v3884
        %v4137 = vpack.c.b16 %v3889, %v3885
        %v4138 = vpack.c.b16 %v3890, %v3886
        %v4139 = vpack.c.b16 %v3891, %v3887
        %v4140 = vpack.c.b16 %v3896, %v3892
        %v4141 = vpack.c.b16 %v3897, %v3893
        %v4142 = vpack.c.b16 %v3898, %v3894
        %v4143 = vpack.c.b16 %v3899, %v3895
        %v4144 = vpack.c.b16 %v3904, %v3900
        %v4145 = vpack.c.b16 %v3905, %v3901
        %v4146 = vpack.c.b16 %v3906, %v3902
        %v4147 = vpack.c.b16 %v3907, %v3903
        %v4148 = vpack.c.b16 %v3912, %v3908
        %v4149 = vpack.c.b16 %v3913, %v3909
        %v4150 = vpack.c.b16 %v3914, %v3910
        %v4151 = vpack.c.b16 %v3915, %v3911
        %v4152 = vpack.c.b16 %v3920, %v3916
        %v4153 = vpack.c.b16 %v3921, %v3917
        %v4154 = vpack.c.b16 %v3922, %v3918
        %v4155 = vpack.c.b16 %v3923, %v3919
        %v4156 = vpack.c.b16 %v3928, %v3924
        %v4157 = vpack.c.b16 %v3929, %v3925
        %v4158 = vpack.c.b16 %v3930, %v3926
        %v4159 = vpack.c.b16 %v3931, %v3927
        %v4160 = vpack.c.b16 %v3936, %v3932
        %v4161 = vpack.c.b16 %v3937, %v3933
        %v4162 = vpack.c.b16 %v3938, %v3934
        %v4163 = vpack.c.b16 %v3939, %v3935
        %v4164 = vpack.c.b16 %v3944, %v3940
        %v4165 = vpack.c.b16 %v3945, %v3941
        %v4166 = vpack.c.b16 %v3946, %v3942
        %v4167 = vpack.c.b16 %v3947, %v3943
        %v4168 = vpack.c.b16 %v3952, %v3948
        %v4169 = vpack.c.b16 %v3953, %v3949
        %v4170 = vpack.c.b16 %v3954, %v3950
        %v4171 = vpack.c.b16 %v3955, %v3951
        %v4172 = vpack.c.b16 %v3960, %v3956
        %v4173 = vpack.c.b16 %v3961, %v3957
        %v4174 = vpack.c.b16 %v3962, %v3958
        %v4175 = vpack.c.b16 %v3963, %v3959
        %v4176 = vpack.c.b16 %v3968, %v3964
        %v4177 = vpack.c.b16 %v3969, %v3965
        %v4178 = vpack.c.b16 %v3970, %v3966
        %v4179 = vpack.c.b16 %v3971, %v3967
        %v4180 = vpack.c.b16 %v3976, %v3972
        %v4181 = vpack.c.b16 %v3977, %v3973
        %v4182 = vpack.c.b16 %v3978, %v3974
        %v4183 = vpack.c.b16 %v3979, %v3975
        %v4184 = vpack.c.b16 %v3984, %v3980
        %v4185 = vpack.c.b16 %v3985, %v3981
        %v4186 = vpack.c.b16 %v3986, %v3982
        %v4187 = vpack.c.b16 %v3987, %v3983
        %v4188 = vpack.c.b16 %v3992, %v3988
        %v4189 = vpack.c.b16 %v3993, %v3989
        %v4190 = vpack.c.b16 %v3994, %v3990
        %v4191 = vpack.c.b16 %v3995, %v3991
        %v4192 = vpack.c.b16 %v4000, %v3996
        %v4193 = vpack.c.b16 %v4001, %v3997
        %v4194 = vpack.c.b16 %v4002, %v3998
        %v4195 = vpack.c.b16 %v4003, %v3999
        %v4196 = vpack.c.b16 %v4008, %v4004
        %v4197 = vpack.c.b16 %v4009, %v4005
        %v4198 = vpack.c.b16 %v4010, %v4006
        %v4199 = vpack.c.b16 %v4011, %v4007
        %v4200 = vpack.c.b16 %v4016, %v4012
        %v4201 = vpack.c.b16 %v4017, %v4013
        %v4202 = vpack.c.b16 %v4018, %v4014
        %v4203 = vpack.c.b16 %v4019, %v4015
        %v4204 = vpack.c.b16 %v4024, %v4020
        %v4205 = vpack.c.b16 %v4025, %v4021
        %v4206 = vpack.c.b16 %v4026, %v4022
        %v4207 = vpack.c.b16 %v4027, %v4023
        %v4208 = vpack.c.b16 %v4032, %v4028
        %v4209 = vpack.c.b16 %v4033, %v4029
        %v4210 = vpack.c.b16 %v4034, %v4030
        %v4211 = vpack.c.b16 %v4035, %v4031
        %v4212 = vpack.c.b16 %v4040, %v4036
        %v4213 = vpack.c.b16 %v4041, %v4037
        %v4214 = vpack.c.b16 %v4042, %v4038
        %v4215 = vpack.c.b16 %v4043, %v4039
        %v4216 = vpack.c.b16 %v4048, %v4044
        %v4217 = vpack.c.b16 %v4049, %v4045
        %v4218 = vpack.c.b16 %v4050, %v4046
        %v4219 = vpack.c.b16 %v4051, %v4047
        %v4220 = vpack.c.b16 %v4056, %v4052
        %v4221 = vpack.c.b16 %v4057, %v4053
        %v4222 = vpack.c.b16 %v4058, %v4054
        %v4223 = vpack.c.b16 %v4059, %v4055
        %v4224 = vpack.c.b16 %v4064, %v4060
        %v4225 = vpack.c.b16 %v4065, %v4061
        %v4226 = vpack.c.b16 %v4066, %v4062
        %v4227 = vpack.c.b16 %v4067, %v4063
        %v4228 = vpack.c.b16 %v4072, %v4068
        %v4229 = vpack.c.b16 %v4073, %v4069
        %v4230 = vpack.c.b16 %v4074, %v4070
        %v4231 = vpack.c.b16 %v4075, %v4071
        %v4232 = vpack.c.b16 %v4080, %v4076
        %v4233 = vpack.c.b16 %v4081, %v4077
        %v4234 = vpack.c.b16 %v4082, %v4078
        %v4235 = vpack.c.b16 %v4083, %v4079
        %v4236 = vpack.c.b16 %v4088, %v4084
        %v4237 = vpack.c.b16 %v4089, %v4085
        %v4238 = vpack.c.b16 %v4090, %v4086
        %v4239 = vpack.c.b16 %v4091, %v4087
        %v4240 = vpack.c.b16 %v4096, %v4092
        %v4241 = vpack.c.b16 %v4097, %v4093
        %v4242 = vpack.c.b16 %v4098, %v4094
        %v4243 = vpack.c.b16 %v4099, %v4095
        %v4244 = vpack.c.b16 %v4104, %v4100
        %v4245 = vpack.c.b16 %v4105, %v4101
        %v4246 = vpack.c.b16 %v4106, %v4102
        %v4247 = vpack.c.b16 %v4107, %v4103
        %v4248 = vpack.c.b16 %v4112, %v4108
        %v4249 = vpack.c.b16 %v4113, %v4109
        %v4250 = vpack.c.b16 %v4114, %v4110
        %v4251 = vpack.c.b16 %v4115, %v4111
        %v4252 = vpack.c.b16 %v4120, %v4116
        %v4253 = vpack.c.b16 %v4121, %v4117
        %v4254 = vpack.c.b16 %v4122, %v4118
        %v4255 = vpack.c.b16 %v4123, %v4119
        %v4256 = vpack.c.b16 %v4128, %v4124
        %v4257 = vpack.c.b16 %v4129, %v4125
        %v4258 = vpack.c.b16 %v4130, %v4126
        %v4259 = vpack.c.b16 %v4131, %v4127
        %v4452 = vunpack.c.l.b16 %v3812
        %v4453 = vunpack.c.l.b16 %v3813
        %v4454 = vunpack.c.l.b16 %v3814
        %v4455 = vunpack.c.l.b16 %v3815
        %v4456 = vunpack.c.l.b16 %v3816
        %v4457 = vunpack.c.l.b16 %v3817
        %v4458 = vunpack.c.l.b16 %v3818
        %v4459 = vunpack.c.l.b16 %v3819
        %v4460 = vunpack.c.l.b16 %v3820
        %v4461 = vunpack.c.l.b16 %v3821
        %v4462 = vunpack.c.l.b16 %v3822
        %v4463 = vunpack.c.l.b16 %v3823
        %v4464 = vunpack.c.l.b16 %v3824
        %v4465 = vunpack.c.l.b16 %v3825
        %v4466 = vunpack.c.l.b16 %v3826
        %v4467 = vunpack.c.l.b16 %v3827
        %v4468 = vunpack.c.l.b16 %v3828
        %v4469 = vunpack.c.l.b16 %v3829
        %v4470 = vunpack.c.l.b16 %v3830
        %v4471 = vunpack.c.l.b16 %v3831
        %v4472 = vunpack.c.l.b16 %v3832
        %v4473 = vunpack.c.l.b16 %v3833
        %v4474 = vunpack.c.l.b16 %v3834
        %v4475 = vunpack.c.l.b16 %v3835
        %v4476 = vunpack.c.l.b16 %v3836
        %v4477 = vunpack.c.l.b16 %v3837
        %v4478 = vunpack.c.l.b16 %v3838
        %v4479 = vunpack.c.l.b16 %v3839
        %v4480 = vunpack.c.l.b16 %v3840
        %v4481 = vunpack.c.l.b16 %v3841
        %v4482 = vunpack.c.l.b16 %v3842
        %v4483 = vunpack.c.l.b16 %v3843
        %v4484 = vunpack.c.l.b16 %v3844
        %v4485 = vunpack.c.l.b16 %v3845
        %v4486 = vunpack.c.l.b16 %v3846
        %v4487 = vunpack.c.l.b16 %v3847
        %v4488 = vunpack.c.l.b16 %v3848
        %v4489 = vunpack.c.l.b16 %v3849
        %v4490 = vunpack.c.l.b16 %v3850
        %v4491 = vunpack.c.l.b16 %v3851
        %v4492 = vunpack.c.l.b16 %v3852
        %v4493 = vunpack.c.l.b16 %v3853
        %v4494 = vunpack.c.l.b16 %v3854
        %v4495 = vunpack.c.l.b16 %v3855
        %v4496 = vunpack.c.l.b16 %v3856
        %v4497 = vunpack.c.l.b16 %v3857
        %v4498 = vunpack.c.l.b16 %v3858
        %v4499 = vunpack.c.l.b16 %v3859
        %v4500 = vunpack.c.l.b16 %v3860
        %v4501 = vunpack.c.l.b16 %v3861
        %v4502 = vunpack.c.l.b16 %v3862
        %v4503 = vunpack.c.l.b16 %v3863
        %v4504 = vunpack.c.l.b16 %v3864
        %v4505 = vunpack.c.l.b16 %v3865
        %v4506 = vunpack.c.l.b16 %v3866
        %v4507 = vunpack.c.l.b16 %v3867
        %v4508 = vunpack.c.l.b16 %v3868
        %v4509 = vunpack.c.l.b16 %v3869
        %v4510 = vunpack.c.l.b16 %v3870
        %v4511 = vunpack.c.l.b16 %v3871
        %v4512 = vunpack.c.l.b16 %v3872
        %v4513 = vunpack.c.l.b16 %v3873
        %v4514 = vunpack.c.l.b16 %v3874
        %v4515 = vunpack.c.l.b16 %v3875
        %v4516 = vpack.c.b16 %v4453, %v4452
        %v4517 = vpack.c.b16 %v4455, %v4454
        %v4518 = vpack.c.b16 %v4457, %v4456
        %v4519 = vpack.c.b16 %v4459, %v4458
        %v4520 = vpack.c.b16 %v4461, %v4460
        %v4521 = vpack.c.b16 %v4463, %v4462
        %v4522 = vpack.c.b16 %v4465, %v4464
        %v4523 = vpack.c.b16 %v4467, %v4466
        %v4524 = vpack.c.b16 %v4469, %v4468
        %v4525 = vpack.c.b16 %v4471, %v4470
        %v4526 = vpack.c.b16 %v4473, %v4472
        %v4527 = vpack.c.b16 %v4475, %v4474
        %v4528 = vpack.c.b16 %v4477, %v4476
        %v4529 = vpack.c.b16 %v4479, %v4478
        %v4530 = vpack.c.b16 %v4481, %v4480
        %v4531 = vpack.c.b16 %v4483, %v4482
        %v4532 = vpack.c.b16 %v4485, %v4484
        %v4533 = vpack.c.b16 %v4487, %v4486
        %v4534 = vpack.c.b16 %v4489, %v4488
        %v4535 = vpack.c.b16 %v4491, %v4490
        %v4536 = vpack.c.b16 %v4493, %v4492
        %v4537 = vpack.c.b16 %v4495, %v4494
        %v4538 = vpack.c.b16 %v4497, %v4496
        %v4539 = vpack.c.b16 %v4499, %v4498
        %v4540 = vpack.c.b16 %v4501, %v4500
        %v4541 = vpack.c.b16 %v4503, %v4502
        %v4542 = vpack.c.b16 %v4505, %v4504
        %v4543 = vpack.c.b16 %v4507, %v4506
        %v4544 = vpack.c.b16 %v4509, %v4508
        %v4545 = vpack.c.b16 %v4511, %v4510
        %v4546 = vpack.c.b16 %v4513, %v4512
        %v4547 = vpack.c.b16 %v4515, %v4514
        %4580 = vmatprep.subr.bf16.mxu0 0
        %4581 = vmatpush1.bf16.msra.mxu0 %v4516
        %4582 = vmatprep.subr.bf16.mxu0 0
        %4583 = vmatpush1.bf16.msra.mxu0 %v4517
        %4584 = vmatprep.subr.bf16.mxu0 0
        %4585 = vmatpush1.bf16.msra.mxu0 %v4518
        %4586 = vmatprep.subr.bf16.mxu0 0
        %4587 = vmatpush1.bf16.msra.mxu0 %v4519
        %4588 = vmatprep.subr.bf16.mxu0 0
        %4589 = vmatpush1.bf16.msra.mxu0 %v4520
        %4590 = vmatprep.subr.bf16.mxu0 0
        %4591 = vmatpush1.bf16.msra.mxu0 %v4521
        %4592 = vmatprep.subr.bf16.mxu0 0
        %4593 = vmatpush1.bf16.msra.mxu0 %v4522
        %4594 = vmatprep.subr.bf16.mxu0 0
        %4595 = vmatpush1.bf16.msra.mxu0 %v4523
        %4596 = vmatprep.subr.bf16.mxu0 0
        %4597 = vmatpush1.bf16.msra.mxu0 %v4524
        %4598 = vmatprep.subr.bf16.mxu0 0
        %4599 = vmatpush1.bf16.msra.mxu0 %v4525
        %4600 = vmatprep.subr.bf16.mxu0 0
        %4601 = vmatpush1.bf16.msra.mxu0 %v4526
        %4602 = vmatprep.subr.bf16.mxu0 0
        %4603 = vmatpush1.bf16.msra.mxu0 %v4527
        %4604 = vmatprep.subr.bf16.mxu0 0
        %4605 = vmatpush1.bf16.msra.mxu0 %v4528
        %4606 = vmatprep.subr.bf16.mxu0 0
        %4607 = vmatpush1.bf16.msra.mxu0 %v4529
        %4608 = vmatprep.subr.bf16.mxu0 0
        %4609 = vmatpush1.bf16.msra.mxu0 %v4530
        %4610 = vmatprep.subr.bf16.mxu0 0
        %4611 = vmatpush1.bf16.msra.mxu0 %v4531
        %4612 = vmatprep.mubr.bf16.mxu0 %v4133
        %4613 = vmatmul.mubr.bf16.gmra.mrb[0].mxu0 %v4132
        %v4614 = vpop.f32.mrb[0].mxu0
        %v4615 = vadd.f32 0.0, %v4614
        %v4616 = vpop.f32.mrb[0].mxu0
        %v4617 = vpop.f32.mrb[0].mxu0
        %v4618 = vadd.f32 0.0, %v4617
        %v4619 = vpop.f32.mrb[0].mxu0
        %4620 = vmatprep.mubr.bf16.mxu0 %v4137
        %4621 = vmatmul.mubr.bf16.gmra.mrb[0].mxu0 %v4136
        %v4622 = vpop.f32.mrb[0].mxu0
        %v4623 = vadd.f32 0.0, %v4622
        %v4624 = vpop.f32.mrb[0].mxu0
        %v4625 = vpop.f32.mrb[0].mxu0
        %v4626 = vadd.f32 0.0, %v4625
        %v4627 = vpop.f32.mrb[0].mxu0
        %4628 = vmatprep.mubr.bf16.mxu0 %v4141
        %4629 = vmatmul.mubr.bf16.gmra.mrb[0].mxu0 %v4140
        %v4630 = vpop.f32.mrb[0].mxu0
        %v4631 = vadd.f32 0.0, %v4630
        %v4632 = vpop.f32.mrb[0].mxu0
        %v4633 = vpop.f32.mrb[0].mxu0
        %v4634 = vadd.f32 0.0, %v4633
        %v4635 = vpop.f32.mrb[0].mxu0
        %4636 = vmatprep.mubr.bf16.mxu0 %v4145
        %4637 = vmatmul.mubr.bf16.gmra.mrb[0].mxu0 %v4144
        %v4638 = vpop.f32.mrb[0].mxu0
        %v4639 = vadd.f32 0.0, %v4638
        %v4640 = vpop.f32.mrb[0].mxu0
        %v4641 = vpop.f32.mrb[0].mxu0
        %v4642 = vadd.f32 0.0, %v4641
        %v4643 = vpop.f32.mrb[0].mxu0
        %4644 = vmatprep.mubr.bf16.mxu0 %v4149
        %4645 = vmatmul.mubr.bf16.gmra.mrb[0].mxu0 %v4148
        %v4646 = vpop.f32.mrb[0].mxu0
        %v4647 = vadd.f32 0.0, %v4646
        %v4648 = vpop.f32.mrb[0].mxu0
        %v4649 = vpop.f32.mrb[0].mxu0
        %v4650 = vadd.f32 0.0, %v4649
        %v4651 = vpop.f32.mrb[0].mxu0
        %4652 = vmatprep.mubr.bf16.mxu0 %v4153
        %4653 = vmatmul.mubr.bf16.gmra.mrb[0].mxu0 %v4152
        %v4654 = vpop.f32.mrb[0].mxu0
        %v4655 = vadd.f32 0.0, %v4654
        %v4656 = vpop.f32.mrb[0].mxu0
        %v4657 = vpop.f32.mrb[0].mxu0
        %v4658 = vadd.f32 0.0, %v4657
        %v4659 = vpop.f32.mrb[0].mxu0
        %4660 = vmatprep.mubr.bf16.mxu0 %v4157
        %4661 = vmatmul.mubr.bf16.gmra.mrb[0].mxu0 %v4156
        %v4662 = vpop.f32.mrb[0].mxu0
        %v4663 = vadd.f32 0.0, %v4662
        %v4664 = vpop.f32.mrb[0].mxu0
        %v4665 = vpop.f32.mrb[0].mxu0
        %v4666 = vadd.f32 0.0, %v4665
        %v4667 = vpop.f32.mrb[0].mxu0
        %4668 = vmatprep.mubr.bf16.mxu0 %v4161
        %4669 = vmatmul.mubr.bf16.gmra.mrb[0].mxu0 %v4160
        %v4670 = vpop.f32.mrb[0].mxu0
        %v4671 = vadd.f32 0.0, %v4670
        %v4672 = vpop.f32.mrb[0].mxu0
        %v4673 = vpop.f32.mrb[0].mxu0
        %v4674 = vadd.f32 0.0, %v4673
        %v4675 = vpop.f32.mrb[0].mxu0
        %4676 = vmatprep.mubr.bf16.mxu0 %v4165
        %4677 = vmatmul.mubr.bf16.gmra.mrb[0].mxu0 %v4164
        %v4678 = vpop.f32.mrb[0].mxu0
        %v4679 = vadd.f32 0.0, %v4678
        %v4680 = vpop.f32.mrb[0].mxu0
        %v4681 = vpop.f32.mrb[0].mxu0
        %v4682 = vadd.f32 0.0, %v4681
        %v4683 = vpop.f32.mrb[0].mxu0
        %4684 = vmatprep.mubr.bf16.mxu0 %v4169
        %4685 = vmatmul.mubr.bf16.gmra.mrb[0].mxu0 %v4168
        %v4686 = vpop.f32.mrb[0].mxu0
        %v4687 = vadd.f32 0.0, %v4686
        %v4688 = vpop.f32.mrb[0].mxu0
        %v4689 = vpop.f32.mrb[0].mxu0
        %v4690 = vadd.f32 0.0, %v4689
        %v4691 = vpop.f32.mrb[0].mxu0
        %4692 = vmatprep.mubr.bf16.mxu0 %v4173
        %4693 = vmatmul.mubr.bf16.gmra.mrb[0].mxu0 %v4172
        %v4694 = vpop.f32.mrb[0].mxu0
        %v4695 = vadd.f32 0.0, %v4694
        %v4696 = vpop.f32.mrb[0].mxu0
        %v4697 = vpop.f32.mrb[0].mxu0
        %v4698 = vadd.f32 0.0, %v4697
        %v4699 = vpop.f32.mrb[0].mxu0
        %4700 = vmatprep.mubr.bf16.mxu0 %v4177
        %4701 = vmatmul.mubr.bf16.gmra.mrb[0].mxu0 %v4176
        %v4702 = vpop.f32.mrb[0].mxu0
        %v4703 = vadd.f32 0.0, %v4702
        %v4704 = vpop.f32.mrb[0].mxu0
        %v4705 = vpop.f32.mrb[0].mxu0
        %v4706 = vadd.f32 0.0, %v4705
        %v4707 = vpop.f32.mrb[0].mxu0
        %4708 = vmatprep.mubr.bf16.mxu0 %v4181
        %4709 = vmatmul.mubr.bf16.gmra.mrb[0].mxu0 %v4180
        %v4710 = vpop.f32.mrb[0].mxu0
        %v4711 = vadd.f32 0.0, %v4710
        %v4712 = vpop.f32.mrb[0].mxu0
        %v4713 = vpop.f32.mrb[0].mxu0
        %v4714 = vadd.f32 0.0, %v4713
        %v4715 = vpop.f32.mrb[0].mxu0
        %4716 = vmatprep.mubr.bf16.mxu0 %v4185
        %4717 = vmatmul.mubr.bf16.gmra.mrb[0].mxu0 %v4184
        %v4718 = vpop.f32.mrb[0].mxu0
        %v4719 = vadd.f32 0.0, %v4718
        %v4720 = vpop.f32.mrb[0].mxu0
        %v4721 = vpop.f32.mrb[0].mxu0
        %v4722 = vadd.f32 0.0, %v4721
        %v4723 = vpop.f32.mrb[0].mxu0
        %4724 = vmatprep.mubr.bf16.mxu0 %v4189
        %4725 = vmatmul.mubr.bf16.gmra.mrb[0].mxu0 %v4188
        %v4726 = vpop.f32.mrb[0].mxu0
        %v4727 = vadd.f32 0.0, %v4726
        %v4728 = vpop.f32.mrb[0].mxu0
        %v4729 = vpop.f32.mrb[0].mxu0
        %v4730 = vadd.f32 0.0, %v4729
        %v4731 = vpop.f32.mrb[0].mxu0
        %4732 = vmatprep.mubr.bf16.mxu0 %v4193
        %4733 = vmatmul.mubr.bf16.gmra.mrb[0].mxu0 %v4192
        %v4734 = vpop.f32.mrb[0].mxu0
        %v4735 = vadd.f32 0.0, %v4734
        %v4736 = vpop.f32.mrb[0].mxu0
        %v4737 = vpop.f32.mrb[0].mxu0
        %v4738 = vadd.f32 0.0, %v4737
        %v4739 = vpop.f32.mrb[0].mxu0
        %4740 = vmatprep.mubr.bf16.mxu0 %v4197
        %4741 = vmatmul.mubr.bf16.gmra.mrb[0].mxu0 %v4196
        %v4742 = vpop.f32.mrb[0].mxu0
        %v4743 = vadd.f32 0.0, %v4742
        %v4744 = vpop.f32.mrb[0].mxu0
        %v4745 = vpop.f32.mrb[0].mxu0
        %v4746 = vadd.f32 0.0, %v4745
        %v4747 = vpop.f32.mrb[0].mxu0
        %4748 = vmatprep.mubr.bf16.mxu0 %v4201
        %4749 = vmatmul.mubr.bf16.gmra.mrb[0].mxu0 %v4200
        %v4750 = vpop.f32.mrb[0].mxu0
        %v4751 = vadd.f32 0.0, %v4750
        %v4752 = vpop.f32.mrb[0].mxu0
        %v4753 = vpop.f32.mrb[0].mxu0
        %v4754 = vadd.f32 0.0, %v4753
        %v4755 = vpop.f32.mrb[0].mxu0
        %4756 = vmatprep.mubr.bf16.mxu0 %v4205
        %4757 = vmatmul.mubr.bf16.gmra.mrb[0].mxu0 %v4204
        %v4758 = vpop.f32.mrb[0].mxu0
        %v4759 = vadd.f32 0.0, %v4758
        %v4760 = vpop.f32.mrb[0].mxu0
        %v4761 = vpop.f32.mrb[0].mxu0
        %v4762 = vadd.f32 0.0, %v4761
        %v4763 = vpop.f32.mrb[0].mxu0
        %4764 = vmatprep.mubr.bf16.mxu0 %v4209
        %4765 = vmatmul.mubr.bf16.gmra.mrb[0].mxu0 %v4208
        %v4766 = vpop.f32.mrb[0].mxu0
        %v4767 = vadd.f32 0.0, %v4766
        %v4768 = vpop.f32.mrb[0].mxu0
        %v4769 = vpop.f32.mrb[0].mxu0
        %v4770 = vadd.f32 0.0, %v4769
        %v4771 = vpop.f32.mrb[0].mxu0
        %4772 = vmatprep.mubr.bf16.mxu0 %v4213
        %4773 = vmatmul.mubr.bf16.gmra.mrb[0].mxu0 %v4212
        %v4774 = vpop.f32.mrb[0].mxu0
        %v4775 = vadd.f32 0.0, %v4774
        %v4776 = vpop.f32.mrb[0].mxu0
        %v4777 = vpop.f32.mrb[0].mxu0
        %v4778 = vadd.f32 0.0, %v4777
        %v4779 = vpop.f32.mrb[0].mxu0
        %4780 = vmatprep.mubr.bf16.mxu0 %v4217
        %4781 = vmatmul.mubr.bf16.gmra.mrb[0].mxu0 %v4216
        %v4782 = vpop.f32.mrb[0].mxu0
        %v4783 = vadd.f32 0.0, %v4782
        %v4784 = vpop.f32.mrb[0].mxu0
        %v4785 = vpop.f32.mrb[0].mxu0
        %v4786 = vadd.f32 0.0, %v4785
        %v4787 = vpop.f32.mrb[0].mxu0
        %4788 = vmatprep.mubr.bf16.mxu0 %v4221
        %4789 = vmatmul.mubr.bf16.gmra.mrb[0].mxu0 %v4220
        %v4790 = vpop.f32.mrb[0].mxu0
        %v4791 = vadd.f32 0.0, %v4790
        %v4792 = vpop.f32.mrb[0].mxu0
        %v4793 = vpop.f32.mrb[0].mxu0
        %v4794 = vadd.f32 0.0, %v4793
        %v4795 = vpop.f32.mrb[0].mxu0
        %4796 = vmatprep.mubr.bf16.mxu0 %v4225
        %4797 = vmatmul.mubr.bf16.gmra.mrb[0].mxu0 %v4224
        %v4798 = vpop.f32.mrb[0].mxu0
        %v4799 = vadd.f32 0.0, %v4798
        %v4800 = vpop.f32.mrb[0].mxu0
        %v4801 = vpop.f32.mrb[0].mxu0
        %v4802 = vadd.f32 0.0, %v4801
        %v4803 = vpop.f32.mrb[0].mxu0
        %4804 = vmatprep.mubr.bf16.mxu0 %v4229
        %4805 = vmatmul.mubr.bf16.gmra.mrb[0].mxu0 %v4228
        %v4806 = vpop.f32.mrb[0].mxu0
        %v4807 = vadd.f32 0.0, %v4806
        %v4808 = vpop.f32.mrb[0].mxu0
        %v4809 = vpop.f32.mrb[0].mxu0
        %v4810 = vadd.f32 0.0, %v4809
        %v4811 = vpop.f32.mrb[0].mxu0
        %4812 = vmatprep.mubr.bf16.mxu0 %v4233
        %4813 = vmatmul.mubr.bf16.gmra.mrb[0].mxu0 %v4232
        %v4814 = vpop.f32.mrb[0].mxu0
        %v4815 = vadd.f32 0.0, %v4814
        %v4816 = vpop.f32.mrb[0].mxu0
        %v4817 = vpop.f32.mrb[0].mxu0
        %v4818 = vadd.f32 0.0, %v4817
        %v4819 = vpop.f32.mrb[0].mxu0
        %4820 = vmatprep.mubr.bf16.mxu0 %v4237
        %4821 = vmatmul.mubr.bf16.gmra.mrb[0].mxu0 %v4236
        %v4822 = vpop.f32.mrb[0].mxu0
        %v4823 = vadd.f32 0.0, %v4822
        %v4824 = vpop.f32.mrb[0].mxu0
        %v4825 = vpop.f32.mrb[0].mxu0
        %v4826 = vadd.f32 0.0, %v4825
        %v4827 = vpop.f32.mrb[0].mxu0
        %4828 = vmatprep.mubr.bf16.mxu0 %v4241
        %4829 = vmatmul.mubr.bf16.gmra.mrb[0].mxu0 %v4240
        %v4830 = vpop.f32.mrb[0].mxu0
        %v4831 = vadd.f32 0.0, %v4830
        %v4832 = vpop.f32.mrb[0].mxu0
        %v4833 = vpop.f32.mrb[0].mxu0
        %v4834 = vadd.f32 0.0, %v4833
        %v4835 = vpop.f32.mrb[0].mxu0
        %4836 = vmatprep.mubr.bf16.mxu0 %v4245
        %4837 = vmatmul.mubr.bf16.gmra.mrb[0].mxu0 %v4244
        %v4838 = vpop.f32.mrb[0].mxu0
        %v4839 = vadd.f32 0.0, %v4838
        %v4840 = vpop.f32.mrb[0].mxu0
        %v4841 = vpop.f32.mrb[0].mxu0
        %v4842 = vadd.f32 0.0, %v4841
        %v4843 = vpop.f32.mrb[0].mxu0
        %4844 = vmatprep.mubr.bf16.mxu0 %v4249
        %4845 = vmatmul.mubr.bf16.gmra.mrb[0].mxu0 %v4248
        %v4846 = vpop.f32.mrb[0].mxu0
        %v4847 = vadd.f32 0.0, %v4846
        %v4848 = vpop.f32.mrb[0].mxu0
        %v4849 = vpop.f32.mrb[0].mxu0
        %v4850 = vadd.f32 0.0, %v4849
        %v4851 = vpop.f32.mrb[0].mxu0
        %4852 = vmatprep.mubr.bf16.mxu0 %v4253
        %4853 = vmatmul.mubr.bf16.gmra.mrb[0].mxu0 %v4252
        %v4854 = vpop.f32.mrb[0].mxu0
        %v4855 = vadd.f32 0.0, %v4854
        %v4856 = vpop.f32.mrb[0].mxu0
        %v4857 = vpop.f32.mrb[0].mxu0
        %v4858 = vadd.f32 0.0, %v4857
        %v4859 = vpop.f32.mrb[0].mxu0
        %4860 = vmatprep.mubr.bf16.mxu0 %v4257
        %4861 = vmatmul.mubr.bf16.gmra.mrb[0].mxu0 %v4256
        %v4862 = vpop.f32.mrb[0].mxu0
        %v4863 = vadd.f32 0.0, %v4862
        %v4864 = vpop.f32.mrb[0].mxu0
        %v4865 = vpop.f32.mrb[0].mxu0
        %v4866 = vadd.f32 0.0, %v4865
        %v4867 = vpop.f32.mrb[0].mxu0
        %4868 = vdwg.mxu0
        %4869 = vmatprep.subr.bf16.mxu0 0
        %4870 = vmatpush1.bf16.msra.mxu0 %v4532
        %4871 = vmatprep.subr.bf16.mxu0 0
        %4872 = vmatpush1.bf16.msra.mxu0 %v4533
        %4873 = vmatprep.subr.bf16.mxu0 0
        %4874 = vmatpush1.bf16.msra.mxu0 %v4534
        %4875 = vmatprep.subr.bf16.mxu0 0
        %4876 = vmatpush1.bf16.msra.mxu0 %v4535
        %4877 = vmatprep.subr.bf16.mxu0 0
        %4878 = vmatpush1.bf16.msra.mxu0 %v4536
        %4879 = vmatprep.subr.bf16.mxu0 0
        %4880 = vmatpush1.bf16.msra.mxu0 %v4537
        %4881 = vmatprep.subr.bf16.mxu0 0
        %4882 = vmatpush1.bf16.msra.mxu0 %v4538
        %4883 = vmatprep.subr.bf16.mxu0 0
        %4884 = vmatpush1.bf16.msra.mxu0 %v4539
        %4885 = vmatprep.subr.bf16.mxu0 0
        %4886 = vmatpush1.bf16.msra.mxu0 %v4540
        %4887 = vmatprep.subr.bf16.mxu0 0
        %4888 = vmatpush1.bf16.msra.mxu0 %v4541
        %4889 = vmatprep.subr.bf16.mxu0 0
        %4890 = vmatpush1.bf16.msra.mxu0 %v4542
        %4891 = vmatprep.subr.bf16.mxu0 0
        %4892 = vmatpush1.bf16.msra.mxu0 %v4543
        %4893 = vmatprep.subr.bf16.mxu0 0
        %4894 = vmatpush1.bf16.msra.mxu0 %v4544
        %4895 = vmatprep.subr.bf16.mxu0 0
        %4896 = vmatpush1.bf16.msra.mxu0 %v4545
        %4897 = vmatprep.subr.bf16.mxu0 0
        %4898 = vmatpush1.bf16.msra.mxu0 %v4546
        %4899 = vmatprep.subr.bf16.mxu0 0
        %4900 = vmatpush1.bf16.msra.mxu0 %v4547
        %4901 = vmatprep.mubr.bf16.mxu0 %v4135
        %4902 = vmatmul.mubr.bf16.gmra.mrb[0].mxu0 %v4134
        %v4903 = vpop.f32.mrb[0].mxu0
        %v4904 = vadd.f32 %v4615, %v4903
        %v4905 = vpop.f32.mrb[0].mxu0
        %v4906 = vpop.f32.mrb[0].mxu0
        %v4907 = vadd.f32 %v4618, %v4906
        %v4908 = vpop.f32.mrb[0].mxu0
        %4909 = vmatprep.mubr.bf16.mxu0 %v4139
        %4910 = vmatmul.mubr.bf16.gmra.mrb[0].mxu0 %v4138
        %v4911 = vpop.f32.mrb[0].mxu0
        %v4912 = vadd.f32 %v4623, %v4911
        %v4913 = vpop.f32.mrb[0].mxu0
        %v4914 = vpop.f32.mrb[0].mxu0
        %v4915 = vadd.f32 %v4626, %v4914
        %v4916 = vpop.f32.mrb[0].mxu0
        %4917 = vmatprep.mubr.bf16.mxu0 %v4143
        %4918 = vmatmul.mubr.bf16.gmra.mrb[0].mxu0 %v4142
        %v4919 = vpop.f32.mrb[0].mxu0
        %v4920 = vadd.f32 %v4631, %v4919
        %v4921 = vpop.f32.mrb[0].mxu0
        %v4922 = vpop.f32.mrb[0].mxu0
        %v4923 = vadd.f32 %v4634, %v4922
        %v4924 = vpop.f32.mrb[0].mxu0
        %4925 = vmatprep.mubr.bf16.mxu0 %v4147
        %4926 = vmatmul.mubr.bf16.gmra.mrb[0].mxu0 %v4146
        %v4927 = vpop.f32.mrb[0].mxu0
        %v4928 = vadd.f32 %v4639, %v4927
        %v4929 = vpop.f32.mrb[0].mxu0
        %v4930 = vpop.f32.mrb[0].mxu0
        %v4931 = vadd.f32 %v4642, %v4930
        %v4932 = vpop.f32.mrb[0].mxu0
        %4933 = vmatprep.mubr.bf16.mxu0 %v4151
        %4934 = vmatmul.mubr.bf16.gmra.mrb[0].mxu0 %v4150
        %v4935 = vpop.f32.mrb[0].mxu0
        %v4936 = vadd.f32 %v4647, %v4935
        %v4937 = vpop.f32.mrb[0].mxu0
        %v4938 = vpop.f32.mrb[0].mxu0
        %v4939 = vadd.f32 %v4650, %v4938
        %v4940 = vpop.f32.mrb[0].mxu0
        %4941 = vmatprep.mubr.bf16.mxu0 %v4155
        %4942 = vmatmul.mubr.bf16.gmra.mrb[0].mxu0 %v4154
        %v4943 = vpop.f32.mrb[0].mxu0
        %v4944 = vadd.f32 %v4655, %v4943
        %v4945 = vpop.f32.mrb[0].mxu0
        %v4946 = vpop.f32.mrb[0].mxu0
        %v4947 = vadd.f32 %v4658, %v4946
        %v4948 = vpop.f32.mrb[0].mxu0
        %4949 = vmatprep.mubr.bf16.mxu0 %v4159
        %4950 = vmatmul.mubr.bf16.gmra.mrb[0].mxu0 %v4158
        %v4951 = vpop.f32.mrb[0].mxu0
        %v4952 = vadd.f32 %v4663, %v4951
        %v4953 = vpop.f32.mrb[0].mxu0
        %v4954 = vpop.f32.mrb[0].mxu0
        %v4955 = vadd.f32 %v4666, %v4954
        %v4956 = vpop.f32.mrb[0].mxu0
        %4957 = vmatprep.mubr.bf16.mxu0 %v4163
        %4958 = vmatmul.mubr.bf16.gmra.mrb[0].mxu0 %v4162
        %v4959 = vpop.f32.mrb[0].mxu0
        %v4960 = vadd.f32 %v4671, %v4959
        %v4961 = vpop.f32.mrb[0].mxu0
        %v4962 = vpop.f32.mrb[0].mxu0
        %v4963 = vadd.f32 %v4674, %v4962
        %v4964 = vpop.f32.mrb[0].mxu0
        %4965 = vmatprep.mubr.bf16.mxu0 %v4167
        %4966 = vmatmul.mubr.bf16.gmra.mrb[0].mxu0 %v4166
        %v4967 = vpop.f32.mrb[0].mxu0
        %v4968 = vadd.f32 %v4679, %v4967
        %v4969 = vpop.f32.mrb[0].mxu0
        %v4970 = vpop.f32.mrb[0].mxu0
        %v4971 = vadd.f32 %v4682, %v4970
        %v4972 = vpop.f32.mrb[0].mxu0
        %4973 = vmatprep.mubr.bf16.mxu0 %v4171
        %4974 = vmatmul.mubr.bf16.gmra.mrb[0].mxu0 %v4170
        %v4975 = vpop.f32.mrb[0].mxu0
        %v4976 = vadd.f32 %v4687, %v4975
        %v4977 = vpop.f32.mrb[0].mxu0
        %v4978 = vpop.f32.mrb[0].mxu0
        %v4979 = vadd.f32 %v4690, %v4978
        %v4980 = vpop.f32.mrb[0].mxu0
        %4981 = vmatprep.mubr.bf16.mxu0 %v4175
        %4982 = vmatmul.mubr.bf16.gmra.mrb[0].mxu0 %v4174
        %v4983 = vpop.f32.mrb[0].mxu0
        %v4984 = vadd.f32 %v4695, %v4983
        %v4985 = vpop.f32.mrb[0].mxu0
        %v4986 = vpop.f32.mrb[0].mxu0
        %v4987 = vadd.f32 %v4698, %v4986
        %v4988 = vpop.f32.mrb[0].mxu0
        %4989 = vmatprep.mubr.bf16.mxu0 %v4179
        %4990 = vmatmul.mubr.bf16.gmra.mrb[0].mxu0 %v4178
        %v4991 = vpop.f32.mrb[0].mxu0
        %v4992 = vadd.f32 %v4703, %v4991
        %v4993 = vpop.f32.mrb[0].mxu0
        %v4994 = vpop.f32.mrb[0].mxu0
        %v4995 = vadd.f32 %v4706, %v4994
        %v4996 = vpop.f32.mrb[0].mxu0
        %4997 = vmatprep.mubr.bf16.mxu0 %v4183
        %4998 = vmatmul.mubr.bf16.gmra.mrb[0].mxu0 %v4182
        %v4999 = vpop.f32.mrb[0].mxu0
        %v5000 = vadd.f32 %v4711, %v4999
        %v5001 = vpop.f32.mrb[0].mxu0
        %v5002 = vpop.f32.mrb[0].mxu0
        %v5003 = vadd.f32 %v4714, %v5002
        %v5004 = vpop.f32.mrb[0].mxu0
        %5005 = vmatprep.mubr.bf16.mxu0 %v4187
        %5006 = vmatmul.mubr.bf16.gmra.mrb[0].mxu0 %v4186
        %v5007 = vpop.f32.mrb[0].mxu0
        %v5008 = vadd.f32 %v4719, %v5007
        %v5009 = vpop.f32.mrb[0].mxu0
        %v5010 = vpop.f32.mrb[0].mxu0
        %v5011 = vadd.f32 %v4722, %v5010
        %v5012 = vpop.f32.mrb[0].mxu0
        %5013 = vmatprep.mubr.bf16.mxu0 %v4191
        %5014 = vmatmul.mubr.bf16.gmra.mrb[0].mxu0 %v4190
        %v5015 = vpop.f32.mrb[0].mxu0
        %v5016 = vadd.f32 %v4727, %v5015
        %v5017 = vpop.f32.mrb[0].mxu0
        %v5018 = vpop.f32.mrb[0].mxu0
        %v5019 = vadd.f32 %v4730, %v5018
        %v5020 = vpop.f32.mrb[0].mxu0
        %5021 = vmatprep.mubr.bf16.mxu0 %v4195
        %5022 = vmatmul.mubr.bf16.gmra.mrb[0].mxu0 %v4194
        %v5023 = vpop.f32.mrb[0].mxu0
        %v5024 = vadd.f32 %v4735, %v5023
        %v5025 = vpop.f32.mrb[0].mxu0
        %v5026 = vpop.f32.mrb[0].mxu0
        %v5027 = vadd.f32 %v4738, %v5026
        %v5028 = vpop.f32.mrb[0].mxu0
        %5029 = vmatprep.mubr.bf16.mxu0 %v4199
        %5030 = vmatmul.mubr.bf16.gmra.mrb[0].mxu0 %v4198
        %v5031 = vpop.f32.mrb[0].mxu0
        %v5032 = vadd.f32 %v4743, %v5031
        %v5033 = vpop.f32.mrb[0].mxu0
        %v5034 = vpop.f32.mrb[0].mxu0
        %v5035 = vadd.f32 %v4746, %v5034
        %v5036 = vpop.f32.mrb[0].mxu0
        %5037 = vmatprep.mubr.bf16.mxu0 %v4203
        %5038 = vmatmul.mubr.bf16.gmra.mrb[0].mxu0 %v4202
        %v5039 = vpop.f32.mrb[0].mxu0
        %v5040 = vadd.f32 %v4751, %v5039
        %v5041 = vpop.f32.mrb[0].mxu0
        %v5042 = vpop.f32.mrb[0].mxu0
        %v5043 = vadd.f32 %v4754, %v5042
        %v5044 = vpop.f32.mrb[0].mxu0
        %5045 = vmatprep.mubr.bf16.mxu0 %v4207
        %5046 = vmatmul.mubr.bf16.gmra.mrb[0].mxu0 %v4206
        %v5047 = vpop.f32.mrb[0].mxu0
        %v5048 = vadd.f32 %v4759, %v5047
        %v5049 = vpop.f32.mrb[0].mxu0
        %v5050 = vpop.f32.mrb[0].mxu0
        %v5051 = vadd.f32 %v4762, %v5050
        %v5052 = vpop.f32.mrb[0].mxu0
        %5053 = vmatprep.mubr.bf16.mxu0 %v4211
        %5054 = vmatmul.mubr.bf16.gmra.mrb[0].mxu0 %v4210
        %v5055 = vpop.f32.mrb[0].mxu0
        %v5056 = vadd.f32 %v4767, %v5055
        %v5057 = vpop.f32.mrb[0].mxu0
        %v5058 = vpop.f32.mrb[0].mxu0
        %v5059 = vadd.f32 %v4770, %v5058
        %v5060 = vpop.f32.mrb[0].mxu0
        %5061 = vmatprep.mubr.bf16.mxu0 %v4215
        %5062 = vmatmul.mubr.bf16.gmra.mrb[0].mxu0 %v4214
        %v5063 = vpop.f32.mrb[0].mxu0
        %v5064 = vadd.f32 %v4775, %v5063
        %v5065 = vpop.f32.mrb[0].mxu0
        %v5066 = vpop.f32.mrb[0].mxu0
        %v5067 = vadd.f32 %v4778, %v5066
        %v5068 = vpop.f32.mrb[0].mxu0
        %5069 = vmatprep.mubr.bf16.mxu0 %v4219
        %5070 = vmatmul.mubr.bf16.gmra.mrb[0].mxu0 %v4218
        %v5071 = vpop.f32.mrb[0].mxu0
        %v5072 = vadd.f32 %v4783, %v5071
        %v5073 = vpop.f32.mrb[0].mxu0
        %v5074 = vpop.f32.mrb[0].mxu0
        %v5075 = vadd.f32 %v4786, %v5074
        %v5076 = vpop.f32.mrb[0].mxu0
        %5077 = vmatprep.mubr.bf16.mxu0 %v4223
        %5078 = vmatmul.mubr.bf16.gmra.mrb[0].mxu0 %v4222
        %v5079 = vpop.f32.mrb[0].mxu0
        %v5080 = vadd.f32 %v4791, %v5079
        %v5081 = vpop.f32.mrb[0].mxu0
        %v5082 = vpop.f32.mrb[0].mxu0
        %v5083 = vadd.f32 %v4794, %v5082
        %v5084 = vpop.f32.mrb[0].mxu0
        %5085 = vmatprep.mubr.bf16.mxu0 %v4227
        %5086 = vmatmul.mubr.bf16.gmra.mrb[0].mxu0 %v4226
        %v5087 = vpop.f32.mrb[0].mxu0
        %v5088 = vadd.f32 %v4799, %v5087
        %v5089 = vpop.f32.mrb[0].mxu0
        %v5090 = vpop.f32.mrb[0].mxu0
        %v5091 = vadd.f32 %v4802, %v5090
        %v5092 = vpop.f32.mrb[0].mxu0
        %5093 = vmatprep.mubr.bf16.mxu0 %v4231
        %5094 = vmatmul.mubr.bf16.gmra.mrb[0].mxu0 %v4230
        %v5095 = vpop.f32.mrb[0].mxu0
        %v5096 = vadd.f32 %v4807, %v5095
        %v5097 = vpop.f32.mrb[0].mxu0
        %v5098 = vpop.f32.mrb[0].mxu0
        %v5099 = vadd.f32 %v4810, %v5098
        %v5100 = vpop.f32.mrb[0].mxu0
        %5101 = vmatprep.mubr.bf16.mxu0 %v4235
        %5102 = vmatmul.mubr.bf16.gmra.mrb[0].mxu0 %v4234
        %v5103 = vpop.f32.mrb[0].mxu0
        %v5104 = vadd.f32 %v4815, %v5103
        %v5105 = vpop.f32.mrb[0].mxu0
        %v5106 = vpop.f32.mrb[0].mxu0
        %v5107 = vadd.f32 %v4818, %v5106
        %v5108 = vpop.f32.mrb[0].mxu0
        %5109 = vmatprep.mubr.bf16.mxu0 %v4239
        %5110 = vmatmul.mubr.bf16.gmra.mrb[0].mxu0 %v4238
        %v5111 = vpop.f32.mrb[0].mxu0
        %v5112 = vadd.f32 %v4823, %v5111
        %v5113 = vpop.f32.mrb[0].mxu0
        %v5114 = vpop.f32.mrb[0].mxu0
        %v5115 = vadd.f32 %v4826, %v5114
        %v5116 = vpop.f32.mrb[0].mxu0
        %5117 = vmatprep.mubr.bf16.mxu0 %v4243
        %5118 = vmatmul.mubr.bf16.gmra.mrb[0].mxu0 %v4242
        %v5119 = vpop.f32.mrb[0].mxu0
        %v5120 = vadd.f32 %v4831, %v5119
        %v5121 = vpop.f32.mrb[0].mxu0
        %v5122 = vpop.f32.mrb[0].mxu0
        %v5123 = vadd.f32 %v4834, %v5122
        %v5124 = vpop.f32.mrb[0].mxu0
        %5125 = vmatprep.mubr.bf16.mxu0 %v4247
        %5126 = vmatmul.mubr.bf16.gmra.mrb[0].mxu0 %v4246
        %v5127 = vpop.f32.mrb[0].mxu0
        %v5128 = vadd.f32 %v4839, %v5127
        %v5129 = vpop.f32.mrb[0].mxu0
        %v5130 = vpop.f32.mrb[0].mxu0
        %v5131 = vadd.f32 %v4842, %v5130
        %v5132 = vpop.f32.mrb[0].mxu0
        %5133 = vmatprep.mubr.bf16.mxu0 %v4251
        %5134 = vmatmul.mubr.bf16.gmra.mrb[0].mxu0 %v4250
        %v5135 = vpop.f32.mrb[0].mxu0
        %v5136 = vadd.f32 %v4847, %v5135
        %v5137 = vpop.f32.mrb[0].mxu0
        %v5138 = vpop.f32.mrb[0].mxu0
        %v5139 = vadd.f32 %v4850, %v5138
        %v5140 = vpop.f32.mrb[0].mxu0
        %5141 = vmatprep.mubr.bf16.mxu0 %v4255
        %5142 = vmatmul.mubr.bf16.gmra.mrb[0].mxu0 %v4254
        %v5143 = vpop.f32.mrb[0].mxu0
        %v5144 = vadd.f32 %v4855, %v5143
        %v5145 = vpop.f32.mrb[0].mxu0
        %v5146 = vpop.f32.mrb[0].mxu0
        %v5147 = vadd.f32 %v4858, %v5146
        %v5148 = vpop.f32.mrb[0].mxu0
        %5149 = vmatprep.mubr.bf16.mxu0 %v4259
        %5150 = vmatmul.mubr.bf16.gmra.mrb[0].mxu0 %v4258
        %v5151 = vpop.f32.mrb[0].mxu0
        %v5152 = vadd.f32 %v4863, %v5151
        %v5153 = vpop.f32.mrb[0].mxu0
        %v5154 = vpop.f32.mrb[0].mxu0
        %v5155 = vadd.f32 %v4866, %v5154
        %v5156 = vpop.f32.mrb[0].mxu0
        %5157 = vdwg.mxu0
        %v5158 = vadd.f32 %v3747, %v4904
        %v5159 = vadd.f32 %v3748, %v4907
        %v5160 = vadd.f32 %v3749, %v4912
        %v5161 = vadd.f32 %v3750, %v4915
        %v5162 = vadd.f32 %v3751, %v4920
        %v5163 = vadd.f32 %v3752, %v4923
        %v5164 = vadd.f32 %v3753, %v4928
        %v5165 = vadd.f32 %v3754, %v4931
        %v5166 = vadd.f32 %v3755, %v4936
        %v5167 = vadd.f32 %v3756, %v4939
        %v5168 = vadd.f32 %v3757, %v4944
        %v5169 = vadd.f32 %v3758, %v4947
        %v5170 = vadd.f32 %v3759, %v4952
        %v5171 = vadd.f32 %v3760, %v4955
        %v5172 = vadd.f32 %v3761, %v4960
        %v5173 = vadd.f32 %v3762, %v4963
        %v5174 = vadd.f32 %v3763, %v4968
        %v5175 = vadd.f32 %v3764, %v4971
        %v5176 = vadd.f32 %v3765, %v4976
        %v5177 = vadd.f32 %v3766, %v4979
        %v5178 = vadd.f32 %v3767, %v4984
        %v5179 = vadd.f32 %v3768, %v4987
        %v5180 = vadd.f32 %v3769, %v4992
        %v5181 = vadd.f32 %v3770, %v4995
        %v5182 = vadd.f32 %v3771, %v5000
        %v5183 = vadd.f32 %v3772, %v5003
        %v5184 = vadd.f32 %v3773, %v5008
        %v5185 = vadd.f32 %v3774, %v5011
        %v5186 = vadd.f32 %v3775, %v5016
        %v5187 = vadd.f32 %v3776, %v5019
        %v5188 = vadd.f32 %v3777, %v5024
        %v5189 = vadd.f32 %v3778, %v5027
        %v5190 = vadd.f32 %v3779, %v5032
        %v5191 = vadd.f32 %v3780, %v5035
        %v5192 = vadd.f32 %v3781, %v5040
        %v5193 = vadd.f32 %v3782, %v5043
        %v5194 = vadd.f32 %v3783, %v5048
        %v5195 = vadd.f32 %v3784, %v5051
        %v5196 = vadd.f32 %v3785, %v5056
        %v5197 = vadd.f32 %v3786, %v5059
        %v5198 = vadd.f32 %v3787, %v5064
        %v5199 = vadd.f32 %v3788, %v5067
        %v5200 = vadd.f32 %v3789, %v5072
        %v5201 = vadd.f32 %v3790, %v5075
        %v5202 = vadd.f32 %v3791, %v5080
        %v5203 = vadd.f32 %v3792, %v5083
        %v5204 = vadd.f32 %v3793, %v5088
        %v5205 = vadd.f32 %v3794, %v5091
        %v5206 = vadd.f32 %v3795, %v5096
        %v5207 = vadd.f32 %v3796, %v5099
        %v5208 = vadd.f32 %v3797, %v5104
        %v5209 = vadd.f32 %v3798, %v5107
        %v5210 = vadd.f32 %v3799, %v5112
        %v5211 = vadd.f32 %v3800, %v5115
        %v5212 = vadd.f32 %v3801, %v5120
        %v5213 = vadd.f32 %v3802, %v5123
        %v5214 = vadd.f32 %v3803, %v5128
        %v5215 = vadd.f32 %v3804, %v5131
        %v5216 = vadd.f32 %v3805, %v5136
        %v5217 = vadd.f32 %v3806, %v5139
        %v5218 = vadd.f32 %v3807, %v5144
        %v5219 = vadd.f32 %v3808, %v5147
        %v5220 = vadd.f32 %v3809, %v5152
        %v5221 = vadd.f32 %v3810, %v5155
        %5222 = vst [vmem:[#allocation2] sm:$0xff] %v5158
        %5223 = vst [vmem:[#allocation2 + $0x8] sm:$0xff] %v5159
        %5224 = vst [vmem:[#allocation2 + $0x10] sm:$0xff] %v5160
        %5225 = vst [vmem:[#allocation2 + $0x18] sm:$0xff] %v5161
        %5226 = vst [vmem:[#allocation2 + $0x20] sm:$0xff] %v5162
        %5227 = vst [vmem:[#allocation2 + $0x28] sm:$0xff] %v5163
        %5228 = vst [vmem:[#allocation2 + $0x30] sm:$0xff] %v5164
        %5229 = vst [vmem:[#allocation2 + $0x38] sm:$0xff] %v5165
        %5230 = vst [vmem:[#allocation2 + $0x40] sm:$0xff] %v5166
        %5231 = vst [vmem:[#allocation2 + $0x48] sm:$0xff] %v5167
        %5232 = vst [vmem:[#allocation2 + $0x50] sm:$0xff] %v5168
        %5233 = vst [vmem:[#allocation2 + $0x58] sm:$0xff] %v5169
        %5234 = vst [vmem:[#allocation2 + $0x60] sm:$0xff] %v5170
        %5235 = vst [vmem:[#allocation2 + $0x68] sm:$0xff] %v5171
        %5236 = vst [vmem:[#allocation2 + $0x70] sm:$0xff] %v5172
        %5237 = vst [vmem:[#allocation2 + $0x78] sm:$0xff] %v5173
        %5238 = vst [vmem:[#allocation2 + $0x80] sm:$0xff] %v5174
        %5239 = vst [vmem:[#allocation2 + $0x88] sm:$0xff] %v5175
        %5240 = vst [vmem:[#allocation2 + $0x90] sm:$0xff] %v5176
        %5241 = vst [vmem:[#allocation2 + $0x98] sm:$0xff] %v5177
        %5242 = vst [vmem:[#allocation2 + $0xa0] sm:$0xff] %v5178
        %5243 = vst [vmem:[#allocation2 + $0xa8] sm:$0xff] %v5179
        %5244 = vst [vmem:[#allocation2 + $0xb0] sm:$0xff] %v5180
        %5245 = vst [vmem:[#allocation2 + $0xb8] sm:$0xff] %v5181
        %5246 = vst [vmem:[#allocation2 + $0xc0] sm:$0xff] %v5182
        %5247 = vst [vmem:[#allocation2 + $0xc8] sm:$0xff] %v5183
        %5248 = vst [vmem:[#allocation2 + $0xd0] sm:$0xff] %v5184
        %5249 = vst [vmem:[#allocation2 + $0xd8] sm:$0xff] %v5185
        %5250 = vst [vmem:[#allocation2 + $0xe0] sm:$0xff] %v5186
        %5251 = vst [vmem:[#allocation2 + $0xe8] sm:$0xff] %v5187
        %5252 = vst [vmem:[#allocation2 + $0xf0] sm:$0xff] %v5188
        %5253 = vst [vmem:[#allocation2 + $0xf8] sm:$0xff] %v5189
        %5254 = vst [vmem:[#allocation2 + $0x100] sm:$0xff] %v5190
        %5255 = vst [vmem:[#allocation2 + $0x108] sm:$0xff] %v5191
        %5256 = vst [vmem:[#allocation2 + $0x110] sm:$0xff] %v5192
        %5257 = vst [vmem:[#allocation2 + $0x118] sm:$0xff] %v5193
        %5258 = vst [vmem:[#allocation2 + $0x120] sm:$0xff] %v5194
        %5259 = vst [vmem:[#allocation2 + $0x128] sm:$0xff] %v5195
        %5260 = vst [vmem:[#allocation2 + $0x130] sm:$0xff] %v5196
        %5261 = vst [vmem:[#allocation2 + $0x138] sm:$0xff] %v5197
        %5262 = vst [vmem:[#allocation2 + $0x140] sm:$0xff] %v5198
        %5263 = vst [vmem:[#allocation2 + $0x148] sm:$0xff] %v5199
        %5264 = vst [vmem:[#allocation2 + $0x150] sm:$0xff] %v5200
        %5265 = vst [vmem:[#allocation2 + $0x158] sm:$0xff] %v5201
        %5266 = vst [vmem:[#allocation2 + $0x160] sm:$0xff] %v5202
        %5267 = vst [vmem:[#allocation2 + $0x168] sm:$0xff] %v5203
        %5268 = vst [vmem:[#allocation2 + $0x170] sm:$0xff] %v5204
        %5269 = vst [vmem:[#allocation2 + $0x178] sm:$0xff] %v5205
        %5270 = vst [vmem:[#allocation2 + $0x180] sm:$0xff] %v5206
        %5271 = vst [vmem:[#allocation2 + $0x188] sm:$0xff] %v5207
        %5272 = vst [vmem:[#allocation2 + $0x190] sm:$0xff] %v5208
        %5273 = vst [vmem:[#allocation2 + $0x198] sm:$0xff] %v5209
        %5274 = vst [vmem:[#allocation2 + $0x1a0] sm:$0xff] %v5210
        %5275 = vst [vmem:[#allocation2 + $0x1a8] sm:$0xff] %v5211
        %5276 = vst [vmem:[#allocation2 + $0x1b0] sm:$0xff] %v5212
        %5277 = vst [vmem:[#allocation2 + $0x1b8] sm:$0xff] %v5213
        %5278 = vst [vmem:[#allocation2 + $0x1c0] sm:$0xff] %v5214
        %5279 = vst [vmem:[#allocation2 + $0x1c8] sm:$0xff] %v5215
        %5280 = vst [vmem:[#allocation2 + $0x1d0] sm:$0xff] %v5216
        %5281 = vst [vmem:[#allocation2 + $0x1d8] sm:$0xff] %v5217
        %5282 = vst [vmem:[#allocation2 + $0x1e0] sm:$0xff] %v5218
        %5283 = vst [vmem:[#allocation2 + $0x1e8] sm:$0xff] %v5219
        %5284 = vst [vmem:[#allocation2 + $0x1f0] sm:$0xff] %v5220
        %5285 = vst [vmem:[#allocation2 + $0x1f8] sm:$0xff] %v5221
        %v5286 = vld [vmem:[%s1043 + $0x10] sm:$0xcc]
        %v5287 = vld [vmem:[%s1043 + $0x18] sm:$0xcc]
        %v5288 = vld [vmem:[%s1043 + $0x20] sm:$0xff]
        %v5289 = vld [vmem:[%s1043 + $0x28] sm:$0xff]
        %v5290 = vld [vmem:[%s1043 + $0x30] sm:$0x33]
        %v5291 = vld [vmem:[%s1043 + $0x38] sm:$0x33]
        %v5292 = vld [vmem:[%s1043 + $0x50] sm:$0xcc]
        %v5293 = vld [vmem:[%s1043 + $0x58] sm:$0xcc]
        %v5294 = vld [vmem:[%s1043 + $0x60] sm:$0xff]
        %v5295 = vld [vmem:[%s1043 + $0x68] sm:$0xff]
        %v5296 = vld [vmem:[%s1043 + $0x70] sm:$0x33]
        %v5297 = vld [vmem:[%s1043 + $0x78] sm:$0x33]
        %v5298 = vld [vmem:[%s1043 + $0x90] sm:$0xcc]
        %v5299 = vld [vmem:[%s1043 + $0x98] sm:$0xcc]
        %v5300 = vld [vmem:[%s1043 + $0xa0] sm:$0xff]
        %v5301 = vld [vmem:[%s1043 + $0xa8] sm:$0xff]
        %v5302 = vld [vmem:[%s1043 + $0xb0] sm:$0x33]
        %v5303 = vld [vmem:[%s1043 + $0xb8] sm:$0x33]
        %v5304 = vld [vmem:[%s1043 + $0xd0] sm:$0xcc]
        %v5305 = vld [vmem:[%s1043 + $0xd8] sm:$0xcc]
        %v5306 = vld [vmem:[%s1043 + $0xe0] sm:$0xff]
        %v5307 = vld [vmem:[%s1043 + $0xe8] sm:$0xff]
        %v5308 = vld [vmem:[%s1043 + $0xf0] sm:$0x33]
        %v5309 = vld [vmem:[%s1043 + $0xf8] sm:$0x33]
        %v5310 = vld [vmem:[%s1043 + $0x110] sm:$0xcc]
        %v5311 = vld [vmem:[%s1043 + $0x118] sm:$0xcc]
        %v5312 = vld [vmem:[%s1043 + $0x120] sm:$0xff]
        %v5313 = vld [vmem:[%s1043 + $0x128] sm:$0xff]
        %v5314 = vld [vmem:[%s1043 + $0x130] sm:$0x33]
        %v5315 = vld [vmem:[%s1043 + $0x138] sm:$0x33]
        %v5316 = vld [vmem:[%s1043 + $0x150] sm:$0xcc]
        %v5317 = vld [vmem:[%s1043 + $0x158] sm:$0xcc]
        %v5318 = vld [vmem:[%s1043 + $0x160] sm:$0xff]
        %v5319 = vld [vmem:[%s1043 + $0x168] sm:$0xff]
        %v5320 = vld [vmem:[%s1043 + $0x170] sm:$0x33]
        %v5321 = vld [vmem:[%s1043 + $0x178] sm:$0x33]
        %v5322 = vld [vmem:[%s1043 + $0x190] sm:$0xcc]
        %v5323 = vld [vmem:[%s1043 + $0x198] sm:$0xcc]
        %v5324 = vld [vmem:[%s1043 + $0x1a0] sm:$0xff]
        %v5325 = vld [vmem:[%s1043 + $0x1a8] sm:$0xff]
        %v5326 = vld [vmem:[%s1043 + $0x1b0] sm:$0x33]
        %v5327 = vld [vmem:[%s1043 + $0x1b8] sm:$0x33]
        %v5328 = vld [vmem:[%s1043 + $0x1d0] sm:$0xcc]
        %v5329 = vld [vmem:[%s1043 + $0x1d8] sm:$0xcc]
        %v5330 = vld [vmem:[%s1043 + $0x1e0] sm:$0xff]
        %v5331 = vld [vmem:[%s1043 + $0x1e8] sm:$0xff]
        %v5332 = vld [vmem:[%s1043 + $0x1f0] sm:$0x33]
        %v5333 = vld [vmem:[%s1043 + $0x1f8] sm:$0x33]
        %v5334 = vld [vmem:[%s1043 + $0x210] sm:$0xcc]
        %v5335 = vld [vmem:[%s1043 + $0x218] sm:$0xcc]
        %v5336 = vld [vmem:[%s1043 + $0x220] sm:$0xff]
        %v5337 = vld [vmem:[%s1043 + $0x228] sm:$0xff]
        %v5338 = vld [vmem:[%s1043 + $0x230] sm:$0x33]
        %v5339 = vld [vmem:[%s1043 + $0x238] sm:$0x33]
        %v5340 = vld [vmem:[%s1043 + $0x250] sm:$0xcc]
        %v5341 = vld [vmem:[%s1043 + $0x258] sm:$0xcc]
        %v5342 = vld [vmem:[%s1043 + $0x260] sm:$0xff]
        %v5343 = vld [vmem:[%s1043 + $0x268] sm:$0xff]
        %v5344 = vld [vmem:[%s1043 + $0x270] sm:$0x33]
        %v5345 = vld [vmem:[%s1043 + $0x278] sm:$0x33]
        %v5346 = vld [vmem:[%s1043 + $0x290] sm:$0xcc]
        %v5347 = vld [vmem:[%s1043 + $0x298] sm:$0xcc]
        %v5348 = vld [vmem:[%s1043 + $0x2a0] sm:$0xff]
        %v5349 = vld [vmem:[%s1043 + $0x2a8] sm:$0xff]
        %v5350 = vld [vmem:[%s1043 + $0x2b0] sm:$0x33]
        %v5351 = vld [vmem:[%s1043 + $0x2b8] sm:$0x33]
        %v5352 = vld [vmem:[%s1043 + $0x2d0] sm:$0xcc]
        %v5353 = vld [vmem:[%s1043 + $0x2d8] sm:$0xcc]
        %v5354 = vld [vmem:[%s1043 + $0x2e0] sm:$0xff]
        %v5355 = vld [vmem:[%s1043 + $0x2e8] sm:$0xff]
        %v5356 = vld [vmem:[%s1043 + $0x2f0] sm:$0x33]
        %v5357 = vld [vmem:[%s1043 + $0x2f8] sm:$0x33]
        %v5358 = vld [vmem:[%s1043 + $0x310] sm:$0xcc]
        %v5359 = vld [vmem:[%s1043 + $0x318] sm:$0xcc]
        %v5360 = vld [vmem:[%s1043 + $0x320] sm:$0xff]
        %v5361 = vld [vmem:[%s1043 + $0x328] sm:$0xff]
        %v5362 = vld [vmem:[%s1043 + $0x330] sm:$0x33]
        %v5363 = vld [vmem:[%s1043 + $0x338] sm:$0x33]
        %v5364 = vld [vmem:[%s1043 + $0x350] sm:$0xcc]
        %v5365 = vld [vmem:[%s1043 + $0x358] sm:$0xcc]
        %v5366 = vld [vmem:[%s1043 + $0x360] sm:$0xff]
        %v5367 = vld [vmem:[%s1043 + $0x368] sm:$0xff]
        %v5368 = vld [vmem:[%s1043 + $0x370] sm:$0x33]
        %v5369 = vld [vmem:[%s1043 + $0x378] sm:$0x33]
        %v5370 = vld [vmem:[%s1043 + $0x390] sm:$0xcc]
        %v5371 = vld [vmem:[%s1043 + $0x398] sm:$0xcc]
        %v5372 = vld [vmem:[%s1043 + $0x3a0] sm:$0xff]
        %v5373 = vld [vmem:[%s1043 + $0x3a8] sm:$0xff]
        %v5374 = vld [vmem:[%s1043 + $0x3b0] sm:$0x33]
        %v5375 = vld [vmem:[%s1043 + $0x3b8] sm:$0x33]
        %v5376 = vld [vmem:[%s1043 + $0x3d0] sm:$0xcc]
        %v5377 = vld [vmem:[%s1043 + $0x3d8] sm:$0xcc]
        %v5378 = vld [vmem:[%s1043 + $0x3e0] sm:$0xff]
        %v5379 = vld [vmem:[%s1043 + $0x3e8] sm:$0xff]
        %v5380 = vld [vmem:[%s1043 + $0x3f0] sm:$0x33]
        %v5381 = vld [vmem:[%s1043 + $0x3f8] sm:$0x33]
        %v5382 = vld [vmem:[%s1043 + $0x410] sm:$0xcc]
        %v5383 = vld [vmem:[%s1043 + $0x418] sm:$0xcc]
        %v5384 = vld [vmem:[%s1043 + $0x420] sm:$0xff]
        %v5385 = vld [vmem:[%s1043 + $0x428] sm:$0xff]
        %v5386 = vld [vmem:[%s1043 + $0x430] sm:$0x33]
        %v5387 = vld [vmem:[%s1043 + $0x438] sm:$0x33]
        %v5388 = vld [vmem:[%s1043 + $0x450] sm:$0xcc]
        %v5389 = vld [vmem:[%s1043 + $0x458] sm:$0xcc]
        %v5390 = vld [vmem:[%s1043 + $0x460] sm:$0xff]
        %v5391 = vld [vmem:[%s1043 + $0x468] sm:$0xff]
        %v5392 = vld [vmem:[%s1043 + $0x470] sm:$0x33]
        %v5393 = vld [vmem:[%s1043 + $0x478] sm:$0x33]
        %v5394 = vld [vmem:[%s1043 + $0x490] sm:$0xcc]
        %v5395 = vld [vmem:[%s1043 + $0x498] sm:$0xcc]
        %v5396 = vld [vmem:[%s1043 + $0x4a0] sm:$0xff]
        %v5397 = vld [vmem:[%s1043 + $0x4a8] sm:$0xff]
        %v5398 = vld [vmem:[%s1043 + $0x4b0] sm:$0x33]
        %v5399 = vld [vmem:[%s1043 + $0x4b8] sm:$0x33]
        %v5400 = vld [vmem:[%s1043 + $0x4d0] sm:$0xcc]
        %v5401 = vld [vmem:[%s1043 + $0x4d8] sm:$0xcc]
        %v5402 = vld [vmem:[%s1043 + $0x4e0] sm:$0xff]
        %v5403 = vld [vmem:[%s1043 + $0x4e8] sm:$0xff]
        %v5404 = vld [vmem:[%s1043 + $0x4f0] sm:$0x33]
        %v5405 = vld [vmem:[%s1043 + $0x4f8] sm:$0x33]
        %v5406 = vld [vmem:[%s1043 + $0x510] sm:$0xcc]
        %v5407 = vld [vmem:[%s1043 + $0x518] sm:$0xcc]
        %v5408 = vld [vmem:[%s1043 + $0x520] sm:$0xff]
        %v5409 = vld [vmem:[%s1043 + $0x528] sm:$0xff]
        %v5410 = vld [vmem:[%s1043 + $0x530] sm:$0x33]
        %v5411 = vld [vmem:[%s1043 + $0x538] sm:$0x33]
        %v5412 = vld [vmem:[%s1043 + $0x550] sm:$0xcc]
        %v5413 = vld [vmem:[%s1043 + $0x558] sm:$0xcc]
        %v5414 = vld [vmem:[%s1043 + $0x560] sm:$0xff]
        %v5415 = vld [vmem:[%s1043 + $0x568] sm:$0xff]
        %v5416 = vld [vmem:[%s1043 + $0x570] sm:$0x33]
        %v5417 = vld [vmem:[%s1043 + $0x578] sm:$0x33]
        %v5418 = vld [vmem:[%s1043 + $0x590] sm:$0xcc]
        %v5419 = vld [vmem:[%s1043 + $0x598] sm:$0xcc]
        %v5420 = vld [vmem:[%s1043 + $0x5a0] sm:$0xff]
        %v5421 = vld [vmem:[%s1043 + $0x5a8] sm:$0xff]
        %v5422 = vld [vmem:[%s1043 + $0x5b0] sm:$0x33]
        %v5423 = vld [vmem:[%s1043 + $0x5b8] sm:$0x33]
        %v5424 = vld [vmem:[%s1043 + $0x5d0] sm:$0xcc]
        %v5425 = vld [vmem:[%s1043 + $0x5d8] sm:$0xcc]
        %v5426 = vld [vmem:[%s1043 + $0x5e0] sm:$0xff]
        %v5427 = vld [vmem:[%s1043 + $0x5e8] sm:$0xff]
        %v5428 = vld [vmem:[%s1043 + $0x5f0] sm:$0x33]
        %v5429 = vld [vmem:[%s1043 + $0x5f8] sm:$0x33]
        %v5430 = vld [vmem:[%s1043 + $0x610] sm:$0xcc]
        %v5431 = vld [vmem:[%s1043 + $0x618] sm:$0xcc]
        %v5432 = vld [vmem:[%s1043 + $0x620] sm:$0xff]
        %v5433 = vld [vmem:[%s1043 + $0x628] sm:$0xff]
        %v5434 = vld [vmem:[%s1043 + $0x630] sm:$0x33]
        %v5435 = vld [vmem:[%s1043 + $0x638] sm:$0x33]
        %v5436 = vld [vmem:[%s1043 + $0x650] sm:$0xcc]
        %v5437 = vld [vmem:[%s1043 + $0x658] sm:$0xcc]
        %v5438 = vld [vmem:[%s1043 + $0x660] sm:$0xff]
        %v5439 = vld [vmem:[%s1043 + $0x668] sm:$0xff]
        %v5440 = vld [vmem:[%s1043 + $0x670] sm:$0x33]
        %v5441 = vld [vmem:[%s1043 + $0x678] sm:$0x33]
        %v5442 = vld [vmem:[%s1043 + $0x690] sm:$0xcc]
        %v5443 = vld [vmem:[%s1043 + $0x698] sm:$0xcc]
        %v5444 = vld [vmem:[%s1043 + $0x6a0] sm:$0xff]
        %v5445 = vld [vmem:[%s1043 + $0x6a8] sm:$0xff]
        %v5446 = vld [vmem:[%s1043 + $0x6b0] sm:$0x33]
        %v5447 = vld [vmem:[%s1043 + $0x6b8] sm:$0x33]
        %v5448 = vld [vmem:[%s1043 + $0x6d0] sm:$0xcc]
        %v5449 = vld [vmem:[%s1043 + $0x6d8] sm:$0xcc]
        %v5450 = vld [vmem:[%s1043 + $0x6e0] sm:$0xff]
        %v5451 = vld [vmem:[%s1043 + $0x6e8] sm:$0xff]
        %v5452 = vld [vmem:[%s1043 + $0x6f0] sm:$0x33]
        %v5453 = vld [vmem:[%s1043 + $0x6f8] sm:$0x33]
        %v5454 = vld [vmem:[%s1043 + $0x710] sm:$0xcc]
        %v5455 = vld [vmem:[%s1043 + $0x718] sm:$0xcc]
        %v5456 = vld [vmem:[%s1043 + $0x720] sm:$0xff]
        %v5457 = vld [vmem:[%s1043 + $0x728] sm:$0xff]
        %v5458 = vld [vmem:[%s1043 + $0x730] sm:$0x33]
        %v5459 = vld [vmem:[%s1043 + $0x738] sm:$0x33]
        %v5460 = vld [vmem:[%s1043 + $0x750] sm:$0xcc]
        %v5461 = vld [vmem:[%s1043 + $0x758] sm:$0xcc]
        %v5462 = vld [vmem:[%s1043 + $0x760] sm:$0xff]
        %v5463 = vld [vmem:[%s1043 + $0x768] sm:$0xff]
        %v5464 = vld [vmem:[%s1043 + $0x770] sm:$0x33]
        %v5465 = vld [vmem:[%s1043 + $0x778] sm:$0x33]
        %v5466 = vld [vmem:[%s1043 + $0x790] sm:$0xcc]
        %v5467 = vld [vmem:[%s1043 + $0x798] sm:$0xcc]
        %v5468 = vld [vmem:[%s1043 + $0x7a0] sm:$0xff]
        %v5469 = vld [vmem:[%s1043 + $0x7a8] sm:$0xff]
        %v5470 = vld [vmem:[%s1043 + $0x7b0] sm:$0x33]
        %v5471 = vld [vmem:[%s1043 + $0x7b8] sm:$0x33]
        %v5472 = vld [vmem:[%s1043 + $0x7d0] sm:$0xcc]
        %v5473 = vld [vmem:[%s1043 + $0x7d8] sm:$0xcc]
        %v5474 = vld [vmem:[%s1043 + $0x7e0] sm:$0xff]
        %v5475 = vld [vmem:[%s1043 + $0x7e8] sm:$0xff]
        %v5476 = vld [vmem:[%s1043 + $0x7f0] sm:$0x33]
        %v5477 = vld [vmem:[%s1043 + $0x7f8] sm:$0x33]
        %vm5670 = vcmask 1041408
        %vm5671 = vcmask 1045508
        %vm5672 = vmor %vm5670, %vm5671
        %v5673 = vrot.slane %v5286, 6
        %v5674 = vrot.slane %v5673, 4
        %v5675 = vrot.slane %v5288, 6
        %v5676 = vsel %vm5672, %v5674, %v5675
        %v5677 = vrot.slane %v5287, 6
        %v5678 = vrot.slane %v5677, 4
        %v5679 = vrot.slane %v5289, 6
        %v5680 = vsel %vm5672, %v5678, %v5679
        %v5681 = vrot.slane %v5675, 4
        %v5682 = vrot.slane %v5290, 6
        %v5683 = vsel %vm5672, %v5681, %v5682
        %v5684 = vrot.slane %v5679, 4
        %v5685 = vrot.slane %v5291, 6
        %v5686 = vsel %vm5672, %v5684, %v5685
        %v5687 = vrot.slane %v5292, 6
        %v5688 = vrot.slane %v5687, 4
        %v5689 = vrot.slane %v5294, 6
        %v5690 = vsel %vm5672, %v5688, %v5689
        %v5691 = vrot.slane %v5293, 6
        %v5692 = vrot.slane %v5691, 4
        %v5693 = vrot.slane %v5295, 6
        %v5694 = vsel %vm5672, %v5692, %v5693
        %v5695 = vrot.slane %v5689, 4
        %v5696 = vrot.slane %v5296, 6
        %v5697 = vsel %vm5672, %v5695, %v5696
        %v5698 = vrot.slane %v5693, 4
        %v5699 = vrot.slane %v5297, 6
        %v5700 = vsel %vm5672, %v5698, %v5699
        %v5701 = vrot.slane %v5298, 6
        %v5702 = vrot.slane %v5701, 4
        %v5703 = vrot.slane %v5300, 6
        %v5704 = vsel %vm5672, %v5702, %v5703
        %v5705 = vrot.slane %v5299, 6
        %v5706 = vrot.slane %v5705, 4
        %v5707 = vrot.slane %v5301, 6
        %v5708 = vsel %vm5672, %v5706, %v5707
        %v5709 = vrot.slane %v5703, 4
        %v5710 = vrot.slane %v5302, 6
        %v5711 = vsel %vm5672, %v5709, %v5710
        %v5712 = vrot.slane %v5707, 4
        %v5713 = vrot.slane %v5303, 6
        %v5714 = vsel %vm5672, %v5712, %v5713
        %v5715 = vrot.slane %v5304, 6
        %v5716 = vrot.slane %v5715, 4
        %v5717 = vrot.slane %v5306, 6
        %v5718 = vsel %vm5672, %v5716, %v5717
        %v5719 = vrot.slane %v5305, 6
        %v5720 = vrot.slane %v5719, 4
        %v5721 = vrot.slane %v5307, 6
        %v5722 = vsel %vm5672, %v5720, %v5721
        %v5723 = vrot.slane %v5717, 4
        %v5724 = vrot.slane %v5308, 6
        %v5725 = vsel %vm5672, %v5723, %v5724
        %v5726 = vrot.slane %v5721, 4
        %v5727 = vrot.slane %v5309, 6
        %v5728 = vsel %vm5672, %v5726, %v5727
        %v5729 = vrot.slane %v5310, 6
        %v5730 = vrot.slane %v5729, 4
        %v5731 = vrot.slane %v5312, 6
        %v5732 = vsel %vm5672, %v5730, %v5731
        %v5733 = vrot.slane %v5311, 6
        %v5734 = vrot.slane %v5733, 4
        %v5735 = vrot.slane %v5313, 6
        %v5736 = vsel %vm5672, %v5734, %v5735
        %v5737 = vrot.slane %v5731, 4
        %v5738 = vrot.slane %v5314, 6
        %v5739 = vsel %vm5672, %v5737, %v5738
        %v5740 = vrot.slane %v5735, 4
        %v5741 = vrot.slane %v5315, 6
        %v5742 = vsel %vm5672, %v5740, %v5741
        %v5743 = vrot.slane %v5316, 6
        %v5744 = vrot.slane %v5743, 4
        %v5745 = vrot.slane %v5318, 6
        %v5746 = vsel %vm5672, %v5744, %v5745
        %v5747 = vrot.slane %v5317, 6
        %v5748 = vrot.slane %v5747, 4
        %v5749 = vrot.slane %v5319, 6
        %v5750 = vsel %vm5672, %v5748, %v5749
        %v5751 = vrot.slane %v5745, 4
        %v5752 = vrot.slane %v5320, 6
        %v5753 = vsel %vm5672, %v5751, %v5752
        %v5754 = vrot.slane %v5749, 4
        %v5755 = vrot.slane %v5321, 6
        %v5756 = vsel %vm5672, %v5754, %v5755
        %v5757 = vrot.slane %v5322, 6
        %v5758 = vrot.slane %v5757, 4
        %v5759 = vrot.slane %v5324, 6
        %v5760 = vsel %vm5672, %v5758, %v5759
        %v5761 = vrot.slane %v5323, 6
        %v5762 = vrot.slane %v5761, 4
        %v5763 = vrot.slane %v5325, 6
        %v5764 = vsel %vm5672, %v5762, %v5763
        %v5765 = vrot.slane %v5759, 4
        %v5766 = vrot.slane %v5326, 6
        %v5767 = vsel %vm5672, %v5765, %v5766
        %v5768 = vrot.slane %v5763, 4
        %v5769 = vrot.slane %v5327, 6
        %v5770 = vsel %vm5672, %v5768, %v5769
        %v5771 = vrot.slane %v5328, 6
        %v5772 = vrot.slane %v5771, 4
        %v5773 = vrot.slane %v5330, 6
        %v5774 = vsel %vm5672, %v5772, %v5773
        %v5775 = vrot.slane %v5329, 6
        %v5776 = vrot.slane %v5775, 4
        %v5777 = vrot.slane %v5331, 6
        %v5778 = vsel %vm5672, %v5776, %v5777
        %v5779 = vrot.slane %v5773, 4
        %v5780 = vrot.slane %v5332, 6
        %v5781 = vsel %vm5672, %v5779, %v5780
        %v5782 = vrot.slane %v5777, 4
        %v5783 = vrot.slane %v5333, 6
        %v5784 = vsel %vm5672, %v5782, %v5783
        %v5785 = vrot.slane %v5334, 6
        %v5786 = vrot.slane %v5785, 4
        %v5787 = vrot.slane %v5336, 6
        %v5788 = vsel %vm5672, %v5786, %v5787
        %v5789 = vrot.slane %v5335, 6
        %v5790 = vrot.slane %v5789, 4
        %v5791 = vrot.slane %v5337, 6
        %v5792 = vsel %vm5672, %v5790, %v5791
        %v5793 = vrot.slane %v5787, 4
        %v5794 = vrot.slane %v5338, 6
        %v5795 = vsel %vm5672, %v5793, %v5794
        %v5796 = vrot.slane %v5791, 4
        %v5797 = vrot.slane %v5339, 6
        %v5798 = vsel %vm5672, %v5796, %v5797
        %v5799 = vrot.slane %v5340, 6
        %v5800 = vrot.slane %v5799, 4
        %v5801 = vrot.slane %v5342, 6
        %v5802 = vsel %vm5672, %v5800, %v5801
        %v5803 = vrot.slane %v5341, 6
        %v5804 = vrot.slane %v5803, 4
        %v5805 = vrot.slane %v5343, 6
        %v5806 = vsel %vm5672, %v5804, %v5805
        %v5807 = vrot.slane %v5801, 4
        %v5808 = vrot.slane %v5344, 6
        %v5809 = vsel %vm5672, %v5807, %v5808
        %v5810 = vrot.slane %v5805, 4
        %v5811 = vrot.slane %v5345, 6
        %v5812 = vsel %vm5672, %v5810, %v5811
        %v5813 = vrot.slane %v5346, 6
        %v5814 = vrot.slane %v5813, 4
        %v5815 = vrot.slane %v5348, 6
        %v5816 = vsel %vm5672, %v5814, %v5815
        %v5817 = vrot.slane %v5347, 6
        %v5818 = vrot.slane %v5817, 4
        %v5819 = vrot.slane %v5349, 6
        %v5820 = vsel %vm5672, %v5818, %v5819
        %v5821 = vrot.slane %v5815, 4
        %v5822 = vrot.slane %v5350, 6
        %v5823 = vsel %vm5672, %v5821, %v5822
        %v5824 = vrot.slane %v5819, 4
        %v5825 = vrot.slane %v5351, 6
        %v5826 = vsel %vm5672, %v5824, %v5825
        %v5827 = vrot.slane %v5352, 6
        %v5828 = vrot.slane %v5827, 4
        %v5829 = vrot.slane %v5354, 6
        %v5830 = vsel %vm5672, %v5828, %v5829
        %v5831 = vrot.slane %v5353, 6
        %v5832 = vrot.slane %v5831, 4
        %v5833 = vrot.slane %v5355, 6
        %v5834 = vsel %vm5672, %v5832, %v5833
        %v5835 = vrot.slane %v5829, 4
        %v5836 = vrot.slane %v5356, 6
        %v5837 = vsel %vm5672, %v5835, %v5836
        %v5838 = vrot.slane %v5833, 4
        %v5839 = vrot.slane %v5357, 6
        %v5840 = vsel %vm5672, %v5838, %v5839
        %v5841 = vrot.slane %v5358, 6
        %v5842 = vrot.slane %v5841, 4
        %v5843 = vrot.slane %v5360, 6
        %v5844 = vsel %vm5672, %v5842, %v5843
        %v5845 = vrot.slane %v5359, 6
        %v5846 = vrot.slane %v5845, 4
        %v5847 = vrot.slane %v5361, 6
        %v5848 = vsel %vm5672, %v5846, %v5847
        %v5849 = vrot.slane %v5843, 4
        %v5850 = vrot.slane %v5362, 6
        %v5851 = vsel %vm5672, %v5849, %v5850
        %v5852 = vrot.slane %v5847, 4
        %v5853 = vrot.slane %v5363, 6
        %v5854 = vsel %vm5672, %v5852, %v5853
        %v5855 = vrot.slane %v5364, 6
        %v5856 = vrot.slane %v5855, 4
        %v5857 = vrot.slane %v5366, 6
        %v5858 = vsel %vm5672, %v5856, %v5857
        %v5859 = vrot.slane %v5365, 6
        %v5860 = vrot.slane %v5859, 4
        %v5861 = vrot.slane %v5367, 6
        %v5862 = vsel %vm5672, %v5860, %v5861
        %v5863 = vrot.slane %v5857, 4
        %v5864 = vrot.slane %v5368, 6
        %v5865 = vsel %vm5672, %v5863, %v5864
        %v5866 = vrot.slane %v5861, 4
        %v5867 = vrot.slane %v5369, 6
        %v5868 = vsel %vm5672, %v5866, %v5867
        %v5869 = vrot.slane %v5370, 6
        %v5870 = vrot.slane %v5869, 4
        %v5871 = vrot.slane %v5372, 6
        %v5872 = vsel %vm5672, %v5870, %v5871
        %v5873 = vrot.slane %v5371, 6
        %v5874 = vrot.slane %v5873, 4
        %v5875 = vrot.slane %v5373, 6
        %v5876 = vsel %vm5672, %v5874, %v5875
        %v5877 = vrot.slane %v5871, 4
        %v5878 = vrot.slane %v5374, 6
        %v5879 = vsel %vm5672, %v5877, %v5878
        %v5880 = vrot.slane %v5875, 4
        %v5881 = vrot.slane %v5375, 6
        %v5882 = vsel %vm5672, %v5880, %v5881
        %v5883 = vrot.slane %v5376, 6
        %v5884 = vrot.slane %v5883, 4
        %v5885 = vrot.slane %v5378, 6
        %v5886 = vsel %vm5672, %v5884, %v5885
        %v5887 = vrot.slane %v5377, 6
        %v5888 = vrot.slane %v5887, 4
        %v5889 = vrot.slane %v5379, 6
        %v5890 = vsel %vm5672, %v5888, %v5889
        %v5891 = vrot.slane %v5885, 4
        %v5892 = vrot.slane %v5380, 6
        %v5893 = vsel %vm5672, %v5891, %v5892
        %v5894 = vrot.slane %v5889, 4
        %v5895 = vrot.slane %v5381, 6
        %v5896 = vsel %vm5672, %v5894, %v5895
        %v5897 = vrot.slane %v5382, 6
        %v5898 = vrot.slane %v5897, 4
        %v5899 = vrot.slane %v5384, 6
        %v5900 = vsel %vm5672, %v5898, %v5899
        %v5901 = vrot.slane %v5383, 6
        %v5902 = vrot.slane %v5901, 4
        %v5903 = vrot.slane %v5385, 6
        %v5904 = vsel %vm5672, %v5902, %v5903
        %v5905 = vrot.slane %v5899, 4
        %v5906 = vrot.slane %v5386, 6
        %v5907 = vsel %vm5672, %v5905, %v5906
        %v5908 = vrot.slane %v5903, 4
        %v5909 = vrot.slane %v5387, 6
        %v5910 = vsel %vm5672, %v5908, %v5909
        %v5911 = vrot.slane %v5388, 6
        %v5912 = vrot.slane %v5911, 4
        %v5913 = vrot.slane %v5390, 6
        %v5914 = vsel %vm5672, %v5912, %v5913
        %v5915 = vrot.slane %v5389, 6
        %v5916 = vrot.slane %v5915, 4
        %v5917 = vrot.slane %v5391, 6
        %v5918 = vsel %vm5672, %v5916, %v5917
        %v5919 = vrot.slane %v5913, 4
        %v5920 = vrot.slane %v5392, 6
        %v5921 = vsel %vm5672, %v5919, %v5920
        %v5922 = vrot.slane %v5917, 4
        %v5923 = vrot.slane %v5393, 6
        %v5924 = vsel %vm5672, %v5922, %v5923
        %v5925 = vrot.slane %v5394, 6
        %v5926 = vrot.slane %v5925, 4
        %v5927 = vrot.slane %v5396, 6
        %v5928 = vsel %vm5672, %v5926, %v5927
        %v5929 = vrot.slane %v5395, 6
        %v5930 = vrot.slane %v5929, 4
        %v5931 = vrot.slane %v5397, 6
        %v5932 = vsel %vm5672, %v5930, %v5931
        %v5933 = vrot.slane %v5927, 4
        %v5934 = vrot.slane %v5398, 6
        %v5935 = vsel %vm5672, %v5933, %v5934
        %v5936 = vrot.slane %v5931, 4
        %v5937 = vrot.slane %v5399, 6
        %v5938 = vsel %vm5672, %v5936, %v5937
        %v5939 = vrot.slane %v5400, 6
        %v5940 = vrot.slane %v5939, 4
        %v5941 = vrot.slane %v5402, 6
        %v5942 = vsel %vm5672, %v5940, %v5941
        %v5943 = vrot.slane %v5401, 6
        %v5944 = vrot.slane %v5943, 4
        %v5945 = vrot.slane %v5403, 6
        %v5946 = vsel %vm5672, %v5944, %v5945
        %v5947 = vrot.slane %v5941, 4
        %v5948 = vrot.slane %v5404, 6
        %v5949 = vsel %vm5672, %v5947, %v5948
        %v5950 = vrot.slane %v5945, 4
        %v5951 = vrot.slane %v5405, 6
        %v5952 = vsel %vm5672, %v5950, %v5951
        %v5953 = vrot.slane %v5406, 6
        %v5954 = vrot.slane %v5953, 4
        %v5955 = vrot.slane %v5408, 6
        %v5956 = vsel %vm5672, %v5954, %v5955
        %v5957 = vrot.slane %v5407, 6
        %v5958 = vrot.slane %v5957, 4
        %v5959 = vrot.slane %v5409, 6
        %v5960 = vsel %vm5672, %v5958, %v5959
        %v5961 = vrot.slane %v5955, 4
        %v5962 = vrot.slane %v5410, 6
        %v5963 = vsel %vm5672, %v5961, %v5962
        %v5964 = vrot.slane %v5959, 4
        %v5965 = vrot.slane %v5411, 6
        %v5966 = vsel %vm5672, %v5964, %v5965
        %v5967 = vrot.slane %v5412, 6
        %v5968 = vrot.slane %v5967, 4
        %v5969 = vrot.slane %v5414, 6
        %v5970 = vsel %vm5672, %v5968, %v5969
        %v5971 = vrot.slane %v5413, 6
        %v5972 = vrot.slane %v5971, 4
        %v5973 = vrot.slane %v5415, 6
        %v5974 = vsel %vm5672, %v5972, %v5973
        %v5975 = vrot.slane %v5969, 4
        %v5976 = vrot.slane %v5416, 6
        %v5977 = vsel %vm5672, %v5975, %v5976
        %v5978 = vrot.slane %v5973, 4
        %v5979 = vrot.slane %v5417, 6
        %v5980 = vsel %vm5672, %v5978, %v5979
        %v5981 = vrot.slane %v5418, 6
        %v5982 = vrot.slane %v5981, 4
        %v5983 = vrot.slane %v5420, 6
        %v5984 = vsel %vm5672, %v5982, %v5983
        %v5985 = vrot.slane %v5419, 6
        %v5986 = vrot.slane %v5985, 4
        %v5987 = vrot.slane %v5421, 6
        %v5988 = vsel %vm5672, %v5986, %v5987
        %v5989 = vrot.slane %v5983, 4
        %v5990 = vrot.slane %v5422, 6
        %v5991 = vsel %vm5672, %v5989, %v5990
        %v5992 = vrot.slane %v5987, 4
        %v5993 = vrot.slane %v5423, 6
        %v5994 = vsel %vm5672, %v5992, %v5993
        %v5995 = vrot.slane %v5424, 6
        %v5996 = vrot.slane %v5995, 4
        %v5997 = vrot.slane %v5426, 6
        %v5998 = vsel %vm5672, %v5996, %v5997
        %v5999 = vrot.slane %v5425, 6
        %v6000 = vrot.slane %v5999, 4
        %v6001 = vrot.slane %v5427, 6
        %v6002 = vsel %vm5672, %v6000, %v6001
        %v6003 = vrot.slane %v5997, 4
        %v6004 = vrot.slane %v5428, 6
        %v6005 = vsel %vm5672, %v6003, %v6004
        %v6006 = vrot.slane %v6001, 4
        %v6007 = vrot.slane %v5429, 6
        %v6008 = vsel %vm5672, %v6006, %v6007
        %v6009 = vrot.slane %v5430, 6
        %v6010 = vrot.slane %v6009, 4
        %v6011 = vrot.slane %v5432, 6
        %v6012 = vsel %vm5672, %v6010, %v6011
        %v6013 = vrot.slane %v5431, 6
        %v6014 = vrot.slane %v6013, 4
        %v6015 = vrot.slane %v5433, 6
        %v6016 = vsel %vm5672, %v6014, %v6015
        %v6017 = vrot.slane %v6011, 4
        %v6018 = vrot.slane %v5434, 6
        %v6019 = vsel %vm5672, %v6017, %v6018
        %v6020 = vrot.slane %v6015, 4
        %v6021 = vrot.slane %v5435, 6
        %v6022 = vsel %vm5672, %v6020, %v6021
        %v6023 = vrot.slane %v5436, 6
        %v6024 = vrot.slane %v6023, 4
        %v6025 = vrot.slane %v5438, 6
        %v6026 = vsel %vm5672, %v6024, %v6025
        %v6027 = vrot.slane %v5437, 6
        %v6028 = vrot.slane %v6027, 4
        %v6029 = vrot.slane %v5439, 6
        %v6030 = vsel %vm5672, %v6028, %v6029
        %v6031 = vrot.slane %v6025, 4
        %v6032 = vrot.slane %v5440, 6
        %v6033 = vsel %vm5672, %v6031, %v6032
        %v6034 = vrot.slane %v6029, 4
        %v6035 = vrot.slane %v5441, 6
        %v6036 = vsel %vm5672, %v6034, %v6035
        %v6037 = vrot.slane %v5442, 6
        %v6038 = vrot.slane %v6037, 4
        %v6039 = vrot.slane %v5444, 6
        %v6040 = vsel %vm5672, %v6038, %v6039
        %v6041 = vrot.slane %v5443, 6
        %v6042 = vrot.slane %v6041, 4
        %v6043 = vrot.slane %v5445, 6
        %v6044 = vsel %vm5672, %v6042, %v6043
        %v6045 = vrot.slane %v6039, 4
        %v6046 = vrot.slane %v5446, 6
        %v6047 = vsel %vm5672, %v6045, %v6046
        %v6048 = vrot.slane %v6043, 4
        %v6049 = vrot.slane %v5447, 6
        %v6050 = vsel %vm5672, %v6048, %v6049
        %v6051 = vrot.slane %v5448, 6
        %v6052 = vrot.slane %v6051, 4
        %v6053 = vrot.slane %v5450, 6
        %v6054 = vsel %vm5672, %v6052, %v6053
        %v6055 = vrot.slane %v5449, 6
        %v6056 = vrot.slane %v6055, 4
        %v6057 = vrot.slane %v5451, 6
        %v6058 = vsel %vm5672, %v6056, %v6057
        %v6059 = vrot.slane %v6053, 4
        %v6060 = vrot.slane %v5452, 6
        %v6061 = vsel %vm5672, %v6059, %v6060
        %v6062 = vrot.slane %v6057, 4
        %v6063 = vrot.slane %v5453, 6
        %v6064 = vsel %vm5672, %v6062, %v6063
        %v6065 = vrot.slane %v5454, 6
        %v6066 = vrot.slane %v6065, 4
        %v6067 = vrot.slane %v5456, 6
        %v6068 = vsel %vm5672, %v6066, %v6067
        %v6069 = vrot.slane %v5455, 6
        %v6070 = vrot.slane %v6069, 4
        %v6071 = vrot.slane %v5457, 6
        %v6072 = vsel %vm5672, %v6070, %v6071
        %v6073 = vrot.slane %v6067, 4
        %v6074 = vrot.slane %v5458, 6
        %v6075 = vsel %vm5672, %v6073, %v6074
        %v6076 = vrot.slane %v6071, 4
        %v6077 = vrot.slane %v5459, 6
        %v6078 = vsel %vm5672, %v6076, %v6077
        %v6079 = vrot.slane %v5460, 6
        %v6080 = vrot.slane %v6079, 4
        %v6081 = vrot.slane %v5462, 6
        %v6082 = vsel %vm5672, %v6080, %v6081
        %v6083 = vrot.slane %v5461, 6
        %v6084 = vrot.slane %v6083, 4
        %v6085 = vrot.slane %v5463, 6
        %v6086 = vsel %vm5672, %v6084, %v6085
        %v6087 = vrot.slane %v6081, 4
        %v6088 = vrot.slane %v5464, 6
        %v6089 = vsel %vm5672, %v6087, %v6088
        %v6090 = vrot.slane %v6085, 4
        %v6091 = vrot.slane %v5465, 6
        %v6092 = vsel %vm5672, %v6090, %v6091
        %v6093 = vrot.slane %v5466, 6
        %v6094 = vrot.slane %v6093, 4
        %v6095 = vrot.slane %v5468, 6
        %v6096 = vsel %vm5672, %v6094, %v6095
        %v6097 = vrot.slane %v5467, 6
        %v6098 = vrot.slane %v6097, 4
        %v6099 = vrot.slane %v5469, 6
        %v6100 = vsel %vm5672, %v6098, %v6099
        %v6101 = vrot.slane %v6095, 4
        %v6102 = vrot.slane %v5470, 6
        %v6103 = vsel %vm5672, %v6101, %v6102
        %v6104 = vrot.slane %v6099, 4
        %v6105 = vrot.slane %v5471, 6
        %v6106 = vsel %vm5672, %v6104, %v6105
        %v6107 = vrot.slane %v5472, 6
        %v6108 = vrot.slane %v6107, 4
        %v6109 = vrot.slane %v5474, 6
        %v6110 = vsel %vm5672, %v6108, %v6109
        %v6111 = vrot.slane %v5473, 6
        %v6112 = vrot.slane %v6111, 4
        %v6113 = vrot.slane %v5475, 6
        %v6114 = vsel %vm5672, %v6112, %v6113
        %v6115 = vrot.slane %v6109, 4
        %v6116 = vrot.slane %v5476, 6
        %v6117 = vsel %vm5672, %v6115, %v6116
        %v6118 = vrot.slane %v6113, 4
        %v6119 = vrot.slane %v5477, 6
        %v6120 = vsel %vm5672, %v6118, %v6119
        %v6121 = vld [vmem:[#allocation2] sm:$0xff]
        %v6122 = vld [vmem:[#allocation2 + $0x8] sm:$0xff]
        %v6123 = vld [vmem:[#allocation2 + $0x10] sm:$0xff]
        %v6124 = vld [vmem:[#allocation2 + $0x18] sm:$0xff]
        %v6125 = vld [vmem:[#allocation2 + $0x20] sm:$0xff]
        %v6126 = vld [vmem:[#allocation2 + $0x28] sm:$0xff]
        %v6127 = vld [vmem:[#allocation2 + $0x30] sm:$0xff]
        %v6128 = vld [vmem:[#allocation2 + $0x38] sm:$0xff]
        %v6129 = vld [vmem:[#allocation2 + $0x40] sm:$0xff]
        %v6130 = vld [vmem:[#allocation2 + $0x48] sm:$0xff]
        %v6131 = vld [vmem:[#allocation2 + $0x50] sm:$0xff]
        %v6132 = vld [vmem:[#allocation2 + $0x58] sm:$0xff]
        %v6133 = vld [vmem:[#allocation2 + $0x60] sm:$0xff]
        %v6134 = vld [vmem:[#allocation2 + $0x68] sm:$0xff]
        %v6135 = vld [vmem:[#allocation2 + $0x70] sm:$0xff]
        %v6136 = vld [vmem:[#allocation2 + $0x78] sm:$0xff]
        %v6137 = vld [vmem:[#allocation2 + $0x80] sm:$0xff]
        %v6138 = vld [vmem:[#allocation2 + $0x88] sm:$0xff]
        %v6139 = vld [vmem:[#allocation2 + $0x90] sm:$0xff]
        %v6140 = vld [vmem:[#allocation2 + $0x98] sm:$0xff]
        %v6141 = vld [vmem:[#allocation2 + $0xa0] sm:$0xff]
        %v6142 = vld [vmem:[#allocation2 + $0xa8] sm:$0xff]
        %v6143 = vld [vmem:[#allocation2 + $0xb0] sm:$0xff]
        %v6144 = vld [vmem:[#allocation2 + $0xb8] sm:$0xff]
        %v6145 = vld [vmem:[#allocation2 + $0xc0] sm:$0xff]
        %v6146 = vld [vmem:[#allocation2 + $0xc8] sm:$0xff]
        %v6147 = vld [vmem:[#allocation2 + $0xd0] sm:$0xff]
        %v6148 = vld [vmem:[#allocation2 + $0xd8] sm:$0xff]
        %v6149 = vld [vmem:[#allocation2 + $0xe0] sm:$0xff]
        %v6150 = vld [vmem:[#allocation2 + $0xe8] sm:$0xff]
        %v6151 = vld [vmem:[#allocation2 + $0xf0] sm:$0xff]
        %v6152 = vld [vmem:[#allocation2 + $0xf8] sm:$0xff]
        %v6153 = vld [vmem:[#allocation2 + $0x100] sm:$0xff]
        %v6154 = vld [vmem:[#allocation2 + $0x108] sm:$0xff]
        %v6155 = vld [vmem:[#allocation2 + $0x110] sm:$0xff]
        %v6156 = vld [vmem:[#allocation2 + $0x118] sm:$0xff]
        %v6157 = vld [vmem:[#allocation2 + $0x120] sm:$0xff]
        %v6158 = vld [vmem:[#allocation2 + $0x128] sm:$0xff]
        %v6159 = vld [vmem:[#allocation2 + $0x130] sm:$0xff]
        %v6160 = vld [vmem:[#allocation2 + $0x138] sm:$0xff]
        %v6161 = vld [vmem:[#allocation2 + $0x140] sm:$0xff]
        %v6162 = vld [vmem:[#allocation2 + $0x148] sm:$0xff]
        %v6163 = vld [vmem:[#allocation2 + $0x150] sm:$0xff]
        %v6164 = vld [vmem:[#allocation2 + $0x158] sm:$0xff]
        %v6165 = vld [vmem:[#allocation2 + $0x160] sm:$0xff]
        %v6166 = vld [vmem:[#allocation2 + $0x168] sm:$0xff]
        %v6167 = vld [vmem:[#allocation2 + $0x170] sm:$0xff]
        %v6168 = vld [vmem:[#allocation2 + $0x178] sm:$0xff]
        %v6169 = vld [vmem:[#allocation2 + $0x180] sm:$0xff]
        %v6170 = vld [vmem:[#allocation2 + $0x188] sm:$0xff]
        %v6171 = vld [vmem:[#allocation2 + $0x190] sm:$0xff]
        %v6172 = vld [vmem:[#allocation2 + $0x198] sm:$0xff]
        %v6173 = vld [vmem:[#allocation2 + $0x1a0] sm:$0xff]
        %v6174 = vld [vmem:[#allocation2 + $0x1a8] sm:$0xff]
        %v6175 = vld [vmem:[#allocation2 + $0x1b0] sm:$0xff]
        %v6176 = vld [vmem:[#allocation2 + $0x1b8] sm:$0xff]
        %v6177 = vld [vmem:[#allocation2 + $0x1c0] sm:$0xff]
        %v6178 = vld [vmem:[#allocation2 + $0x1c8] sm:$0xff]
        %v6179 = vld [vmem:[#allocation2 + $0x1d0] sm:$0xff]
        %v6180 = vld [vmem:[#allocation2 + $0x1d8] sm:$0xff]
        %v6181 = vld [vmem:[#allocation2 + $0x1e0] sm:$0xff]
        %v6182 = vld [vmem:[#allocation2 + $0x1e8] sm:$0xff]
        %v6183 = vld [vmem:[#allocation2 + $0x1f0] sm:$0xff]
        %v6184 = vld [vmem:[#allocation2 + $0x1f8] sm:$0xff]
        %s6185 = scalar_lea.vmem %s1001, 512 [#allocation3]
        %v6186 = vld [vmem:[%s6185] sm:$0xf]
        %v6187 = vld [vmem:[%s6185 + $0x4] sm:$0xf]
        %v6188 = vld [vmem:[%s6185 + $0x8] sm:$0xf]
        %v6189 = vld [vmem:[%s6185 + $0xc] sm:$0xf]
        %v6190 = vld [vmem:[%s6185 + $0x10] sm:$0xf]
        %v6191 = vld [vmem:[%s6185 + $0x14] sm:$0xf]
        %v6192 = vld [vmem:[%s6185 + $0x18] sm:$0xf]
        %v6193 = vld [vmem:[%s6185 + $0x1c] sm:$0xf]
        %v6194 = vld [vmem:[%s6185 + $0x20] sm:$0xf]
        %v6195 = vld [vmem:[%s6185 + $0x24] sm:$0xf]
        %v6196 = vld [vmem:[%s6185 + $0x28] sm:$0xf]
        %v6197 = vld [vmem:[%s6185 + $0x2c] sm:$0xf]
        %v6198 = vld [vmem:[%s6185 + $0x30] sm:$0xf]
        %v6199 = vld [vmem:[%s6185 + $0x34] sm:$0xf]
        %v6200 = vld [vmem:[%s6185 + $0x38] sm:$0xf]
        %v6201 = vld [vmem:[%s6185 + $0x3c] sm:$0xf]
        %v6202 = vld [vmem:[%s6185 + $0x40] sm:$0xf]
        %v6203 = vld [vmem:[%s6185 + $0x44] sm:$0xf]
        %v6204 = vld [vmem:[%s6185 + $0x48] sm:$0xf]
        %v6205 = vld [vmem:[%s6185 + $0x4c] sm:$0xf]
        %v6206 = vld [vmem:[%s6185 + $0x50] sm:$0xf]
        %v6207 = vld [vmem:[%s6185 + $0x54] sm:$0xf]
        %v6208 = vld [vmem:[%s6185 + $0x58] sm:$0xf]
        %v6209 = vld [vmem:[%s6185 + $0x5c] sm:$0xf]
        %v6210 = vld [vmem:[%s6185 + $0x60] sm:$0xf]
        %v6211 = vld [vmem:[%s6185 + $0x64] sm:$0xf]
        %v6212 = vld [vmem:[%s6185 + $0x68] sm:$0xf]
        %v6213 = vld [vmem:[%s6185 + $0x6c] sm:$0xf]
        %v6214 = vld [vmem:[%s6185 + $0x70] sm:$0xf]
        %v6215 = vld [vmem:[%s6185 + $0x74] sm:$0xf]
        %v6216 = vld [vmem:[%s6185 + $0x78] sm:$0xf]
        %v6217 = vld [vmem:[%s6185 + $0x7c] sm:$0xf]
        %v6218 = vld [vmem:[%s6185 + $0x80] sm:$0xf]
        %v6219 = vld [vmem:[%s6185 + $0x84] sm:$0xf]
        %v6220 = vld [vmem:[%s6185 + $0x88] sm:$0xf]
        %v6221 = vld [vmem:[%s6185 + $0x8c] sm:$0xf]
        %v6222 = vld [vmem:[%s6185 + $0x90] sm:$0xf]
        %v6223 = vld [vmem:[%s6185 + $0x94] sm:$0xf]
        %v6224 = vld [vmem:[%s6185 + $0x98] sm:$0xf]
        %v6225 = vld [vmem:[%s6185 + $0x9c] sm:$0xf]
        %v6226 = vld [vmem:[%s6185 + $0xa0] sm:$0xf]
        %v6227 = vld [vmem:[%s6185 + $0xa4] sm:$0xf]
        %v6228 = vld [vmem:[%s6185 + $0xa8] sm:$0xf]
        %v6229 = vld [vmem:[%s6185 + $0xac] sm:$0xf]
        %v6230 = vld [vmem:[%s6185 + $0xb0] sm:$0xf]
        %v6231 = vld [vmem:[%s6185 + $0xb4] sm:$0xf]
        %v6232 = vld [vmem:[%s6185 + $0xb8] sm:$0xf]
        %v6233 = vld [vmem:[%s6185 + $0xbc] sm:$0xf]
        %v6234 = vld [vmem:[%s6185 + $0xc0] sm:$0xf]
        %v6235 = vld [vmem:[%s6185 + $0xc4] sm:$0xf]
        %v6236 = vld [vmem:[%s6185 + $0xc8] sm:$0xf]
        %v6237 = vld [vmem:[%s6185 + $0xcc] sm:$0xf]
        %v6238 = vld [vmem:[%s6185 + $0xd0] sm:$0xf]
        %v6239 = vld [vmem:[%s6185 + $0xd4] sm:$0xf]
        %v6240 = vld [vmem:[%s6185 + $0xd8] sm:$0xf]
        %v6241 = vld [vmem:[%s6185 + $0xdc] sm:$0xf]
        %v6242 = vld [vmem:[%s6185 + $0xe0] sm:$0xf]
        %v6243 = vld [vmem:[%s6185 + $0xe4] sm:$0xf]
        %v6244 = vld [vmem:[%s6185 + $0xe8] sm:$0xf]
        %v6245 = vld [vmem:[%s6185 + $0xec] sm:$0xf]
        %v6246 = vld [vmem:[%s6185 + $0xf0] sm:$0xf]
        %v6247 = vld [vmem:[%s6185 + $0xf4] sm:$0xf]
        %v6248 = vld [vmem:[%s6185 + $0xf8] sm:$0xf]
        %v6249 = vld [vmem:[%s6185 + $0xfc] sm:$0xf]
        %v6250 = vunpack.c.l.b16 %v5676
        %v6251 = vunpack.c.h.b16 %v5676
        %v6252 = vunpack.c.l.b16 %v5680
        %v6253 = vunpack.c.h.b16 %v5680
        %v6254 = vunpack.c.l.b16 %v5683
        %v6255 = vunpack.c.h.b16 %v5683
        %v6256 = vunpack.c.l.b16 %v5686
        %v6257 = vunpack.c.h.b16 %v5686
        %v6258 = vunpack.c.l.b16 %v5690
        %v6259 = vunpack.c.h.b16 %v5690
        %v6260 = vunpack.c.l.b16 %v5694
        %v6261 = vunpack.c.h.b16 %v5694
        %v6262 = vunpack.c.l.b16 %v5697
        %v6263 = vunpack.c.h.b16 %v5697
        %v6264 = vunpack.c.l.b16 %v5700
        %v6265 = vunpack.c.h.b16 %v5700
        %v6266 = vunpack.c.l.b16 %v5704
        %v6267 = vunpack.c.h.b16 %v5704
        %v6268 = vunpack.c.l.b16 %v5708
        %v6269 = vunpack.c.h.b16 %v5708
        %v6270 = vunpack.c.l.b16 %v5711
        %v6271 = vunpack.c.h.b16 %v5711
        %v6272 = vunpack.c.l.b16 %v5714
        %v6273 = vunpack.c.h.b16 %v5714
        %v6274 = vunpack.c.l.b16 %v5718
        %v6275 = vunpack.c.h.b16 %v5718
        %v6276 = vunpack.c.l.b16 %v5722
        %v6277 = vunpack.c.h.b16 %v5722
        %v6278 = vunpack.c.l.b16 %v5725
        %v6279 = vunpack.c.h.b16 %v5725
        %v6280 = vunpack.c.l.b16 %v5728
        %v6281 = vunpack.c.h.b16 %v5728
        %v6282 = vunpack.c.l.b16 %v5732
        %v6283 = vunpack.c.h.b16 %v5732
        %v6284 = vunpack.c.l.b16 %v5736
        %v6285 = vunpack.c.h.b16 %v5736
        %v6286 = vunpack.c.l.b16 %v5739
        %v6287 = vunpack.c.h.b16 %v5739
        %v6288 = vunpack.c.l.b16 %v5742
        %v6289 = vunpack.c.h.b16 %v5742
        %v6290 = vunpack.c.l.b16 %v5746
        %v6291 = vunpack.c.h.b16 %v5746
        %v6292 = vunpack.c.l.b16 %v5750
        %v6293 = vunpack.c.h.b16 %v5750
        %v6294 = vunpack.c.l.b16 %v5753
        %v6295 = vunpack.c.h.b16 %v5753
        %v6296 = vunpack.c.l.b16 %v5756
        %v6297 = vunpack.c.h.b16 %v5756
        %v6298 = vunpack.c.l.b16 %v5760
        %v6299 = vunpack.c.h.b16 %v5760
        %v6300 = vunpack.c.l.b16 %v5764
        %v6301 = vunpack.c.h.b16 %v5764
        %v6302 = vunpack.c.l.b16 %v5767
        %v6303 = vunpack.c.h.b16 %v5767
        %v6304 = vunpack.c.l.b16 %v5770
        %v6305 = vunpack.c.h.b16 %v5770
        %v6306 = vunpack.c.l.b16 %v5774
        %v6307 = vunpack.c.h.b16 %v5774
        %v6308 = vunpack.c.l.b16 %v5778
        %v6309 = vunpack.c.h.b16 %v5778
        %v6310 = vunpack.c.l.b16 %v5781
        %v6311 = vunpack.c.h.b16 %v5781
        %v6312 = vunpack.c.l.b16 %v5784
        %v6313 = vunpack.c.h.b16 %v5784
        %v6314 = vunpack.c.l.b16 %v5788
        %v6315 = vunpack.c.h.b16 %v5788
        %v6316 = vunpack.c.l.b16 %v5792
        %v6317 = vunpack.c.h.b16 %v5792
        %v6318 = vunpack.c.l.b16 %v5795
        %v6319 = vunpack.c.h.b16 %v5795
        %v6320 = vunpack.c.l.b16 %v5798
        %v6321 = vunpack.c.h.b16 %v5798
        %v6322 = vunpack.c.l.b16 %v5802
        %v6323 = vunpack.c.h.b16 %v5802
        %v6324 = vunpack.c.l.b16 %v5806
        %v6325 = vunpack.c.h.b16 %v5806
        %v6326 = vunpack.c.l.b16 %v5809
        %v6327 = vunpack.c.h.b16 %v5809
        %v6328 = vunpack.c.l.b16 %v5812
        %v6329 = vunpack.c.h.b16 %v5812
        %v6330 = vunpack.c.l.b16 %v5816
        %v6331 = vunpack.c.h.b16 %v5816
        %v6332 = vunpack.c.l.b16 %v5820
        %v6333 = vunpack.c.h.b16 %v5820
        %v6334 = vunpack.c.l.b16 %v5823
        %v6335 = vunpack.c.h.b16 %v5823
        %v6336 = vunpack.c.l.b16 %v5826
        %v6337 = vunpack.c.h.b16 %v5826
        %v6338 = vunpack.c.l.b16 %v5830
        %v6339 = vunpack.c.h.b16 %v5830
        %v6340 = vunpack.c.l.b16 %v5834
        %v6341 = vunpack.c.h.b16 %v5834
        %v6342 = vunpack.c.l.b16 %v5837
        %v6343 = vunpack.c.h.b16 %v5837
        %v6344 = vunpack.c.l.b16 %v5840
        %v6345 = vunpack.c.h.b16 %v5840
        %v6346 = vunpack.c.l.b16 %v5844
        %v6347 = vunpack.c.h.b16 %v5844
        %v6348 = vunpack.c.l.b16 %v5848
        %v6349 = vunpack.c.h.b16 %v5848
        %v6350 = vunpack.c.l.b16 %v5851
        %v6351 = vunpack.c.h.b16 %v5851
        %v6352 = vunpack.c.l.b16 %v5854
        %v6353 = vunpack.c.h.b16 %v5854
        %v6354 = vunpack.c.l.b16 %v5858
        %v6355 = vunpack.c.h.b16 %v5858
        %v6356 = vunpack.c.l.b16 %v5862
        %v6357 = vunpack.c.h.b16 %v5862
        %v6358 = vunpack.c.l.b16 %v5865
        %v6359 = vunpack.c.h.b16 %v5865
        %v6360 = vunpack.c.l.b16 %v5868
        %v6361 = vunpack.c.h.b16 %v5868
        %v6362 = vunpack.c.l.b16 %v5872
        %v6363 = vunpack.c.h.b16 %v5872
        %v6364 = vunpack.c.l.b16 %v5876
        %v6365 = vunpack.c.h.b16 %v5876
        %v6366 = vunpack.c.l.b16 %v5879
        %v6367 = vunpack.c.h.b16 %v5879
        %v6368 = vunpack.c.l.b16 %v5882
        %v6369 = vunpack.c.h.b16 %v5882
        %v6370 = vunpack.c.l.b16 %v5886
        %v6371 = vunpack.c.h.b16 %v5886
        %v6372 = vunpack.c.l.b16 %v5890
        %v6373 = vunpack.c.h.b16 %v5890
        %v6374 = vunpack.c.l.b16 %v5893
        %v6375 = vunpack.c.h.b16 %v5893
        %v6376 = vunpack.c.l.b16 %v5896
        %v6377 = vunpack.c.h.b16 %v5896
        %v6378 = vunpack.c.l.b16 %v5900
        %v6379 = vunpack.c.h.b16 %v5900
        %v6380 = vunpack.c.l.b16 %v5904
        %v6381 = vunpack.c.h.b16 %v5904
        %v6382 = vunpack.c.l.b16 %v5907
        %v6383 = vunpack.c.h.b16 %v5907
        %v6384 = vunpack.c.l.b16 %v5910
        %v6385 = vunpack.c.h.b16 %v5910
        %v6386 = vunpack.c.l.b16 %v5914
        %v6387 = vunpack.c.h.b16 %v5914
        %v6388 = vunpack.c.l.b16 %v5918
        %v6389 = vunpack.c.h.b16 %v5918
        %v6390 = vunpack.c.l.b16 %v5921
        %v6391 = vunpack.c.h.b16 %v5921
        %v6392 = vunpack.c.l.b16 %v5924
        %v6393 = vunpack.c.h.b16 %v5924
        %v6394 = vunpack.c.l.b16 %v5928
        %v6395 = vunpack.c.h.b16 %v5928
        %v6396 = vunpack.c.l.b16 %v5932
        %v6397 = vunpack.c.h.b16 %v5932
        %v6398 = vunpack.c.l.b16 %v5935
        %v6399 = vunpack.c.h.b16 %v5935
        %v6400 = vunpack.c.l.b16 %v5938
        %v6401 = vunpack.c.h.b16 %v5938
        %v6402 = vunpack.c.l.b16 %v5942
        %v6403 = vunpack.c.h.b16 %v5942
        %v6404 = vunpack.c.l.b16 %v5946
        %v6405 = vunpack.c.h.b16 %v5946
        %v6406 = vunpack.c.l.b16 %v5949
        %v6407 = vunpack.c.h.b16 %v5949
        %v6408 = vunpack.c.l.b16 %v5952
        %v6409 = vunpack.c.h.b16 %v5952
        %v6410 = vunpack.c.l.b16 %v5956
        %v6411 = vunpack.c.h.b16 %v5956
        %v6412 = vunpack.c.l.b16 %v5960
        %v6413 = vunpack.c.h.b16 %v5960
        %v6414 = vunpack.c.l.b16 %v5963
        %v6415 = vunpack.c.h.b16 %v5963
        %v6416 = vunpack.c.l.b16 %v5966
        %v6417 = vunpack.c.h.b16 %v5966
        %v6418 = vunpack.c.l.b16 %v5970
        %v6419 = vunpack.c.h.b16 %v5970
        %v6420 = vunpack.c.l.b16 %v5974
        %v6421 = vunpack.c.h.b16 %v5974
        %v6422 = vunpack.c.l.b16 %v5977
        %v6423 = vunpack.c.h.b16 %v5977
        %v6424 = vunpack.c.l.b16 %v5980
        %v6425 = vunpack.c.h.b16 %v5980
        %v6426 = vunpack.c.l.b16 %v5984
        %v6427 = vunpack.c.h.b16 %v5984
        %v6428 = vunpack.c.l.b16 %v5988
        %v6429 = vunpack.c.h.b16 %v5988
        %v6430 = vunpack.c.l.b16 %v5991
        %v6431 = vunpack.c.h.b16 %v5991
        %v6432 = vunpack.c.l.b16 %v5994
        %v6433 = vunpack.c.h.b16 %v5994
        %v6434 = vunpack.c.l.b16 %v5998
        %v6435 = vunpack.c.h.b16 %v5998
        %v6436 = vunpack.c.l.b16 %v6002
        %v6437 = vunpack.c.h.b16 %v6002
        %v6438 = vunpack.c.l.b16 %v6005
        %v6439 = vunpack.c.h.b16 %v6005
        %v6440 = vunpack.c.l.b16 %v6008
        %v6441 = vunpack.c.h.b16 %v6008
        %v6442 = vunpack.c.l.b16 %v6012
        %v6443 = vunpack.c.h.b16 %v6012
        %v6444 = vunpack.c.l.b16 %v6016
        %v6445 = vunpack.c.h.b16 %v6016
        %v6446 = vunpack.c.l.b16 %v6019
        %v6447 = vunpack.c.h.b16 %v6019
        %v6448 = vunpack.c.l.b16 %v6022
        %v6449 = vunpack.c.h.b16 %v6022
        %v6450 = vunpack.c.l.b16 %v6026
        %v6451 = vunpack.c.h.b16 %v6026
        %v6452 = vunpack.c.l.b16 %v6030
        %v6453 = vunpack.c.h.b16 %v6030
        %v6454 = vunpack.c.l.b16 %v6033
        %v6455 = vunpack.c.h.b16 %v6033
        %v6456 = vunpack.c.l.b16 %v6036
        %v6457 = vunpack.c.h.b16 %v6036
        %v6458 = vunpack.c.l.b16 %v6040
        %v6459 = vunpack.c.h.b16 %v6040
        %v6460 = vunpack.c.l.b16 %v6044
        %v6461 = vunpack.c.h.b16 %v6044
        %v6462 = vunpack.c.l.b16 %v6047
        %v6463 = vunpack.c.h.b16 %v6047
        %v6464 = vunpack.c.l.b16 %v6050
        %v6465 = vunpack.c.h.b16 %v6050
        %v6466 = vunpack.c.l.b16 %v6054
        %v6467 = vunpack.c.h.b16 %v6054
        %v6468 = vunpack.c.l.b16 %v6058
        %v6469 = vunpack.c.h.b16 %v6058
        %v6470 = vunpack.c.l.b16 %v6061
        %v6471 = vunpack.c.h.b16 %v6061
        %v6472 = vunpack.c.l.b16 %v6064
        %v6473 = vunpack.c.h.b16 %v6064
        %v6474 = vunpack.c.l.b16 %v6068
        %v6475 = vunpack.c.h.b16 %v6068
        %v6476 = vunpack.c.l.b16 %v6072
        %v6477 = vunpack.c.h.b16 %v6072
        %v6478 = vunpack.c.l.b16 %v6075
        %v6479 = vunpack.c.h.b16 %v6075
        %v6480 = vunpack.c.l.b16 %v6078
        %v6481 = vunpack.c.h.b16 %v6078
        %v6482 = vunpack.c.l.b16 %v6082
        %v6483 = vunpack.c.h.b16 %v6082
        %v6484 = vunpack.c.l.b16 %v6086
        %v6485 = vunpack.c.h.b16 %v6086
        %v6486 = vunpack.c.l.b16 %v6089
        %v6487 = vunpack.c.h.b16 %v6089
        %v6488 = vunpack.c.l.b16 %v6092
        %v6489 = vunpack.c.h.b16 %v6092
        %v6490 = vunpack.c.l.b16 %v6096
        %v6491 = vunpack.c.h.b16 %v6096
        %v6492 = vunpack.c.l.b16 %v6100
        %v6493 = vunpack.c.h.b16 %v6100
        %v6494 = vunpack.c.l.b16 %v6103
        %v6495 = vunpack.c.h.b16 %v6103
        %v6496 = vunpack.c.l.b16 %v6106
        %v6497 = vunpack.c.h.b16 %v6106
        %v6498 = vunpack.c.l.b16 %v6110
        %v6499 = vunpack.c.h.b16 %v6110
        %v6500 = vunpack.c.l.b16 %v6114
        %v6501 = vunpack.c.h.b16 %v6114
        %v6502 = vunpack.c.l.b16 %v6117
        %v6503 = vunpack.c.h.b16 %v6117
        %v6504 = vunpack.c.l.b16 %v6120
        %v6505 = vunpack.c.h.b16 %v6120
        %v6506 = vpack.c.b16 %v6254, %v6250
        %v6507 = vpack.c.b16 %v6255, %v6251
        %v6508 = vpack.c.b16 %v6256, %v6252
        %v6509 = vpack.c.b16 %v6257, %v6253
        %v6510 = vpack.c.b16 %v6262, %v6258
        %v6511 = vpack.c.b16 %v6263, %v6259
        %v6512 = vpack.c.b16 %v6264, %v6260
        %v6513 = vpack.c.b16 %v6265, %v6261
        %v6514 = vpack.c.b16 %v6270, %v6266
        %v6515 = vpack.c.b16 %v6271, %v6267
        %v6516 = vpack.c.b16 %v6272, %v6268
        %v6517 = vpack.c.b16 %v6273, %v6269
        %v6518 = vpack.c.b16 %v6278, %v6274
        %v6519 = vpack.c.b16 %v6279, %v6275
        %v6520 = vpack.c.b16 %v6280, %v6276
        %v6521 = vpack.c.b16 %v6281, %v6277
        %v6522 = vpack.c.b16 %v6286, %v6282
        %v6523 = vpack.c.b16 %v6287, %v6283
        %v6524 = vpack.c.b16 %v6288, %v6284
        %v6525 = vpack.c.b16 %v6289, %v6285
        %v6526 = vpack.c.b16 %v6294, %v6290
        %v6527 = vpack.c.b16 %v6295, %v6291
        %v6528 = vpack.c.b16 %v6296, %v6292
        %v6529 = vpack.c.b16 %v6297, %v6293
        %v6530 = vpack.c.b16 %v6302, %v6298
        %v6531 = vpack.c.b16 %v6303, %v6299
        %v6532 = vpack.c.b16 %v6304, %v6300
        %v6533 = vpack.c.b16 %v6305, %v6301
        %v6534 = vpack.c.b16 %v6310, %v6306
        %v6535 = vpack.c.b16 %v6311, %v6307
        %v6536 = vpack.c.b16 %v6312, %v6308
        %v6537 = vpack.c.b16 %v6313, %v6309
        %v6538 = vpack.c.b16 %v6318, %v6314
        %v6539 = vpack.c.b16 %v6319, %v6315
        %v6540 = vpack.c.b16 %v6320, %v6316
        %v6541 = vpack.c.b16 %v6321, %v6317
        %v6542 = vpack.c.b16 %v6326, %v6322
        %v6543 = vpack.c.b16 %v6327, %v6323
        %v6544 = vpack.c.b16 %v6328, %v6324
        %v6545 = vpack.c.b16 %v6329, %v6325
        %v6546 = vpack.c.b16 %v6334, %v6330
        %v6547 = vpack.c.b16 %v6335, %v6331
        %v6548 = vpack.c.b16 %v6336, %v6332
        %v6549 = vpack.c.b16 %v6337, %v6333
        %v6550 = vpack.c.b16 %v6342, %v6338
        %v6551 = vpack.c.b16 %v6343, %v6339
        %v6552 = vpack.c.b16 %v6344, %v6340
        %v6553 = vpack.c.b16 %v6345, %v6341
        %v6554 = vpack.c.b16 %v6350, %v6346
        %v6555 = vpack.c.b16 %v6351, %v6347
        %v6556 = vpack.c.b16 %v6352, %v6348
        %v6557 = vpack.c.b16 %v6353, %v6349
        %v6558 = vpack.c.b16 %v6358, %v6354
        %v6559 = vpack.c.b16 %v6359, %v6355
        %v6560 = vpack.c.b16 %v6360, %v6356
        %v6561 = vpack.c.b16 %v6361, %v6357
        %v6562 = vpack.c.b16 %v6366, %v6362
        %v6563 = vpack.c.b16 %v6367, %v6363
        %v6564 = vpack.c.b16 %v6368, %v6364
        %v6565 = vpack.c.b16 %v6369, %v6365
        %v6566 = vpack.c.b16 %v6374, %v6370
        %v6567 = vpack.c.b16 %v6375, %v6371
        %v6568 = vpack.c.b16 %v6376, %v6372
        %v6569 = vpack.c.b16 %v6377, %v6373
        %v6570 = vpack.c.b16 %v6382, %v6378
        %v6571 = vpack.c.b16 %v6383, %v6379
        %v6572 = vpack.c.b16 %v6384, %v6380
        %v6573 = vpack.c.b16 %v6385, %v6381
        %v6574 = vpack.c.b16 %v6390, %v6386
        %v6575 = vpack.c.b16 %v6391, %v6387
        %v6576 = vpack.c.b16 %v6392, %v6388
        %v6577 = vpack.c.b16 %v6393, %v6389
        %v6578 = vpack.c.b16 %v6398, %v6394
        %v6579 = vpack.c.b16 %v6399, %v6395
        %v6580 = vpack.c.b16 %v6400, %v6396
        %v6581 = vpack.c.b16 %v6401, %v6397
        %v6582 = vpack.c.b16 %v6406, %v6402
        %v6583 = vpack.c.b16 %v6407, %v6403
        %v6584 = vpack.c.b16 %v6408, %v6404
        %v6585 = vpack.c.b16 %v6409, %v6405
        %v6586 = vpack.c.b16 %v6414, %v6410
        %v6587 = vpack.c.b16 %v6415, %v6411
        %v6588 = vpack.c.b16 %v6416, %v6412
        %v6589 = vpack.c.b16 %v6417, %v6413
        %v6590 = vpack.c.b16 %v6422, %v6418
        %v6591 = vpack.c.b16 %v6423, %v6419
        %v6592 = vpack.c.b16 %v6424, %v6420
        %v6593 = vpack.c.b16 %v6425, %v6421
        %v6594 = vpack.c.b16 %v6430, %v6426
        %v6595 = vpack.c.b16 %v6431, %v6427
        %v6596 = vpack.c.b16 %v6432, %v6428
        %v6597 = vpack.c.b16 %v6433, %v6429
        %v6598 = vpack.c.b16 %v6438, %v6434
        %v6599 = vpack.c.b16 %v6439, %v6435
        %v6600 = vpack.c.b16 %v6440, %v6436
        %v6601 = vpack.c.b16 %v6441, %v6437
        %v6602 = vpack.c.b16 %v6446, %v6442
        %v6603 = vpack.c.b16 %v6447, %v6443
        %v6604 = vpack.c.b16 %v6448, %v6444
        %v6605 = vpack.c.b16 %v6449, %v6445
        %v6606 = vpack.c.b16 %v6454, %v6450
        %v6607 = vpack.c.b16 %v6455, %v6451
        %v6608 = vpack.c.b16 %v6456, %v6452
        %v6609 = vpack.c.b16 %v6457, %v6453
        %v6610 = vpack.c.b16 %v6462, %v6458
        %v6611 = vpack.c.b16 %v6463, %v6459
        %v6612 = vpack.c.b16 %v6464, %v6460
        %v6613 = vpack.c.b16 %v6465, %v6461
        %v6614 = vpack.c.b16 %v6470, %v6466
        %v6615 = vpack.c.b16 %v6471, %v6467
        %v6616 = vpack.c.b16 %v6472, %v6468
        %v6617 = vpack.c.b16 %v6473, %v6469
        %v6618 = vpack.c.b16 %v6478, %v6474
        %v6619 = vpack.c.b16 %v6479, %v6475
        %v6620 = vpack.c.b16 %v6480, %v6476
        %v6621 = vpack.c.b16 %v6481, %v6477
        %v6622 = vpack.c.b16 %v6486, %v6482
        %v6623 = vpack.c.b16 %v6487, %v6483
        %v6624 = vpack.c.b16 %v6488, %v6484
        %v6625 = vpack.c.b16 %v6489, %v6485
        %v6626 = vpack.c.b16 %v6494, %v6490
        %v6627 = vpack.c.b16 %v6495, %v6491
        %v6628 = vpack.c.b16 %v6496, %v6492
        %v6629 = vpack.c.b16 %v6497, %v6493
        %v6630 = vpack.c.b16 %v6502, %v6498
        %v6631 = vpack.c.b16 %v6503, %v6499
        %v6632 = vpack.c.b16 %v6504, %v6500
        %v6633 = vpack.c.b16 %v6505, %v6501
        %v6826 = vunpack.c.l.b16 %v6186
        %v6827 = vunpack.c.l.b16 %v6187
        %v6828 = vunpack.c.l.b16 %v6188
        %v6829 = vunpack.c.l.b16 %v6189
        %v6830 = vunpack.c.l.b16 %v6190
        %v6831 = vunpack.c.l.b16 %v6191
        %v6832 = vunpack.c.l.b16 %v6192
        %v6833 = vunpack.c.l.b16 %v6193
        %v6834 = vunpack.c.l.b16 %v6194
        %v6835 = vunpack.c.l.b16 %v6195
        %v6836 = vunpack.c.l.b16 %v6196
        %v6837 = vunpack.c.l.b16 %v6197
        %v6838 = vunpack.c.l.b16 %v6198
        %v6839 = vunpack.c.l.b16 %v6199
        %v6840 = vunpack.c.l.b16 %v6200
        %v6841 = vunpack.c.l.b16 %v6201
        %v6842 = vunpack.c.l.b16 %v6202
        %v6843 = vunpack.c.l.b16 %v6203
        %v6844 = vunpack.c.l.b16 %v6204
        %v6845 = vunpack.c.l.b16 %v6205
        %v6846 = vunpack.c.l.b16 %v6206
        %v6847 = vunpack.c.l.b16 %v6207
        %v6848 = vunpack.c.l.b16 %v6208
        %v6849 = vunpack.c.l.b16 %v6209
        %v6850 = vunpack.c.l.b16 %v6210
        %v6851 = vunpack.c.l.b16 %v6211
        %v6852 = vunpack.c.l.b16 %v6212
        %v6853 = vunpack.c.l.b16 %v6213
        %v6854 = vunpack.c.l.b16 %v6214
        %v6855 = vunpack.c.l.b16 %v6215
        %v6856 = vunpack.c.l.b16 %v6216
        %v6857 = vunpack.c.l.b16 %v6217
        %v6858 = vunpack.c.l.b16 %v6218
        %v6859 = vunpack.c.l.b16 %v6219
        %v6860 = vunpack.c.l.b16 %v6220
        %v6861 = vunpack.c.l.b16 %v6221
        %v6862 = vunpack.c.l.b16 %v6222
        %v6863 = vunpack.c.l.b16 %v6223
        %v6864 = vunpack.c.l.b16 %v6224
        %v6865 = vunpack.c.l.b16 %v6225
        %v6866 = vunpack.c.l.b16 %v6226
        %v6867 = vunpack.c.l.b16 %v6227
        %v6868 = vunpack.c.l.b16 %v6228
        %v6869 = vunpack.c.l.b16 %v6229
        %v6870 = vunpack.c.l.b16 %v6230
        %v6871 = vunpack.c.l.b16 %v6231
        %v6872 = vunpack.c.l.b16 %v6232
        %v6873 = vunpack.c.l.b16 %v6233
        %v6874 = vunpack.c.l.b16 %v6234
        %v6875 = vunpack.c.l.b16 %v6235
        %v6876 = vunpack.c.l.b16 %v6236
        %v6877 = vunpack.c.l.b16 %v6237
        %v6878 = vunpack.c.l.b16 %v6238
        %v6879 = vunpack.c.l.b16 %v6239
        %v6880 = vunpack.c.l.b16 %v6240
        %v6881 = vunpack.c.l.b16 %v6241
        %v6882 = vunpack.c.l.b16 %v6242
        %v6883 = vunpack.c.l.b16 %v6243
        %v6884 = vunpack.c.l.b16 %v6244
        %v6885 = vunpack.c.l.b16 %v6245
        %v6886 = vunpack.c.l.b16 %v6246
        %v6887 = vunpack.c.l.b16 %v6247
        %v6888 = vunpack.c.l.b16 %v6248
        %v6889 = vunpack.c.l.b16 %v6249
        %v6890 = vpack.c.b16 %v6827, %v6826
        %v6891 = vpack.c.b16 %v6829, %v6828
        %v6892 = vpack.c.b16 %v6831, %v6830
        %v6893 = vpack.c.b16 %v6833, %v6832
        %v6894 = vpack.c.b16 %v6835, %v6834
        %v6895 = vpack.c.b16 %v6837, %v6836
        %v6896 = vpack.c.b16 %v6839, %v6838
        %v6897 = vpack.c.b16 %v6841, %v6840
        %v6898 = vpack.c.b16 %v6843, %v6842
        %v6899 = vpack.c.b16 %v6845, %v6844
        %v6900 = vpack.c.b16 %v6847, %v6846
        %v6901 = vpack.c.b16 %v6849, %v6848
        %v6902 = vpack.c.b16 %v6851, %v6850
        %v6903 = vpack.c.b16 %v6853, %v6852
        %v6904 = vpack.c.b16 %v6855, %v6854
        %v6905 = vpack.c.b16 %v6857, %v6856
        %v6906 = vpack.c.b16 %v6859, %v6858
        %v6907 = vpack.c.b16 %v6861, %v6860
        %v6908 = vpack.c.b16 %v6863, %v6862
        %v6909 = vpack.c.b16 %v6865, %v6864
        %v6910 = vpack.c.b16 %v6867, %v6866
        %v6911 = vpack.c.b16 %v6869, %v6868
        %v6912 = vpack.c.b16 %v6871, %v6870
        %v6913 = vpack.c.b16 %v6873, %v6872
        %v6914 = vpack.c.b16 %v6875, %v6874
        %v6915 = vpack.c.b16 %v6877, %v6876
        %v6916 = vpack.c.b16 %v6879, %v6878
        %v6917 = vpack.c.b16 %v6881, %v6880
        %v6918 = vpack.c.b16 %v6883, %v6882
        %v6919 = vpack.c.b16 %v6885, %v6884
        %v6920 = vpack.c.b16 %v6887, %v6886
        %v6921 = vpack.c.b16 %v6889, %v6888
        %6954 = vmatprep.subr.bf16.mxu0 0
        %6955 = vmatpush1.bf16.msra.mxu0 %v6890
        %6956 = vmatprep.subr.bf16.mxu0 0
        %6957 = vmatpush1.bf16.msra.mxu0 %v6891
        %6958 = vmatprep.subr.bf16.mxu0 0
        %6959 = vmatpush1.bf16.msra.mxu0 %v6892
        %6960 = vmatprep.subr.bf16.mxu0 0
        %6961 = vmatpush1.bf16.msra.mxu0 %v6893
        %6962 = vmatprep.subr.bf16.mxu0 0
        %6963 = vmatpush1.bf16.msra.mxu0 %v6894
        %6964 = vmatprep.subr.bf16.mxu0 0
        %6965 = vmatpush1.bf16.msra.mxu0 %v6895
        %6966 = vmatprep.subr.bf16.mxu0 0
        %6967 = vmatpush1.bf16.msra.mxu0 %v6896
        %6968 = vmatprep.subr.bf16.mxu0 0
        %6969 = vmatpush1.bf16.msra.mxu0 %v6897
        %6970 = vmatprep.subr.bf16.mxu0 0
        %6971 = vmatpush1.bf16.msra.mxu0 %v6898
        %6972 = vmatprep.subr.bf16.mxu0 0
        %6973 = vmatpush1.bf16.msra.mxu0 %v6899
        %6974 = vmatprep.subr.bf16.mxu0 0
        %6975 = vmatpush1.bf16.msra.mxu0 %v6900
        %6976 = vmatprep.subr.bf16.mxu0 0
        %6977 = vmatpush1.bf16.msra.mxu0 %v6901
        %6978 = vmatprep.subr.bf16.mxu0 0
        %6979 = vmatpush1.bf16.msra.mxu0 %v6902
        %6980 = vmatprep.subr.bf16.mxu0 0
        %6981 = vmatpush1.bf16.msra.mxu0 %v6903
        %6982 = vmatprep.subr.bf16.mxu0 0
        %6983 = vmatpush1.bf16.msra.mxu0 %v6904
        %6984 = vmatprep.subr.bf16.mxu0 0
        %6985 = vmatpush1.bf16.msra.mxu0 %v6905
        %6986 = vmatprep.mubr.bf16.mxu0 %v6507
        %6987 = vmatmul.mubr.bf16.gmra.mrb[0].mxu0 %v6506
        %v6988 = vpop.f32.mrb[0].mxu0
        %v6989 = vadd.f32 0.0, %v6988
        %v6990 = vpop.f32.mrb[0].mxu0
        %v6991 = vpop.f32.mrb[0].mxu0
        %v6992 = vadd.f32 0.0, %v6991
        %v6993 = vpop.f32.mrb[0].mxu0
        %6994 = vmatprep.mubr.bf16.mxu0 %v6511
        %6995 = vmatmul.mubr.bf16.gmra.mrb[0].mxu0 %v6510
        %v6996 = vpop.f32.mrb[0].mxu0
        %v6997 = vadd.f32 0.0, %v6996
        %v6998 = vpop.f32.mrb[0].mxu0
        %v6999 = vpop.f32.mrb[0].mxu0
        %v7000 = vadd.f32 0.0, %v6999
        %v7001 = vpop.f32.mrb[0].mxu0
        %7002 = vmatprep.mubr.bf16.mxu0 %v6515
        %7003 = vmatmul.mubr.bf16.gmra.mrb[0].mxu0 %v6514
        %v7004 = vpop.f32.mrb[0].mxu0
        %v7005 = vadd.f32 0.0, %v7004
        %v7006 = vpop.f32.mrb[0].mxu0
        %v7007 = vpop.f32.mrb[0].mxu0
        %v7008 = vadd.f32 0.0, %v7007
        %v7009 = vpop.f32.mrb[0].mxu0
        %7010 = vmatprep.mubr.bf16.mxu0 %v6519
        %7011 = vmatmul.mubr.bf16.gmra.mrb[0].mxu0 %v6518
        %v7012 = vpop.f32.mrb[0].mxu0
        %v7013 = vadd.f32 0.0, %v7012
        %v7014 = vpop.f32.mrb[0].mxu0
        %v7015 = vpop.f32.mrb[0].mxu0
        %v7016 = vadd.f32 0.0, %v7015
        %v7017 = vpop.f32.mrb[0].mxu0
        %7018 = vmatprep.mubr.bf16.mxu0 %v6523
        %7019 = vmatmul.mubr.bf16.gmra.mrb[0].mxu0 %v6522
        %v7020 = vpop.f32.mrb[0].mxu0
        %v7021 = vadd.f32 0.0, %v7020
        %v7022 = vpop.f32.mrb[0].mxu0
        %v7023 = vpop.f32.mrb[0].mxu0
        %v7024 = vadd.f32 0.0, %v7023
        %v7025 = vpop.f32.mrb[0].mxu0
        %7026 = vmatprep.mubr.bf16.mxu0 %v6527
        %7027 = vmatmul.mubr.bf16.gmra.mrb[0].mxu0 %v6526
        %v7028 = vpop.f32.mrb[0].mxu0
        %v7029 = vadd.f32 0.0, %v7028
        %v7030 = vpop.f32.mrb[0].mxu0
        %v7031 = vpop.f32.mrb[0].mxu0
        %v7032 = vadd.f32 0.0, %v7031
        %v7033 = vpop.f32.mrb[0].mxu0
        %7034 = vmatprep.mubr.bf16.mxu0 %v6531
        %7035 = vmatmul.mubr.bf16.gmra.mrb[0].mxu0 %v6530
        %v7036 = vpop.f32.mrb[0].mxu0
        %v7037 = vadd.f32 0.0, %v7036
        %v7038 = vpop.f32.mrb[0].mxu0
        %v7039 = vpop.f32.mrb[0].mxu0
        %v7040 = vadd.f32 0.0, %v7039
        %v7041 = vpop.f32.mrb[0].mxu0
        %7042 = vmatprep.mubr.bf16.mxu0 %v6535
        %7043 = vmatmul.mubr.bf16.gmra.mrb[0].mxu0 %v6534
        %v7044 = vpop.f32.mrb[0].mxu0
        %v7045 = vadd.f32 0.0, %v7044
        %v7046 = vpop.f32.mrb[0].mxu0
        %v7047 = vpop.f32.mrb[0].mxu0
        %v7048 = vadd.f32 0.0, %v7047
        %v7049 = vpop.f32.mrb[0].mxu0
        %7050 = vmatprep.mubr.bf16.mxu0 %v6539
        %7051 = vmatmul.mubr.bf16.gmra.mrb[0].mxu0 %v6538
        %v7052 = vpop.f32.mrb[0].mxu0
        %v7053 = vadd.f32 0.0, %v7052
        %v7054 = vpop.f32.mrb[0].mxu0
        %v7055 = vpop.f32.mrb[0].mxu0
        %v7056 = vadd.f32 0.0, %v7055
        %v7057 = vpop.f32.mrb[0].mxu0
        %7058 = vmatprep.mubr.bf16.mxu0 %v6543
        %7059 = vmatmul.mubr.bf16.gmra.mrb[0].mxu0 %v6542
        %v7060 = vpop.f32.mrb[0].mxu0
        %v7061 = vadd.f32 0.0, %v7060
        %v7062 = vpop.f32.mrb[0].mxu0
        %v7063 = vpop.f32.mrb[0].mxu0
        %v7064 = vadd.f32 0.0, %v7063
        %v7065 = vpop.f32.mrb[0].mxu0
        %7066 = vmatprep.mubr.bf16.mxu0 %v6547
        %7067 = vmatmul.mubr.bf16.gmra.mrb[0].mxu0 %v6546
        %v7068 = vpop.f32.mrb[0].mxu0
        %v7069 = vadd.f32 0.0, %v7068
        %v7070 = vpop.f32.mrb[0].mxu0
        %v7071 = vpop.f32.mrb[0].mxu0
        %v7072 = vadd.f32 0.0, %v7071
        %v7073 = vpop.f32.mrb[0].mxu0
        %7074 = vmatprep.mubr.bf16.mxu0 %v6551
        %7075 = vmatmul.mubr.bf16.gmra.mrb[0].mxu0 %v6550
        %v7076 = vpop.f32.mrb[0].mxu0
        %v7077 = vadd.f32 0.0, %v7076
        %v7078 = vpop.f32.mrb[0].mxu0
        %v7079 = vpop.f32.mrb[0].mxu0
        %v7080 = vadd.f32 0.0, %v7079
        %v7081 = vpop.f32.mrb[0].mxu0
        %7082 = vmatprep.mubr.bf16.mxu0 %v6555
        %7083 = vmatmul.mubr.bf16.gmra.mrb[0].mxu0 %v6554
        %v7084 = vpop.f32.mrb[0].mxu0
        %v7085 = vadd.f32 0.0, %v7084
        %v7086 = vpop.f32.mrb[0].mxu0
        %v7087 = vpop.f32.mrb[0].mxu0
        %v7088 = vadd.f32 0.0, %v7087
        %v7089 = vpop.f32.mrb[0].mxu0
        %7090 = vmatprep.mubr.bf16.mxu0 %v6559
        %7091 = vmatmul.mubr.bf16.gmra.mrb[0].mxu0 %v6558
        %v7092 = vpop.f32.mrb[0].mxu0
        %v7093 = vadd.f32 0.0, %v7092
        %v7094 = vpop.f32.mrb[0].mxu0
        %v7095 = vpop.f32.mrb[0].mxu0
        %v7096 = vadd.f32 0.0, %v7095
        %v7097 = vpop.f32.mrb[0].mxu0
        %7098 = vmatprep.mubr.bf16.mxu0 %v6563
        %7099 = vmatmul.mubr.bf16.gmra.mrb[0].mxu0 %v6562
        %v7100 = vpop.f32.mrb[0].mxu0
        %v7101 = vadd.f32 0.0, %v7100
        %v7102 = vpop.f32.mrb[0].mxu0
        %v7103 = vpop.f32.mrb[0].mxu0
        %v7104 = vadd.f32 0.0, %v7103
        %v7105 = vpop.f32.mrb[0].mxu0
        %7106 = vmatprep.mubr.bf16.mxu0 %v6567
        %7107 = vmatmul.mubr.bf16.gmra.mrb[0].mxu0 %v6566
        %v7108 = vpop.f32.mrb[0].mxu0
        %v7109 = vadd.f32 0.0, %v7108
        %v7110 = vpop.f32.mrb[0].mxu0
        %v7111 = vpop.f32.mrb[0].mxu0
        %v7112 = vadd.f32 0.0, %v7111
        %v7113 = vpop.f32.mrb[0].mxu0
        %7114 = vmatprep.mubr.bf16.mxu0 %v6571
        %7115 = vmatmul.mubr.bf16.gmra.mrb[0].mxu0 %v6570
        %v7116 = vpop.f32.mrb[0].mxu0
        %v7117 = vadd.f32 0.0, %v7116
        %v7118 = vpop.f32.mrb[0].mxu0
        %v7119 = vpop.f32.mrb[0].mxu0
        %v7120 = vadd.f32 0.0, %v7119
        %v7121 = vpop.f32.mrb[0].mxu0
        %7122 = vmatprep.mubr.bf16.mxu0 %v6575
        %7123 = vmatmul.mubr.bf16.gmra.mrb[0].mxu0 %v6574
        %v7124 = vpop.f32.mrb[0].mxu0
        %v7125 = vadd.f32 0.0, %v7124
        %v7126 = vpop.f32.mrb[0].mxu0
        %v7127 = vpop.f32.mrb[0].mxu0
        %v7128 = vadd.f32 0.0, %v7127
        %v7129 = vpop.f32.mrb[0].mxu0
        %7130 = vmatprep.mubr.bf16.mxu0 %v6579
        %7131 = vmatmul.mubr.bf16.gmra.mrb[0].mxu0 %v6578
        %v7132 = vpop.f32.mrb[0].mxu0
        %v7133 = vadd.f32 0.0, %v7132
        %v7134 = vpop.f32.mrb[0].mxu0
        %v7135 = vpop.f32.mrb[0].mxu0
        %v7136 = vadd.f32 0.0, %v7135
        %v7137 = vpop.f32.mrb[0].mxu0
        %7138 = vmatprep.mubr.bf16.mxu0 %v6583
        %7139 = vmatmul.mubr.bf16.gmra.mrb[0].mxu0 %v6582
        %v7140 = vpop.f32.mrb[0].mxu0
        %v7141 = vadd.f32 0.0, %v7140
        %v7142 = vpop.f32.mrb[0].mxu0
        %v7143 = vpop.f32.mrb[0].mxu0
        %v7144 = vadd.f32 0.0, %v7143
        %v7145 = vpop.f32.mrb[0].mxu0
        %7146 = vmatprep.mubr.bf16.mxu0 %v6587
        %7147 = vmatmul.mubr.bf16.gmra.mrb[0].mxu0 %v6586
        %v7148 = vpop.f32.mrb[0].mxu0
        %v7149 = vadd.f32 0.0, %v7148
        %v7150 = vpop.f32.mrb[0].mxu0
        %v7151 = vpop.f32.mrb[0].mxu0
        %v7152 = vadd.f32 0.0, %v7151
        %v7153 = vpop.f32.mrb[0].mxu0
        %7154 = vmatprep.mubr.bf16.mxu0 %v6591
        %7155 = vmatmul.mubr.bf16.gmra.mrb[0].mxu0 %v6590
        %v7156 = vpop.f32.mrb[0].mxu0
        %v7157 = vadd.f32 0.0, %v7156
        %v7158 = vpop.f32.mrb[0].mxu0
        %v7159 = vpop.f32.mrb[0].mxu0
        %v7160 = vadd.f32 0.0, %v7159
        %v7161 = vpop.f32.mrb[0].mxu0
        %7162 = vmatprep.mubr.bf16.mxu0 %v6595
        %7163 = vmatmul.mubr.bf16.gmra.mrb[0].mxu0 %v6594
        %v7164 = vpop.f32.mrb[0].mxu0
        %v7165 = vadd.f32 0.0, %v7164
        %v7166 = vpop.f32.mrb[0].mxu0
        %v7167 = vpop.f32.mrb[0].mxu0
        %v7168 = vadd.f32 0.0, %v7167
        %v7169 = vpop.f32.mrb[0].mxu0
        %7170 = vmatprep.mubr.bf16.mxu0 %v6599
        %7171 = vmatmul.mubr.bf16.gmra.mrb[0].mxu0 %v6598
        %v7172 = vpop.f32.mrb[0].mxu0
        %v7173 = vadd.f32 0.0, %v7172
        %v7174 = vpop.f32.mrb[0].mxu0
        %v7175 = vpop.f32.mrb[0].mxu0
        %v7176 = vadd.f32 0.0, %v7175
        %v7177 = vpop.f32.mrb[0].mxu0
        %7178 = vmatprep.mubr.bf16.mxu0 %v6603
        %7179 = vmatmul.mubr.bf16.gmra.mrb[0].mxu0 %v6602
        %v7180 = vpop.f32.mrb[0].mxu0
        %v7181 = vadd.f32 0.0, %v7180
        %v7182 = vpop.f32.mrb[0].mxu0
        %v7183 = vpop.f32.mrb[0].mxu0
        %v7184 = vadd.f32 0.0, %v7183
        %v7185 = vpop.f32.mrb[0].mxu0
        %7186 = vmatprep.mubr.bf16.mxu0 %v6607
        %7187 = vmatmul.mubr.bf16.gmra.mrb[0].mxu0 %v6606
        %v7188 = vpop.f32.mrb[0].mxu0
        %v7189 = vadd.f32 0.0, %v7188
        %v7190 = vpop.f32.mrb[0].mxu0
        %v7191 = vpop.f32.mrb[0].mxu0
        %v7192 = vadd.f32 0.0, %v7191
        %v7193 = vpop.f32.mrb[0].mxu0
        %7194 = vmatprep.mubr.bf16.mxu0 %v6611
        %7195 = vmatmul.mubr.bf16.gmra.mrb[0].mxu0 %v6610
        %v7196 = vpop.f32.mrb[0].mxu0
        %v7197 = vadd.f32 0.0, %v7196
        %v7198 = vpop.f32.mrb[0].mxu0
        %v7199 = vpop.f32.mrb[0].mxu0
        %v7200 = vadd.f32 0.0, %v7199
        %v7201 = vpop.f32.mrb[0].mxu0
        %7202 = vmatprep.mubr.bf16.mxu0 %v6615
        %7203 = vmatmul.mubr.bf16.gmra.mrb[0].mxu0 %v6614
        %v7204 = vpop.f32.mrb[0].mxu0
        %v7205 = vadd.f32 0.0, %v7204
        %v7206 = vpop.f32.mrb[0].mxu0
        %v7207 = vpop.f32.mrb[0].mxu0
        %v7208 = vadd.f32 0.0, %v7207
        %v7209 = vpop.f32.mrb[0].mxu0
        %7210 = vmatprep.mubr.bf16.mxu0 %v6619
        %7211 = vmatmul.mubr.bf16.gmra.mrb[0].mxu0 %v6618
        %v7212 = vpop.f32.mrb[0].mxu0
        %v7213 = vadd.f32 0.0, %v7212
        %v7214 = vpop.f32.mrb[0].mxu0
        %v7215 = vpop.f32.mrb[0].mxu0
        %v7216 = vadd.f32 0.0, %v7215
        %v7217 = vpop.f32.mrb[0].mxu0
        %7218 = vmatprep.mubr.bf16.mxu0 %v6623
        %7219 = vmatmul.mubr.bf16.gmra.mrb[0].mxu0 %v6622
        %v7220 = vpop.f32.mrb[0].mxu0
        %v7221 = vadd.f32 0.0, %v7220
        %v7222 = vpop.f32.mrb[0].mxu0
        %v7223 = vpop.f32.mrb[0].mxu0
        %v7224 = vadd.f32 0.0, %v7223
        %v7225 = vpop.f32.mrb[0].mxu0
        %7226 = vmatprep.mubr.bf16.mxu0 %v6627
        %7227 = vmatmul.mubr.bf16.gmra.mrb[0].mxu0 %v6626
        %v7228 = vpop.f32.mrb[0].mxu0
        %v7229 = vadd.f32 0.0, %v7228
        %v7230 = vpop.f32.mrb[0].mxu0
        %v7231 = vpop.f32.mrb[0].mxu0
        %v7232 = vadd.f32 0.0, %v7231
        %v7233 = vpop.f32.mrb[0].mxu0
        %7234 = vmatprep.mubr.bf16.mxu0 %v6631
        %7235 = vmatmul.mubr.bf16.gmra.mrb[0].mxu0 %v6630
        %v7236 = vpop.f32.mrb[0].mxu0
        %v7237 = vadd.f32 0.0, %v7236
        %v7238 = vpop.f32.mrb[0].mxu0
        %v7239 = vpop.f32.mrb[0].mxu0
        %v7240 = vadd.f32 0.0, %v7239
        %v7241 = vpop.f32.mrb[0].mxu0
        %7242 = vdwg.mxu0
        %7243 = vmatprep.subr.bf16.mxu0 0
        %7244 = vmatpush1.bf16.msra.mxu0 %v6906
        %7245 = vmatprep.subr.bf16.mxu0 0
        %7246 = vmatpush1.bf16.msra.mxu0 %v6907
        %7247 = vmatprep.subr.bf16.mxu0 0
        %7248 = vmatpush1.bf16.msra.mxu0 %v6908
        %7249 = vmatprep.subr.bf16.mxu0 0
        %7250 = vmatpush1.bf16.msra.mxu0 %v6909
        %7251 = vmatprep.subr.bf16.mxu0 0
        %7252 = vmatpush1.bf16.msra.mxu0 %v6910
        %7253 = vmatprep.subr.bf16.mxu0 0
        %7254 = vmatpush1.bf16.msra.mxu0 %v6911
        %7255 = vmatprep.subr.bf16.mxu0 0
        %7256 = vmatpush1.bf16.msra.mxu0 %v6912
        %7257 = vmatprep.subr.bf16.mxu0 0
        %7258 = vmatpush1.bf16.msra.mxu0 %v6913
        %7259 = vmatprep.subr.bf16.mxu0 0
        %7260 = vmatpush1.bf16.msra.mxu0 %v6914
        %7261 = vmatprep.subr.bf16.mxu0 0
        %7262 = vmatpush1.bf16.msra.mxu0 %v6915
        %7263 = vmatprep.subr.bf16.mxu0 0
        %7264 = vmatpush1.bf16.msra.mxu0 %v6916
        %7265 = vmatprep.subr.bf16.mxu0 0
        %7266 = vmatpush1.bf16.msra.mxu0 %v6917
        %7267 = vmatprep.subr.bf16.mxu0 0
        %7268 = vmatpush1.bf16.msra.mxu0 %v6918
        %7269 = vmatprep.subr.bf16.mxu0 0
        %7270 = vmatpush1.bf16.msra.mxu0 %v6919
        %7271 = vmatprep.subr.bf16.mxu0 0
        %7272 = vmatpush1.bf16.msra.mxu0 %v6920
        %7273 = vmatprep.subr.bf16.mxu0 0
        %7274 = vmatpush1.bf16.msra.mxu0 %v6921
        %7275 = vmatprep.mubr.bf16.mxu0 %v6509
        %7276 = vmatmul.mubr.bf16.gmra.mrb[0].mxu0 %v6508
        %v7277 = vpop.f32.mrb[0].mxu0
        %v7278 = vadd.f32 %v6989, %v7277
        %v7279 = vpop.f32.mrb[0].mxu0
        %v7280 = vpop.f32.mrb[0].mxu0
        %v7281 = vadd.f32 %v6992, %v7280
        %v7282 = vpop.f32.mrb[0].mxu0
        %7283 = vmatprep.mubr.bf16.mxu0 %v6513
        %7284 = vmatmul.mubr.bf16.gmra.mrb[0].mxu0 %v6512
        %v7285 = vpop.f32.mrb[0].mxu0
        %v7286 = vadd.f32 %v6997, %v7285
        %v7287 = vpop.f32.mrb[0].mxu0
        %v7288 = vpop.f32.mrb[0].mxu0
        %v7289 = vadd.f32 %v7000, %v7288
        %v7290 = vpop.f32.mrb[0].mxu0
        %7291 = vmatprep.mubr.bf16.mxu0 %v6517
        %7292 = vmatmul.mubr.bf16.gmra.mrb[0].mxu0 %v6516
        %v7293 = vpop.f32.mrb[0].mxu0
        %v7294 = vadd.f32 %v7005, %v7293
        %v7295 = vpop.f32.mrb[0].mxu0
        %v7296 = vpop.f32.mrb[0].mxu0
        %v7297 = vadd.f32 %v7008, %v7296
        %v7298 = vpop.f32.mrb[0].mxu0
        %7299 = vmatprep.mubr.bf16.mxu0 %v6521
        %7300 = vmatmul.mubr.bf16.gmra.mrb[0].mxu0 %v6520
        %v7301 = vpop.f32.mrb[0].mxu0
        %v7302 = vadd.f32 %v7013, %v7301
        %v7303 = vpop.f32.mrb[0].mxu0
        %v7304 = vpop.f32.mrb[0].mxu0
        %v7305 = vadd.f32 %v7016, %v7304
        %v7306 = vpop.f32.mrb[0].mxu0
        %7307 = vmatprep.mubr.bf16.mxu0 %v6525
        %7308 = vmatmul.mubr.bf16.gmra.mrb[0].mxu0 %v6524
        %v7309 = vpop.f32.mrb[0].mxu0
        %v7310 = vadd.f32 %v7021, %v7309
        %v7311 = vpop.f32.mrb[0].mxu0
        %v7312 = vpop.f32.mrb[0].mxu0
        %v7313 = vadd.f32 %v7024, %v7312
        %v7314 = vpop.f32.mrb[0].mxu0
        %7315 = vmatprep.mubr.bf16.mxu0 %v6529
        %7316 = vmatmul.mubr.bf16.gmra.mrb[0].mxu0 %v6528
        %v7317 = vpop.f32.mrb[0].mxu0
        %v7318 = vadd.f32 %v7029, %v7317
        %v7319 = vpop.f32.mrb[0].mxu0
        %v7320 = vpop.f32.mrb[0].mxu0
        %v7321 = vadd.f32 %v7032, %v7320
        %v7322 = vpop.f32.mrb[0].mxu0
        %7323 = vmatprep.mubr.bf16.mxu0 %v6533
        %7324 = vmatmul.mubr.bf16.gmra.mrb[0].mxu0 %v6532
        %v7325 = vpop.f32.mrb[0].mxu0
        %v7326 = vadd.f32 %v7037, %v7325
        %v7327 = vpop.f32.mrb[0].mxu0
        %v7328 = vpop.f32.mrb[0].mxu0
        %v7329 = vadd.f32 %v7040, %v7328
        %v7330 = vpop.f32.mrb[0].mxu0
        %7331 = vmatprep.mubr.bf16.mxu0 %v6537
        %7332 = vmatmul.mubr.bf16.gmra.mrb[0].mxu0 %v6536
        %v7333 = vpop.f32.mrb[0].mxu0
        %v7334 = vadd.f32 %v7045, %v7333
        %v7335 = vpop.f32.mrb[0].mxu0
        %v7336 = vpop.f32.mrb[0].mxu0
        %v7337 = vadd.f32 %v7048, %v7336
        %v7338 = vpop.f32.mrb[0].mxu0
        %7339 = vmatprep.mubr.bf16.mxu0 %v6541
        %7340 = vmatmul.mubr.bf16.gmra.mrb[0].mxu0 %v6540
        %v7341 = vpop.f32.mrb[0].mxu0
        %v7342 = vadd.f32 %v7053, %v7341
        %v7343 = vpop.f32.mrb[0].mxu0
        %v7344 = vpop.f32.mrb[0].mxu0
        %v7345 = vadd.f32 %v7056, %v7344
        %v7346 = vpop.f32.mrb[0].mxu0
        %7347 = vmatprep.mubr.bf16.mxu0 %v6545
        %7348 = vmatmul.mubr.bf16.gmra.mrb[0].mxu0 %v6544
        %v7349 = vpop.f32.mrb[0].mxu0
        %v7350 = vadd.f32 %v7061, %v7349
        %v7351 = vpop.f32.mrb[0].mxu0
        %v7352 = vpop.f32.mrb[0].mxu0
        %v7353 = vadd.f32 %v7064, %v7352
        %v7354 = vpop.f32.mrb[0].mxu0
        %7355 = vmatprep.mubr.bf16.mxu0 %v6549
        %7356 = vmatmul.mubr.bf16.gmra.mrb[0].mxu0 %v6548
        %v7357 = vpop.f32.mrb[0].mxu0
        %v7358 = vadd.f32 %v7069, %v7357
        %v7359 = vpop.f32.mrb[0].mxu0
        %v7360 = vpop.f32.mrb[0].mxu0
        %v7361 = vadd.f32 %v7072, %v7360
        %v7362 = vpop.f32.mrb[0].mxu0
        %7363 = vmatprep.mubr.bf16.mxu0 %v6553
        %7364 = vmatmul.mubr.bf16.gmra.mrb[0].mxu0 %v6552
        %v7365 = vpop.f32.mrb[0].mxu0
        %v7366 = vadd.f32 %v7077, %v7365
        %v7367 = vpop.f32.mrb[0].mxu0
        %v7368 = vpop.f32.mrb[0].mxu0
        %v7369 = vadd.f32 %v7080, %v7368
        %v7370 = vpop.f32.mrb[0].mxu0
        %7371 = vmatprep.mubr.bf16.mxu0 %v6557
        %7372 = vmatmul.mubr.bf16.gmra.mrb[0].mxu0 %v6556
        %v7373 = vpop.f32.mrb[0].mxu0
        %v7374 = vadd.f32 %v7085, %v7373
        %v7375 = vpop.f32.mrb[0].mxu0
        %v7376 = vpop.f32.mrb[0].mxu0
        %v7377 = vadd.f32 %v7088, %v7376
        %v7378 = vpop.f32.mrb[0].mxu0
        %7379 = vmatprep.mubr.bf16.mxu0 %v6561
        %7380 = vmatmul.mubr.bf16.gmra.mrb[0].mxu0 %v6560
        %v7381 = vpop.f32.mrb[0].mxu0
        %v7382 = vadd.f32 %v7093, %v7381
        %v7383 = vpop.f32.mrb[0].mxu0
        %v7384 = vpop.f32.mrb[0].mxu0
        %v7385 = vadd.f32 %v7096, %v7384
        %v7386 = vpop.f32.mrb[0].mxu0
        %7387 = vmatprep.mubr.bf16.mxu0 %v6565
        %7388 = vmatmul.mubr.bf16.gmra.mrb[0].mxu0 %v6564
        %v7389 = vpop.f32.mrb[0].mxu0
        %v7390 = vadd.f32 %v7101, %v7389
        %v7391 = vpop.f32.mrb[0].mxu0
        %v7392 = vpop.f32.mrb[0].mxu0
        %v7393 = vadd.f32 %v7104, %v7392
        %v7394 = vpop.f32.mrb[0].mxu0
        %7395 = vmatprep.mubr.bf16.mxu0 %v6569
        %7396 = vmatmul.mubr.bf16.gmra.mrb[0].mxu0 %v6568
        %v7397 = vpop.f32.mrb[0].mxu0
        %v7398 = vadd.f32 %v7109, %v7397
        %v7399 = vpop.f32.mrb[0].mxu0
        %v7400 = vpop.f32.mrb[0].mxu0
        %v7401 = vadd.f32 %v7112, %v7400
        %v7402 = vpop.f32.mrb[0].mxu0
        %7403 = vmatprep.mubr.bf16.mxu0 %v6573
        %7404 = vmatmul.mubr.bf16.gmra.mrb[0].mxu0 %v6572
        %v7405 = vpop.f32.mrb[0].mxu0
        %v7406 = vadd.f32 %v7117, %v7405
        %v7407 = vpop.f32.mrb[0].mxu0
        %v7408 = vpop.f32.mrb[0].mxu0
        %v7409 = vadd.f32 %v7120, %v7408
        %v7410 = vpop.f32.mrb[0].mxu0
        %7411 = vmatprep.mubr.bf16.mxu0 %v6577
        %7412 = vmatmul.mubr.bf16.gmra.mrb[0].mxu0 %v6576
        %v7413 = vpop.f32.mrb[0].mxu0
        %v7414 = vadd.f32 %v7125, %v7413
        %v7415 = vpop.f32.mrb[0].mxu0
        %v7416 = vpop.f32.mrb[0].mxu0
        %v7417 = vadd.f32 %v7128, %v7416
        %v7418 = vpop.f32.mrb[0].mxu0
        %7419 = vmatprep.mubr.bf16.mxu0 %v6581
        %7420 = vmatmul.mubr.bf16.gmra.mrb[0].mxu0 %v6580
        %v7421 = vpop.f32.mrb[0].mxu0
        %v7422 = vadd.f32 %v7133, %v7421
        %v7423 = vpop.f32.mrb[0].mxu0
        %v7424 = vpop.f32.mrb[0].mxu0
        %v7425 = vadd.f32 %v7136, %v7424
        %v7426 = vpop.f32.mrb[0].mxu0
        %7427 = vmatprep.mubr.bf16.mxu0 %v6585
        %7428 = vmatmul.mubr.bf16.gmra.mrb[0].mxu0 %v6584
        %v7429 = vpop.f32.mrb[0].mxu0
        %v7430 = vadd.f32 %v7141, %v7429
        %v7431 = vpop.f32.mrb[0].mxu0
        %v7432 = vpop.f32.mrb[0].mxu0
        %v7433 = vadd.f32 %v7144, %v7432
        %v7434 = vpop.f32.mrb[0].mxu0
        %7435 = vmatprep.mubr.bf16.mxu0 %v6589
        %7436 = vmatmul.mubr.bf16.gmra.mrb[0].mxu0 %v6588
        %v7437 = vpop.f32.mrb[0].mxu0
        %v7438 = vadd.f32 %v7149, %v7437
        %v7439 = vpop.f32.mrb[0].mxu0
        %v7440 = vpop.f32.mrb[0].mxu0
        %v7441 = vadd.f32 %v7152, %v7440
        %v7442 = vpop.f32.mrb[0].mxu0
        %7443 = vmatprep.mubr.bf16.mxu0 %v6593
        %7444 = vmatmul.mubr.bf16.gmra.mrb[0].mxu0 %v6592
        %v7445 = vpop.f32.mrb[0].mxu0
        %v7446 = vadd.f32 %v7157, %v7445
        %v7447 = vpop.f32.mrb[0].mxu0
        %v7448 = vpop.f32.mrb[0].mxu0
        %v7449 = vadd.f32 %v7160, %v7448
        %v7450 = vpop.f32.mrb[0].mxu0
        %7451 = vmatprep.mubr.bf16.mxu0 %v6597
        %7452 = vmatmul.mubr.bf16.gmra.mrb[0].mxu0 %v6596
        %v7453 = vpop.f32.mrb[0].mxu0
        %v7454 = vadd.f32 %v7165, %v7453
        %v7455 = vpop.f32.mrb[0].mxu0
        %v7456 = vpop.f32.mrb[0].mxu0
        %v7457 = vadd.f32 %v7168, %v7456
        %v7458 = vpop.f32.mrb[0].mxu0
        %7459 = vmatprep.mubr.bf16.mxu0 %v6601
        %7460 = vmatmul.mubr.bf16.gmra.mrb[0].mxu0 %v6600
        %v7461 = vpop.f32.mrb[0].mxu0
        %v7462 = vadd.f32 %v7173, %v7461
        %v7463 = vpop.f32.mrb[0].mxu0
        %v7464 = vpop.f32.mrb[0].mxu0
        %v7465 = vadd.f32 %v7176, %v7464
        %v7466 = vpop.f32.mrb[0].mxu0
        %7467 = vmatprep.mubr.bf16.mxu0 %v6605
        %7468 = vmatmul.mubr.bf16.gmra.mrb[0].mxu0 %v6604
        %v7469 = vpop.f32.mrb[0].mxu0
        %v7470 = vadd.f32 %v7181, %v7469
        %v7471 = vpop.f32.mrb[0].mxu0
        %v7472 = vpop.f32.mrb[0].mxu0
        %v7473 = vadd.f32 %v7184, %v7472
        %v7474 = vpop.f32.mrb[0].mxu0
        %7475 = vmatprep.mubr.bf16.mxu0 %v6609
        %7476 = vmatmul.mubr.bf16.gmra.mrb[0].mxu0 %v6608
        %v7477 = vpop.f32.mrb[0].mxu0
        %v7478 = vadd.f32 %v7189, %v7477
        %v7479 = vpop.f32.mrb[0].mxu0
        %v7480 = vpop.f32.mrb[0].mxu0
        %v7481 = vadd.f32 %v7192, %v7480
        %v7482 = vpop.f32.mrb[0].mxu0
        %7483 = vmatprep.mubr.bf16.mxu0 %v6613
        %7484 = vmatmul.mubr.bf16.gmra.mrb[0].mxu0 %v6612
        %v7485 = vpop.f32.mrb[0].mxu0
        %v7486 = vadd.f32 %v7197, %v7485
        %v7487 = vpop.f32.mrb[0].mxu0
        %v7488 = vpop.f32.mrb[0].mxu0
        %v7489 = vadd.f32 %v7200, %v7488
        %v7490 = vpop.f32.mrb[0].mxu0
        %7491 = vmatprep.mubr.bf16.mxu0 %v6617
        %7492 = vmatmul.mubr.bf16.gmra.mrb[0].mxu0 %v6616
        %v7493 = vpop.f32.mrb[0].mxu0
        %v7494 = vadd.f32 %v7205, %v7493
        %v7495 = vpop.f32.mrb[0].mxu0
        %v7496 = vpop.f32.mrb[0].mxu0
        %v7497 = vadd.f32 %v7208, %v7496
        %v7498 = vpop.f32.mrb[0].mxu0
        %7499 = vmatprep.mubr.bf16.mxu0 %v6621
        %7500 = vmatmul.mubr.bf16.gmra.mrb[0].mxu0 %v6620
        %v7501 = vpop.f32.mrb[0].mxu0
        %v7502 = vadd.f32 %v7213, %v7501
        %v7503 = vpop.f32.mrb[0].mxu0
        %v7504 = vpop.f32.mrb[0].mxu0
        %v7505 = vadd.f32 %v7216, %v7504
        %v7506 = vpop.f32.mrb[0].mxu0
        %7507 = vmatprep.mubr.bf16.mxu0 %v6625
        %7508 = vmatmul.mubr.bf16.gmra.mrb[0].mxu0 %v6624
        %v7509 = vpop.f32.mrb[0].mxu0
        %v7510 = vadd.f32 %v7221, %v7509
        %v7511 = vpop.f32.mrb[0].mxu0
        %v7512 = vpop.f32.mrb[0].mxu0
        %v7513 = vadd.f32 %v7224, %v7512
        %v7514 = vpop.f32.mrb[0].mxu0
        %7515 = vmatprep.mubr.bf16.mxu0 %v6629
        %7516 = vmatmul.mubr.bf16.gmra.mrb[0].mxu0 %v6628
        %v7517 = vpop.f32.mrb[0].mxu0
        %v7518 = vadd.f32 %v7229, %v7517
        %v7519 = vpop.f32.mrb[0].mxu0
        %v7520 = vpop.f32.mrb[0].mxu0
        %v7521 = vadd.f32 %v7232, %v7520
        %v7522 = vpop.f32.mrb[0].mxu0
        %7523 = vmatprep.mubr.bf16.mxu0 %v6633
        %7524 = vmatmul.mubr.bf16.gmra.mrb[0].mxu0 %v6632
        %v7525 = vpop.f32.mrb[0].mxu0
        %v7526 = vadd.f32 %v7237, %v7525
        %v7527 = vpop.f32.mrb[0].mxu0
        %v7528 = vpop.f32.mrb[0].mxu0
        %v7529 = vadd.f32 %v7240, %v7528
        %v7530 = vpop.f32.mrb[0].mxu0
        %7531 = vdwg.mxu0
        %v7532 = vadd.f32 %v6121, %v7278
        %v7533 = vadd.f32 %v6122, %v7281
        %v7534 = vadd.f32 %v6123, %v7286
        %v7535 = vadd.f32 %v6124, %v7289
        %v7536 = vadd.f32 %v6125, %v7294
        %v7537 = vadd.f32 %v6126, %v7297
        %v7538 = vadd.f32 %v6127, %v7302
        %v7539 = vadd.f32 %v6128, %v7305
        %v7540 = vadd.f32 %v6129, %v7310
        %v7541 = vadd.f32 %v6130, %v7313
        %v7542 = vadd.f32 %v6131, %v7318
        %v7543 = vadd.f32 %v6132, %v7321
        %v7544 = vadd.f32 %v6133, %v7326
        %v7545 = vadd.f32 %v6134, %v7329
        %v7546 = vadd.f32 %v6135, %v7334
        %v7547 = vadd.f32 %v6136, %v7337
        %v7548 = vadd.f32 %v6137, %v7342
        %v7549 = vadd.f32 %v6138, %v7345
        %v7550 = vadd.f32 %v6139, %v7350
        %v7551 = vadd.f32 %v6140, %v7353
        %v7552 = vadd.f32 %v6141, %v7358
        %v7553 = vadd.f32 %v6142, %v7361
        %v7554 = vadd.f32 %v6143, %v7366
        %v7555 = vadd.f32 %v6144, %v7369
        %v7556 = vadd.f32 %v6145, %v7374
        %v7557 = vadd.f32 %v6146, %v7377
        %v7558 = vadd.f32 %v6147, %v7382
        %v7559 = vadd.f32 %v6148, %v7385
        %v7560 = vadd.f32 %v6149, %v7390
        %v7561 = vadd.f32 %v6150, %v7393
        %v7562 = vadd.f32 %v6151, %v7398
        %v7563 = vadd.f32 %v6152, %v7401
        %v7564 = vadd.f32 %v6153, %v7406
        %v7565 = vadd.f32 %v6154, %v7409
        %v7566 = vadd.f32 %v6155, %v7414
        %v7567 = vadd.f32 %v6156, %v7417
        %v7568 = vadd.f32 %v6157, %v7422
        %v7569 = vadd.f32 %v6158, %v7425
        %v7570 = vadd.f32 %v6159, %v7430
        %v7571 = vadd.f32 %v6160, %v7433
        %v7572 = vadd.f32 %v6161, %v7438
        %v7573 = vadd.f32 %v6162, %v7441
        %v7574 = vadd.f32 %v6163, %v7446
        %v7575 = vadd.f32 %v6164, %v7449
        %v7576 = vadd.f32 %v6165, %v7454
        %v7577 = vadd.f32 %v6166, %v7457
        %v7578 = vadd.f32 %v6167, %v7462
        %v7579 = vadd.f32 %v6168, %v7465
        %v7580 = vadd.f32 %v6169, %v7470
        %v7581 = vadd.f32 %v6170, %v7473
        %v7582 = vadd.f32 %v6171, %v7478
        %v7583 = vadd.f32 %v6172, %v7481
        %v7584 = vadd.f32 %v6173, %v7486
        %v7585 = vadd.f32 %v6174, %v7489
        %v7586 = vadd.f32 %v6175, %v7494
        %v7587 = vadd.f32 %v6176, %v7497
        %v7588 = vadd.f32 %v6177, %v7502
        %v7589 = vadd.f32 %v6178, %v7505
        %v7590 = vadd.f32 %v6179, %v7510
        %v7591 = vadd.f32 %v6180, %v7513
        %v7592 = vadd.f32 %v6181, %v7518
        %v7593 = vadd.f32 %v6182, %v7521
        %v7594 = vadd.f32 %v6183, %v7526
        %v7595 = vadd.f32 %v6184, %v7529
        %7596 = vst [vmem:[#allocation2] sm:$0xff] %v7532
        %7597 = vst [vmem:[#allocation2 + $0x8] sm:$0xff] %v7533
        %7598 = vst [vmem:[#allocation2 + $0x10] sm:$0xff] %v7534
        %7599 = vst [vmem:[#allocation2 + $0x18] sm:$0xff] %v7535
        %7600 = vst [vmem:[#allocation2 + $0x20] sm:$0xff] %v7536
        %7601 = vst [vmem:[#allocation2 + $0x28] sm:$0xff] %v7537
        %7602 = vst [vmem:[#allocation2 + $0x30] sm:$0xff] %v7538
        %7603 = vst [vmem:[#allocation2 + $0x38] sm:$0xff] %v7539
        %7604 = vst [vmem:[#allocation2 + $0x40] sm:$0xff] %v7540
        %7605 = vst [vmem:[#allocation2 + $0x48] sm:$0xff] %v7541
        %7606 = vst [vmem:[#allocation2 + $0x50] sm:$0xff] %v7542
        %7607 = vst [vmem:[#allocation2 + $0x58] sm:$0xff] %v7543
        %7608 = vst [vmem:[#allocation2 + $0x60] sm:$0xff] %v7544
        %7609 = vst [vmem:[#allocation2 + $0x68] sm:$0xff] %v7545
        %7610 = vst [vmem:[#allocation2 + $0x70] sm:$0xff] %v7546
        %7611 = vst [vmem:[#allocation2 + $0x78] sm:$0xff] %v7547
        %7612 = vst [vmem:[#allocation2 + $0x80] sm:$0xff] %v7548
        %7613 = vst [vmem:[#allocation2 + $0x88] sm:$0xff] %v7549
        %7614 = vst [vmem:[#allocation2 + $0x90] sm:$0xff] %v7550
        %7615 = vst [vmem:[#allocation2 + $0x98] sm:$0xff] %v7551
        %7616 = vst [vmem:[#allocation2 + $0xa0] sm:$0xff] %v7552
        %7617 = vst [vmem:[#allocation2 + $0xa8] sm:$0xff] %v7553
        %7618 = vst [vmem:[#allocation2 + $0xb0] sm:$0xff] %v7554
        %7619 = vst [vmem:[#allocation2 + $0xb8] sm:$0xff] %v7555
        %7620 = vst [vmem:[#allocation2 + $0xc0] sm:$0xff] %v7556
        %7621 = vst [vmem:[#allocation2 + $0xc8] sm:$0xff] %v7557
        %7622 = vst [vmem:[#allocation2 + $0xd0] sm:$0xff] %v7558
        %7623 = vst [vmem:[#allocation2 + $0xd8] sm:$0xff] %v7559
        %7624 = vst [vmem:[#allocation2 + $0xe0] sm:$0xff] %v7560
        %7625 = vst [vmem:[#allocation2 + $0xe8] sm:$0xff] %v7561
        %7626 = vst [vmem:[#allocation2 + $0xf0] sm:$0xff] %v7562
        %7627 = vst [vmem:[#allocation2 + $0xf8] sm:$0xff] %v7563
        %7628 = vst [vmem:[#allocation2 + $0x100] sm:$0xff] %v7564
        %7629 = vst [vmem:[#allocation2 + $0x108] sm:$0xff] %v7565
        %7630 = vst [vmem:[#allocation2 + $0x110] sm:$0xff] %v7566
        %7631 = vst [vmem:[#allocation2 + $0x118] sm:$0xff] %v7567
        %7632 = vst [vmem:[#allocation2 + $0x120] sm:$0xff] %v7568
        %7633 = vst [vmem:[#allocation2 + $0x128] sm:$0xff] %v7569
        %7634 = vst [vmem:[#allocation2 + $0x130] sm:$0xff] %v7570
        %7635 = vst [vmem:[#allocation2 + $0x138] sm:$0xff] %v7571
        %7636 = vst [vmem:[#allocation2 + $0x140] sm:$0xff] %v7572
        %7637 = vst [vmem:[#allocation2 + $0x148] sm:$0xff] %v7573
        %7638 = vst [vmem:[#allocation2 + $0x150] sm:$0xff] %v7574
        %7639 = vst [vmem:[#allocation2 + $0x158] sm:$0xff] %v7575
        %7640 = vst [vmem:[#allocation2 + $0x160] sm:$0xff] %v7576
        %7641 = vst [vmem:[#allocation2 + $0x168] sm:$0xff] %v7577
        %7642 = vst [vmem:[#allocation2 + $0x170] sm:$0xff] %v7578
        %7643 = vst [vmem:[#allocation2 + $0x178] sm:$0xff] %v7579
        %7644 = vst [vmem:[#allocation2 + $0x180] sm:$0xff] %v7580
        %7645 = vst [vmem:[#allocation2 + $0x188] sm:$0xff] %v7581
        %7646 = vst [vmem:[#allocation2 + $0x190] sm:$0xff] %v7582
        %7647 = vst [vmem:[#allocation2 + $0x198] sm:$0xff] %v7583
        %7648 = vst [vmem:[#allocation2 + $0x1a0] sm:$0xff] %v7584
        %7649 = vst [vmem:[#allocation2 + $0x1a8] sm:$0xff] %v7585
        %7650 = vst [vmem:[#allocation2 + $0x1b0] sm:$0xff] %v7586
        %7651 = vst [vmem:[#allocation2 + $0x1b8] sm:$0xff] %v7587
        %7652 = vst [vmem:[#allocation2 + $0x1c0] sm:$0xff] %v7588
        %7653 = vst [vmem:[#allocation2 + $0x1c8] sm:$0xff] %v7589
        %7654 = vst [vmem:[#allocation2 + $0x1d0] sm:$0xff] %v7590
        %7655 = vst [vmem:[#allocation2 + $0x1d8] sm:$0xff] %v7591
        %7656 = vst [vmem:[#allocation2 + $0x1e0] sm:$0xff] %v7592
        %7657 = vst [vmem:[#allocation2 + $0x1e8] sm:$0xff] %v7593
        %7658 = vst [vmem:[#allocation2 + $0x1f0] sm:$0xff] %v7594
        %7659 = vst [vmem:[#allocation2 + $0x1f8] sm:$0xff] %v7595
        %p7660 = scmp.eq.s32.totalorder %s21, 2
        // Predicated region
        $region78: #{astrous_forward.3} parent=68 // pred_check
          %p7661 = pneg %p7660
        $region79: #{astrous_forward.3} parent=68 // pred_check_branch
          %7663 = sbr.rel (%p7661) target = $region81
        $region80: #{astrous_forward.3} parent=68 // pred_region
          %v7664 = vld [vmem:[#allocation2] sm:$0xff]
          %v7665 = vld [vmem:[#allocation2 + $0x8] sm:$0xff]
          %v7666 = vld [vmem:[#allocation2 + $0x10] sm:$0xff]
          %v7667 = vld [vmem:[#allocation2 + $0x18] sm:$0xff]
          %v7668 = vld [vmem:[#allocation2 + $0x20] sm:$0xff]
          %v7669 = vld [vmem:[#allocation2 + $0x28] sm:$0xff]
          %v7670 = vld [vmem:[#allocation2 + $0x30] sm:$0xff]
          %v7671 = vld [vmem:[#allocation2 + $0x38] sm:$0xff]
          %v7672 = vld [vmem:[#allocation2 + $0x40] sm:$0xff]
          %v7673 = vld [vmem:[#allocation2 + $0x48] sm:$0xff]
          %v7674 = vld [vmem:[#allocation2 + $0x50] sm:$0xff]
          %v7675 = vld [vmem:[#allocation2 + $0x58] sm:$0xff]
          %v7676 = vld [vmem:[#allocation2 + $0x60] sm:$0xff]
          %v7677 = vld [vmem:[#allocation2 + $0x68] sm:$0xff]
          %v7678 = vld [vmem:[#allocation2 + $0x70] sm:$0xff]
          %v7679 = vld [vmem:[#allocation2 + $0x78] sm:$0xff]
          %v7680 = vld [vmem:[#allocation2 + $0x80] sm:$0xff]
          %v7681 = vld [vmem:[#allocation2 + $0x88] sm:$0xff]
          %v7682 = vld [vmem:[#allocation2 + $0x90] sm:$0xff]
          %v7683 = vld [vmem:[#allocation2 + $0x98] sm:$0xff]
          %v7684 = vld [vmem:[#allocation2 + $0xa0] sm:$0xff]
          %v7685 = vld [vmem:[#allocation2 + $0xa8] sm:$0xff]
          %v7686 = vld [vmem:[#allocation2 + $0xb0] sm:$0xff]
          %v7687 = vld [vmem:[#allocation2 + $0xb8] sm:$0xff]
          %v7688 = vld [vmem:[#allocation2 + $0xc0] sm:$0xff]
          %v7689 = vld [vmem:[#allocation2 + $0xc8] sm:$0xff]
          %v7690 = vld [vmem:[#allocation2 + $0xd0] sm:$0xff]
          %v7691 = vld [vmem:[#allocation2 + $0xd8] sm:$0xff]
          %v7692 = vld [vmem:[#allocation2 + $0xe0] sm:$0xff]
          %v7693 = vld [vmem:[#allocation2 + $0xe8] sm:$0xff]
          %v7694 = vld [vmem:[#allocation2 + $0xf0] sm:$0xff]
          %v7695 = vld [vmem:[#allocation2 + $0xf8] sm:$0xff]
          %v7696 = vld [vmem:[#allocation2 + $0x100] sm:$0xff]
          %v7697 = vld [vmem:[#allocation2 + $0x108] sm:$0xff]
          %v7698 = vld [vmem:[#allocation2 + $0x110] sm:$0xff]
          %v7699 = vld [vmem:[#allocation2 + $0x118] sm:$0xff]
          %v7700 = vld [vmem:[#allocation2 + $0x120] sm:$0xff]
          %v7701 = vld [vmem:[#allocation2 + $0x128] sm:$0xff]
          %v7702 = vld [vmem:[#allocation2 + $0x130] sm:$0xff]
          %v7703 = vld [vmem:[#allocation2 + $0x138] sm:$0xff]
          %v7704 = vld [vmem:[#allocation2 + $0x140] sm:$0xff]
          %v7705 = vld [vmem:[#allocation2 + $0x148] sm:$0xff]
          %v7706 = vld [vmem:[#allocation2 + $0x150] sm:$0xff]
          %v7707 = vld [vmem:[#allocation2 + $0x158] sm:$0xff]
          %v7708 = vld [vmem:[#allocation2 + $0x160] sm:$0xff]
          %v7709 = vld [vmem:[#allocation2 + $0x168] sm:$0xff]
          %v7710 = vld [vmem:[#allocation2 + $0x170] sm:$0xff]
          %v7711 = vld [vmem:[#allocation2 + $0x178] sm:$0xff]
          %v7712 = vld [vmem:[#allocation2 + $0x180] sm:$0xff]
          %v7713 = vld [vmem:[#allocation2 + $0x188] sm:$0xff]
          %v7714 = vld [vmem:[#allocation2 + $0x190] sm:$0xff]
          %v7715 = vld [vmem:[#allocation2 + $0x198] sm:$0xff]
          %v7716 = vld [vmem:[#allocation2 + $0x1a0] sm:$0xff]
          %v7717 = vld [vmem:[#allocation2 + $0x1a8] sm:$0xff]
          %v7718 = vld [vmem:[#allocation2 + $0x1b0] sm:$0xff]
          %v7719 = vld [vmem:[#allocation2 + $0x1b8] sm:$0xff]
          %v7720 = vld [vmem:[#allocation2 + $0x1c0] sm:$0xff]
          %v7721 = vld [vmem:[#allocation2 + $0x1c8] sm:$0xff]
          %v7722 = vld [vmem:[#allocation2 + $0x1d0] sm:$0xff]
          %v7723 = vld [vmem:[#allocation2 + $0x1d8] sm:$0xff]
          %v7724 = vld [vmem:[#allocation2 + $0x1e0] sm:$0xff]
          %v7725 = vld [vmem:[#allocation2 + $0x1e8] sm:$0xff]
          %v7726 = vld [vmem:[#allocation2 + $0x1f0] sm:$0xff]
          %v7727 = vld [vmem:[#allocation2 + $0x1f8] sm:$0xff]
          %v7728 = vld [vmem:[%s1047] sm:$0x1]
          %v7730 = vlaneseq
          %v7731 = vshrl.u32 %v7730, 7
          %v7732 = vsub.s32 0, %v7731
          %v7733 = vrot.slane %v7728, %v7732
          %v7735 = vadd.f32 %v7664, %v7733
          %v7736 = vadd.f32 %v7665, %v7733
          %v7737 = vadd.f32 %v7666, %v7733
          %v7738 = vadd.f32 %v7667, %v7733
          %v7739 = vadd.f32 %v7668, %v7733
          %v7740 = vadd.f32 %v7669, %v7733
          %v7741 = vadd.f32 %v7670, %v7733
          %v7742 = vadd.f32 %v7671, %v7733
          %v7743 = vadd.f32 %v7672, %v7733
          %v7744 = vadd.f32 %v7673, %v7733
          %v7745 = vadd.f32 %v7674, %v7733
          %v7746 = vadd.f32 %v7675, %v7733
          %v7747 = vadd.f32 %v7676, %v7733
          %v7748 = vadd.f32 %v7677, %v7733
          %v7749 = vadd.f32 %v7678, %v7733
          %v7750 = vadd.f32 %v7679, %v7733
          %v7751 = vadd.f32 %v7680, %v7733
          %v7752 = vadd.f32 %v7681, %v7733
          %v7753 = vadd.f32 %v7682, %v7733
          %v7754 = vadd.f32 %v7683, %v7733
          %v7755 = vadd.f32 %v7684, %v7733
          %v7756 = vadd.f32 %v7685, %v7733
          %v7757 = vadd.f32 %v7686, %v7733
          %v7758 = vadd.f32 %v7687, %v7733
          %v7759 = vadd.f32 %v7688, %v7733
          %v7760 = vadd.f32 %v7689, %v7733
          %v7761 = vadd.f32 %v7690, %v7733
          %v7762 = vadd.f32 %v7691, %v7733
          %v7763 = vadd.f32 %v7692, %v7733
          %v7764 = vadd.f32 %v7693, %v7733
          %v7765 = vadd.f32 %v7694, %v7733
          %v7766 = vadd.f32 %v7695, %v7733
          %v7767 = vadd.f32 %v7696, %v7733
          %v7768 = vadd.f32 %v7697, %v7733
          %v7769 = vadd.f32 %v7698, %v7733
          %v7770 = vadd.f32 %v7699, %v7733
          %v7771 = vadd.f32 %v7700, %v7733
          %v7772 = vadd.f32 %v7701, %v7733
          %v7773 = vadd.f32 %v7702, %v7733
          %v7774 = vadd.f32 %v7703, %v7733
          %v7775 = vadd.f32 %v7704, %v7733
          %v7776 = vadd.f32 %v7705, %v7733
          %v7777 = vadd.f32 %v7706, %v7733
          %v7778 = vadd.f32 %v7707, %v7733
          %v7779 = vadd.f32 %v7708, %v7733
          %v7780 = vadd.f32 %v7709, %v7733
          %v7781 = vadd.f32 %v7710, %v7733
          %v7782 = vadd.f32 %v7711, %v7733
          %v7783 = vadd.f32 %v7712, %v7733
          %v7784 = vadd.f32 %v7713, %v7733
          %v7785 = vadd.f32 %v7714, %v7733
          %v7786 = vadd.f32 %v7715, %v7733
          %v7787 = vadd.f32 %v7716, %v7733
          %v7788 = vadd.f32 %v7717, %v7733
          %v7789 = vadd.f32 %v7718, %v7733
          %v7790 = vadd.f32 %v7719, %v7733
          %v7791 = vadd.f32 %v7720, %v7733
          %v7792 = vadd.f32 %v7721, %v7733
          %v7793 = vadd.f32 %v7722, %v7733
          %v7794 = vadd.f32 %v7723, %v7733
          %v7795 = vadd.f32 %v7724, %v7733
          %v7796 = vadd.f32 %v7725, %v7733
          %v7797 = vadd.f32 %v7726, %v7733
          %v7798 = vadd.f32 %v7727, %v7733
          %v7799 = vpack.c.bf16 %v7736, %v7735
          %v7800 = vpack.c.bf16 %v7738, %v7737
          %v7801 = vpack.c.bf16 %v7740, %v7739
          %v7802 = vpack.c.bf16 %v7742, %v7741
          %v7803 = vpack.c.bf16 %v7744, %v7743
          %v7804 = vpack.c.bf16 %v7746, %v7745
          %v7805 = vpack.c.bf16 %v7748, %v7747
          %v7806 = vpack.c.bf16 %v7750, %v7749
          %v7807 = vpack.c.bf16 %v7752, %v7751
          %v7808 = vpack.c.bf16 %v7754, %v7753
          %v7809 = vpack.c.bf16 %v7756, %v7755
          %v7810 = vpack.c.bf16 %v7758, %v7757
          %v7811 = vpack.c.bf16 %v7760, %v7759
          %v7812 = vpack.c.bf16 %v7762, %v7761
          %v7813 = vpack.c.bf16 %v7764, %v7763
          %v7814 = vpack.c.bf16 %v7766, %v7765
          %v7815 = vpack.c.bf16 %v7768, %v7767
          %v7816 = vpack.c.bf16 %v7770, %v7769
          %v7817 = vpack.c.bf16 %v7772, %v7771
          %v7818 = vpack.c.bf16 %v7774, %v7773
          %v7819 = vpack.c.bf16 %v7776, %v7775
          %v7820 = vpack.c.bf16 %v7778, %v7777
          %v7821 = vpack.c.bf16 %v7780, %v7779
          %v7822 = vpack.c.bf16 %v7782, %v7781
          %v7823 = vpack.c.bf16 %v7784, %v7783
          %v7824 = vpack.c.bf16 %v7786, %v7785
          %v7825 = vpack.c.bf16 %v7788, %v7787
          %v7826 = vpack.c.bf16 %v7790, %v7789
          %v7827 = vpack.c.bf16 %v7792, %v7791
          %v7828 = vpack.c.bf16 %v7794, %v7793
          %v7829 = vpack.c.bf16 %v7796, %v7795
          %v7830 = vpack.c.bf16 %v7798, %v7797
          %v7863 = vunpack.c.l.b16 %v7799
          %v7864 = vunpack.c.h.b16 %v7799
          %v7865 = vunpack.c.l.b16 %v7800
          %v7866 = vunpack.c.h.b16 %v7800
          %v7867 = vunpack.c.l.b16 %v7801
          %v7868 = vunpack.c.h.b16 %v7801
          %v7869 = vunpack.c.l.b16 %v7802
          %v7870 = vunpack.c.h.b16 %v7802
          %v7871 = vunpack.c.l.b16 %v7803
          %v7872 = vunpack.c.h.b16 %v7803
          %v7873 = vunpack.c.l.b16 %v7804
          %v7874 = vunpack.c.h.b16 %v7804
          %v7875 = vunpack.c.l.b16 %v7805
          %v7876 = vunpack.c.h.b16 %v7805
          %v7877 = vunpack.c.l.b16 %v7806
          %v7878 = vunpack.c.h.b16 %v7806
          %v7879 = vunpack.c.l.b16 %v7807
          %v7880 = vunpack.c.h.b16 %v7807
          %v7881 = vunpack.c.l.b16 %v7808
          %v7882 = vunpack.c.h.b16 %v7808
          %v7883 = vunpack.c.l.b16 %v7809
          %v7884 = vunpack.c.h.b16 %v7809
          %v7885 = vunpack.c.l.b16 %v7810
          %v7886 = vunpack.c.h.b16 %v7810
          %v7887 = vunpack.c.l.b16 %v7811
          %v7888 = vunpack.c.h.b16 %v7811
          %v7889 = vunpack.c.l.b16 %v7812
          %v7890 = vunpack.c.h.b16 %v7812
          %v7891 = vunpack.c.l.b16 %v7813
          %v7892 = vunpack.c.h.b16 %v7813
          %v7893 = vunpack.c.l.b16 %v7814
          %v7894 = vunpack.c.h.b16 %v7814
          %v7895 = vunpack.c.l.b16 %v7815
          %v7896 = vunpack.c.h.b16 %v7815
          %v7897 = vunpack.c.l.b16 %v7816
          %v7898 = vunpack.c.h.b16 %v7816
          %v7899 = vunpack.c.l.b16 %v7817
          %v7900 = vunpack.c.h.b16 %v7817
          %v7901 = vunpack.c.l.b16 %v7818
          %v7902 = vunpack.c.h.b16 %v7818
          %v7903 = vunpack.c.l.b16 %v7819
          %v7904 = vunpack.c.h.b16 %v7819
          %v7905 = vunpack.c.l.b16 %v7820
          %v7906 = vunpack.c.h.b16 %v7820
          %v7907 = vunpack.c.l.b16 %v7821
          %v7908 = vunpack.c.h.b16 %v7821
          %v7909 = vunpack.c.l.b16 %v7822
          %v7910 = vunpack.c.h.b16 %v7822
          %v7911 = vunpack.c.l.b16 %v7823
          %v7912 = vunpack.c.h.b16 %v7823
          %v7913 = vunpack.c.l.b16 %v7824
          %v7914 = vunpack.c.h.b16 %v7824
          %v7915 = vunpack.c.l.b16 %v7825
          %v7916 = vunpack.c.h.b16 %v7825
          %v7917 = vunpack.c.l.b16 %v7826
          %v7918 = vunpack.c.h.b16 %v7826
          %v7919 = vunpack.c.l.b16 %v7827
          %v7920 = vunpack.c.h.b16 %v7827
          %v7921 = vunpack.c.l.b16 %v7828
          %v7922 = vunpack.c.h.b16 %v7828
          %v7923 = vunpack.c.l.b16 %v7829
          %v7924 = vunpack.c.h.b16 %v7829
          %v7925 = vunpack.c.l.b16 %v7830
          %v7926 = vunpack.c.h.b16 %v7830
          %v7927 = vpack.c.b16 %v7863, %v7863
          %v7928 = vpack.c.b16 %v7864, %v7864
          %v7929 = vpack.c.b16 %v7865, %v7865
          %v7930 = vpack.c.b16 %v7866, %v7866
          %v7931 = vpack.c.b16 %v7867, %v7867
          %v7932 = vpack.c.b16 %v7868, %v7868
          %v7933 = vpack.c.b16 %v7869, %v7869
          %v7934 = vpack.c.b16 %v7870, %v7870
          %v7935 = vpack.c.b16 %v7871, %v7871
          %v7936 = vpack.c.b16 %v7872, %v7872
          %v7937 = vpack.c.b16 %v7873, %v7873
          %v7938 = vpack.c.b16 %v7874, %v7874
          %v7939 = vpack.c.b16 %v7875, %v7875
          %v7940 = vpack.c.b16 %v7876, %v7876
          %v7941 = vpack.c.b16 %v7877, %v7877
          %v7942 = vpack.c.b16 %v7878, %v7878
          %v7943 = vpack.c.b16 %v7879, %v7879
          %v7944 = vpack.c.b16 %v7880, %v7880
          %v7945 = vpack.c.b16 %v7881, %v7881
          %v7946 = vpack.c.b16 %v7882, %v7882
          %v7947 = vpack.c.b16 %v7883, %v7883
          %v7948 = vpack.c.b16 %v7884, %v7884
          %v7949 = vpack.c.b16 %v7885, %v7885
          %v7950 = vpack.c.b16 %v7886, %v7886
          %v7951 = vpack.c.b16 %v7887, %v7887
          %v7952 = vpack.c.b16 %v7888, %v7888
          %v7953 = vpack.c.b16 %v7889, %v7889
          %v7954 = vpack.c.b16 %v7890, %v7890
          %v7955 = vpack.c.b16 %v7891, %v7891
          %v7956 = vpack.c.b16 %v7892, %v7892
          %v7957 = vpack.c.b16 %v7893, %v7893
          %v7958 = vpack.c.b16 %v7894, %v7894
          %v7959 = vpack.c.b16 %v7895, %v7895
          %v7960 = vpack.c.b16 %v7896, %v7896
          %v7961 = vpack.c.b16 %v7897, %v7897
          %v7962 = vpack.c.b16 %v7898, %v7898
          %v7963 = vpack.c.b16 %v7899, %v7899
          %v7964 = vpack.c.b16 %v7900, %v7900
          %v7965 = vpack.c.b16 %v7901, %v7901
          %v7966 = vpack.c.b16 %v7902, %v7902
          %v7967 = vpack.c.b16 %v7903, %v7903
          %v7968 = vpack.c.b16 %v7904, %v7904
          %v7969 = vpack.c.b16 %v7905, %v7905
          %v7970 = vpack.c.b16 %v7906, %v7906
          %v7971 = vpack.c.b16 %v7907, %v7907
          %v7972 = vpack.c.b16 %v7908, %v7908
          %v7973 = vpack.c.b16 %v7909, %v7909
          %v7974 = vpack.c.b16 %v7910, %v7910
          %v7975 = vpack.c.b16 %v7911, %v7911
          %v7976 = vpack.c.b16 %v7912, %v7912
          %v7977 = vpack.c.b16 %v7913, %v7913
          %v7978 = vpack.c.b16 %v7914, %v7914
          %v7979 = vpack.c.b16 %v7915, %v7915
          %v7980 = vpack.c.b16 %v7916, %v7916
          %v7981 = vpack.c.b16 %v7917, %v7917
          %v7982 = vpack.c.b16 %v7918, %v7918
          %v7983 = vpack.c.b16 %v7919, %v7919
          %v7984 = vpack.c.b16 %v7920, %v7920
          %v7985 = vpack.c.b16 %v7921, %v7921
          %v7986 = vpack.c.b16 %v7922, %v7922
          %v7987 = vpack.c.b16 %v7923, %v7923
          %v7988 = vpack.c.b16 %v7924, %v7924
          %v7989 = vpack.c.b16 %v7925, %v7925
          %v7990 = vpack.c.b16 %v7926, %v7926
          %8055 = vst [vmem:[%s1033] sm:$0xf] %v7927
          %8056 = vst [vmem:[%s1033 + $0x4] sm:$0xf] %v7928
          %8057 = vst [vmem:[%s1033 + $0x8] sm:$0xf] %v7929
          %8058 = vst [vmem:[%s1033 + $0xc] sm:$0xf] %v7930
          %8059 = vst [vmem:[%s1033 + $0x10] sm:$0xf] %v7931
          %8060 = vst [vmem:[%s1033 + $0x14] sm:$0xf] %v7932
          %8061 = vst [vmem:[%s1033 + $0x18] sm:$0xf] %v7933
          %8062 = vst [vmem:[%s1033 + $0x1c] sm:$0xf] %v7934
          %8063 = vst [vmem:[%s1033 + $0x20] sm:$0xf] %v7935
          %8064 = vst [vmem:[%s1033 + $0x24] sm:$0xf] %v7936
          %8065 = vst [vmem:[%s1033 + $0x28] sm:$0xf] %v7937
          %8066 = vst [vmem:[%s1033 + $0x2c] sm:$0xf] %v7938
          %8067 = vst [vmem:[%s1033 + $0x30] sm:$0xf] %v7939
          %8068 = vst [vmem:[%s1033 + $0x34] sm:$0xf] %v7940
          %8069 = vst [vmem:[%s1033 + $0x38] sm:$0xf] %v7941
          %8070 = vst [vmem:[%s1033 + $0x3c] sm:$0xf] %v7942
          %8071 = vst [vmem:[%s1033 + $0x40] sm:$0xf] %v7943
          %8072 = vst [vmem:[%s1033 + $0x44] sm:$0xf] %v7944
          %8073 = vst [vmem:[%s1033 + $0x48] sm:$0xf] %v7945
          %8074 = vst [vmem:[%s1033 + $0x4c] sm:$0xf] %v7946
          %8075 = vst [vmem:[%s1033 + $0x50] sm:$0xf] %v7947
          %8076 = vst [vmem:[%s1033 + $0x54] sm:$0xf] %v7948
          %8077 = vst [vmem:[%s1033 + $0x58] sm:$0xf] %v7949
          %8078 = vst [vmem:[%s1033 + $0x5c] sm:$0xf] %v7950
          %8079 = vst [vmem:[%s1033 + $0x60] sm:$0xf] %v7951
          %8080 = vst [vmem:[%s1033 + $0x64] sm:$0xf] %v7952
          %8081 = vst [vmem:[%s1033 + $0x68] sm:$0xf] %v7953
          %8082 = vst [vmem:[%s1033 + $0x6c] sm:$0xf] %v7954
          %8083 = vst [vmem:[%s1033 + $0x70] sm:$0xf] %v7955
          %8084 = vst [vmem:[%s1033 + $0x74] sm:$0xf] %v7956
          %8085 = vst [vmem:[%s1033 + $0x78] sm:$0xf] %v7957
          %8086 = vst [vmem:[%s1033 + $0x7c] sm:$0xf] %v7958
          %8087 = vst [vmem:[%s1033 + $0x80] sm:$0xf] %v7959
          %8088 = vst [vmem:[%s1033 + $0x84] sm:$0xf] %v7960
          %8089 = vst [vmem:[%s1033 + $0x88] sm:$0xf] %v7961
          %8090 = vst [vmem:[%s1033 + $0x8c] sm:$0xf] %v7962
          %8091 = vst [vmem:[%s1033 + $0x90] sm:$0xf] %v7963
          %8092 = vst [vmem:[%s1033 + $0x94] sm:$0xf] %v7964
          %8093 = vst [vmem:[%s1033 + $0x98] sm:$0xf] %v7965
          %8094 = vst [vmem:[%s1033 + $0x9c] sm:$0xf] %v7966
          %8095 = vst [vmem:[%s1033 + $0xa0] sm:$0xf] %v7967
          %8096 = vst [vmem:[%s1033 + $0xa4] sm:$0xf] %v7968
          %8097 = vst [vmem:[%s1033 + $0xa8] sm:$0xf] %v7969
          %8098 = vst [vmem:[%s1033 + $0xac] sm:$0xf] %v7970
          %8099 = vst [vmem:[%s1033 + $0xb0] sm:$0xf] %v7971
          %8100 = vst [vmem:[%s1033 + $0xb4] sm:$0xf] %v7972
          %8101 = vst [vmem:[%s1033 + $0xb8] sm:$0xf] %v7973
          %8102 = vst [vmem:[%s1033 + $0xbc] sm:$0xf] %v7974
          %8103 = vst [vmem:[%s1033 + $0xc0] sm:$0xf] %v7975
          %8104 = vst [vmem:[%s1033 + $0xc4] sm:$0xf] %v7976
          %8105 = vst [vmem:[%s1033 + $0xc8] sm:$0xf] %v7977
          %8106 = vst [vmem:[%s1033 + $0xcc] sm:$0xf] %v7978
          %8107 = vst [vmem:[%s1033 + $0xd0] sm:$0xf] %v7979
          %8108 = vst [vmem:[%s1033 + $0xd4] sm:$0xf] %v7980
          %8109 = vst [vmem:[%s1033 + $0xd8] sm:$0xf] %v7981
          %8110 = vst [vmem:[%s1033 + $0xdc] sm:$0xf] %v7982
          %8111 = vst [vmem:[%s1033 + $0xe0] sm:$0xf] %v7983
          %8112 = vst [vmem:[%s1033 + $0xe4] sm:$0xf] %v7984
          %8113 = vst [vmem:[%s1033 + $0xe8] sm:$0xf] %v7985
          %8114 = vst [vmem:[%s1033 + $0xec] sm:$0xf] %v7986
          %8115 = vst [vmem:[%s1033 + $0xf0] sm:$0xf] %v7987
          %8116 = vst [vmem:[%s1033 + $0xf4] sm:$0xf] %v7988
          %8117 = vst [vmem:[%s1033 + $0xf8] sm:$0xf] %v7989
          %8118 = vst [vmem:[%s1033 + $0xfc] sm:$0xf] %v7990
        $region81: #{astrous_forward.3} parent=68 // pred_fallthru
          _
        %s8119 = sand.u32 %s125, 1
        %s8120 = sand.u32 %s125, 1
        %s8121 = smul.addr %s8120, 256
        %s8122 = scalar_lea.vmem [#allocation4], %s8121
        // Predicated region
        $region82: #{astrous_forward.3} parent=68 // pred_check
          %p8123 = pneg %p135
        $region83: #{astrous_forward.3} parent=68 // pred_check_branch
          %8125 = sbr.rel (%p8123) target = $region85
        $region84: #{astrous_forward.3} parent=68 // pred_region
          %s8126 = smul.u32 64, %s19
          %s8127 = smul.addr %s8126, 2
          %s8128 = sadd.s32 %s20, %s8127
          %s8129 = smul.addr %s8128, 4
          %s8130 = scalar_lea.vmem %s3, %s8129
          // Predicated region
          $region86: #{astrous_forward.3} parent=84 // pred_check
            _
          $region87: #{astrous_forward.3} parent=84 // pred_check_branch
            %8132 = sbr.rel (0) target = $region89
          $region88: #{astrous_forward.3} parent=84 // pred_region
            // Predicated region
            $region90: #{astrous_forward.3} parent=88 // pred_check
              _
            $region91: #{astrous_forward.3} parent=88 // pred_check_branch
              %8134 = sbr.rel target = $region93
            $region92: #{astrous_forward.3} parent=88 // pred_region
              // Predicated region
              $region105: #{astrous_forward.3} parent=92 // pred_check
                _
              $region106: #{astrous_forward.3} parent=92 // pred_check_branch
                %8275 = sbr.rel (0) target = $region108
              $region107: #{astrous_forward.3} parent=92 // pred_region
                loop: start=0, step=1, limit=1
                $region109: #{astrous_forward.3} parent=107 // loop_pre_header
                  _
                $region110: #{astrous_forward.3} parent=107 // loop_header
                  %s8277 = sphi 0, %s8281
                  %p8278 = scmp.ge.s32.totalorder %s8277, 1
                  %s8282 = sphi %s8122, %s8122
                  %s8283 = sphi %s8130, %s8130
                $region111: #{astrous_forward.3} parent=107 // loop_header_branch
                  %8280 = sbr.rel (%p8278) target = $region115
                $region112: #{astrous_forward.3} parent=107 // loop_body
                  _
                $region113: #{astrous_forward.3} parent=107 // loop_footer
                  %s8281 = sadd.s32 1, %s8277
                $region114: #{astrous_forward.3} parent=107 // loop_footer_branch
                  %8276 = sbr.rel target = $region110
                $region115: #{astrous_forward.3} parent=107 // loop_exit
                  _
                loop: start=0, step=1, limit=1
                $region116: #{astrous_forward.3} parent=107 // loop_pre_header
                  _
                $region117: #{astrous_forward.3} parent=107 // loop_header
                  %s8286 = sphi 0, %s8290
                  %p8287 = scmp.ge.s32.totalorder %s8286, 1
                  %s8291 = sphi %s8122, %s8122
                  %s8292 = sphi %s8130, %s8130
                $region118: #{astrous_forward.3} parent=107 // loop_header_branch
                  %8289 = sbr.rel (%p8287) target = $region122
                $region119: #{astrous_forward.3} parent=107 // loop_body
                  %v8293 = vld [vmem:[%s8291] sm:$0xf]
                  %8294 = vst [vmem:[%s8292] sm:$0xf] %v8293
                  %v8295 = vld [vmem:[%s8291 + $0x4] sm:$0xf]
                  %8296 = vst [vmem:[%s8292 + $0x8] sm:$0xf] %v8295
                  %v8297 = vld [vmem:[%s8291 + $0x8] sm:$0xf]
                  %8298 = vst [vmem:[%s8292 + $0x10] sm:$0xf] %v8297
                  %v8299 = vld [vmem:[%s8291 + $0xc] sm:$0xf]
                  %8300 = vst [vmem:[%s8292 + $0x18] sm:$0xf] %v8299
                  %v8301 = vld [vmem:[%s8291 + $0x10] sm:$0xf]
                  %8302 = vst [vmem:[%s8292 + $0x20] sm:$0xf] %v8301
                  %v8303 = vld [vmem:[%s8291 + $0x14] sm:$0xf]
                  %8304 = vst [vmem:[%s8292 + $0x28] sm:$0xf] %v8303
                  %v8305 = vld [vmem:[%s8291 + $0x18] sm:$0xf]
                  %8306 = vst [vmem:[%s8292 + $0x30] sm:$0xf] %v8305
                  %v8307 = vld [vmem:[%s8291 + $0x1c] sm:$0xf]
                  %8308 = vst [vmem:[%s8292 + $0x38] sm:$0xf] %v8307
                  %v8309 = vld [vmem:[%s8291 + $0x20] sm:$0xf]
                  %8310 = vst [vmem:[%s8292 + $0x40] sm:$0xf] %v8309
                  %v8311 = vld [vmem:[%s8291 + $0x24] sm:$0xf]
                  %8312 = vst [vmem:[%s8292 + $0x48] sm:$0xf] %v8311
                  %v8313 = vld [vmem:[%s8291 + $0x28] sm:$0xf]
                  %8314 = vst [vmem:[%s8292 + $0x50] sm:$0xf] %v8313
                  %v8315 = vld [vmem:[%s8291 + $0x2c] sm:$0xf]
                  %8316 = vst [vmem:[%s8292 + $0x58] sm:$0xf] %v8315
                  %v8317 = vld [vmem:[%s8291 + $0x30] sm:$0xf]
                  %8318 = vst [vmem:[%s8292 + $0x60] sm:$0xf] %v8317
                  %v8319 = vld [vmem:[%s8291 + $0x34] sm:$0xf]
                  %8320 = vst [vmem:[%s8292 + $0x68] sm:$0xf] %v8319
                  %v8321 = vld [vmem:[%s8291 + $0x38] sm:$0xf]
                  %8322 = vst [vmem:[%s8292 + $0x70] sm:$0xf] %v8321
                  %v8323 = vld [vmem:[%s8291 + $0x3c] sm:$0xf]
                  %8324 = vst [vmem:[%s8292 + $0x78] sm:$0xf] %v8323
                  %v8325 = vld [vmem:[%s8291 + $0x40] sm:$0xf]
                  %8326 = vst [vmem:[%s8292 + $0x80] sm:$0xf] %v8325
                  %v8327 = vld [vmem:[%s8291 + $0x44] sm:$0xf]
                  %8328 = vst [vmem:[%s8292 + $0x88] sm:$0xf] %v8327
                  %v8329 = vld [vmem:[%s8291 + $0x48] sm:$0xf]
                  %8330 = vst [vmem:[%s8292 + $0x90] sm:$0xf] %v8329
                  %v8331 = vld [vmem:[%s8291 + $0x4c] sm:$0xf]
                  %8332 = vst [vmem:[%s8292 + $0x98] sm:$0xf] %v8331
                  %v8333 = vld [vmem:[%s8291 + $0x50] sm:$0xf]
                  %8334 = vst [vmem:[%s8292 + $0xa0] sm:$0xf] %v8333
                  %v8335 = vld [vmem:[%s8291 + $0x54] sm:$0xf]
                  %8336 = vst [vmem:[%s8292 + $0xa8] sm:$0xf] %v8335
                  %v8337 = vld [vmem:[%s8291 + $0x58] sm:$0xf]
                  %8338 = vst [vmem:[%s8292 + $0xb0] sm:$0xf] %v8337
                  %v8339 = vld [vmem:[%s8291 + $0x5c] sm:$0xf]
                  %8340 = vst [vmem:[%s8292 + $0xb8] sm:$0xf] %v8339
                  %v8341 = vld [vmem:[%s8291 + $0x60] sm:$0xf]
                  %8342 = vst [vmem:[%s8292 + $0xc0] sm:$0xf] %v8341
                  %v8343 = vld [vmem:[%s8291 + $0x64] sm:$0xf]
                  %8344 = vst [vmem:[%s8292 + $0xc8] sm:$0xf] %v8343
                  %v8345 = vld [vmem:[%s8291 + $0x68] sm:$0xf]
                  %8346 = vst [vmem:[%s8292 + $0xd0] sm:$0xf] %v8345
                  %v8347 = vld [vmem:[%s8291 + $0x6c] sm:$0xf]
                  %8348 = vst [vmem:[%s8292 + $0xd8] sm:$0xf] %v8347
                  %v8349 = vld [vmem:[%s8291 + $0x70] sm:$0xf]
                  %8350 = vst [vmem:[%s8292 + $0xe0] sm:$0xf] %v8349
                  %v8351 = vld [vmem:[%s8291 + $0x74] sm:$0xf]
                  %8352 = vst [vmem:[%s8292 + $0xe8] sm:$0xf] %v8351
                  %v8353 = vld [vmem:[%s8291 + $0x78] sm:$0xf]
                  %8354 = vst [vmem:[%s8292 + $0xf0] sm:$0xf] %v8353
                  %v8355 = vld [vmem:[%s8291 + $0x7c] sm:$0xf]
                  %8356 = vst [vmem:[%s8292 + $0xf8] sm:$0xf] %v8355
                  %v8357 = vld [vmem:[%s8291 + $0x80] sm:$0xf]
                  %8358 = vst [vmem:[%s8292 + $0x100] sm:$0xf] %v8357
                  %v8359 = vld [vmem:[%s8291 + $0x84] sm:$0xf]
                  %8360 = vst [vmem:[%s8292 + $0x108] sm:$0xf] %v8359
                  %v8361 = vld [vmem:[%s8291 + $0x88] sm:$0xf]
                  %8362 = vst [vmem:[%s8292 + $0x110] sm:$0xf] %v8361
                  %v8363 = vld [vmem:[%s8291 + $0x8c] sm:$0xf]
                  %8364 = vst [vmem:[%s8292 + $0x118] sm:$0xf] %v8363
                  %v8365 = vld [vmem:[%s8291 + $0x90] sm:$0xf]
                  %8366 = vst [vmem:[%s8292 + $0x120] sm:$0xf] %v8365
                  %v8367 = vld [vmem:[%s8291 + $0x94] sm:$0xf]
                  %8368 = vst [vmem:[%s8292 + $0x128] sm:$0xf] %v8367
                  %v8369 = vld [vmem:[%s8291 + $0x98] sm:$0xf]
                  %8370 = vst [vmem:[%s8292 + $0x130] sm:$0xf] %v8369
                  %v8371 = vld [vmem:[%s8291 + $0x9c] sm:$0xf]
                  %8372 = vst [vmem:[%s8292 + $0x138] sm:$0xf] %v8371
                  %v8373 = vld [vmem:[%s8291 + $0xa0] sm:$0xf]
                  %8374 = vst [vmem:[%s8292 + $0x140] sm:$0xf] %v8373
                  %v8375 = vld [vmem:[%s8291 + $0xa4] sm:$0xf]
                  %8376 = vst [vmem:[%s8292 + $0x148] sm:$0xf] %v8375
                  %v8377 = vld [vmem:[%s8291 + $0xa8] sm:$0xf]
                  %8378 = vst [vmem:[%s8292 + $0x150] sm:$0xf] %v8377
                  %v8379 = vld [vmem:[%s8291 + $0xac] sm:$0xf]
                  %8380 = vst [vmem:[%s8292 + $0x158] sm:$0xf] %v8379
                  %v8381 = vld [vmem:[%s8291 + $0xb0] sm:$0xf]
                  %8382 = vst [vmem:[%s8292 + $0x160] sm:$0xf] %v8381
                  %v8383 = vld [vmem:[%s8291 + $0xb4] sm:$0xf]
                  %8384 = vst [vmem:[%s8292 + $0x168] sm:$0xf] %v8383
                  %v8385 = vld [vmem:[%s8291 + $0xb8] sm:$0xf]
                  %8386 = vst [vmem:[%s8292 + $0x170] sm:$0xf] %v8385
                  %v8387 = vld [vmem:[%s8291 + $0xbc] sm:$0xf]
                  %8388 = vst [vmem:[%s8292 + $0x178] sm:$0xf] %v8387
                  %v8389 = vld [vmem:[%s8291 + $0xc0] sm:$0xf]
                  %8390 = vst [vmem:[%s8292 + $0x180] sm:$0xf] %v8389
                  %v8391 = vld [vmem:[%s8291 + $0xc4] sm:$0xf]
                  %8392 = vst [vmem:[%s8292 + $0x188] sm:$0xf] %v8391
                  %v8393 = vld [vmem:[%s8291 + $0xc8] sm:$0xf]
                  %8394 = vst [vmem:[%s8292 + $0x190] sm:$0xf] %v8393
                  %v8395 = vld [vmem:[%s8291 + $0xcc] sm:$0xf]
                  %8396 = vst [vmem:[%s8292 + $0x198] sm:$0xf] %v8395
                  %v8397 = vld [vmem:[%s8291 + $0xd0] sm:$0xf]
                  %8398 = vst [vmem:[%s8292 + $0x1a0] sm:$0xf] %v8397
                  %v8399 = vld [vmem:[%s8291 + $0xd4] sm:$0xf]
                  %8400 = vst [vmem:[%s8292 + $0x1a8] sm:$0xf] %v8399
                  %v8401 = vld [vmem:[%s8291 + $0xd8] sm:$0xf]
                  %8402 = vst [vmem:[%s8292 + $0x1b0] sm:$0xf] %v8401
                  %v8403 = vld [vmem:[%s8291 + $0xdc] sm:$0xf]
                  %8404 = vst [vmem:[%s8292 + $0x1b8] sm:$0xf] %v8403
                  %v8405 = vld [vmem:[%s8291 + $0xe0] sm:$0xf]
                  %8406 = vst [vmem:[%s8292 + $0x1c0] sm:$0xf] %v8405
                  %v8407 = vld [vmem:[%s8291 + $0xe4] sm:$0xf]
                  %8408 = vst [vmem:[%s8292 + $0x1c8] sm:$0xf] %v8407
                  %v8409 = vld [vmem:[%s8291 + $0xe8] sm:$0xf]
                  %8410 = vst [vmem:[%s8292 + $0x1d0] sm:$0xf] %v8409
                  %v8411 = vld [vmem:[%s8291 + $0xec] sm:$0xf]
                  %8412 = vst [vmem:[%s8292 + $0x1d8] sm:$0xf] %v8411
                  %v8413 = vld [vmem:[%s8291 + $0xf0] sm:$0xf]
                  %8414 = vst [vmem:[%s8292 + $0x1e0] sm:$0xf] %v8413
                  %v8415 = vld [vmem:[%s8291 + $0xf4] sm:$0xf]
                  %8416 = vst [vmem:[%s8292 + $0x1e8] sm:$0xf] %v8415
                  %v8417 = vld [vmem:[%s8291 + $0xf8] sm:$0xf]
                  %8418 = vst [vmem:[%s8292 + $0x1f0] sm:$0xf] %v8417
                  %v8419 = vld [vmem:[%s8291 + $0xfc] sm:$0xf]
                  %8420 = vst [vmem:[%s8292 + $0x1f8] sm:$0xf] %v8419
                $region120: #{astrous_forward.3} parent=107 // loop_footer
                  %s8290 = sadd.s32 1, %s8286
                $region121: #{astrous_forward.3} parent=107 // loop_footer_branch
                  %8285 = sbr.rel target = $region117
                $region122: #{astrous_forward.3} parent=107 // loop_exit
                  _
              $region108: #{astrous_forward.3} parent=92 // pred_fallthru
                _
            $region93: #{astrous_forward.3} parent=88 // pred_fallthru
              _
            // Predicated region
            $region94: #{astrous_forward.3} parent=88 // pred_check
              _
            $region95: #{astrous_forward.3} parent=88 // pred_check_branch
              %8136 = sbr.rel (0) target = $region97
            $region96: #{astrous_forward.3} parent=88 // pred_region
              loop: start=0, step=1, limit=1
              $region98: #{astrous_forward.3} parent=96 // loop_pre_header
                _
              $region99: #{astrous_forward.3} parent=96 // loop_header
                %s8139 = sphi 0, %s8143
                %p8140 = scmp.ge.s32.totalorder %s8139, 1
                %s8144 = sphi %s8122, %s8122
                %s8145 = sphi %s8130, %s8130
              $region100: #{astrous_forward.3} parent=96 // loop_header_branch
                %8142 = sbr.rel (%p8140) target = $region104
              $region101: #{astrous_forward.3} parent=96 // loop_body
                %v8146 = vld [vmem:[%s8144] sm:$0xf]
                %8147 = vst [vmem:[%s8145] sm:$0xf] %v8146
                %v8148 = vld [vmem:[%s8144 + $0x4] sm:$0xf]
                %8149 = vst [vmem:[%s8145 + $0x8] sm:$0xf] %v8148
                %v8150 = vld [vmem:[%s8144 + $0x8] sm:$0xf]
                %8151 = vst [vmem:[%s8145 + $0x10] sm:$0xf] %v8150
                %v8152 = vld [vmem:[%s8144 + $0xc] sm:$0xf]
                %8153 = vst [vmem:[%s8145 + $0x18] sm:$0xf] %v8152
                %v8154 = vld [vmem:[%s8144 + $0x10] sm:$0xf]
                %8155 = vst [vmem:[%s8145 + $0x20] sm:$0xf] %v8154
                %v8156 = vld [vmem:[%s8144 + $0x14] sm:$0xf]
                %8157 = vst [vmem:[%s8145 + $0x28] sm:$0xf] %v8156
                %v8158 = vld [vmem:[%s8144 + $0x18] sm:$0xf]
                %8159 = vst [vmem:[%s8145 + $0x30] sm:$0xf] %v8158
                %v8160 = vld [vmem:[%s8144 + $0x1c] sm:$0xf]
                %8161 = vst [vmem:[%s8145 + $0x38] sm:$0xf] %v8160
                %v8162 = vld [vmem:[%s8144 + $0x20] sm:$0xf]
                %8163 = vst [vmem:[%s8145 + $0x40] sm:$0xf] %v8162
                %v8164 = vld [vmem:[%s8144 + $0x24] sm:$0xf]
                %8165 = vst [vmem:[%s8145 + $0x48] sm:$0xf] %v8164
                %v8166 = vld [vmem:[%s8144 + $0x28] sm:$0xf]
                %8167 = vst [vmem:[%s8145 + $0x50] sm:$0xf] %v8166
                %v8168 = vld [vmem:[%s8144 + $0x2c] sm:$0xf]
                %8169 = vst [vmem:[%s8145 + $0x58] sm:$0xf] %v8168
                %v8170 = vld [vmem:[%s8144 + $0x30] sm:$0xf]
                %8171 = vst [vmem:[%s8145 + $0x60] sm:$0xf] %v8170
                %v8172 = vld [vmem:[%s8144 + $0x34] sm:$0xf]
                %8173 = vst [vmem:[%s8145 + $0x68] sm:$0xf] %v8172
                %v8174 = vld [vmem:[%s8144 + $0x38] sm:$0xf]
                %8175 = vst [vmem:[%s8145 + $0x70] sm:$0xf] %v8174
                %v8176 = vld [vmem:[%s8144 + $0x3c] sm:$0xf]
                %8177 = vst [vmem:[%s8145 + $0x78] sm:$0xf] %v8176
                %v8178 = vld [vmem:[%s8144 + $0x40] sm:$0xf]
                %8179 = vst [vmem:[%s8145 + $0x80] sm:$0xf] %v8178
                %v8180 = vld [vmem:[%s8144 + $0x44] sm:$0xf]
                %8181 = vst [vmem:[%s8145 + $0x88] sm:$0xf] %v8180
                %v8182 = vld [vmem:[%s8144 + $0x48] sm:$0xf]
                %8183 = vst [vmem:[%s8145 + $0x90] sm:$0xf] %v8182
                %v8184 = vld [vmem:[%s8144 + $0x4c] sm:$0xf]
                %8185 = vst [vmem:[%s8145 + $0x98] sm:$0xf] %v8184
                %v8186 = vld [vmem:[%s8144 + $0x50] sm:$0xf]
                %8187 = vst [vmem:[%s8145 + $0xa0] sm:$0xf] %v8186
                %v8188 = vld [vmem:[%s8144 + $0x54] sm:$0xf]
                %8189 = vst [vmem:[%s8145 + $0xa8] sm:$0xf] %v8188
                %v8190 = vld [vmem:[%s8144 + $0x58] sm:$0xf]
                %8191 = vst [vmem:[%s8145 + $0xb0] sm:$0xf] %v8190
                %v8192 = vld [vmem:[%s8144 + $0x5c] sm:$0xf]
                %8193 = vst [vmem:[%s8145 + $0xb8] sm:$0xf] %v8192
                %v8194 = vld [vmem:[%s8144 + $0x60] sm:$0xf]
                %8195 = vst [vmem:[%s8145 + $0xc0] sm:$0xf] %v8194
                %v8196 = vld [vmem:[%s8144 + $0x64] sm:$0xf]
                %8197 = vst [vmem:[%s8145 + $0xc8] sm:$0xf] %v8196
                %v8198 = vld [vmem:[%s8144 + $0x68] sm:$0xf]
                %8199 = vst [vmem:[%s8145 + $0xd0] sm:$0xf] %v8198
                %v8200 = vld [vmem:[%s8144 + $0x6c] sm:$0xf]
                %8201 = vst [vmem:[%s8145 + $0xd8] sm:$0xf] %v8200
                %v8202 = vld [vmem:[%s8144 + $0x70] sm:$0xf]
                %8203 = vst [vmem:[%s8145 + $0xe0] sm:$0xf] %v8202
                %v8204 = vld [vmem:[%s8144 + $0x74] sm:$0xf]
                %8205 = vst [vmem:[%s8145 + $0xe8] sm:$0xf] %v8204
                %v8206 = vld [vmem:[%s8144 + $0x78] sm:$0xf]
                %8207 = vst [vmem:[%s8145 + $0xf0] sm:$0xf] %v8206
                %v8208 = vld [vmem:[%s8144 + $0x7c] sm:$0xf]
                %8209 = vst [vmem:[%s8145 + $0xf8] sm:$0xf] %v8208
                %v8210 = vld [vmem:[%s8144 + $0x80] sm:$0xf]
                %8211 = vst [vmem:[%s8145 + $0x100] sm:$0xf] %v8210
                %v8212 = vld [vmem:[%s8144 + $0x84] sm:$0xf]
                %8213 = vst [vmem:[%s8145 + $0x108] sm:$0xf] %v8212
                %v8214 = vld [vmem:[%s8144 + $0x88] sm:$0xf]
                %8215 = vst [vmem:[%s8145 + $0x110] sm:$0xf] %v8214
                %v8216 = vld [vmem:[%s8144 + $0x8c] sm:$0xf]
                %8217 = vst [vmem:[%s8145 + $0x118] sm:$0xf] %v8216
                %v8218 = vld [vmem:[%s8144 + $0x90] sm:$0xf]
                %8219 = vst [vmem:[%s8145 + $0x120] sm:$0xf] %v8218
                %v8220 = vld [vmem:[%s8144 + $0x94] sm:$0xf]
                %8221 = vst [vmem:[%s8145 + $0x128] sm:$0xf] %v8220
                %v8222 = vld [vmem:[%s8144 + $0x98] sm:$0xf]
                %8223 = vst [vmem:[%s8145 + $0x130] sm:$0xf] %v8222
                %v8224 = vld [vmem:[%s8144 + $0x9c] sm:$0xf]
                %8225 = vst [vmem:[%s8145 + $0x138] sm:$0xf] %v8224
                %v8226 = vld [vmem:[%s8144 + $0xa0] sm:$0xf]
                %8227 = vst [vmem:[%s8145 + $0x140] sm:$0xf] %v8226
                %v8228 = vld [vmem:[%s8144 + $0xa4] sm:$0xf]
                %8229 = vst [vmem:[%s8145 + $0x148] sm:$0xf] %v8228
                %v8230 = vld [vmem:[%s8144 + $0xa8] sm:$0xf]
                %8231 = vst [vmem:[%s8145 + $0x150] sm:$0xf] %v8230
                %v8232 = vld [vmem:[%s8144 + $0xac] sm:$0xf]
                %8233 = vst [vmem:[%s8145 + $0x158] sm:$0xf] %v8232
                %v8234 = vld [vmem:[%s8144 + $0xb0] sm:$0xf]
                %8235 = vst [vmem:[%s8145 + $0x160] sm:$0xf] %v8234
                %v8236 = vld [vmem:[%s8144 + $0xb4] sm:$0xf]
                %8237 = vst [vmem:[%s8145 + $0x168] sm:$0xf] %v8236
                %v8238 = vld [vmem:[%s8144 + $0xb8] sm:$0xf]
                %8239 = vst [vmem:[%s8145 + $0x170] sm:$0xf] %v8238
                %v8240 = vld [vmem:[%s8144 + $0xbc] sm:$0xf]
                %8241 = vst [vmem:[%s8145 + $0x178] sm:$0xf] %v8240
                %v8242 = vld [vmem:[%s8144 + $0xc0] sm:$0xf]
                %8243 = vst [vmem:[%s8145 + $0x180] sm:$0xf] %v8242
                %v8244 = vld [vmem:[%s8144 + $0xc4] sm:$0xf]
                %8245 = vst [vmem:[%s8145 + $0x188] sm:$0xf] %v8244
                %v8246 = vld [vmem:[%s8144 + $0xc8] sm:$0xf]
                %8247 = vst [vmem:[%s8145 + $0x190] sm:$0xf] %v8246
                %v8248 = vld [vmem:[%s8144 + $0xcc] sm:$0xf]
                %8249 = vst [vmem:[%s8145 + $0x198] sm:$0xf] %v8248
                %v8250 = vld [vmem:[%s8144 + $0xd0] sm:$0xf]
                %8251 = vst [vmem:[%s8145 + $0x1a0] sm:$0xf] %v8250
                %v8252 = vld [vmem:[%s8144 + $0xd4] sm:$0xf]
                %8253 = vst [vmem:[%s8145 + $0x1a8] sm:$0xf] %v8252
                %v8254 = vld [vmem:[%s8144 + $0xd8] sm:$0xf]
                %8255 = vst [vmem:[%s8145 + $0x1b0] sm:$0xf] %v8254
                %v8256 = vld [vmem:[%s8144 + $0xdc] sm:$0xf]
                %8257 = vst [vmem:[%s8145 + $0x1b8] sm:$0xf] %v8256
                %v8258 = vld [vmem:[%s8144 + $0xe0] sm:$0xf]
                %8259 = vst [vmem:[%s8145 + $0x1c0] sm:$0xf] %v8258
                %v8260 = vld [vmem:[%s8144 + $0xe4] sm:$0xf]
                %8261 = vst [vmem:[%s8145 + $0x1c8] sm:$0xf] %v8260
                %v8262 = vld [vmem:[%s8144 + $0xe8] sm:$0xf]
                %8263 = vst [vmem:[%s8145 + $0x1d0] sm:$0xf] %v8262
                %v8264 = vld [vmem:[%s8144 + $0xec] sm:$0xf]
                %8265 = vst [vmem:[%s8145 + $0x1d8] sm:$0xf] %v8264
                %v8266 = vld [vmem:[%s8144 + $0xf0] sm:$0xf]
                %8267 = vst [vmem:[%s8145 + $0x1e0] sm:$0xf] %v8266
                %v8268 = vld [vmem:[%s8144 + $0xf4] sm:$0xf]
                %8269 = vst [vmem:[%s8145 + $0x1e8] sm:$0xf] %v8268
                %v8270 = vld [vmem:[%s8144 + $0xf8] sm:$0xf]
                %8271 = vst [vmem:[%s8145 + $0x1f0] sm:$0xf] %v8270
                %v8272 = vld [vmem:[%s8144 + $0xfc] sm:$0xf]
                %8273 = vst [vmem:[%s8145 + $0x1f8] sm:$0xf] %v8272
              $region102: #{astrous_forward.3} parent=96 // loop_footer
                %s8143 = sadd.s32 1, %s8139
              $region103: #{astrous_forward.3} parent=96 // loop_footer_branch
                %8138 = sbr.rel target = $region99
              $region104: #{astrous_forward.3} parent=96 // loop_exit
                _
            $region97: #{astrous_forward.3} parent=88 // pred_fallthru
              _
          $region89: #{astrous_forward.3} parent=84 // pred_fallthru
            _
          %8421 = vnop
        $region85: #{astrous_forward.3} parent=68 // pred_fallthru
          _
      $region69: #{astrous_forward.3} parent=5 // pred_fallthru
        _
      %p8422 = scmp.le.s32.totalorder 2, %s9
      // Predicated region
      $region123: #{astrous_forward.3} parent=5 // pred_check
        %p8423 = pneg %p8422
      $region124: #{astrous_forward.3} parent=5 // pred_check_branch
        %8425 = sbr.rel (%p8423) target = $region126
      $region125: #{astrous_forward.3} parent=5 // pred_region
        %s8426 = ssub.s32 %s9, 2
        // Predicated region
        $region127: #{astrous_forward.3} parent=125 // pred_check
          %p8427 = pneg %p141
        $region128: #{astrous_forward.3} parent=125 // pred_check_branch
          %8429 = sbr.rel (%p8427) target = $region130
        $region129: #{astrous_forward.3} parent=125 // pred_region
          %s8430 = sand.u32 %s126, 1
          %s8431 = sand.u32 %s126, 1
          %s8432 = smul.addr %s8431, 256
          %s8433 = scalar_lea.vmem [#allocation4], %s8432
        $region130: #{astrous_forward.3} parent=125 // pred_fallthru
          _
      $region126: #{astrous_forward.3} parent=5 // pred_fallthru
        _
    $region6: #{astrous_forward.3} parent=1 // loop_footer
      %s13 = sadd.s32 1, %s9
    $region7: #{astrous_forward.3} parent=1 // loop_footer_branch
      %8 = sbr.rel target = $region3
    $region8: #{astrous_forward.3} parent=1 // loop_exit
      _

</llo_original>
